<compile_context>
chip_gen: v7x
topology: tpu7x:2x2x1
jax: 0.10.0
libtpu: 0.0.40
codegen_flags: <defaults>
</compile_context>

<pallas_src>
import functools

import jax
import jax.numpy as jnp
from jax.experimental import pallas as pl
from jax.experimental.pallas import tpu as pltpu

_HIGHEST = jax.lax.Precision.HIGHEST   # used only by the pure-JAX reference

_KS = 5              # depthwise kernel size
_PAD = _KS // 2      # 'same' padding
_BASE = 8            # sublane-aligned top padding (rows) inside the depthwise halo scratch


def _silu(x):
    # x * sigmoid(x); the reciprocal goes to the EUP (approx) instead of a VPU divide.
    return x * pl.reciprocal(1.0 + jnp.exp(-x), approx=True)


def _fill_halo_scratch(pbuf_ref, img, h, w):
    """Zero only the halo rows (interior is fully overwritten) and store the image.

    pbuf_ref: ((h + 4) * w + 2 * _BASE, c) VMEM scratch, image row-major at
              rows [_BASE + 2*w, _BASE + (h + 2) * w).
    """
    c = pbuf_ref.shape[-1]
    top = _BASE + 2 * w                       # first image row
    bot = _BASE + (h + 2) * w                 # one past the last image row
    tail = pbuf_ref.shape[0] - bot
    pbuf_ref[0:top, :] = jnp.zeros((top, c), jnp.float32)
    pbuf_ref[bot:bot + tail, :] = jnp.zeros((tail, c), jnp.float32)
    pbuf_ref[top:bot, :] = img


def _dw5x5_flat(pbuf_ref, wd, col_mask, h, w):
    """5x5 stride-1 'same' depthwise conv on a row-flattened zero-halo scratch.

    wd:       (25, c) f32 tap weights (dy-major).
    col_mask: (h*w, 5) f32; col_mask[:, dx] == 0 where tap column dx-2 leaves the image.
    Returns (h*w, c) f32.
    """
    hw = h * w
    c = wd.shape[-1]
    acc = jnp.zeros((hw, c), jnp.float32)
    for dx in range(_KS):
        # One sublane-shifted slab read per horizontal tap; the 5 vertical taps below are
        # sub-slices at multiples of w (exact vreg subsets when w % 8 == 0).
        start = _BASE + dx - _PAD
        ext = pbuf_ref[start:start + (h + 2 * _PAD) * w, :]          # ((h+4)*w, c)
        part = jnp.zeros((hw, c), jnp.float32)
        for dy in range(_KS):
            tap = dy * _KS + dx
            part = part + ext[dy * w:dy * w + hw, :] * wd[tap:tap + 1, :]
        if dx == _PAD:
            acc = acc + part                   # centre column never wraps -> no mask needed
        else:
            acc = acc + part * col_mask[:, dx:dx + 1]
    return acc


def _ghost_bottleneck_kernel(x_ref, mask_ref,
                             wA1_ref, wdA2_ref, wB1a_ref, wB1b_ref, wdB2_ref,
                             sA1_ref, bA1_ref, sA2_ref, bA2_ref,
                             sB1_ref, bB1_ref, sB2_ref, bB2_ref,
                             o_ref, padA_ref, padB_ref, *, h, w):
    x = x_ref[0].astype(jnp.float32)                     # (H*W, C1), channels on lanes
    col_mask = mask_ref[...]                             # (H*W, 5)

    # GhostConvA.cv1 : 1x1 conv + BN + SiLU   (MXU matmul, default precision)
    y1 = jnp.dot(x, wA1_ref[...], preferred_element_type=jnp.float32)
    y1 = _silu(y1 * sA1_ref[...] + bA1_ref[...])         # (H*W, Ca)

    # GhostConvA.cv2 : 5x5 depthwise conv + BN + SiLU   (VPU, VMEM-resident)
    _fill_halo_scratch(padA_ref, y1, h, w)
    y2 = _dw5x5_flat(padA_ref, wdA2_ref[...], col_mask, h, w)
    y2 = _silu(y2 * sA2_ref[...] + bA2_ref[...])         # (H*W, Ca)

    # GhostConvB.cv1 : 1x1 conv over concat([y1, y2], C) via split weights + BN (no act)
    z1 = (jnp.dot(y1, wB1a_ref[...], preferred_element_type=jnp.float32)
          + jnp.dot(y2, wB1b_ref[...], preferred_element_type=jnp.float32))
    z1 = z1 * sB1_ref[...] + bB1_ref[...]                # (H*W, Cb)

    # GhostConvB.cv2 : 5x5 depthwise conv + BN (no act)
    _fill_halo_scratch(padB_ref, z1, h, w)
    z2 = _dw5x5_flat(padB_ref, wdB2_ref[...], col_mask, h, w)
    z2 = z2 * sB2_ref[...] + bB2_ref[...]                # (H*W, Cb)

    # Ghost concat + identity shortcut (s == 1, c1 == c2), fused into the single output store.
    out = jnp.concatenate([z1, z2], axis=-1) + x         # (H*W, C2)
    o_ref[0] = out.astype(o_ref.dtype)


def ghost_bottleneck_forward(x_nchw, p):
    """GhostBottleneck(c1, c2, k=3, s=1) forward; NCHW in / NCHW out (inference BN)."""
    n, c1, h, w = x_nchw.shape
    ca = p["wA1"].shape[1]          # first GhostConv hidden width  (= c2 // 4)
    cb = p["wB1"].shape[1]          # second GhostConv hidden width (= c2 // 2)
    c2 = 2 * cb
    assert c1 == c2, "s == 1 identity shortcut requires c1 == c2"
    # TODO(synk): s == 2 branch (stride-2 DWConv main path + DWConv/1x1 shortcut) not implemented.
    hw = h * w

    # Channels-last, pixels row-major (free-ish XLA boundary transform).
    x2d = jnp.transpose(x_nchw, (0, 2, 3, 1)).reshape(n, hw, c1)

    # Per-column validity masks for the 5 horizontal depthwise taps (constant-folded by XLA).
    col = jnp.arange(hw, dtype=jnp.int32) % w
    col_mask = jnp.stack(
        [((col + dx - _PAD) >= 0) & ((col + dx - _PAD) < w) for dx in range(_KS)],
        axis=1).astype(jnp.float32)                      # (H*W, 5)

    pad_rows = (h + 2 * _PAD) * w + 2 * _BASE            # flattened zero-halo scratch rows
    wB1a, wB1b = p["wB1"][:ca], p["wB1"][ca:]

    img3d = lambda i: (i, 0, 0)
    full2d = lambda i: (0, 0)

    inputs = (x2d, col_mask, p["wA1"], p["wdA2"], wB1a, wB1b, p["wdB2"],
              p["sA1"], p["bA1"], p["sA2"], p["bA2"],
              p["sB1"], p["bB1"], p["sB2"], p["bB2"])
    in_specs = ([pl.BlockSpec((1, hw, c1), img3d)]
                + [pl.BlockSpec(a.shape, full2d) for a in inputs[1:]])

    out2d = pl.pallas_call(
        functools.partial(_ghost_bottleneck_kernel, h=h, w=w),
        out_shape=jax.ShapeDtypeStruct((n, hw, c2), x_nchw.dtype),
        grid=(n,),
        in_specs=in_specs,
        out_specs=pl.BlockSpec((1, hw, c2), img3d),
        scratch_shapes=[pltpu.VMEM((pad_rows, ca), jnp.float32),
                        pltpu.VMEM((pad_rows, cb), jnp.float32)],
        compiler_params=pltpu.CompilerParams(dimension_semantics=("parallel",)),
    )(*inputs)

    return jnp.transpose(out2d.reshape(n, h, w, c2), (0, 3, 1, 2))


# ------------------------------ pure-JAX reference (NCHW) ------------------------------

def _fold_bn(gamma, beta, mean, var, eps=1e-5):
    s = gamma / jnp.sqrt(var + eps)
    return s, beta - mean * s


def _conv_nchw(x, w_oihw, stride, pad, groups):
    return jax.lax.conv_general_dilated(
        x, w_oihw, window_strides=(stride, stride),
        padding=[(pad, pad), (pad, pad)],
        dimension_numbers=("NCHW", "OIHW", "NCHW"),
        feature_group_count=groups, precision=_HIGHEST)


def ghost_bottleneck_ref(x, raw):
    def conv_bn(inp, w, stride, pad, groups, bn, act):
        y = _conv_nchw(inp, w, stride, pad, groups)
        s, b = _fold_bn(*bn)
        y = y * s[None, :, None, None] + b[None, :, None, None]
        return jax.nn.silu(y) if act else y

    y1 = conv_bn(x, raw["A1_w"], 1, 0, 1, raw["A1_bn"], True)
    y2 = conv_bn(y1, raw["A2_w"], 1, 2, raw["A2_w"].shape[0], raw["A2_bn"], True)
    hcat = jnp.concatenate([y1, y2], axis=1)
    z1 = conv_bn(hcat, raw["B1_w"], 1, 0, 1, raw["B1_bn"], False)
    z2 = conv_bn(z1, raw["B2_w"], 1, 2, raw["B2_w"].shape[0], raw["B2_bn"], False)
    return jnp.concatenate([z1, z2], axis=1) + x


# ------------------------------------ parameters ------------------------------------

def make_params(key, c1, c2):
    c_mid = c2 // 2
    ca, cb = c_mid // 2, c2 // 2
    ks = jax.random.split(key, 8)

    def nrm(k, shape, scale=0.3):
        return jax.random.normal(k, shape, jnp.float32) * scale

    def bn(k, c):
        k1, k2, k3, k4 = jax.random.split(k, 4)
        return (jax.random.uniform(k1, (c,), jnp.float32, 0.5, 1.5),   # gamma
                nrm(k2, (c,), 0.1),                                    # beta
                nrm(k3, (c,), 0.1),                                    # running_mean
                jax.random.uniform(k4, (c,), jnp.float32, 0.5, 1.5))   # running_var

    raw = {
        "A1_w": nrm(ks[0], (ca, c1, 1, 1)),    "A1_bn": bn(ks[1], ca),   # GhostConvA.cv1 (1x1)
        "A2_w": nrm(ks[2], (ca, 1, 5, 5)),     "A2_bn": bn(ks[3], ca),   # GhostConvA.cv2 (5x5 dw)
        "B1_w": nrm(ks[4], (cb, c_mid, 1, 1)), "B1_bn": bn(ks[5], cb),   # GhostConvB.cv1 (1x1)
        "B2_w": nrm(ks[6], (cb, 1, 5, 5)),     "B2_bn": bn(ks[7], cb),   # GhostConvB.cv2 (5x5 dw)
    }

    sA1, bA1 = _fold_bn(*raw["A1_bn"]); sA2, bA2 = _fold_bn(*raw["A2_bn"])
    sB1, bB1 = _fold_bn(*raw["B1_bn"]); sB2, bB2 = _fold_bn(*raw["B2_bn"])
    kp = {
        "wA1": jnp.transpose(raw["A1_w"][:, :, 0, 0], (1, 0)),                      # (C1, Ca)
        "sA1": sA1.reshape(1, ca), "bA1": bA1.reshape(1, ca),
        "wdA2": jnp.transpose(raw["A2_w"][:, 0, :, :], (1, 2, 0)).reshape(25, ca),  # (25, Ca)
        "sA2": sA2.reshape(1, ca), "bA2": bA2.reshape(1, ca),
        "wB1": jnp.transpose(raw["B1_w"][:, :, 0, 0], (1, 0)),                      # (c_mid, Cb)
        "sB1": sB1.reshape(1, cb), "bB1": bB1.reshape(1, cb),
        "wdB2": jnp.transpose(raw["B2_w"][:, 0, :, :], (1, 2, 0)).reshape(25, cb),  # (25, Cb)
        "sB2": sB2.reshape(1, cb), "bB2": bB2.reshape(1, cb),
    }
    return raw, kp


if __name__ == "__main__":
    key = jax.random.PRNGKey(0)
    k_x, k_p = jax.random.split(key)

    N, C1, H, W = 2, 16, 16, 16
    C2 = 16                       # c1 == c2 so the s == 1 identity shortcut is valid
    x = jax.random.normal(k_x, (N, C1, H, W), jnp.float32)
    raw, kp = make_params(k_p, C1, C2)

    out = jax.jit(ghost_bottleneck_forward)(x, kp)
    out = jax.block_until_ready(out)

    ref = ghost_bottleneck_ref(x, raw)
    assert out.shape == (N, C2, H, W) and out.dtype == x.dtype
    max_err = float(jnp.max(jnp.abs(out - ref)))
    # Default (single bf16 pass) MXU precision + EUP approx reciprocal in SiLU: slightly
    # looser than the old precision=HIGHEST kernel, still tight for an inference block.
    assert max_err < 5e-2, f"mismatch vs reference, max abs err = {max_err}"

    print("KERNEL_OK")
</pallas_src>

<mosaic_0001>
module attributes {stable_mosaic.version = 11 : i64} {
  func.func @_ghost_bottleneck_kernel(%arg0: i32, %arg1: memref<1x256x16xf32, #tpu.memory_space<vmem>>, %arg2: memref<256x5xf32, #tpu.memory_space<vmem>>, %arg3: memref<16x4xf32, #tpu.memory_space<vmem>>, %arg4: memref<25x4xf32, #tpu.memory_space<vmem>>, %arg5: memref<4x8xf32, #tpu.memory_space<vmem>>, %arg6: memref<4x8xf32, #tpu.memory_space<vmem>>, %arg7: memref<25x8xf32, #tpu.memory_space<vmem>>, %arg8: memref<1x4xf32, #tpu.memory_space<vmem>>, %arg9: memref<1x4xf32, #tpu.memory_space<vmem>>, %arg10: memref<1x4xf32, #tpu.memory_space<vmem>>, %arg11: memref<1x4xf32, #tpu.memory_space<vmem>>, %arg12: memref<1x8xf32, #tpu.memory_space<vmem>>, %arg13: memref<1x8xf32, #tpu.memory_space<vmem>>, %arg14: memref<1x8xf32, #tpu.memory_space<vmem>>, %arg15: memref<1x8xf32, #tpu.memory_space<vmem>>, %arg16: memref<1x256x16xf32, #tpu.memory_space<vmem>>, %arg17: memref<336x4xf32, #tpu.memory_space<vmem>>, %arg18: memref<336x8xf32, #tpu.memory_space<vmem>>) attributes {dimension_semantics = [#tpu.dimension_semantics<parallel>], iteration_bounds = array<i64: 2>, scalar_prefetch = 0 : i64, scratch_operands = 2 : i64, tpu.core_type = #tpu.core_type<tc>, window_params = [{transform_indices = @transform_0, window_bounds = array<i64: 1, 256, 16>}, {pipeline_mode = #tpu.pipeline_mode<synchronous>, transform_indices = @transform_1, window_bounds = array<i64: 256, 5>}, {pipeline_mode = #tpu.pipeline_mode<synchronous>, transform_indices = @transform_2, window_bounds = array<i64: 16, 4>}, {pipeline_mode = #tpu.pipeline_mode<synchronous>, transform_indices = @transform_3, window_bounds = array<i64: 25, 4>}, {pipeline_mode = #tpu.pipeline_mode<synchronous>, transform_indices = @transform_4, window_bounds = array<i64: 4, 8>}, {pipeline_mode = #tpu.pipeline_mode<synchronous>, transform_indices = @transform_5, window_bounds = array<i64: 4, 8>}, {pipeline_mode = #tpu.pipeline_mode<synchronous>, transform_indices = @transform_6, window_bounds = array<i64: 25, 8>}, {pipeline_mode = #tpu.pipeline_mode<synchronous>, transform_indices = @transform_7, window_bounds = array<i64: 1, 4>}, {pipeline_mode = #tpu.pipeline_mode<synchronous>, transform_indices = @transform_8, window_bounds = array<i64: 1, 4>}, {pipeline_mode = #tpu.pipeline_mode<synchronous>, transform_indices = @transform_9, window_bounds = array<i64: 1, 4>}, {pipeline_mode = #tpu.pipeline_mode<synchronous>, transform_indices = @transform_10, window_bounds = array<i64: 1, 4>}, {pipeline_mode = #tpu.pipeline_mode<synchronous>, transform_indices = @transform_11, window_bounds = array<i64: 1, 8>}, {pipeline_mode = #tpu.pipeline_mode<synchronous>, transform_indices = @transform_12, window_bounds = array<i64: 1, 8>}, {pipeline_mode = #tpu.pipeline_mode<synchronous>, transform_indices = @transform_13, window_bounds = array<i64: 1, 8>}, {pipeline_mode = #tpu.pipeline_mode<synchronous>, transform_indices = @transform_14, window_bounds = array<i64: 1, 8>}, {transform_indices = @transform_15, window_bounds = array<i64: 1, 256, 16>}]} {
    %c0 = arith.constant 0 : index
    %c0_0 = arith.constant 0 : index
    %c0_1 = arith.constant 0 : index
    %0 = vector.load %arg1[%c0, %c0_0, %c0_1] : memref<1x256x16xf32, #tpu.memory_space<vmem>>, vector<1x256x16xf32>
    %1 = vector.shape_cast %0 : vector<1x256x16xf32> to vector<256x16xf32>
    %c0_2 = arith.constant 0 : index
    %c0_3 = arith.constant 0 : index
    %2 = vector.load %arg2[%c0_2, %c0_3] : memref<256x5xf32, #tpu.memory_space<vmem>>, vector<256x5xf32>
    %c0_4 = arith.constant 0 : index
    %c0_5 = arith.constant 0 : index
    %3 = vector.load %arg3[%c0_4, %c0_5] : memref<16x4xf32, #tpu.memory_space<vmem>>, vector<16x4xf32>
    %cst = arith.constant dense<0.000000e+00> : vector<256x4xf32>
    %4 = tpu.matmul %1, %3, %cst {dimension_numbers = #tpu.dot_dimension_numbers<[1], [0], [0], [1], [0, 0, 1, 1], [], []>} : vector<256x16xf32>, vector<16x4xf32>, vector<256x4xf32> -> vector<256x4xf32>
    %c0_6 = arith.constant 0 : index
    %c0_7 = arith.constant 0 : index
    %5 = vector.load %arg8[%c0_6, %c0_7] : memref<1x4xf32, #tpu.memory_space<vmem>>, vector<1x4xf32>
    %6 = vector.broadcast %5 : vector<1x4xf32> to vector<256x4xf32>
    %7 = arith.mulf %4, %6 : vector<256x4xf32>
    %c0_8 = arith.constant 0 : index
    %c0_9 = arith.constant 0 : index
    %8 = vector.load %arg9[%c0_8, %c0_9] : memref<1x4xf32, #tpu.memory_space<vmem>>, vector<1x4xf32>
    %9 = vector.broadcast %8 : vector<1x4xf32> to vector<256x4xf32>
    %10 = arith.addf %7, %9 : vector<256x4xf32>
    %cst_10 = arith.constant 0.000000e+00 : f32
    %11 = vector.broadcast %cst_10 : f32 to vector<256x4xf32>
    %12 = arith.subf %11, %10 : vector<256x4xf32>
    %13 = math.exp %12 : vector<256x4xf32>
    %cst_11 = arith.constant 1.000000e+00 : f32
    %14 = vector.broadcast %cst_11 : f32 to vector<256x4xf32>
    %15 = arith.addf %14, %13 : vector<256x4xf32>
    %16 = tpu.reciprocal %15 {approx = true} : vector<256x4xf32> -> vector<256x4xf32>
    %17 = arith.mulf %10, %16 : vector<256x4xf32>
    %cst_12 = arith.constant 0.000000e+00 : f32
    %18 = vector.broadcast %cst_12 : f32 to vector<40x4xf32>
    %c0_13 = arith.constant 0 : index
    %c0_14 = arith.constant 0 : index
    %19 = vector.load %arg17[%c0_13, %c0_14] : memref<336x4xf32, #tpu.memory_space<vmem>>, vector<40x4xf32>
    tpu.vector_store %arg17[%c0_13, %c0_14], %18 {strides = array<i32>} : memref<336x4xf32, #tpu.memory_space<vmem>>, vector<40x4xf32>,
    %cst_15 = arith.constant 0.000000e+00 : f32
    %20 = vector.broadcast %cst_15 : f32 to vector<40x4xf32>
    %c296 = arith.constant 296 : index
    %c0_16 = arith.constant 0 : index
    %21 = vector.load %arg17[%c296, %c0_16] : memref<336x4xf32, #tpu.memory_space<vmem>>, vector<40x4xf32>
    tpu.vector_store %arg17[%c296, %c0_16], %20 {strides = array<i32>} : memref<336x4xf32, #tpu.memory_space<vmem>>, vector<40x4xf32>,
    %c40 = arith.constant 40 : index
    %c0_17 = arith.constant 0 : index
    %22 = vector.load %arg17[%c40, %c0_17] : memref<336x4xf32, #tpu.memory_space<vmem>>, vector<256x4xf32>
    tpu.vector_store %arg17[%c40, %c0_17], %17 {strides = array<i32>} : memref<336x4xf32, #tpu.memory_space<vmem>>, vector<256x4xf32>,
    %c0_18 = arith.constant 0 : index
    %c0_19 = arith.constant 0 : index
    %23 = vector.load %arg4[%c0_18, %c0_19] : memref<25x4xf32, #tpu.memory_space<vmem>>, vector<25x4xf32>
    %cst_20 = arith.constant 0.000000e+00 : f32
    %24 = vector.broadcast %cst_20 : f32 to vector<256x4xf32>
    %c6 = arith.constant 6 : index
    %c0_21 = arith.constant 0 : index
    %25 = vector.load %arg17[%c6, %c0_21] : memref<336x4xf32, #tpu.memory_space<vmem>>, vector<320x4xf32>
    %cst_22 = arith.constant 0.000000e+00 : f32
    %26 = vector.broadcast %cst_22 : f32 to vector<256x4xf32>
    %27 = vector.extract_strided_slice %25 {offsets = [0, 0], sizes = [256, 4], strides = [1, 1]} : vector<320x4xf32> to vector<256x4xf32>
    %28 = vector.extract_strided_slice %23 {offsets = [0, 0], sizes = [1, 4], strides = [1, 1]} : vector<25x4xf32> to vector<1x4xf32>
    %29 = vector.broadcast %28 : vector<1x4xf32> to vector<256x4xf32>
    %30 = arith.mulf %27, %29 : vector<256x4xf32>
    %31 = arith.addf %26, %30 : vector<256x4xf32>
    %32 = vector.extract_strided_slice %25 {offsets = [16, 0], sizes = [256, 4], strides = [1, 1]} : vector<320x4xf32> to vector<256x4xf32>
    %33 = vector.extract_strided_slice %23 {offsets = [5, 0], sizes = [1, 4], strides = [1, 1]} : vector<25x4xf32> to vector<1x4xf32>
    %34 = vector.broadcast %33 : vector<1x4xf32> to vector<256x4xf32>
    %35 = arith.mulf %32, %34 : vector<256x4xf32>
    %36 = arith.addf %31, %35 : vector<256x4xf32>
    %37 = vector.extract_strided_slice %25 {offsets = [32, 0], sizes = [256, 4], strides = [1, 1]} : vector<320x4xf32> to vector<256x4xf32>
    %38 = vector.extract_strided_slice %23 {offsets = [10, 0], sizes = [1, 4], strides = [1, 1]} : vector<25x4xf32> to vector<1x4xf32>
    %39 = vector.broadcast %38 : vector<1x4xf32> to vector<256x4xf32>
    %40 = arith.mulf %37, %39 : vector<256x4xf32>
    %41 = arith.addf %36, %40 : vector<256x4xf32>
    %42 = vector.extract_strided_slice %25 {offsets = [48, 0], sizes = [256, 4], strides = [1, 1]} : vector<320x4xf32> to vector<256x4xf32>
    %43 = vector.extract_strided_slice %23 {offsets = [15, 0], sizes = [1, 4], strides = [1, 1]} : vector<25x4xf32> to vector<1x4xf32>
    %44 = vector.broadcast %43 : vector<1x4xf32> to vector<256x4xf32>
    %45 = arith.mulf %42, %44 : vector<256x4xf32>
    %46 = arith.addf %41, %45 : vector<256x4xf32>
    %47 = vector.extract_strided_slice %25 {offsets = [64, 0], sizes = [256, 4], strides = [1, 1]} : vector<320x4xf32> to vector<256x4xf32>
    %48 = vector.extract_strided_slice %23 {offsets = [20, 0], sizes = [1, 4], strides = [1, 1]} : vector<25x4xf32> to vector<1x4xf32>
    %49 = vector.broadcast %48 : vector<1x4xf32> to vector<256x4xf32>
    %50 = arith.mulf %47, %49 : vector<256x4xf32>
    %51 = arith.addf %46, %50 : vector<256x4xf32>
    %52 = vector.extract_strided_slice %2 {offsets = [0, 0], sizes = [256, 1], strides = [1, 1]} : vector<256x5xf32> to vector<256x1xf32>
    %53 = vector.broadcast %52 : vector<256x1xf32> to vector<256x4xf32>
    %54 = arith.mulf %51, %53 : vector<256x4xf32>
    %55 = arith.addf %24, %54 : vector<256x4xf32>
    %c7 = arith.constant 7 : index
    %c0_23 = arith.constant 0 : index
    %56 = vector.load %arg17[%c7, %c0_23] : memref<336x4xf32, #tpu.memory_space<vmem>>, vector<320x4xf32>
    %cst_24 = arith.constant 0.000000e+00 : f32
    %57 = vector.broadcast %cst_24 : f32 to vector<256x4xf32>
    %58 = vector.extract_strided_slice %56 {offsets = [0, 0], sizes = [256, 4], strides = [1, 1]} : vector<320x4xf32> to vector<256x4xf32>
    %59 = vector.extract_strided_slice %23 {offsets = [1, 0], sizes = [1, 4], strides = [1, 1]} : vector<25x4xf32> to vector<1x4xf32>
    %60 = vector.broadcast %59 : vector<1x4xf32> to vector<256x4xf32>
    %61 = arith.mulf %58, %60 : vector<256x4xf32>
    %62 = arith.addf %57, %61 : vector<256x4xf32>
    %63 = vector.extract_strided_slice %56 {offsets = [16, 0], sizes = [256, 4], strides = [1, 1]} : vector<320x4xf32> to vector<256x4xf32>
    %64 = vector.extract_strided_slice %23 {offsets = [6, 0], sizes = [1, 4], strides = [1, 1]} : vector<25x4xf32> to vector<1x4xf32>
    %65 = vector.broadcast %64 : vector<1x4xf32> to vector<256x4xf32>
    %66 = arith.mulf %63, %65 : vector<256x4xf32>
    %67 = arith.addf %62, %66 : vector<256x4xf32>
    %68 = vector.extract_strided_slice %56 {offsets = [32, 0], sizes = [256, 4], strides = [1, 1]} : vector<320x4xf32> to vector<256x4xf32>
    %69 = vector.extract_strided_slice %23 {offsets = [11, 0], sizes = [1, 4], strides = [1, 1]} : vector<25x4xf32> to vector<1x4xf32>
    %70 = vector.broadcast %69 : vector<1x4xf32> to vector<256x4xf32>
    %71 = arith.mulf %68, %70 : vector<256x4xf32>
    %72 = arith.addf %67, %71 : vector<256x4xf32>
    %73 = vector.extract_strided_slice %56 {offsets = [48, 0], sizes = [256, 4], strides = [1, 1]} : vector<320x4xf32> to vector<256x4xf32>
    %74 = vector.extract_strided_slice %23 {offsets = [16, 0], sizes = [1, 4], strides = [1, 1]} : vector<25x4xf32> to vector<1x4xf32>
    %75 = vector.broadcast %74 : vector<1x4xf32> to vector<256x4xf32>
    %76 = arith.mulf %73, %75 : vector<256x4xf32>
    %77 = arith.addf %72, %76 : vector<256x4xf32>
    %78 = vector.extract_strided_slice %56 {offsets = [64, 0], sizes = [256, 4], strides = [1, 1]} : vector<320x4xf32> to vector<256x4xf32>
    %79 = vector.extract_strided_slice %23 {offsets = [21, 0], sizes = [1, 4], strides = [1, 1]} : vector<25x4xf32> to vector<1x4xf32>
    %80 = vector.broadcast %79 : vector<1x4xf32> to vector<256x4xf32>
    %81 = arith.mulf %78, %80 : vector<256x4xf32>
    %82 = arith.addf %77, %81 : vector<256x4xf32>
    %83 = vector.extract_strided_slice %2 {offsets = [0, 1], sizes = [256, 1], strides = [1, 1]} : vector<256x5xf32> to vector<256x1xf32>
    %84 = vector.broadcast %83 : vector<256x1xf32> to vector<256x4xf32>
    %85 = arith.mulf %82, %84 : vector<256x4xf32>
    %86 = arith.addf %55, %85 : vector<256x4xf32>
    %c8 = arith.constant 8 : index
    %c0_25 = arith.constant 0 : index
    %87 = vector.load %arg17[%c8, %c0_25] : memref<336x4xf32, #tpu.memory_space<vmem>>, vector<320x4xf32>
    %cst_26 = arith.constant 0.000000e+00 : f32
    %88 = vector.broadcast %cst_26 : f32 to vector<256x4xf32>
    %89 = vector.extract_strided_slice %87 {offsets = [0, 0], sizes = [256, 4], strides = [1, 1]} : vector<320x4xf32> to vector<256x4xf32>
    %90 = vector.extract_strided_slice %23 {offsets = [2, 0], sizes = [1, 4], strides = [1, 1]} : vector<25x4xf32> to vector<1x4xf32>
    %91 = vector.broadcast %90 : vector<1x4xf32> to vector<256x4xf32>
    %92 = arith.mulf %89, %91 : vector<256x4xf32>
    %93 = arith.addf %88, %92 : vector<256x4xf32>
    %94 = vector.extract_strided_slice %87 {offsets = [16, 0], sizes = [256, 4], strides = [1, 1]} : vector<320x4xf32> to vector<256x4xf32>
    %95 = vector.extract_strided_slice %23 {offsets = [7, 0], sizes = [1, 4], strides = [1, 1]} : vector<25x4xf32> to vector<1x4xf32>
    %96 = vector.broadcast %95 : vector<1x4xf32> to vector<256x4xf32>
    %97 = arith.mulf %94, %96 : vector<256x4xf32>
    %98 = arith.addf %93, %97 : vector<256x4xf32>
    %99 = vector.extract_strided_slice %87 {offsets = [32, 0], sizes = [256, 4], strides = [1, 1]} : vector<320x4xf32> to vector<256x4xf32>
    %100 = vector.extract_strided_slice %23 {offsets = [12, 0], sizes = [1, 4], strides = [1, 1]} : vector<25x4xf32> to vector<1x4xf32>
    %101 = vector.broadcast %100 : vector<1x4xf32> to vector<256x4xf32>
    %102 = arith.mulf %99, %101 : vector<256x4xf32>
    %103 = arith.addf %98, %102 : vector<256x4xf32>
    %104 = vector.extract_strided_slice %87 {offsets = [48, 0], sizes = [256, 4], strides = [1, 1]} : vector<320x4xf32> to vector<256x4xf32>
    %105 = vector.extract_strided_slice %23 {offsets = [17, 0], sizes = [1, 4], strides = [1, 1]} : vector<25x4xf32> to vector<1x4xf32>
    %106 = vector.broadcast %105 : vector<1x4xf32> to vector<256x4xf32>
    %107 = arith.mulf %104, %106 : vector<256x4xf32>
    %108 = arith.addf %103, %107 : vector<256x4xf32>
    %109 = vector.extract_strided_slice %87 {offsets = [64, 0], sizes = [256, 4], strides = [1, 1]} : vector<320x4xf32> to vector<256x4xf32>
    %110 = vector.extract_strided_slice %23 {offsets = [22, 0], sizes = [1, 4], strides = [1, 1]} : vector<25x4xf32> to vector<1x4xf32>
    %111 = vector.broadcast %110 : vector<1x4xf32> to vector<256x4xf32>
    %112 = arith.mulf %109, %111 : vector<256x4xf32>
    %113 = arith.addf %108, %112 : vector<256x4xf32>
    %114 = arith.addf %86, %113 : vector<256x4xf32>
    %c9 = arith.constant 9 : index
    %c0_27 = arith.constant 0 : index
    %115 = vector.load %arg17[%c9, %c0_27] : memref<336x4xf32, #tpu.memory_space<vmem>>, vector<320x4xf32>
    %cst_28 = arith.constant 0.000000e+00 : f32
    %116 = vector.broadcast %cst_28 : f32 to vector<256x4xf32>
    %117 = vector.extract_strided_slice %115 {offsets = [0, 0], sizes = [256, 4], strides = [1, 1]} : vector<320x4xf32> to vector<256x4xf32>
    %118 = vector.extract_strided_slice %23 {offsets = [3, 0], sizes = [1, 4], strides = [1, 1]} : vector<25x4xf32> to vector<1x4xf32>
    %119 = vector.broadcast %118 : vector<1x4xf32> to vector<256x4xf32>
    %120 = arith.mulf %117, %119 : vector<256x4xf32>
    %121 = arith.addf %116, %120 : vector<256x4xf32>
    %122 = vector.extract_strided_slice %115 {offsets = [16, 0], sizes = [256, 4], strides = [1, 1]} : vector<320x4xf32> to vector<256x4xf32>
    %123 = vector.extract_strided_slice %23 {offsets = [8, 0], sizes = [1, 4], strides = [1, 1]} : vector<25x4xf32> to vector<1x4xf32>
    %124 = vector.broadcast %123 : vector<1x4xf32> to vector<256x4xf32>
    %125 = arith.mulf %122, %124 : vector<256x4xf32>
    %126 = arith.addf %121, %125 : vector<256x4xf32>
    %127 = vector.extract_strided_slice %115 {offsets = [32, 0], sizes = [256, 4], strides = [1, 1]} : vector<320x4xf32> to vector<256x4xf32>
    %128 = vector.extract_strided_slice %23 {offsets = [13, 0], sizes = [1, 4], strides = [1, 1]} : vector<25x4xf32> to vector<1x4xf32>
    %129 = vector.broadcast %128 : vector<1x4xf32> to vector<256x4xf32>
    %130 = arith.mulf %127, %129 : vector<256x4xf32>
    %131 = arith.addf %126, %130 : vector<256x4xf32>
    %132 = vector.extract_strided_slice %115 {offsets = [48, 0], sizes = [256, 4], strides = [1, 1]} : vector<320x4xf32> to vector<256x4xf32>
    %133 = vector.extract_strided_slice %23 {offsets = [18, 0], sizes = [1, 4], strides = [1, 1]} : vector<25x4xf32> to vector<1x4xf32>
    %134 = vector.broadcast %133 : vector<1x4xf32> to vector<256x4xf32>
    %135 = arith.mulf %132, %134 : vector<256x4xf32>
    %136 = arith.addf %131, %135 : vector<256x4xf32>
    %137 = vector.extract_strided_slice %115 {offsets = [64, 0], sizes = [256, 4], strides = [1, 1]} : vector<320x4xf32> to vector<256x4xf32>
    %138 = vector.extract_strided_slice %23 {offsets = [23, 0], sizes = [1, 4], strides = [1, 1]} : vector<25x4xf32> to vector<1x4xf32>
    %139 = vector.broadcast %138 : vector<1x4xf32> to vector<256x4xf32>
    %140 = arith.mulf %137, %139 : vector<256x4xf32>
    %141 = arith.addf %136, %140 : vector<256x4xf32>
    %142 = vector.extract_strided_slice %2 {offsets = [0, 3], sizes = [256, 1], strides = [1, 1]} : vector<256x5xf32> to vector<256x1xf32>
    %143 = vector.broadcast %142 : vector<256x1xf32> to vector<256x4xf32>
    %144 = arith.mulf %141, %143 : vector<256x4xf32>
    %145 = arith.addf %114, %144 : vector<256x4xf32>
    %c10 = arith.constant 10 : index
    %c0_29 = arith.constant 0 : index
    %146 = vector.load %arg17[%c10, %c0_29] : memref<336x4xf32, #tpu.memory_space<vmem>>, vector<320x4xf32>
    %cst_30 = arith.constant 0.000000e+00 : f32
    %147 = vector.broadcast %cst_30 : f32 to vector<256x4xf32>
    %148 = vector.extract_strided_slice %146 {offsets = [0, 0], sizes = [256, 4], strides = [1, 1]} : vector<320x4xf32> to vector<256x4xf32>
    %149 = vector.extract_strided_slice %23 {offsets = [4, 0], sizes = [1, 4], strides = [1, 1]} : vector<25x4xf32> to vector<1x4xf32>
    %150 = vector.broadcast %149 : vector<1x4xf32> to vector<256x4xf32>
    %151 = arith.mulf %148, %150 : vector<256x4xf32>
    %152 = arith.addf %147, %151 : vector<256x4xf32>
    %153 = vector.extract_strided_slice %146 {offsets = [16, 0], sizes = [256, 4], strides = [1, 1]} : vector<320x4xf32> to vector<256x4xf32>
    %154 = vector.extract_strided_slice %23 {offsets = [9, 0], sizes = [1, 4], strides = [1, 1]} : vector<25x4xf32> to vector<1x4xf32>
    %155 = vector.broadcast %154 : vector<1x4xf32> to vector<256x4xf32>
    %156 = arith.mulf %153, %155 : vector<256x4xf32>
    %157 = arith.addf %152, %156 : vector<256x4xf32>
    %158 = vector.extract_strided_slice %146 {offsets = [32, 0], sizes = [256, 4], strides = [1, 1]} : vector<320x4xf32> to vector<256x4xf32>
    %159 = vector.extract_strided_slice %23 {offsets = [14, 0], sizes = [1, 4], strides = [1, 1]} : vector<25x4xf32> to vector<1x4xf32>
    %160 = vector.broadcast %159 : vector<1x4xf32> to vector<256x4xf32>
    %161 = arith.mulf %158, %160 : vector<256x4xf32>
    %162 = arith.addf %157, %161 : vector<256x4xf32>
    %163 = vector.extract_strided_slice %146 {offsets = [48, 0], sizes = [256, 4], strides = [1, 1]} : vector<320x4xf32> to vector<256x4xf32>
    %164 = vector.extract_strided_slice %23 {offsets = [19, 0], sizes = [1, 4], strides = [1, 1]} : vector<25x4xf32> to vector<1x4xf32>
    %165 = vector.broadcast %164 : vector<1x4xf32> to vector<256x4xf32>
    %166 = arith.mulf %163, %165 : vector<256x4xf32>
    %167 = arith.addf %162, %166 : vector<256x4xf32>
    %168 = vector.extract_strided_slice %146 {offsets = [64, 0], sizes = [256, 4], strides = [1, 1]} : vector<320x4xf32> to vector<256x4xf32>
    %169 = vector.extract_strided_slice %23 {offsets = [24, 0], sizes = [1, 4], strides = [1, 1]} : vector<25x4xf32> to vector<1x4xf32>
    %170 = vector.broadcast %169 : vector<1x4xf32> to vector<256x4xf32>
    %171 = arith.mulf %168, %170 : vector<256x4xf32>
    %172 = arith.addf %167, %171 : vector<256x4xf32>
    %173 = vector.extract_strided_slice %2 {offsets = [0, 4], sizes = [256, 1], strides = [1, 1]} : vector<256x5xf32> to vector<256x1xf32>
    %174 = vector.broadcast %173 : vector<256x1xf32> to vector<256x4xf32>
    %175 = arith.mulf %172, %174 : vector<256x4xf32>
    %176 = arith.addf %145, %175 : vector<256x4xf32>
    %c0_31 = arith.constant 0 : index
    %c0_32 = arith.constant 0 : index
    %177 = vector.load %arg10[%c0_31, %c0_32] : memref<1x4xf32, #tpu.memory_space<vmem>>, vector<1x4xf32>
    %178 = vector.broadcast %177 : vector<1x4xf32> to vector<256x4xf32>
    %179 = arith.mulf %176, %178 : vector<256x4xf32>
    %c0_33 = arith.constant 0 : index
    %c0_34 = arith.constant 0 : index
    %180 = vector.load %arg11[%c0_33, %c0_34] : memref<1x4xf32, #tpu.memory_space<vmem>>, vector<1x4xf32>
    %181 = vector.broadcast %180 : vector<1x4xf32> to vector<256x4xf32>
    %182 = arith.addf %179, %181 : vector<256x4xf32>
    %cst_35 = arith.constant 0.000000e+00 : f32
    %183 = vector.broadcast %cst_35 : f32 to vector<256x4xf32>
    %184 = arith.subf %183, %182 : vector<256x4xf32>
    %185 = math.exp %184 : vector<256x4xf32>
    %cst_36 = arith.constant 1.000000e+00 : f32
    %186 = vector.broadcast %cst_36 : f32 to vector<256x4xf32>
    %187 = arith.addf %186, %185 : vector<256x4xf32>
    %188 = tpu.reciprocal %187 {approx = true} : vector<256x4xf32> -> vector<256x4xf32>
    %189 = arith.mulf %182, %188 : vector<256x4xf32>
    %c0_37 = arith.constant 0 : index
    %c0_38 = arith.constant 0 : index
    %190 = vector.load %arg5[%c0_37, %c0_38] : memref<4x8xf32, #tpu.memory_space<vmem>>, vector<4x8xf32>
    %cst_39 = arith.constant dense<0.000000e+00> : vector<256x8xf32>
    %191 = tpu.matmul %17, %190, %cst_39 {dimension_numbers = #tpu.dot_dimension_numbers<[1], [0], [0], [1], [0, 0, 1, 1], [], []>} : vector<256x4xf32>, vector<4x8xf32>, vector<256x8xf32> -> vector<256x8xf32>
    %c0_40 = arith.constant 0 : index
    %c0_41 = arith.constant 0 : index
    %192 = vector.load %arg6[%c0_40, %c0_41] : memref<4x8xf32, #tpu.memory_space<vmem>>, vector<4x8xf32>
    %cst_42 = arith.constant dense<0.000000e+00> : vector<256x8xf32>
    %193 = tpu.matmul %189, %192, %cst_42 {dimension_numbers = #tpu.dot_dimension_numbers<[1], [0], [0], [1], [0, 0, 1, 1], [], []>} : vector<256x4xf32>, vector<4x8xf32>, vector<256x8xf32> -> vector<256x8xf32>
    %194 = arith.addf %191, %193 : vector<256x8xf32>
    %c0_43 = arith.constant 0 : index
    %c0_44 = arith.constant 0 : index
    %195 = vector.load %arg12[%c0_43, %c0_44] : memref<1x8xf32, #tpu.memory_space<vmem>>, vector<1x8xf32>
    %196 = vector.broadcast %195 : vector<1x8xf32> to vector<256x8xf32>
    %197 = arith.mulf %194, %196 : vector<256x8xf32>
    %c0_45 = arith.constant 0 : index
    %c0_46 = arith.constant 0 : index
    %198 = vector.load %arg13[%c0_45, %c0_46] : memref<1x8xf32, #tpu.memory_space<vmem>>, vector<1x8xf32>
    %199 = vector.broadcast %198 : vector<1x8xf32> to vector<256x8xf32>
    %200 = arith.addf %197, %199 : vector<256x8xf32>
    %cst_47 = arith.constant 0.000000e+00 : f32
    %201 = vector.broadcast %cst_47 : f32 to vector<40x8xf32>
    %c0_48 = arith.constant 0 : index
    %c0_49 = arith.constant 0 : index
    %202 = vector.load %arg18[%c0_48, %c0_49] : memref<336x8xf32, #tpu.memory_space<vmem>>, vector<40x8xf32>
    tpu.vector_store %arg18[%c0_48, %c0_49], %201 {strides = array<i32>} : memref<336x8xf32, #tpu.memory_space<vmem>>, vector<40x8xf32>,
    %cst_50 = arith.constant 0.000000e+00 : f32
    %203 = vector.broadcast %cst_50 : f32 to vector<40x8xf32>
    %c296_51 = arith.constant 296 : index
    %c0_52 = arith.constant 0 : index
    %204 = vector.load %arg18[%c296_51, %c0_52] : memref<336x8xf32, #tpu.memory_space<vmem>>, vector<40x8xf32>
    tpu.vector_store %arg18[%c296_51, %c0_52], %203 {strides = array<i32>} : memref<336x8xf32, #tpu.memory_space<vmem>>, vector<40x8xf32>,
    %c40_53 = arith.constant 40 : index
    %c0_54 = arith.constant 0 : index
    %205 = vector.load %arg18[%c40_53, %c0_54] : memref<336x8xf32, #tpu.memory_space<vmem>>, vector<256x8xf32>
    tpu.vector_store %arg18[%c40_53, %c0_54], %200 {strides = array<i32>} : memref<336x8xf32, #tpu.memory_space<vmem>>, vector<256x8xf32>,
    %c0_55 = arith.constant 0 : index
    %c0_56 = arith.constant 0 : index
    %206 = vector.load %arg7[%c0_55, %c0_56] : memref<25x8xf32, #tpu.memory_space<vmem>>, vector<25x8xf32>
    %cst_57 = arith.constant 0.000000e+00 : f32
    %207 = vector.broadcast %cst_57 : f32 to vector<256x8xf32>
    %c6_58 = arith.constant 6 : index
    %c0_59 = arith.constant 0 : index
    %208 = vector.load %arg18[%c6_58, %c0_59] : memref<336x8xf32, #tpu.memory_space<vmem>>, vector<320x8xf32>
    %cst_60 = arith.constant 0.000000e+00 : f32
    %209 = vector.broadcast %cst_60 : f32 to vector<256x8xf32>
    %210 = vector.extract_strided_slice %208 {offsets = [0, 0], sizes = [256, 8], strides = [1, 1]} : vector<320x8xf32> to vector<256x8xf32>
    %211 = vector.extract_strided_slice %206 {offsets = [0, 0], sizes = [1, 8], strides = [1, 1]} : vector<25x8xf32> to vector<1x8xf32>
    %212 = vector.broadcast %211 : vector<1x8xf32> to vector<256x8xf32>
    %213 = arith.mulf %210, %212 : vector<256x8xf32>
    %214 = arith.addf %209, %213 : vector<256x8xf32>
    %215 = vector.extract_strided_slice %208 {offsets = [16, 0], sizes = [256, 8], strides = [1, 1]} : vector<320x8xf32> to vector<256x8xf32>
    %216 = vector.extract_strided_slice %206 {offsets = [5, 0], sizes = [1, 8], strides = [1, 1]} : vector<25x8xf32> to vector<1x8xf32>
    %217 = vector.broadcast %216 : vector<1x8xf32> to vector<256x8xf32>
    %218 = arith.mulf %215, %217 : vector<256x8xf32>
    %219 = arith.addf %214, %218 : vector<256x8xf32>
    %220 = vector.extract_strided_slice %208 {offsets = [32, 0], sizes = [256, 8], strides = [1, 1]} : vector<320x8xf32> to vector<256x8xf32>
    %221 = vector.extract_strided_slice %206 {offsets = [10, 0], sizes = [1, 8], strides = [1, 1]} : vector<25x8xf32> to vector<1x8xf32>
    %222 = vector.broadcast %221 : vector<1x8xf32> to vector<256x8xf32>
    %223 = arith.mulf %220, %222 : vector<256x8xf32>
    %224 = arith.addf %219, %223 : vector<256x8xf32>
    %225 = vector.extract_strided_slice %208 {offsets = [48, 0], sizes = [256, 8], strides = [1, 1]} : vector<320x8xf32> to vector<256x8xf32>
    %226 = vector.extract_strided_slice %206 {offsets = [15, 0], sizes = [1, 8], strides = [1, 1]} : vector<25x8xf32> to vector<1x8xf32>
    %227 = vector.broadcast %226 : vector<1x8xf32> to vector<256x8xf32>
    %228 = arith.mulf %225, %227 : vector<256x8xf32>
    %229 = arith.addf %224, %228 : vector<256x8xf32>
    %230 = vector.extract_strided_slice %208 {offsets = [64, 0], sizes = [256, 8], strides = [1, 1]} : vector<320x8xf32> to vector<256x8xf32>
    %231 = vector.extract_strided_slice %206 {offsets = [20, 0], sizes = [1, 8], strides = [1, 1]} : vector<25x8xf32> to vector<1x8xf32>
    %232 = vector.broadcast %231 : vector<1x8xf32> to vector<256x8xf32>
    %233 = arith.mulf %230, %232 : vector<256x8xf32>
    %234 = arith.addf %229, %233 : vector<256x8xf32>
    %235 = vector.extract_strided_slice %2 {offsets = [0, 0], sizes = [256, 1], strides = [1, 1]} : vector<256x5xf32> to vector<256x1xf32>
    %236 = vector.broadcast %235 : vector<256x1xf32> to vector<256x8xf32>
    %237 = arith.mulf %234, %236 : vector<256x8xf32>
    %238 = arith.addf %207, %237 : vector<256x8xf32>
    %c7_61 = arith.constant 7 : index
    %c0_62 = arith.constant 0 : index
    %239 = vector.load %arg18[%c7_61, %c0_62] : memref<336x8xf32, #tpu.memory_space<vmem>>, vector<320x8xf32>
    %cst_63 = arith.constant 0.000000e+00 : f32
    %240 = vector.broadcast %cst_63 : f32 to vector<256x8xf32>
    %241 = vector.extract_strided_slice %239 {offsets = [0, 0], sizes = [256, 8], strides = [1, 1]} : vector<320x8xf32> to vector<256x8xf32>
    %242 = vector.extract_strided_slice %206 {offsets = [1, 0], sizes = [1, 8], strides = [1, 1]} : vector<25x8xf32> to vector<1x8xf32>
    %243 = vector.broadcast %242 : vector<1x8xf32> to vector<256x8xf32>
    %244 = arith.mulf %241, %243 : vector<256x8xf32>
    %245 = arith.addf %240, %244 : vector<256x8xf32>
    %246 = vector.extract_strided_slice %239 {offsets = [16, 0], sizes = [256, 8], strides = [1, 1]} : vector<320x8xf32> to vector<256x8xf32>
    %247 = vector.extract_strided_slice %206 {offsets = [6, 0], sizes = [1, 8], strides = [1, 1]} : vector<25x8xf32> to vector<1x8xf32>
    %248 = vector.broadcast %247 : vector<1x8xf32> to vector<256x8xf32>
    %249 = arith.mulf %246, %248 : vector<256x8xf32>
    %250 = arith.addf %245, %249 : vector<256x8xf32>
    %251 = vector.extract_strided_slice %239 {offsets = [32, 0], sizes = [256, 8], strides = [1, 1]} : vector<320x8xf32> to vector<256x8xf32>
    %252 = vector.extract_strided_slice %206 {offsets = [11, 0], sizes = [1, 8], strides = [1, 1]} : vector<25x8xf32> to vector<1x8xf32>
    %253 = vector.broadcast %252 : vector<1x8xf32> to vector<256x8xf32>
    %254 = arith.mulf %251, %253 : vector<256x8xf32>
    %255 = arith.addf %250, %254 : vector<256x8xf32>
    %256 = vector.extract_strided_slice %239 {offsets = [48, 0], sizes = [256, 8], strides = [1, 1]} : vector<320x8xf32> to vector<256x8xf32>
    %257 = vector.extract_strided_slice %206 {offsets = [16, 0], sizes = [1, 8], strides = [1, 1]} : vector<25x8xf32> to vector<1x8xf32>
    %258 = vector.broadcast %257 : vector<1x8xf32> to vector<256x8xf32>
    %259 = arith.mulf %256, %258 : vector<256x8xf32>
    %260 = arith.addf %255, %259 : vector<256x8xf32>
    %261 = vector.extract_strided_slice %239 {offsets = [64, 0], sizes = [256, 8], strides = [1, 1]} : vector<320x8xf32> to vector<256x8xf32>
    %262 = vector.extract_strided_slice %206 {offsets = [21, 0], sizes = [1, 8], strides = [1, 1]} : vector<25x8xf32> to vector<1x8xf32>
    %263 = vector.broadcast %262 : vector<1x8xf32> to vector<256x8xf32>
    %264 = arith.mulf %261, %263 : vector<256x8xf32>
    %265 = arith.addf %260, %264 : vector<256x8xf32>
    %266 = vector.extract_strided_slice %2 {offsets = [0, 1], sizes = [256, 1], strides = [1, 1]} : vector<256x5xf32> to vector<256x1xf32>
    %267 = vector.broadcast %266 : vector<256x1xf32> to vector<256x8xf32>
    %268 = arith.mulf %265, %267 : vector<256x8xf32>
    %269 = arith.addf %238, %268 : vector<256x8xf32>
    %c8_64 = arith.constant 8 : index
    %c0_65 = arith.constant 0 : index
    %270 = vector.load %arg18[%c8_64, %c0_65] : memref<336x8xf32, #tpu.memory_space<vmem>>, vector<320x8xf32>
    %cst_66 = arith.constant 0.000000e+00 : f32
    %271 = vector.broadcast %cst_66 : f32 to vector<256x8xf32>
    %272 = vector.extract_strided_slice %270 {offsets = [0, 0], sizes = [256, 8], strides = [1, 1]} : vector<320x8xf32> to vector<256x8xf32>
    %273 = vector.extract_strided_slice %206 {offsets = [2, 0], sizes = [1, 8], strides = [1, 1]} : vector<25x8xf32> to vector<1x8xf32>
    %274 = vector.broadcast %273 : vector<1x8xf32> to vector<256x8xf32>
    %275 = arith.mulf %272, %274 : vector<256x8xf32>
    %276 = arith.addf %271, %275 : vector<256x8xf32>
    %277 = vector.extract_strided_slice %270 {offsets = [16, 0], sizes = [256, 8], strides = [1, 1]} : vector<320x8xf32> to vector<256x8xf32>
    %278 = vector.extract_strided_slice %206 {offsets = [7, 0], sizes = [1, 8], strides = [1, 1]} : vector<25x8xf32> to vector<1x8xf32>
    %279 = vector.broadcast %278 : vector<1x8xf32> to vector<256x8xf32>
    %280 = arith.mulf %277, %279 : vector<256x8xf32>
    %281 = arith.addf %276, %280 : vector<256x8xf32>
    %282 = vector.extract_strided_slice %270 {offsets = [32, 0], sizes = [256, 8], strides = [1, 1]} : vector<320x8xf32> to vector<256x8xf32>
    %283 = vector.extract_strided_slice %206 {offsets = [12, 0], sizes = [1, 8], strides = [1, 1]} : vector<25x8xf32> to vector<1x8xf32>
    %284 = vector.broadcast %283 : vector<1x8xf32> to vector<256x8xf32>
    %285 = arith.mulf %282, %284 : vector<256x8xf32>
    %286 = arith.addf %281, %285 : vector<256x8xf32>
    %287 = vector.extract_strided_slice %270 {offsets = [48, 0], sizes = [256, 8], strides = [1, 1]} : vector<320x8xf32> to vector<256x8xf32>
    %288 = vector.extract_strided_slice %206 {offsets = [17, 0], sizes = [1, 8], strides = [1, 1]} : vector<25x8xf32> to vector<1x8xf32>
    %289 = vector.broadcast %288 : vector<1x8xf32> to vector<256x8xf32>
    %290 = arith.mulf %287, %289 : vector<256x8xf32>
    %291 = arith.addf %286, %290 : vector<256x8xf32>
    %292 = vector.extract_strided_slice %270 {offsets = [64, 0], sizes = [256, 8], strides = [1, 1]} : vector<320x8xf32> to vector<256x8xf32>
    %293 = vector.extract_strided_slice %206 {offsets = [22, 0], sizes = [1, 8], strides = [1, 1]} : vector<25x8xf32> to vector<1x8xf32>
    %294 = vector.broadcast %293 : vector<1x8xf32> to vector<256x8xf32>
    %295 = arith.mulf %292, %294 : vector<256x8xf32>
    %296 = arith.addf %291, %295 : vector<256x8xf32>
    %297 = arith.addf %269, %296 : vector<256x8xf32>
    %c9_67 = arith.constant 9 : index
    %c0_68 = arith.constant 0 : index
    %298 = vector.load %arg18[%c9_67, %c0_68] : memref<336x8xf32, #tpu.memory_space<vmem>>, vector<320x8xf32>
    %cst_69 = arith.constant 0.000000e+00 : f32
    %299 = vector.broadcast %cst_69 : f32 to vector<256x8xf32>
    %300 = vector.extract_strided_slice %298 {offsets = [0, 0], sizes = [256, 8], strides = [1, 1]} : vector<320x8xf32> to vector<256x8xf32>
    %301 = vector.extract_strided_slice %206 {offsets = [3, 0], sizes = [1, 8], strides = [1, 1]} : vector<25x8xf32> to vector<1x8xf32>
    %302 = vector.broadcast %301 : vector<1x8xf32> to vector<256x8xf32>
    %303 = arith.mulf %300, %302 : vector<256x8xf32>
    %304 = arith.addf %299, %303 : vector<256x8xf32>
    %305 = vector.extract_strided_slice %298 {offsets = [16, 0], sizes = [256, 8], strides = [1, 1]} : vector<320x8xf32> to vector<256x8xf32>
    %306 = vector.extract_strided_slice %206 {offsets = [8, 0], sizes = [1, 8], strides = [1, 1]} : vector<25x8xf32> to vector<1x8xf32>
    %307 = vector.broadcast %306 : vector<1x8xf32> to vector<256x8xf32>
    %308 = arith.mulf %305, %307 : vector<256x8xf32>
    %309 = arith.addf %304, %308 : vector<256x8xf32>
    %310 = vector.extract_strided_slice %298 {offsets = [32, 0], sizes = [256, 8], strides = [1, 1]} : vector<320x8xf32> to vector<256x8xf32>
    %311 = vector.extract_strided_slice %206 {offsets = [13, 0], sizes = [1, 8], strides = [1, 1]} : vector<25x8xf32> to vector<1x8xf32>
    %312 = vector.broadcast %311 : vector<1x8xf32> to vector<256x8xf32>
    %313 = arith.mulf %310, %312 : vector<256x8xf32>
    %314 = arith.addf %309, %313 : vector<256x8xf32>
    %315 = vector.extract_strided_slice %298 {offsets = [48, 0], sizes = [256, 8], strides = [1, 1]} : vector<320x8xf32> to vector<256x8xf32>
    %316 = vector.extract_strided_slice %206 {offsets = [18, 0], sizes = [1, 8], strides = [1, 1]} : vector<25x8xf32> to vector<1x8xf32>
    %317 = vector.broadcast %316 : vector<1x8xf32> to vector<256x8xf32>
    %318 = arith.mulf %315, %317 : vector<256x8xf32>
    %319 = arith.addf %314, %318 : vector<256x8xf32>
    %320 = vector.extract_strided_slice %298 {offsets = [64, 0], sizes = [256, 8], strides = [1, 1]} : vector<320x8xf32> to vector<256x8xf32>
    %321 = vector.extract_strided_slice %206 {offsets = [23, 0], sizes = [1, 8], strides = [1, 1]} : vector<25x8xf32> to vector<1x8xf32>
    %322 = vector.broadcast %321 : vector<1x8xf32> to vector<256x8xf32>
    %323 = arith.mulf %320, %322 : vector<256x8xf32>
    %324 = arith.addf %319, %323 : vector<256x8xf32>
    %325 = vector.extract_strided_slice %2 {offsets = [0, 3], sizes = [256, 1], strides = [1, 1]} : vector<256x5xf32> to vector<256x1xf32>
    %326 = vector.broadcast %325 : vector<256x1xf32> to vector<256x8xf32>
    %327 = arith.mulf %324, %326 : vector<256x8xf32>
    %328 = arith.addf %297, %327 : vector<256x8xf32>
    %c10_70 = arith.constant 10 : index
    %c0_71 = arith.constant 0 : index
    %329 = vector.load %arg18[%c10_70, %c0_71] : memref<336x8xf32, #tpu.memory_space<vmem>>, vector<320x8xf32>
    %cst_72 = arith.constant 0.000000e+00 : f32
    %330 = vector.broadcast %cst_72 : f32 to vector<256x8xf32>
    %331 = vector.extract_strided_slice %329 {offsets = [0, 0], sizes = [256, 8], strides = [1, 1]} : vector<320x8xf32> to vector<256x8xf32>
    %332 = vector.extract_strided_slice %206 {offsets = [4, 0], sizes = [1, 8], strides = [1, 1]} : vector<25x8xf32> to vector<1x8xf32>
    %333 = vector.broadcast %332 : vector<1x8xf32> to vector<256x8xf32>
    %334 = arith.mulf %331, %333 : vector<256x8xf32>
    %335 = arith.addf %330, %334 : vector<256x8xf32>
    %336 = vector.extract_strided_slice %329 {offsets = [16, 0], sizes = [256, 8], strides = [1, 1]} : vector<320x8xf32> to vector<256x8xf32>
    %337 = vector.extract_strided_slice %206 {offsets = [9, 0], sizes = [1, 8], strides = [1, 1]} : vector<25x8xf32> to vector<1x8xf32>
    %338 = vector.broadcast %337 : vector<1x8xf32> to vector<256x8xf32>
    %339 = arith.mulf %336, %338 : vector<256x8xf32>
    %340 = arith.addf %335, %339 : vector<256x8xf32>
    %341 = vector.extract_strided_slice %329 {offsets = [32, 0], sizes = [256, 8], strides = [1, 1]} : vector<320x8xf32> to vector<256x8xf32>
    %342 = vector.extract_strided_slice %206 {offsets = [14, 0], sizes = [1, 8], strides = [1, 1]} : vector<25x8xf32> to vector<1x8xf32>
    %343 = vector.broadcast %342 : vector<1x8xf32> to vector<256x8xf32>
    %344 = arith.mulf %341, %343 : vector<256x8xf32>
    %345 = arith.addf %340, %344 : vector<256x8xf32>
    %346 = vector.extract_strided_slice %329 {offsets = [48, 0], sizes = [256, 8], strides = [1, 1]} : vector<320x8xf32> to vector<256x8xf32>
    %347 = vector.extract_strided_slice %206 {offsets = [19, 0], sizes = [1, 8], strides = [1, 1]} : vector<25x8xf32> to vector<1x8xf32>
    %348 = vector.broadcast %347 : vector<1x8xf32> to vector<256x8xf32>
    %349 = arith.mulf %346, %348 : vector<256x8xf32>
    %350 = arith.addf %345, %349 : vector<256x8xf32>
    %351 = vector.extract_strided_slice %329 {offsets = [64, 0], sizes = [256, 8], strides = [1, 1]} : vector<320x8xf32> to vector<256x8xf32>
    %352 = vector.extract_strided_slice %206 {offsets = [24, 0], sizes = [1, 8], strides = [1, 1]} : vector<25x8xf32> to vector<1x8xf32>
    %353 = vector.broadcast %352 : vector<1x8xf32> to vector<256x8xf32>
    %354 = arith.mulf %351, %353 : vector<256x8xf32>
    %355 = arith.addf %350, %354 : vector<256x8xf32>
    %356 = vector.extract_strided_slice %2 {offsets = [0, 4], sizes = [256, 1], strides = [1, 1]} : vector<256x5xf32> to vector<256x1xf32>
    %357 = vector.broadcast %356 : vector<256x1xf32> to vector<256x8xf32>
    %358 = arith.mulf %355, %357 : vector<256x8xf32>
    %359 = arith.addf %328, %358 : vector<256x8xf32>
    %c0_73 = arith.constant 0 : index
    %c0_74 = arith.constant 0 : index
    %360 = vector.load %arg14[%c0_73, %c0_74] : memref<1x8xf32, #tpu.memory_space<vmem>>, vector<1x8xf32>
    %361 = vector.broadcast %360 : vector<1x8xf32> to vector<256x8xf32>
    %362 = arith.mulf %359, %361 : vector<256x8xf32>
    %c0_75 = arith.constant 0 : index
    %c0_76 = arith.constant 0 : index
    %363 = vector.load %arg15[%c0_75, %c0_76] : memref<1x8xf32, #tpu.memory_space<vmem>>, vector<1x8xf32>
    %364 = vector.broadcast %363 : vector<1x8xf32> to vector<256x8xf32>
    %365 = arith.addf %362, %364 : vector<256x8xf32>
    %366 = tpu.concatenate %200, %365 in 1 : vector<256x8xf32>, vector<256x8xf32> -> vector<256x16xf32>
    %367 = arith.addf %366, %1 : vector<256x16xf32>
    %c0_77 = arith.constant 0 : index
    %c0_78 = arith.constant 0 : index
    %c0_79 = arith.constant 0 : index
    %368 = vector.load %arg16[%c0_77, %c0_78, %c0_79] : memref<1x256x16xf32, #tpu.memory_space<vmem>>, vector<1x256x16xf32>
    %369 = vector.shape_cast %368 : vector<1x256x16xf32> to vector<256x16xf32>
    %370 = vector.shape_cast %367 : vector<256x16xf32> to vector<1x256x16xf32>
    tpu.vector_store %arg16[%c0_77, %c0_78, %c0_79], %370 {strides = array<i32>} : memref<1x256x16xf32, #tpu.memory_space<vmem>>, vector<1x256x16xf32>,
    return
  }
  func.func @transform_0(%arg0: i32) -> (i32, i32, i32) {
    %c0_i32 = arith.constant 0 : i32
    %c0_i32_0 = arith.constant 0 : i32
    %c0_i32_1 = arith.constant 0 : i32
    return %arg0, %c0_i32, %c0_i32_0 : i32, i32, i32
  }
  func.func @transform_1(%arg0: i32) -> (i32, i32) {
    %c0_i32 = arith.constant 0 : i32
    %c0_i32_0 = arith.constant 0 : i32
    %c0_i32_1 = arith.constant 0 : i32
    return %c0_i32, %c0_i32_0 : i32, i32
  }
  func.func @transform_2(%arg0: i32) -> (i32, i32) {
    %c0_i32 = arith.constant 0 : i32
    %c0_i32_0 = arith.constant 0 : i32
    %c0_i32_1 = arith.constant 0 : i32
    return %c0_i32, %c0_i32_0 : i32, i32
  }
  func.func @transform_3(%arg0: i32) -> (i32, i32) {
    %c0_i32 = arith.constant 0 : i32
    %c0_i32_0 = arith.constant 0 : i32
    %c0_i32_1 = arith.constant 0 : i32
    return %c0_i32, %c0_i32_0 : i32, i32
  }
  func.func @transform_4(%arg0: i32) -> (i32, i32) {
    %c0_i32 = arith.constant 0 : i32
    %c0_i32_0 = arith.constant 0 : i32
    %c0_i32_1 = arith.constant 0 : i32
    return %c0_i32, %c0_i32_0 : i32, i32
  }
  func.func @transform_5(%arg0: i32) -> (i32, i32) {
    %c0_i32 = arith.constant 0 : i32
    %c0_i32_0 = arith.constant 0 : i32
    %c0_i32_1 = arith.constant 0 : i32
    return %c0_i32, %c0_i32_0 : i32, i32
  }
  func.func @transform_6(%arg0: i32) -> (i32, i32) {
    %c0_i32 = arith.constant 0 : i32
    %c0_i32_0 = arith.constant 0 : i32
    %c0_i32_1 = arith.constant 0 : i32
    return %c0_i32, %c0_i32_0 : i32, i32
  }
  func.func @transform_7(%arg0: i32) -> (i32, i32) {
    %c0_i32 = arith.constant 0 : i32
    %c0_i32_0 = arith.constant 0 : i32
    %c0_i32_1 = arith.constant 0 : i32
    return %c0_i32, %c0_i32_0 : i32, i32
  }
  func.func @transform_8(%arg0: i32) -> (i32, i32) {
    %c0_i32 = arith.constant 0 : i32
    %c0_i32_0 = arith.constant 0 : i32
    %c0_i32_1 = arith.constant 0 : i32
    return %c0_i32, %c0_i32_0 : i32, i32
  }
  func.func @transform_9(%arg0: i32) -> (i32, i32) {
    %c0_i32 = arith.constant 0 : i32
    %c0_i32_0 = arith.constant 0 : i32
    %c0_i32_1 = arith.constant 0 : i32
    return %c0_i32, %c0_i32_0 : i32, i32
  }
  func.func @transform_10(%arg0: i32) -> (i32, i32) {
    %c0_i32 = arith.constant 0 : i32
    %c0_i32_0 = arith.constant 0 : i32
    %c0_i32_1 = arith.constant 0 : i32
    return %c0_i32, %c0_i32_0 : i32, i32
  }
  func.func @transform_11(%arg0: i32) -> (i32, i32) {
    %c0_i32 = arith.constant 0 : i32
    %c0_i32_0 = arith.constant 0 : i32
    %c0_i32_1 = arith.constant 0 : i32
    return %c0_i32, %c0_i32_0 : i32, i32
  }
  func.func @transform_12(%arg0: i32) -> (i32, i32) {
    %c0_i32 = arith.constant 0 : i32
    %c0_i32_0 = arith.constant 0 : i32
    %c0_i32_1 = arith.constant 0 : i32
    return %c0_i32, %c0_i32_0 : i32, i32
  }
  func.func @transform_13(%arg0: i32) -> (i32, i32) {
    %c0_i32 = arith.constant 0 : i32
    %c0_i32_0 = arith.constant 0 : i32
    %c0_i32_1 = arith.constant 0 : i32
    return %c0_i32, %c0_i32_0 : i32, i32
  }
  func.func @transform_14(%arg0: i32) -> (i32, i32) {
    %c0_i32 = arith.constant 0 : i32
    %c0_i32_0 = arith.constant 0 : i32
    %c0_i32_1 = arith.constant 0 : i32
    return %c0_i32, %c0_i32_0 : i32, i32
  }
  func.func @transform_15(%arg0: i32) -> (i32, i32, i32) {
    %c0_i32 = arith.constant 0 : i32
    %c0_i32_0 = arith.constant 0 : i32
    %c0_i32_1 = arith.constant 0 : i32
    return %arg0, %c0_i32, %c0_i32_0 : i32, i32, i32
  }
}

</mosaic_0001>

<llo_original>
// kernel: ghost_bottleneck_forward.1
$region0: #{ghost_bottleneck_forward.1}
  #allocation0 [shape = 'u32[]', space=smem, size = 0x4, offset = 0x4, fixed_abs, tag = 'smem constant byte address 0x4 - core index']
  #allocation1 [shape = 'u32[144,128]{1,0:T(1,128)}', space=vmem, size = 0x12000, scoped, tag = 'internal scratch']
  #allocation2 [shape = 'f32[336,4]{1,0:T(8,128)}', space=vmem, size = 0x2a000, scoped, tag = 'scratch operand']
  #allocation3 [shape = 'f32[336,8]{1,0:T(8,128)}', space=vmem, size = 0x2a000, scoped, tag = 'scratch operand']
  %s0 = inlined_call_operand.vmem [shape: f32[2,256,16], index: 0, kind: input, shape index: {}]
  %s1 = inlined_call_operand.vmem [shape: f32[256,5], index: 1, kind: input, shape index: {}]
  %s2 = inlined_call_operand.vmem [shape: f32[16,4], index: 2, kind: input, shape index: {}]
  %s3 = inlined_call_operand.vmem [shape: f32[25,4], index: 3, kind: input, shape index: {}]
  %s4 = inlined_call_operand.vmem [shape: f32[4,8], index: 4, kind: input, shape index: {}]
  %s5 = inlined_call_operand.vmem [shape: f32[4,8], index: 5, kind: input, shape index: {}]
  %s6 = inlined_call_operand.vmem [shape: f32[25,8], index: 6, kind: input, shape index: {}]
  %s7 = inlined_call_operand.vmem [shape: f32[1,4], index: 7, kind: input, shape index: {}]
  %s8 = inlined_call_operand.vmem [shape: f32[1,4], index: 8, kind: input, shape index: {}]
  %s9 = inlined_call_operand.vmem [shape: f32[1,4], index: 9, kind: input, shape index: {}]
  %s10 = inlined_call_operand.vmem [shape: f32[1,4], index: 10, kind: input, shape index: {}]
  %s11 = inlined_call_operand.vmem [shape: f32[1,8], index: 11, kind: input, shape index: {}]
  %s12 = inlined_call_operand.vmem [shape: f32[1,8], index: 12, kind: input, shape index: {}]
  %s13 = inlined_call_operand.vmem [shape: f32[1,8], index: 13, kind: input, shape index: {}]
  %s14 = inlined_call_operand.vmem [shape: f32[1,8], index: 14, kind: input, shape index: {}]
  %s15 = inlined_call_operand.vmem [shape: f32[2,256,16], index: 15, kind: output, shape index: {}]
  %s16 = sld [smem:[#allocation0]]
  $region93: #{ghost_bottleneck_forward.1} parent=0
    _
  %s18 = ssub.s32 1, %s16
  %s19 = scalar_select 0, %s18, %s16
  loop: start=0, step=1, limit=4
  $region2: #{ghost_bottleneck_forward.1} parent=0 // loop_pre_header
    _
  $region3: #{ghost_bottleneck_forward.1} parent=0 // loop_header
    %s21 = sphi 0, %s25
    %p22 = scmp.ge.s32.totalorder %s21, 4
    %s31 = sphi 0, %s33
    %s34 = sphi 0, %s31
    %s35 = sphi 0, %s34
    %s51 = sphi 0, %s35
    %s55 = sphi 0, %s55
    %s57 = sphi 0, %s55
    %s58 = sphi 0, %s57
    %s72 = sphi 0, %s58
    %s76 = sphi 0, %s76
    %s78 = sphi 0, %s76
    %s79 = sphi 0, %s78
    %s93 = sphi 0, %s79
    %s97 = sphi 0, %s97
    %s99 = sphi 0, %s97
    %s100 = sphi 0, %s99
    %s114 = sphi 0, %s100
    %s118 = sphi 0, %s118
    %s120 = sphi 0, %s118
    %s121 = sphi 0, %s120
    %s135 = sphi 0, %s121
    %s139 = sphi 0, %s139
    %s141 = sphi 0, %s139
    %s142 = sphi 0, %s141
    %s156 = sphi 0, %s142
    %s160 = sphi 0, %s160
    %s162 = sphi 0, %s160
    %s163 = sphi 0, %s162
    %s177 = sphi 0, %s163
    %s181 = sphi 0, %s181
    %s183 = sphi 0, %s181
    %s184 = sphi 0, %s183
    %s198 = sphi 0, %s184
    %s202 = sphi 0, %s202
    %s204 = sphi 0, %s202
    %s205 = sphi 0, %s204
    %s219 = sphi 0, %s205
    %s223 = sphi 0, %s223
    %s225 = sphi 0, %s223
    %s226 = sphi 0, %s225
    %s240 = sphi 0, %s226
    %s244 = sphi 0, %s244
    %s246 = sphi 0, %s244
    %s247 = sphi 0, %s246
    %s261 = sphi 0, %s247
    %s265 = sphi 0, %s265
    %s267 = sphi 0, %s265
    %s268 = sphi 0, %s267
    %s282 = sphi 0, %s268
    %s286 = sphi 0, %s286
    %s288 = sphi 0, %s286
    %s289 = sphi 0, %s288
    %s303 = sphi 0, %s289
    %s307 = sphi 0, %s307
    %s309 = sphi 0, %s307
    %s310 = sphi 0, %s309
    %s324 = sphi 0, %s310
    %s328 = sphi 0, %s328
    %s330 = sphi 0, %s328
    %s331 = sphi 0, %s330
    %s345 = sphi 0, %s331
    %s351 = sphi 0, %s353
    %s354 = sphi 0, %s351
    %s355 = sphi 0, %s354
    %s371 = sphi 0, %s355
  $region4: #{ghost_bottleneck_forward.1} parent=0 // loop_header_branch
    %24 = sbr.rel (%p22) target = $region8
  $region5: #{ghost_bottleneck_forward.1} parent=0 // loop_body
    %s26 = ssub.s32 %s21, 1
    %s27 = ssub.s32 %s21, 2
    %s28 = sadd.s32 %s21, 1
    %s29 = ssub.s32 %s21, %s28
    %p30 = scmp.eq.s32.totalorder %s29, 0
    %s32 = sadd.s32 %s31, 1
    %s33 = scalar_select %p30, %s31, %s32
    %p36 = pneg %p30
    %p37 = scmp.eq.s32.totalorder %s21, 1
    %p38 = por %p36, %p37
    %p39 = scmp.ne.s32.totalorder %s31, %s34
    %p40 = scmp.eq.s32.totalorder %s21, 0
    %p41 = por %p39, %p40
    %p42 = scmp.ne.s32.totalorder %s31, %s34
    %p43 = scmp.eq.s32.totalorder %s26, 1
    %p44 = por %p42, %p43
    %p45 = scmp.ne.s32.totalorder %s34, %s35
    %p46 = scmp.eq.s32.totalorder %s26, 0
    %p47 = por %p45, %p46
    %p48 = scmp.ne.s32.totalorder %s34, %s35
    %p49 = scmp.eq.s32.totalorder %s27, 1
    %p50 = por %p48, %p49
    %p52 = scmp.ne.s32.totalorder %s35, %s51
    %p53 = scmp.eq.s32.totalorder %s27, 0
    %p54 = por %p52, %p53
    %s56 = sadd.s32 %s55, 1
    %p59 = scmp.eq.s32.totalorder %s21, 1
    %p60 = scmp.ne.s32.totalorder %s55, %s57
    %p61 = scmp.eq.s32.totalorder %s21, 0
    %p62 = por %p60, %p61
    %p63 = scmp.ne.s32.totalorder %s55, %s57
    %p64 = scmp.eq.s32.totalorder %s26, 1
    %p65 = por %p63, %p64
    %p66 = scmp.ne.s32.totalorder %s57, %s58
    %p67 = scmp.eq.s32.totalorder %s26, 0
    %p68 = por %p66, %p67
    %p69 = scmp.ne.s32.totalorder %s57, %s58
    %p70 = scmp.eq.s32.totalorder %s27, 1
    %p71 = por %p69, %p70
    %p73 = scmp.ne.s32.totalorder %s58, %s72
    %p74 = scmp.eq.s32.totalorder %s27, 0
    %p75 = por %p73, %p74
    %s77 = sadd.s32 %s76, 1
    %p80 = scmp.eq.s32.totalorder %s21, 1
    %p81 = scmp.ne.s32.totalorder %s76, %s78
    %p82 = scmp.eq.s32.totalorder %s21, 0
    %p83 = por %p81, %p82
    %p84 = scmp.ne.s32.totalorder %s76, %s78
    %p85 = scmp.eq.s32.totalorder %s26, 1
    %p86 = por %p84, %p85
    %p87 = scmp.ne.s32.totalorder %s78, %s79
    %p88 = scmp.eq.s32.totalorder %s26, 0
    %p89 = por %p87, %p88
    %p90 = scmp.ne.s32.totalorder %s78, %s79
    %p91 = scmp.eq.s32.totalorder %s27, 1
    %p92 = por %p90, %p91
    %p94 = scmp.ne.s32.totalorder %s79, %s93
    %p95 = scmp.eq.s32.totalorder %s27, 0
    %p96 = por %p94, %p95
    %s98 = sadd.s32 %s97, 1
    %p101 = scmp.eq.s32.totalorder %s21, 1
    %p102 = scmp.ne.s32.totalorder %s97, %s99
    %p103 = scmp.eq.s32.totalorder %s21, 0
    %p104 = por %p102, %p103
    %p105 = scmp.ne.s32.totalorder %s97, %s99
    %p106 = scmp.eq.s32.totalorder %s26, 1
    %p107 = por %p105, %p106
    %p108 = scmp.ne.s32.totalorder %s99, %s100
    %p109 = scmp.eq.s32.totalorder %s26, 0
    %p110 = por %p108, %p109
    %p111 = scmp.ne.s32.totalorder %s99, %s100
    %p112 = scmp.eq.s32.totalorder %s27, 1
    %p113 = por %p111, %p112
    %p115 = scmp.ne.s32.totalorder %s100, %s114
    %p116 = scmp.eq.s32.totalorder %s27, 0
    %p117 = por %p115, %p116
    %s119 = sadd.s32 %s118, 1
    %p122 = scmp.eq.s32.totalorder %s21, 1
    %p123 = scmp.ne.s32.totalorder %s118, %s120
    %p124 = scmp.eq.s32.totalorder %s21, 0
    %p125 = por %p123, %p124
    %p126 = scmp.ne.s32.totalorder %s118, %s120
    %p127 = scmp.eq.s32.totalorder %s26, 1
    %p128 = por %p126, %p127
    %p129 = scmp.ne.s32.totalorder %s120, %s121
    %p130 = scmp.eq.s32.totalorder %s26, 0
    %p131 = por %p129, %p130
    %p132 = scmp.ne.s32.totalorder %s120, %s121
    %p133 = scmp.eq.s32.totalorder %s27, 1
    %p134 = por %p132, %p133
    %p136 = scmp.ne.s32.totalorder %s121, %s135
    %p137 = scmp.eq.s32.totalorder %s27, 0
    %p138 = por %p136, %p137
    %s140 = sadd.s32 %s139, 1
    %p143 = scmp.eq.s32.totalorder %s21, 1
    %p144 = scmp.ne.s32.totalorder %s139, %s141
    %p145 = scmp.eq.s32.totalorder %s21, 0
    %p146 = por %p144, %p145
    %p147 = scmp.ne.s32.totalorder %s139, %s141
    %p148 = scmp.eq.s32.totalorder %s26, 1
    %p149 = por %p147, %p148
    %p150 = scmp.ne.s32.totalorder %s141, %s142
    %p151 = scmp.eq.s32.totalorder %s26, 0
    %p152 = por %p150, %p151
    %p153 = scmp.ne.s32.totalorder %s141, %s142
    %p154 = scmp.eq.s32.totalorder %s27, 1
    %p155 = por %p153, %p154
    %p157 = scmp.ne.s32.totalorder %s142, %s156
    %p158 = scmp.eq.s32.totalorder %s27, 0
    %p159 = por %p157, %p158
    %s161 = sadd.s32 %s160, 1
    %p164 = scmp.eq.s32.totalorder %s21, 1
    %p165 = scmp.ne.s32.totalorder %s160, %s162
    %p166 = scmp.eq.s32.totalorder %s21, 0
    %p167 = por %p165, %p166
    %p168 = scmp.ne.s32.totalorder %s160, %s162
    %p169 = scmp.eq.s32.totalorder %s26, 1
    %p170 = por %p168, %p169
    %p171 = scmp.ne.s32.totalorder %s162, %s163
    %p172 = scmp.eq.s32.totalorder %s26, 0
    %p173 = por %p171, %p172
    %p174 = scmp.ne.s32.totalorder %s162, %s163
    %p175 = scmp.eq.s32.totalorder %s27, 1
    %p176 = por %p174, %p175
    %p178 = scmp.ne.s32.totalorder %s163, %s177
    %p179 = scmp.eq.s32.totalorder %s27, 0
    %p180 = por %p178, %p179
    %s182 = sadd.s32 %s181, 1
    %p185 = scmp.eq.s32.totalorder %s21, 1
    %p186 = scmp.ne.s32.totalorder %s181, %s183
    %p187 = scmp.eq.s32.totalorder %s21, 0
    %p188 = por %p186, %p187
    %p189 = scmp.ne.s32.totalorder %s181, %s183
    %p190 = scmp.eq.s32.totalorder %s26, 1
    %p191 = por %p189, %p190
    %p192 = scmp.ne.s32.totalorder %s183, %s184
    %p193 = scmp.eq.s32.totalorder %s26, 0
    %p194 = por %p192, %p193
    %p195 = scmp.ne.s32.totalorder %s183, %s184
    %p196 = scmp.eq.s32.totalorder %s27, 1
    %p197 = por %p195, %p196
    %p199 = scmp.ne.s32.totalorder %s184, %s198
    %p200 = scmp.eq.s32.totalorder %s27, 0
    %p201 = por %p199, %p200
    %s203 = sadd.s32 %s202, 1
    %p206 = scmp.eq.s32.totalorder %s21, 1
    %p207 = scmp.ne.s32.totalorder %s202, %s204
    %p208 = scmp.eq.s32.totalorder %s21, 0
    %p209 = por %p207, %p208
    %p210 = scmp.ne.s32.totalorder %s202, %s204
    %p211 = scmp.eq.s32.totalorder %s26, 1
    %p212 = por %p210, %p211
    %p213 = scmp.ne.s32.totalorder %s204, %s205
    %p214 = scmp.eq.s32.totalorder %s26, 0
    %p215 = por %p213, %p214
    %p216 = scmp.ne.s32.totalorder %s204, %s205
    %p217 = scmp.eq.s32.totalorder %s27, 1
    %p218 = por %p216, %p217
    %p220 = scmp.ne.s32.totalorder %s205, %s219
    %p221 = scmp.eq.s32.totalorder %s27, 0
    %p222 = por %p220, %p221
    %s224 = sadd.s32 %s223, 1
    %p227 = scmp.eq.s32.totalorder %s21, 1
    %p228 = scmp.ne.s32.totalorder %s223, %s225
    %p229 = scmp.eq.s32.totalorder %s21, 0
    %p230 = por %p228, %p229
    %p231 = scmp.ne.s32.totalorder %s223, %s225
    %p232 = scmp.eq.s32.totalorder %s26, 1
    %p233 = por %p231, %p232
    %p234 = scmp.ne.s32.totalorder %s225, %s226
    %p235 = scmp.eq.s32.totalorder %s26, 0
    %p236 = por %p234, %p235
    %p237 = scmp.ne.s32.totalorder %s225, %s226
    %p238 = scmp.eq.s32.totalorder %s27, 1
    %p239 = por %p237, %p238
    %p241 = scmp.ne.s32.totalorder %s226, %s240
    %p242 = scmp.eq.s32.totalorder %s27, 0
    %p243 = por %p241, %p242
    %s245 = sadd.s32 %s244, 1
    %p248 = scmp.eq.s32.totalorder %s21, 1
    %p249 = scmp.ne.s32.totalorder %s244, %s246
    %p250 = scmp.eq.s32.totalorder %s21, 0
    %p251 = por %p249, %p250
    %p252 = scmp.ne.s32.totalorder %s244, %s246
    %p253 = scmp.eq.s32.totalorder %s26, 1
    %p254 = por %p252, %p253
    %p255 = scmp.ne.s32.totalorder %s246, %s247
    %p256 = scmp.eq.s32.totalorder %s26, 0
    %p257 = por %p255, %p256
    %p258 = scmp.ne.s32.totalorder %s246, %s247
    %p259 = scmp.eq.s32.totalorder %s27, 1
    %p260 = por %p258, %p259
    %p262 = scmp.ne.s32.totalorder %s247, %s261
    %p263 = scmp.eq.s32.totalorder %s27, 0
    %p264 = por %p262, %p263
    %s266 = sadd.s32 %s265, 1
    %p269 = scmp.eq.s32.totalorder %s21, 1
    %p270 = scmp.ne.s32.totalorder %s265, %s267
    %p271 = scmp.eq.s32.totalorder %s21, 0
    %p272 = por %p270, %p271
    %p273 = scmp.ne.s32.totalorder %s265, %s267
    %p274 = scmp.eq.s32.totalorder %s26, 1
    %p275 = por %p273, %p274
    %p276 = scmp.ne.s32.totalorder %s267, %s268
    %p277 = scmp.eq.s32.totalorder %s26, 0
    %p278 = por %p276, %p277
    %p279 = scmp.ne.s32.totalorder %s267, %s268
    %p280 = scmp.eq.s32.totalorder %s27, 1
    %p281 = por %p279, %p280
    %p283 = scmp.ne.s32.totalorder %s268, %s282
    %p284 = scmp.eq.s32.totalorder %s27, 0
    %p285 = por %p283, %p284
    %s287 = sadd.s32 %s286, 1
    %p290 = scmp.eq.s32.totalorder %s21, 1
    %p291 = scmp.ne.s32.totalorder %s286, %s288
    %p292 = scmp.eq.s32.totalorder %s21, 0
    %p293 = por %p291, %p292
    %p294 = scmp.ne.s32.totalorder %s286, %s288
    %p295 = scmp.eq.s32.totalorder %s26, 1
    %p296 = por %p294, %p295
    %p297 = scmp.ne.s32.totalorder %s288, %s289
    %p298 = scmp.eq.s32.totalorder %s26, 0
    %p299 = por %p297, %p298
    %p300 = scmp.ne.s32.totalorder %s288, %s289
    %p301 = scmp.eq.s32.totalorder %s27, 1
    %p302 = por %p300, %p301
    %p304 = scmp.ne.s32.totalorder %s289, %s303
    %p305 = scmp.eq.s32.totalorder %s27, 0
    %p306 = por %p304, %p305
    %s308 = sadd.s32 %s307, 1
    %p311 = scmp.eq.s32.totalorder %s21, 1
    %p312 = scmp.ne.s32.totalorder %s307, %s309
    %p313 = scmp.eq.s32.totalorder %s21, 0
    %p314 = por %p312, %p313
    %p315 = scmp.ne.s32.totalorder %s307, %s309
    %p316 = scmp.eq.s32.totalorder %s26, 1
    %p317 = por %p315, %p316
    %p318 = scmp.ne.s32.totalorder %s309, %s310
    %p319 = scmp.eq.s32.totalorder %s26, 0
    %p320 = por %p318, %p319
    %p321 = scmp.ne.s32.totalorder %s309, %s310
    %p322 = scmp.eq.s32.totalorder %s27, 1
    %p323 = por %p321, %p322
    %p325 = scmp.ne.s32.totalorder %s310, %s324
    %p326 = scmp.eq.s32.totalorder %s27, 0
    %p327 = por %p325, %p326
    %s329 = sadd.s32 %s328, 1
    %p332 = scmp.eq.s32.totalorder %s21, 1
    %p333 = scmp.ne.s32.totalorder %s328, %s330
    %p334 = scmp.eq.s32.totalorder %s21, 0
    %p335 = por %p333, %p334
    %p336 = scmp.ne.s32.totalorder %s328, %s330
    %p337 = scmp.eq.s32.totalorder %s26, 1
    %p338 = por %p336, %p337
    %p339 = scmp.ne.s32.totalorder %s330, %s331
    %p340 = scmp.eq.s32.totalorder %s26, 0
    %p341 = por %p339, %p340
    %p342 = scmp.ne.s32.totalorder %s330, %s331
    %p343 = scmp.eq.s32.totalorder %s27, 1
    %p344 = por %p342, %p343
    %p346 = scmp.ne.s32.totalorder %s331, %s345
    %p347 = scmp.eq.s32.totalorder %s27, 0
    %p348 = por %p346, %p347
    %s349 = ssub.s32 %s21, %s28
    %p350 = scmp.eq.s32.totalorder %s349, 0
    %s352 = sadd.s32 %s351, 1
    %s353 = scalar_select %p350, %s351, %s352
    %p356 = pneg %p350
    %p357 = scmp.eq.s32.totalorder %s21, 1
    %p358 = por %p356, %p357
    %p359 = scmp.ne.s32.totalorder %s351, %s354
    %p360 = scmp.eq.s32.totalorder %s21, 0
    %p361 = por %p359, %p360
    %p362 = scmp.ne.s32.totalorder %s351, %s354
    %p363 = scmp.eq.s32.totalorder %s26, 1
    %p364 = por %p362, %p363
    %p365 = scmp.ne.s32.totalorder %s354, %s355
    %p366 = scmp.eq.s32.totalorder %s26, 0
    %p367 = por %p365, %p366
    %p368 = scmp.ne.s32.totalorder %s354, %s355
    %p369 = scmp.eq.s32.totalorder %s27, 1
    %p370 = por %p368, %p369
    %p372 = scmp.ne.s32.totalorder %s355, %s371
    %p373 = scmp.eq.s32.totalorder %s27, 0
    %p374 = por %p372, %p373
    %p375 = scmp.le.s32.totalorder 1, %s21
    %p376 = scmp.lt.s32.totalorder %s21, 3
    %p377 = pnand %p375, %p376
    %p378 = pneg %p377
    // Predicated region
    $region9: #{ghost_bottleneck_forward.1} parent=5 // pred_check
      _
    $region10: #{ghost_bottleneck_forward.1} parent=5 // pred_check_branch
      %380 = sbr.rel (%p377) target = $region12
    $region11: #{ghost_bottleneck_forward.1} parent=5 // pred_region
      %s381 = ssub.s32 %s21, 1
      // Predicated region
      $region13: #{ghost_bottleneck_forward.1} parent=11 // pred_check
        %p382 = pneg %p68
      $region14: #{ghost_bottleneck_forward.1} parent=11 // pred_check_branch
        %384 = sbr.rel (%p382) target = $region16
      $region15: #{ghost_bottleneck_forward.1} parent=11 // pred_region
        _
      $region16: #{ghost_bottleneck_forward.1} parent=11 // pred_fallthru
        _
      // Predicated region
      $region17: #{ghost_bottleneck_forward.1} parent=11 // pred_check
        %p385 = pneg %p89
      $region18: #{ghost_bottleneck_forward.1} parent=11 // pred_check_branch
        %387 = sbr.rel (%p385) target = $region20
      $region19: #{ghost_bottleneck_forward.1} parent=11 // pred_region
        _
      $region20: #{ghost_bottleneck_forward.1} parent=11 // pred_fallthru
        _
      // Predicated region
      $region21: #{ghost_bottleneck_forward.1} parent=11 // pred_check
        %p388 = pneg %p110
      $region22: #{ghost_bottleneck_forward.1} parent=11 // pred_check_branch
        %390 = sbr.rel (%p388) target = $region24
      $region23: #{ghost_bottleneck_forward.1} parent=11 // pred_region
        _
      $region24: #{ghost_bottleneck_forward.1} parent=11 // pred_fallthru
        _
      // Predicated region
      $region25: #{ghost_bottleneck_forward.1} parent=11 // pred_check
        %p391 = pneg %p131
      $region26: #{ghost_bottleneck_forward.1} parent=11 // pred_check_branch
        %393 = sbr.rel (%p391) target = $region28
      $region27: #{ghost_bottleneck_forward.1} parent=11 // pred_region
        _
      $region28: #{ghost_bottleneck_forward.1} parent=11 // pred_fallthru
        _
      // Predicated region
      $region29: #{ghost_bottleneck_forward.1} parent=11 // pred_check
        %p394 = pneg %p152
      $region30: #{ghost_bottleneck_forward.1} parent=11 // pred_check_branch
        %396 = sbr.rel (%p394) target = $region32
      $region31: #{ghost_bottleneck_forward.1} parent=11 // pred_region
        _
      $region32: #{ghost_bottleneck_forward.1} parent=11 // pred_fallthru
        _
      // Predicated region
      $region33: #{ghost_bottleneck_forward.1} parent=11 // pred_check
        %p397 = pneg %p173
      $region34: #{ghost_bottleneck_forward.1} parent=11 // pred_check_branch
        %399 = sbr.rel (%p397) target = $region36
      $region35: #{ghost_bottleneck_forward.1} parent=11 // pred_region
        _
      $region36: #{ghost_bottleneck_forward.1} parent=11 // pred_fallthru
        _
      // Predicated region
      $region37: #{ghost_bottleneck_forward.1} parent=11 // pred_check
        %p400 = pneg %p194
      $region38: #{ghost_bottleneck_forward.1} parent=11 // pred_check_branch
        %402 = sbr.rel (%p400) target = $region40
      $region39: #{ghost_bottleneck_forward.1} parent=11 // pred_region
        _
      $region40: #{ghost_bottleneck_forward.1} parent=11 // pred_fallthru
        _
      // Predicated region
      $region41: #{ghost_bottleneck_forward.1} parent=11 // pred_check
        %p403 = pneg %p215
      $region42: #{ghost_bottleneck_forward.1} parent=11 // pred_check_branch
        %405 = sbr.rel (%p403) target = $region44
      $region43: #{ghost_bottleneck_forward.1} parent=11 // pred_region
        _
      $region44: #{ghost_bottleneck_forward.1} parent=11 // pred_fallthru
        _
      // Predicated region
      $region45: #{ghost_bottleneck_forward.1} parent=11 // pred_check
        %p406 = pneg %p236
      $region46: #{ghost_bottleneck_forward.1} parent=11 // pred_check_branch
        %408 = sbr.rel (%p406) target = $region48
      $region47: #{ghost_bottleneck_forward.1} parent=11 // pred_region
        _
      $region48: #{ghost_bottleneck_forward.1} parent=11 // pred_fallthru
        _
      // Predicated region
      $region49: #{ghost_bottleneck_forward.1} parent=11 // pred_check
        %p409 = pneg %p257
      $region50: #{ghost_bottleneck_forward.1} parent=11 // pred_check_branch
        %411 = sbr.rel (%p409) target = $region52
      $region51: #{ghost_bottleneck_forward.1} parent=11 // pred_region
        _
      $region52: #{ghost_bottleneck_forward.1} parent=11 // pred_fallthru
        _
      // Predicated region
      $region53: #{ghost_bottleneck_forward.1} parent=11 // pred_check
        %p412 = pneg %p278
      $region54: #{ghost_bottleneck_forward.1} parent=11 // pred_check_branch
        %414 = sbr.rel (%p412) target = $region56
      $region55: #{ghost_bottleneck_forward.1} parent=11 // pred_region
        _
      $region56: #{ghost_bottleneck_forward.1} parent=11 // pred_fallthru
        _
      // Predicated region
      $region57: #{ghost_bottleneck_forward.1} parent=11 // pred_check
        %p415 = pneg %p299
      $region58: #{ghost_bottleneck_forward.1} parent=11 // pred_check_branch
        %417 = sbr.rel (%p415) target = $region60
      $region59: #{ghost_bottleneck_forward.1} parent=11 // pred_region
        _
      $region60: #{ghost_bottleneck_forward.1} parent=11 // pred_fallthru
        _
      // Predicated region
      $region61: #{ghost_bottleneck_forward.1} parent=11 // pred_check
        %p418 = pneg %p320
      $region62: #{ghost_bottleneck_forward.1} parent=11 // pred_check_branch
        %420 = sbr.rel (%p418) target = $region64
      $region63: #{ghost_bottleneck_forward.1} parent=11 // pred_region
        _
      $region64: #{ghost_bottleneck_forward.1} parent=11 // pred_fallthru
        _
      // Predicated region
      $region65: #{ghost_bottleneck_forward.1} parent=11 // pred_check
        %p421 = pneg %p341
      $region66: #{ghost_bottleneck_forward.1} parent=11 // pred_check_branch
        %423 = sbr.rel (%p421) target = $region68
      $region67: #{ghost_bottleneck_forward.1} parent=11 // pred_region
        _
      $region68: #{ghost_bottleneck_forward.1} parent=11 // pred_fallthru
        _
    $region12: #{ghost_bottleneck_forward.1} parent=5 // pred_fallthru
      _
    %p424 = scmp.lt.s32.totalorder %s21, 2
    // Predicated region
    $region69: #{ghost_bottleneck_forward.1} parent=5 // pred_check
      %p425 = pneg %p424
    $region70: #{ghost_bottleneck_forward.1} parent=5 // pred_check_branch
      %427 = sbr.rel (%p425) target = $region72
    $region71: #{ghost_bottleneck_forward.1} parent=5 // pred_region
      // Predicated region
      $region73: #{ghost_bottleneck_forward.1} parent=71 // pred_check
        %p428 = pneg %p41
      $region74: #{ghost_bottleneck_forward.1} parent=71 // pred_check_branch
        %430 = sbr.rel (%p428) target = $region76
      $region75: #{ghost_bottleneck_forward.1} parent=71 // pred_region
        %p431 = scmp.lt.s32.totalorder %s21, 1
        %s432 = scalar_select %p431, %s21, 1
        %s433 = smul.addr %s432, 32
        %s434 = smul.addr %s433, 8
        %s435 = scalar_lea.vmem %s0, %s434
      $region76: #{ghost_bottleneck_forward.1} parent=71 // pred_fallthru
        _
    $region72: #{ghost_bottleneck_forward.1} parent=5 // pred_fallthru
      _
    %p436 = scmp.le.s32.totalorder 1, %s21
    %p437 = scmp.lt.s32.totalorder %s21, 3
    %p438 = pnand %p436, %p437
    %p439 = pneg %p438
    // Predicated region
    $region77: #{ghost_bottleneck_forward.1} parent=5 // pred_check
      _
    $region78: #{ghost_bottleneck_forward.1} parent=5 // pred_check_branch
      %441 = sbr.rel (%p438) target = $region80
    $region79: #{ghost_bottleneck_forward.1} parent=5 // pred_region
      %s442 = ssub.s32 %s21, 1
      %p443 = scmp.lt.s32.totalorder %s26, 1
      %s444 = scalar_select %p443, %s26, 1
      %s445 = smul.addr %s444, 32
      %s446 = smul.addr %s445, 8
      %s447 = scalar_lea.vmem %s0, %s446
      %p448 = pneg %p47
      %p449 = pneg %p44
      %p450 = pneg %p68
      %p451 = pneg %p65
      %p452 = pneg %p89
      %p453 = pneg %p86
      %p454 = pneg %p110
      %p455 = pneg %p107
      %p456 = pneg %p131
      %p457 = pneg %p128
      %p458 = pneg %p152
      %p459 = pneg %p149
      %p460 = pneg %p173
      %p461 = pneg %p170
      %p462 = pneg %p194
      %p463 = pneg %p191
      %p464 = pneg %p215
      %p465 = pneg %p212
      %p466 = pneg %p236
      %p467 = pneg %p233
      %p468 = pneg %p257
      %p469 = pneg %p254
      %p470 = pneg %p278
      %p471 = pneg %p275
      %p472 = pneg %p299
      %p473 = pneg %p296
      %p474 = pneg %p320
      %p475 = pneg %p317
      %p476 = pneg %p341
      %p477 = pneg %p338
      %p478 = pneg %p367
      %p479 = pneg %p364
      %p480 = scmp.lt.s32.totalorder %s26, 1
      %s481 = scalar_select %p480, %s26, 1
      %s482 = smul.addr %s481, 32
      %s483 = smul.addr %s482, 8
      %s484 = scalar_lea.vmem %s15, %s483
      %p485 = scmp.lt.s32.totalorder %s26, 1
      %s486 = scalar_select %p485, %s26, 1
      %s487 = smul.addr %s486, 32
      %s488 = smul.addr %s487, 8
      %s489 = scalar_lea.vmem %s0, %s488
      %p490 = scmp.lt.s32.totalorder %s26, 1
      %s491 = scalar_select %p490, %s26, 1
      %s492 = smul.addr %s491, 32
      %s493 = smul.addr %s492, 8
      %s494 = scalar_lea.vmem %s15, %s493
      %v495 = vld [vmem:[%s489] sm:$0xff]
      %v496 = vld [vmem:[%s489 + $0x8] sm:$0xff]
      %v497 = vld [vmem:[%s489 + $0x10] sm:$0xff]
      %v498 = vld [vmem:[%s489 + $0x18] sm:$0xff]
      %v499 = vld [vmem:[%s489 + $0x20] sm:$0xff]
      %v500 = vld [vmem:[%s489 + $0x28] sm:$0xff]
      %v501 = vld [vmem:[%s489 + $0x30] sm:$0xff]
      %v502 = vld [vmem:[%s489 + $0x38] sm:$0xff]
      %v503 = vld [vmem:[%s489 + $0x40] sm:$0xff]
      %v504 = vld [vmem:[%s489 + $0x48] sm:$0xff]
      %v505 = vld [vmem:[%s489 + $0x50] sm:$0xff]
      %v506 = vld [vmem:[%s489 + $0x58] sm:$0xff]
      %v507 = vld [vmem:[%s489 + $0x60] sm:$0xff]
      %v508 = vld [vmem:[%s489 + $0x68] sm:$0xff]
      %v509 = vld [vmem:[%s489 + $0x70] sm:$0xff]
      %v510 = vld [vmem:[%s489 + $0x78] sm:$0xff]
      %v511 = vld [vmem:[%s489 + $0x80] sm:$0xff]
      %v512 = vld [vmem:[%s489 + $0x88] sm:$0xff]
      %v513 = vld [vmem:[%s489 + $0x90] sm:$0xff]
      %v514 = vld [vmem:[%s489 + $0x98] sm:$0xff]
      %v515 = vld [vmem:[%s489 + $0xa0] sm:$0xff]
      %v516 = vld [vmem:[%s489 + $0xa8] sm:$0xff]
      %v517 = vld [vmem:[%s489 + $0xb0] sm:$0xff]
      %v518 = vld [vmem:[%s489 + $0xb8] sm:$0xff]
      %v519 = vld [vmem:[%s489 + $0xc0] sm:$0xff]
      %v520 = vld [vmem:[%s489 + $0xc8] sm:$0xff]
      %v521 = vld [vmem:[%s489 + $0xd0] sm:$0xff]
      %v522 = vld [vmem:[%s489 + $0xd8] sm:$0xff]
      %v523 = vld [vmem:[%s489 + $0xe0] sm:$0xff]
      %v524 = vld [vmem:[%s489 + $0xe8] sm:$0xff]
      %v525 = vld [vmem:[%s489 + $0xf0] sm:$0xff]
      %v526 = vld [vmem:[%s489 + $0xf8] sm:$0xff]
      %v527 = vld [vmem:[%s1] sm:$0xff]
      %v528 = vld [vmem:[%s1 + $0x8] sm:$0xff]
      %v529 = vld [vmem:[%s1 + $0x10] sm:$0xff]
      %v530 = vld [vmem:[%s1 + $0x18] sm:$0xff]
      %v531 = vld [vmem:[%s1 + $0x20] sm:$0xff]
      %v532 = vld [vmem:[%s1 + $0x28] sm:$0xff]
      %v533 = vld [vmem:[%s1 + $0x30] sm:$0xff]
      %v534 = vld [vmem:[%s1 + $0x38] sm:$0xff]
      %v535 = vld [vmem:[%s1 + $0x40] sm:$0xff]
      %v536 = vld [vmem:[%s1 + $0x48] sm:$0xff]
      %v537 = vld [vmem:[%s1 + $0x50] sm:$0xff]
      %v538 = vld [vmem:[%s1 + $0x58] sm:$0xff]
      %v539 = vld [vmem:[%s1 + $0x60] sm:$0xff]
      %v540 = vld [vmem:[%s1 + $0x68] sm:$0xff]
      %v541 = vld [vmem:[%s1 + $0x70] sm:$0xff]
      %v542 = vld [vmem:[%s1 + $0x78] sm:$0xff]
      %v543 = vld [vmem:[%s1 + $0x80] sm:$0xff]
      %v544 = vld [vmem:[%s1 + $0x88] sm:$0xff]
      %v545 = vld [vmem:[%s1 + $0x90] sm:$0xff]
      %v546 = vld [vmem:[%s1 + $0x98] sm:$0xff]
      %v547 = vld [vmem:[%s1 + $0xa0] sm:$0xff]
      %v548 = vld [vmem:[%s1 + $0xa8] sm:$0xff]
      %v549 = vld [vmem:[%s1 + $0xb0] sm:$0xff]
      %v550 = vld [vmem:[%s1 + $0xb8] sm:$0xff]
      %v551 = vld [vmem:[%s1 + $0xc0] sm:$0xff]
      %v552 = vld [vmem:[%s1 + $0xc8] sm:$0xff]
      %v553 = vld [vmem:[%s1 + $0xd0] sm:$0xff]
      %v554 = vld [vmem:[%s1 + $0xd8] sm:$0xff]
      %v555 = vld [vmem:[%s1 + $0xe0] sm:$0xff]
      %v556 = vld [vmem:[%s1 + $0xe8] sm:$0xff]
      %v557 = vld [vmem:[%s1 + $0xf0] sm:$0xff]
      %v558 = vld [vmem:[%s1 + $0xf8] sm:$0xff]
      %v559 = vld [vmem:[%s2] sm:$0xff]
      %v560 = vld [vmem:[%s2 + $0x8] sm:$0xff]
      %vm561 = vcmask 130048
      %v563 = vsel %vm561, %v495, 0
      %v566 = vsel %vm561, %v496, 0
      %v569 = vsel %vm561, %v497, 0
      %v572 = vsel %vm561, %v498, 0
      %v575 = vsel %vm561, %v499, 0
      %v578 = vsel %vm561, %v500, 0
      %v581 = vsel %vm561, %v501, 0
      %v584 = vsel %vm561, %v502, 0
      %v587 = vsel %vm561, %v503, 0
      %v590 = vsel %vm561, %v504, 0
      %v593 = vsel %vm561, %v505, 0
      %v596 = vsel %vm561, %v506, 0
      %v599 = vsel %vm561, %v507, 0
      %v602 = vsel %vm561, %v508, 0
      %v605 = vsel %vm561, %v509, 0
      %v608 = vsel %vm561, %v510, 0
      %v611 = vsel %vm561, %v511, 0
      %v614 = vsel %vm561, %v512, 0
      %v617 = vsel %vm561, %v513, 0
      %v620 = vsel %vm561, %v514, 0
      %v623 = vsel %vm561, %v515, 0
      %v626 = vsel %vm561, %v516, 0
      %v629 = vsel %vm561, %v517, 0
      %v632 = vsel %vm561, %v518, 0
      %v635 = vsel %vm561, %v519, 0
      %v638 = vsel %vm561, %v520, 0
      %v641 = vsel %vm561, %v521, 0
      %v644 = vsel %vm561, %v522, 0
      %v647 = vsel %vm561, %v523, 0
      %v650 = vsel %vm561, %v524, 0
      %v653 = vsel %vm561, %v525, 0
      %v656 = vsel %vm561, %v526, 0
      %658 = vmatprep.subr.mxu0 0.0
      %659 = vmatpush1.msra.mxu0 %v559
      %660 = vmatprep.subr.mxu0 0.0
      %661 = vmatpush1.msra.mxu0 %v560
      %662 = vmatprep.subr.mxu0 0.0
      %663 = vmatpush1.msra.mxu0 0.0
      %664 = vmatprep.subr.mxu0 0.0
      %665 = vmatpush1.msra.mxu0 0.0
      %666 = vmatprep.subr.mxu0 0.0
      %667 = vmatpush1.msra.mxu0 0.0
      %668 = vmatprep.subr.mxu0 0.0
      %669 = vmatpush1.msra.mxu0 0.0
      %670 = vmatprep.subr.mxu0 0.0
      %671 = vmatpush1.msra.mxu0 0.0
      %672 = vmatprep.subr.mxu0 0.0
      %673 = vmatpush1.msra.mxu0 0.0
      %674 = vmatprep.subr.mxu0 0.0
      %675 = vmatpush1.msra.mxu0 0.0
      %676 = vmatprep.subr.mxu0 0.0
      %677 = vmatpush1.msra.mxu0 0.0
      %678 = vmatprep.subr.mxu0 0.0
      %679 = vmatpush1.msra.mxu0 0.0
      %680 = vmatprep.subr.mxu0 0.0
      %681 = vmatpush1.msra.mxu0 0.0
      %682 = vmatprep.subr.mxu0 0.0
      %683 = vmatpush1.msra.mxu0 0.0
      %684 = vmatprep.subr.mxu0 0.0
      %685 = vmatpush1.msra.mxu0 0.0
      %686 = vmatprep.subr.mxu0 0.0
      %687 = vmatpush1.msra.mxu0 0.0
      %688 = vmatprep.subr.mxu0 0.0
      %689 = vmatpush1.msra.mxu0 0.0
      %690 = vmatprep.subr.mxu0 0.0
      %691 = vmatpush1.msra.mxu0 0.0
      %692 = vmatprep.subr.mxu0 0.0
      %693 = vmatpush1.msra.mxu0 0.0
      %694 = vmatprep.subr.mxu0 0.0
      %695 = vmatpush1.msra.mxu0 0.0
      %696 = vmatprep.subr.mxu0 0.0
      %697 = vmatpush1.msra.mxu0 0.0
      %698 = vmatprep.subr.mxu0 0.0
      %699 = vmatpush1.msra.mxu0 0.0
      %700 = vmatprep.subr.mxu0 0.0
      %701 = vmatpush1.msra.mxu0 0.0
      %702 = vmatprep.subr.mxu0 0.0
      %703 = vmatpush1.msra.mxu0 0.0
      %704 = vmatprep.subr.mxu0 0.0
      %705 = vmatpush1.msra.mxu0 0.0
      %706 = vmatprep.subr.mxu0 0.0
      %707 = vmatpush1.msra.mxu0 0.0
      %708 = vmatprep.subr.mxu0 0.0
      %709 = vmatpush1.msra.mxu0 0.0
      %710 = vmatprep.subr.mxu0 0.0
      %711 = vmatpush1.msra.mxu0 0.0
      %712 = vmatprep.subr.mxu0 0.0
      %713 = vmatpush1.msra.mxu0 0.0
      %714 = vmatprep.subr.mxu0 0.0
      %715 = vmatpush1.msra.mxu0 0.0
      %716 = vmatprep.subr.mxu0 0.0
      %717 = vmatpush1.msra.mxu0 0.0
      %718 = vmatprep.subr.mxu0 0.0
      %719 = vmatpush1.msra.mxu0 0.0
      %720 = vmatprep.subr.mxu0 0.0
      %721 = vmatpush1.msra.mxu0 0.0
      %722 = vmatprep.mubr.f32.mxu0 0.0
      %723 = vmatmul.mubr.f32.gmra.mrb[0].mxu0 %v563
      %v724 = vpop.f32.mrb[0].mxu0
      %v725 = vadd.f32 0.0, %v724
      %v726 = vpop.f32.mrb[0].mxu0
      %727 = vmatprep.mubr.f32.mxu0 0.0
      %728 = vmatmul.mubr.f32.gmra.mrb[0].mxu0 %v566
      %v729 = vpop.f32.mrb[0].mxu0
      %v730 = vadd.f32 0.0, %v729
      %v731 = vpop.f32.mrb[0].mxu0
      %732 = vmatprep.mubr.f32.mxu0 0.0
      %733 = vmatmul.mubr.f32.gmra.mrb[0].mxu0 %v569
      %v734 = vpop.f32.mrb[0].mxu0
      %v735 = vadd.f32 0.0, %v734
      %v736 = vpop.f32.mrb[0].mxu0
      %737 = vmatprep.mubr.f32.mxu0 0.0
      %738 = vmatmul.mubr.f32.gmra.mrb[0].mxu0 %v572
      %v739 = vpop.f32.mrb[0].mxu0
      %v740 = vadd.f32 0.0, %v739
      %v741 = vpop.f32.mrb[0].mxu0
      %742 = vmatprep.mubr.f32.mxu0 0.0
      %743 = vmatmul.mubr.f32.gmra.mrb[0].mxu0 %v575
      %v744 = vpop.f32.mrb[0].mxu0
      %v745 = vadd.f32 0.0, %v744
      %v746 = vpop.f32.mrb[0].mxu0
      %747 = vmatprep.mubr.f32.mxu0 0.0
      %748 = vmatmul.mubr.f32.gmra.mrb[0].mxu0 %v578
      %v749 = vpop.f32.mrb[0].mxu0
      %v750 = vadd.f32 0.0, %v749
      %v751 = vpop.f32.mrb[0].mxu0
      %752 = vmatprep.mubr.f32.mxu0 0.0
      %753 = vmatmul.mubr.f32.gmra.mrb[0].mxu0 %v581
      %v754 = vpop.f32.mrb[0].mxu0
      %v755 = vadd.f32 0.0, %v754
      %v756 = vpop.f32.mrb[0].mxu0
      %757 = vmatprep.mubr.f32.mxu0 0.0
      %758 = vmatmul.mubr.f32.gmra.mrb[0].mxu0 %v584
      %v759 = vpop.f32.mrb[0].mxu0
      %v760 = vadd.f32 0.0, %v759
      %v761 = vpop.f32.mrb[0].mxu0
      %762 = vmatprep.mubr.f32.mxu0 0.0
      %763 = vmatmul.mubr.f32.gmra.mrb[0].mxu0 %v587
      %v764 = vpop.f32.mrb[0].mxu0
      %v765 = vadd.f32 0.0, %v764
      %v766 = vpop.f32.mrb[0].mxu0
      %767 = vmatprep.mubr.f32.mxu0 0.0
      %768 = vmatmul.mubr.f32.gmra.mrb[0].mxu0 %v590
      %v769 = vpop.f32.mrb[0].mxu0
      %v770 = vadd.f32 0.0, %v769
      %v771 = vpop.f32.mrb[0].mxu0
      %772 = vmatprep.mubr.f32.mxu0 0.0
      %773 = vmatmul.mubr.f32.gmra.mrb[0].mxu0 %v593
      %v774 = vpop.f32.mrb[0].mxu0
      %v775 = vadd.f32 0.0, %v774
      %v776 = vpop.f32.mrb[0].mxu0
      %777 = vmatprep.mubr.f32.mxu0 0.0
      %778 = vmatmul.mubr.f32.gmra.mrb[0].mxu0 %v596
      %v779 = vpop.f32.mrb[0].mxu0
      %v780 = vadd.f32 0.0, %v779
      %v781 = vpop.f32.mrb[0].mxu0
      %782 = vmatprep.mubr.f32.mxu0 0.0
      %783 = vmatmul.mubr.f32.gmra.mrb[0].mxu0 %v599
      %v784 = vpop.f32.mrb[0].mxu0
      %v785 = vadd.f32 0.0, %v784
      %v786 = vpop.f32.mrb[0].mxu0
      %787 = vmatprep.mubr.f32.mxu0 0.0
      %788 = vmatmul.mubr.f32.gmra.mrb[0].mxu0 %v602
      %v789 = vpop.f32.mrb[0].mxu0
      %v790 = vadd.f32 0.0, %v789
      %v791 = vpop.f32.mrb[0].mxu0
      %792 = vmatprep.mubr.f32.mxu0 0.0
      %793 = vmatmul.mubr.f32.gmra.mrb[0].mxu0 %v605
      %v794 = vpop.f32.mrb[0].mxu0
      %v795 = vadd.f32 0.0, %v794
      %v796 = vpop.f32.mrb[0].mxu0
      %797 = vmatprep.mubr.f32.mxu0 0.0
      %798 = vmatmul.mubr.f32.gmra.mrb[0].mxu0 %v608
      %v799 = vpop.f32.mrb[0].mxu0
      %v800 = vadd.f32 0.0, %v799
      %v801 = vpop.f32.mrb[0].mxu0
      %802 = vmatprep.mubr.f32.mxu0 0.0
      %803 = vmatmul.mubr.f32.gmra.mrb[0].mxu0 %v611
      %v804 = vpop.f32.mrb[0].mxu0
      %v805 = vadd.f32 0.0, %v804
      %v806 = vpop.f32.mrb[0].mxu0
      %807 = vmatprep.mubr.f32.mxu0 0.0
      %808 = vmatmul.mubr.f32.gmra.mrb[0].mxu0 %v614
      %v809 = vpop.f32.mrb[0].mxu0
      %v810 = vadd.f32 0.0, %v809
      %v811 = vpop.f32.mrb[0].mxu0
      %812 = vmatprep.mubr.f32.mxu0 0.0
      %813 = vmatmul.mubr.f32.gmra.mrb[0].mxu0 %v617
      %v814 = vpop.f32.mrb[0].mxu0
      %v815 = vadd.f32 0.0, %v814
      %v816 = vpop.f32.mrb[0].mxu0
      %817 = vmatprep.mubr.f32.mxu0 0.0
      %818 = vmatmul.mubr.f32.gmra.mrb[0].mxu0 %v620
      %v819 = vpop.f32.mrb[0].mxu0
      %v820 = vadd.f32 0.0, %v819
      %v821 = vpop.f32.mrb[0].mxu0
      %822 = vmatprep.mubr.f32.mxu0 0.0
      %823 = vmatmul.mubr.f32.gmra.mrb[0].mxu0 %v623
      %v824 = vpop.f32.mrb[0].mxu0
      %v825 = vadd.f32 0.0, %v824
      %v826 = vpop.f32.mrb[0].mxu0
      %827 = vmatprep.mubr.f32.mxu0 0.0
      %828 = vmatmul.mubr.f32.gmra.mrb[0].mxu0 %v626
      %v829 = vpop.f32.mrb[0].mxu0
      %v830 = vadd.f32 0.0, %v829
      %v831 = vpop.f32.mrb[0].mxu0
      %832 = vmatprep.mubr.f32.mxu0 0.0
      %833 = vmatmul.mubr.f32.gmra.mrb[0].mxu0 %v629
      %v834 = vpop.f32.mrb[0].mxu0
      %v835 = vadd.f32 0.0, %v834
      %v836 = vpop.f32.mrb[0].mxu0
      %837 = vmatprep.mubr.f32.mxu0 0.0
      %838 = vmatmul.mubr.f32.gmra.mrb[0].mxu0 %v632
      %v839 = vpop.f32.mrb[0].mxu0
      %v840 = vadd.f32 0.0, %v839
      %v841 = vpop.f32.mrb[0].mxu0
      %842 = vmatprep.mubr.f32.mxu0 0.0
      %843 = vmatmul.mubr.f32.gmra.mrb[0].mxu0 %v635
      %v844 = vpop.f32.mrb[0].mxu0
      %v845 = vadd.f32 0.0, %v844
      %v846 = vpop.f32.mrb[0].mxu0
      %847 = vmatprep.mubr.f32.mxu0 0.0
      %848 = vmatmul.mubr.f32.gmra.mrb[0].mxu0 %v638
      %v849 = vpop.f32.mrb[0].mxu0
      %v850 = vadd.f32 0.0, %v849
      %v851 = vpop.f32.mrb[0].mxu0
      %852 = vmatprep.mubr.f32.mxu0 0.0
      %853 = vmatmul.mubr.f32.gmra.mrb[0].mxu0 %v641
      %v854 = vpop.f32.mrb[0].mxu0
      %v855 = vadd.f32 0.0, %v854
      %v856 = vpop.f32.mrb[0].mxu0
      %857 = vmatprep.mubr.f32.mxu0 0.0
      %858 = vmatmul.mubr.f32.gmra.mrb[0].mxu0 %v644
      %v859 = vpop.f32.mrb[0].mxu0
      %v860 = vadd.f32 0.0, %v859
      %v861 = vpop.f32.mrb[0].mxu0
      %862 = vmatprep.mubr.f32.mxu0 0.0
      %863 = vmatmul.mubr.f32.gmra.mrb[0].mxu0 %v647
      %v864 = vpop.f32.mrb[0].mxu0
      %v865 = vadd.f32 0.0, %v864
      %v866 = vpop.f32.mrb[0].mxu0
      %867 = vmatprep.mubr.f32.mxu0 0.0
      %868 = vmatmul.mubr.f32.gmra.mrb[0].mxu0 %v650
      %v869 = vpop.f32.mrb[0].mxu0
      %v870 = vadd.f32 0.0, %v869
      %v871 = vpop.f32.mrb[0].mxu0
      %872 = vmatprep.mubr.f32.mxu0 0.0
      %873 = vmatmul.mubr.f32.gmra.mrb[0].mxu0 %v653
      %v874 = vpop.f32.mrb[0].mxu0
      %v875 = vadd.f32 0.0, %v874
      %v876 = vpop.f32.mrb[0].mxu0
      %877 = vmatprep.mubr.f32.mxu0 0.0
      %878 = vmatmul.mubr.f32.gmra.mrb[0].mxu0 %v656
      %v879 = vpop.f32.mrb[0].mxu0
      %v880 = vadd.f32 0.0, %v879
      %v881 = vpop.f32.mrb[0].mxu0
      %882 = vdwg.mxu0
      %v883 = vld [vmem:[%s7] sm:$0x1]
      %v885 = vlaneseq
      %v886 = vshrl.u32 %v885, 7
      %v887 = vsub.s32 0, %v886
      %v888 = vrot.slane %v883, %v887
      %v890 = vmul.f32 %v725, %v888
      %v891 = vmul.f32 %v730, %v888
      %v892 = vmul.f32 %v735, %v888
      %v893 = vmul.f32 %v740, %v888
      %v894 = vmul.f32 %v745, %v888
      %v895 = vmul.f32 %v750, %v888
      %v896 = vmul.f32 %v755, %v888
      %v897 = vmul.f32 %v760, %v888
      %v898 = vmul.f32 %v765, %v888
      %v899 = vmul.f32 %v770, %v888
      %v900 = vmul.f32 %v775, %v888
      %v901 = vmul.f32 %v780, %v888
      %v902 = vmul.f32 %v785, %v888
      %v903 = vmul.f32 %v790, %v888
      %v904 = vmul.f32 %v795, %v888
      %v905 = vmul.f32 %v800, %v888
      %v906 = vmul.f32 %v805, %v888
      %v907 = vmul.f32 %v810, %v888
      %v908 = vmul.f32 %v815, %v888
      %v909 = vmul.f32 %v820, %v888
      %v910 = vmul.f32 %v825, %v888
      %v911 = vmul.f32 %v830, %v888
      %v912 = vmul.f32 %v835, %v888
      %v913 = vmul.f32 %v840, %v888
      %v914 = vmul.f32 %v845, %v888
      %v915 = vmul.f32 %v850, %v888
      %v916 = vmul.f32 %v855, %v888
      %v917 = vmul.f32 %v860, %v888
      %v918 = vmul.f32 %v865, %v888
      %v919 = vmul.f32 %v870, %v888
      %v920 = vmul.f32 %v875, %v888
      %v921 = vmul.f32 %v880, %v888
      %v922 = vld [vmem:[%s8] sm:$0x1]
      %v924 = vlaneseq
      %v925 = vshrl.u32 %v924, 7
      %v926 = vsub.s32 0, %v925
      %v927 = vrot.slane %v922, %v926
      %v929 = vadd.f32 %v890, %v927
      %v930 = vadd.f32 %v891, %v927
      %v931 = vadd.f32 %v892, %v927
      %v932 = vadd.f32 %v893, %v927
      %v933 = vadd.f32 %v894, %v927
      %v934 = vadd.f32 %v895, %v927
      %v935 = vadd.f32 %v896, %v927
      %v936 = vadd.f32 %v897, %v927
      %v937 = vadd.f32 %v898, %v927
      %v938 = vadd.f32 %v899, %v927
      %v939 = vadd.f32 %v900, %v927
      %v940 = vadd.f32 %v901, %v927
      %v941 = vadd.f32 %v902, %v927
      %v942 = vadd.f32 %v903, %v927
      %v943 = vadd.f32 %v904, %v927
      %v944 = vadd.f32 %v905, %v927
      %v945 = vadd.f32 %v906, %v927
      %v946 = vadd.f32 %v907, %v927
      %v947 = vadd.f32 %v908, %v927
      %v948 = vadd.f32 %v909, %v927
      %v949 = vadd.f32 %v910, %v927
      %v950 = vadd.f32 %v911, %v927
      %v951 = vadd.f32 %v912, %v927
      %v952 = vadd.f32 %v913, %v927
      %v953 = vadd.f32 %v914, %v927
      %v954 = vadd.f32 %v915, %v927
      %v955 = vadd.f32 %v916, %v927
      %v956 = vadd.f32 %v917, %v927
      %v957 = vadd.f32 %v918, %v927
      %v958 = vadd.f32 %v919, %v927
      %v959 = vadd.f32 %v920, %v927
      %v960 = vadd.f32 %v921, %v927
      %v961 = vsub.f32 0.0, %v929
      %v962 = vsub.f32 0.0, %v930
      %v963 = vsub.f32 0.0, %v931
      %v964 = vsub.f32 0.0, %v932
      %v965 = vsub.f32 0.0, %v933
      %v966 = vsub.f32 0.0, %v934
      %v967 = vsub.f32 0.0, %v935
      %v968 = vsub.f32 0.0, %v936
      %v969 = vsub.f32 0.0, %v937
      %v970 = vsub.f32 0.0, %v938
      %v971 = vsub.f32 0.0, %v939
      %v972 = vsub.f32 0.0, %v940
      %v973 = vsub.f32 0.0, %v941
      %v974 = vsub.f32 0.0, %v942
      %v975 = vsub.f32 0.0, %v943
      %v976 = vsub.f32 0.0, %v944
      %v977 = vsub.f32 0.0, %v945
      %v978 = vsub.f32 0.0, %v946
      %v979 = vsub.f32 0.0, %v947
      %v980 = vsub.f32 0.0, %v948
      %v981 = vsub.f32 0.0, %v949
      %v982 = vsub.f32 0.0, %v950
      %v983 = vsub.f32 0.0, %v951
      %v984 = vsub.f32 0.0, %v952
      %v985 = vsub.f32 0.0, %v953
      %v986 = vsub.f32 0.0, %v954
      %v987 = vsub.f32 0.0, %v955
      %v988 = vsub.f32 0.0, %v956
      %v989 = vsub.f32 0.0, %v957
      %v990 = vsub.f32 0.0, %v958
      %v991 = vsub.f32 0.0, %v959
      %v992 = vsub.f32 0.0, %v960
      %v993 = vmul.f32 %v961, 1.442695
      %v994 = vpow.pop %v993
      %v995 = vmul.f32 %v962, 1.442695
      %v996 = vpow.pop %v995
      %v997 = vmul.f32 %v963, 1.442695
      %v998 = vpow.pop %v997
      %v999 = vmul.f32 %v964, 1.442695
      %v1000 = vpow.pop %v999
      %v1001 = vmul.f32 %v965, 1.442695
      %v1002 = vpow.pop %v1001
      %v1003 = vmul.f32 %v966, 1.442695
      %v1004 = vpow.pop %v1003
      %v1005 = vmul.f32 %v967, 1.442695
      %v1006 = vpow.pop %v1005
      %v1007 = vmul.f32 %v968, 1.442695
      %v1008 = vpow.pop %v1007
      %v1009 = vmul.f32 %v969, 1.442695
      %v1010 = vpow.pop %v1009
      %v1011 = vmul.f32 %v970, 1.442695
      %v1012 = vpow.pop %v1011
      %v1013 = vmul.f32 %v971, 1.442695
      %v1014 = vpow.pop %v1013
      %v1015 = vmul.f32 %v972, 1.442695
      %v1016 = vpow.pop %v1015
      %v1017 = vmul.f32 %v973, 1.442695
      %v1018 = vpow.pop %v1017
      %v1019 = vmul.f32 %v974, 1.442695
      %v1020 = vpow.pop %v1019
      %v1021 = vmul.f32 %v975, 1.442695
      %v1022 = vpow.pop %v1021
      %v1023 = vmul.f32 %v976, 1.442695
      %v1024 = vpow.pop %v1023
      %v1025 = vmul.f32 %v977, 1.442695
      %v1026 = vpow.pop %v1025
      %v1027 = vmul.f32 %v978, 1.442695
      %v1028 = vpow.pop %v1027
      %v1029 = vmul.f32 %v979, 1.442695
      %v1030 = vpow.pop %v1029
      %v1031 = vmul.f32 %v980, 1.442695
      %v1032 = vpow.pop %v1031
      %v1033 = vmul.f32 %v981, 1.442695
      %v1034 = vpow.pop %v1033
      %v1035 = vmul.f32 %v982, 1.442695
      %v1036 = vpow.pop %v1035
      %v1037 = vmul.f32 %v983, 1.442695
      %v1038 = vpow.pop %v1037
      %v1039 = vmul.f32 %v984, 1.442695
      %v1040 = vpow.pop %v1039
      %v1041 = vmul.f32 %v985, 1.442695
      %v1042 = vpow.pop %v1041
      %v1043 = vmul.f32 %v986, 1.442695
      %v1044 = vpow.pop %v1043
      %v1045 = vmul.f32 %v987, 1.442695
      %v1046 = vpow.pop %v1045
      %v1047 = vmul.f32 %v988, 1.442695
      %v1048 = vpow.pop %v1047
      %v1049 = vmul.f32 %v989, 1.442695
      %v1050 = vpow.pop %v1049
      %v1051 = vmul.f32 %v990, 1.442695
      %v1052 = vpow.pop %v1051
      %v1053 = vmul.f32 %v991, 1.442695
      %v1054 = vpow.pop %v1053
      %v1055 = vmul.f32 %v992, 1.442695
      %v1056 = vpow.pop %v1055
      %v1057 = vadd.f32 %v994, 1.0
      %v1058 = vadd.f32 %v996, 1.0
      %v1059 = vadd.f32 %v998, 1.0
      %v1060 = vadd.f32 %v1000, 1.0
      %v1061 = vadd.f32 %v1002, 1.0
      %v1062 = vadd.f32 %v1004, 1.0
      %v1063 = vadd.f32 %v1006, 1.0
      %v1064 = vadd.f32 %v1008, 1.0
      %v1065 = vadd.f32 %v1010, 1.0
      %v1066 = vadd.f32 %v1012, 1.0
      %v1067 = vadd.f32 %v1014, 1.0
      %v1068 = vadd.f32 %v1016, 1.0
      %v1069 = vadd.f32 %v1018, 1.0
      %v1070 = vadd.f32 %v1020, 1.0
      %v1071 = vadd.f32 %v1022, 1.0
      %v1072 = vadd.f32 %v1024, 1.0
      %v1073 = vadd.f32 %v1026, 1.0
      %v1074 = vadd.f32 %v1028, 1.0
      %v1075 = vadd.f32 %v1030, 1.0
      %v1076 = vadd.f32 %v1032, 1.0
      %v1077 = vadd.f32 %v1034, 1.0
      %v1078 = vadd.f32 %v1036, 1.0
      %v1079 = vadd.f32 %v1038, 1.0
      %v1080 = vadd.f32 %v1040, 1.0
      %v1081 = vadd.f32 %v1042, 1.0
      %v1082 = vadd.f32 %v1044, 1.0
      %v1083 = vadd.f32 %v1046, 1.0
      %v1084 = vadd.f32 %v1048, 1.0
      %v1085 = vadd.f32 %v1050, 1.0
      %v1086 = vadd.f32 %v1052, 1.0
      %v1087 = vadd.f32 %v1054, 1.0
      %v1088 = vadd.f32 %v1056, 1.0
      %v1089 = vrcp.pop %v1057
      %v1090 = vrcp.pop %v1058
      %v1091 = vrcp.pop %v1059
      %v1092 = vrcp.pop %v1060
      %v1093 = vrcp.pop %v1061
      %v1094 = vrcp.pop %v1062
      %v1095 = vrcp.pop %v1063
      %v1096 = vrcp.pop %v1064
      %v1097 = vrcp.pop %v1065
      %v1098 = vrcp.pop %v1066
      %v1099 = vrcp.pop %v1067
      %v1100 = vrcp.pop %v1068
      %v1101 = vrcp.pop %v1069
      %v1102 = vrcp.pop %v1070
      %v1103 = vrcp.pop %v1071
      %v1104 = vrcp.pop %v1072
      %v1105 = vrcp.pop %v1073
      %v1106 = vrcp.pop %v1074
      %v1107 = vrcp.pop %v1075
      %v1108 = vrcp.pop %v1076
      %v1109 = vrcp.pop %v1077
      %v1110 = vrcp.pop %v1078
      %v1111 = vrcp.pop %v1079
      %v1112 = vrcp.pop %v1080
      %v1113 = vrcp.pop %v1081
      %v1114 = vrcp.pop %v1082
      %v1115 = vrcp.pop %v1083
      %v1116 = vrcp.pop %v1084
      %v1117 = vrcp.pop %v1085
      %v1118 = vrcp.pop %v1086
      %v1119 = vrcp.pop %v1087
      %v1120 = vrcp.pop %v1088
      %v1121 = vmul.f32 %v929, %v1089
      %v1122 = vmul.f32 %v930, %v1090
      %v1123 = vmul.f32 %v931, %v1091
      %v1124 = vmul.f32 %v932, %v1092
      %v1125 = vmul.f32 %v933, %v1093
      %v1126 = vmul.f32 %v934, %v1094
      %v1127 = vmul.f32 %v935, %v1095
      %v1128 = vmul.f32 %v936, %v1096
      %v1129 = vmul.f32 %v937, %v1097
      %v1130 = vmul.f32 %v938, %v1098
      %v1131 = vmul.f32 %v939, %v1099
      %v1132 = vmul.f32 %v940, %v1100
      %v1133 = vmul.f32 %v941, %v1101
      %v1134 = vmul.f32 %v942, %v1102
      %v1135 = vmul.f32 %v943, %v1103
      %v1136 = vmul.f32 %v944, %v1104
      %v1137 = vmul.f32 %v945, %v1105
      %v1138 = vmul.f32 %v946, %v1106
      %v1139 = vmul.f32 %v947, %v1107
      %v1140 = vmul.f32 %v948, %v1108
      %v1141 = vmul.f32 %v949, %v1109
      %v1142 = vmul.f32 %v950, %v1110
      %v1143 = vmul.f32 %v951, %v1111
      %v1144 = vmul.f32 %v952, %v1112
      %v1145 = vmul.f32 %v953, %v1113
      %v1146 = vmul.f32 %v954, %v1114
      %v1147 = vmul.f32 %v955, %v1115
      %v1148 = vmul.f32 %v956, %v1116
      %v1149 = vmul.f32 %v957, %v1117
      %v1150 = vmul.f32 %v958, %v1118
      %v1151 = vmul.f32 %v959, %v1119
      %v1152 = vmul.f32 %v960, %v1120
      %vm1153 = vcmask 31744
      %1154 = vst.msk [vmem:[#allocation2] sm:$0xff] %vm1153, 0.0
      %1155 = vst.msk [vmem:[#allocation2 + $0x8] sm:$0xff] %vm1153, 0.0
      %1156 = vst.msk [vmem:[#allocation2 + $0x10] sm:$0xff] %vm1153, 0.0
      %1157 = vst.msk [vmem:[#allocation2 + $0x18] sm:$0xff] %vm1153, 0.0
      %1158 = vst.msk [vmem:[#allocation2 + $0x20] sm:$0xff] %vm1153, 0.0
      %1159 = vst.msk [vmem:[#allocation2 + $0x128] sm:$0xff] %vm1153, 0.0
      %1160 = vst.msk [vmem:[#allocation2 + $0x130] sm:$0xff] %vm1153, 0.0
      %1161 = vst.msk [vmem:[#allocation2 + $0x138] sm:$0xff] %vm1153, 0.0
      %1162 = vst.msk [vmem:[#allocation2 + $0x140] sm:$0xff] %vm1153, 0.0
      %1163 = vst.msk [vmem:[#allocation2 + $0x148] sm:$0xff] %vm1153, 0.0
      %1164 = vst.msk [vmem:[#allocation2 + $0x28] sm:$0xff] %vm1153, %v1121
      %1165 = vst.msk [vmem:[#allocation2 + $0x30] sm:$0xff] %vm1153, %v1122
      %1166 = vst.msk [vmem:[#allocation2 + $0x38] sm:$0xff] %vm1153, %v1123
      %1167 = vst.msk [vmem:[#allocation2 + $0x40] sm:$0xff] %vm1153, %v1124
      %1168 = vst.msk [vmem:[#allocation2 + $0x48] sm:$0xff] %vm1153, %v1125
      %1169 = vst.msk [vmem:[#allocation2 + $0x50] sm:$0xff] %vm1153, %v1126
      %1170 = vst.msk [vmem:[#allocation2 + $0x58] sm:$0xff] %vm1153, %v1127
      %1171 = vst.msk [vmem:[#allocation2 + $0x60] sm:$0xff] %vm1153, %v1128
      %1172 = vst.msk [vmem:[#allocation2 + $0x68] sm:$0xff] %vm1153, %v1129
      %1173 = vst.msk [vmem:[#allocation2 + $0x70] sm:$0xff] %vm1153, %v1130
      %1174 = vst.msk [vmem:[#allocation2 + $0x78] sm:$0xff] %vm1153, %v1131
      %1175 = vst.msk [vmem:[#allocation2 + $0x80] sm:$0xff] %vm1153, %v1132
      %1176 = vst.msk [vmem:[#allocation2 + $0x88] sm:$0xff] %vm1153, %v1133
      %1177 = vst.msk [vmem:[#allocation2 + $0x90] sm:$0xff] %vm1153, %v1134
      %1178 = vst.msk [vmem:[#allocation2 + $0x98] sm:$0xff] %vm1153, %v1135
      %1179 = vst.msk [vmem:[#allocation2 + $0xa0] sm:$0xff] %vm1153, %v1136
      %1180 = vst.msk [vmem:[#allocation2 + $0xa8] sm:$0xff] %vm1153, %v1137
      %1181 = vst.msk [vmem:[#allocation2 + $0xb0] sm:$0xff] %vm1153, %v1138
      %1182 = vst.msk [vmem:[#allocation2 + $0xb8] sm:$0xff] %vm1153, %v1139
      %1183 = vst.msk [vmem:[#allocation2 + $0xc0] sm:$0xff] %vm1153, %v1140
      %1184 = vst.msk [vmem:[#allocation2 + $0xc8] sm:$0xff] %vm1153, %v1141
      %1185 = vst.msk [vmem:[#allocation2 + $0xd0] sm:$0xff] %vm1153, %v1142
      %1186 = vst.msk [vmem:[#allocation2 + $0xd8] sm:$0xff] %vm1153, %v1143
      %1187 = vst.msk [vmem:[#allocation2 + $0xe0] sm:$0xff] %vm1153, %v1144
      %1188 = vst.msk [vmem:[#allocation2 + $0xe8] sm:$0xff] %vm1153, %v1145
      %1189 = vst.msk [vmem:[#allocation2 + $0xf0] sm:$0xff] %vm1153, %v1146
      %1190 = vst.msk [vmem:[#allocation2 + $0xf8] sm:$0xff] %vm1153, %v1147
      %1191 = vst.msk [vmem:[#allocation2 + $0x100] sm:$0xff] %vm1153, %v1148
      %1192 = vst.msk [vmem:[#allocation2 + $0x108] sm:$0xff] %vm1153, %v1149
      %1193 = vst.msk [vmem:[#allocation2 + $0x110] sm:$0xff] %vm1153, %v1150
      %1194 = vst.msk [vmem:[#allocation2 + $0x118] sm:$0xff] %vm1153, %v1151
      %1195 = vst.msk [vmem:[#allocation2 + $0x120] sm:$0xff] %vm1153, %v1152
      %v1196 = vld [vmem:[%s3] sm:$0xff]
      %v1197 = vld [vmem:[%s3 + $0x8] sm:$0xff]
      %v1198 = vld [vmem:[%s3 + $0x10] sm:$0xff]
      %v1199 = vld [vmem:[%s3 + $0x18] sm:$0x1]
      %v1200 = vld [vmem:[#allocation2 + $0x6] sm:$0xff]
      %v1201 = vld [vmem:[#allocation2 + $0xe] sm:$0xff]
      %v1202 = vld [vmem:[#allocation2 + $0x16] sm:$0xff]
      %v1203 = vld [vmem:[#allocation2 + $0x1e] sm:$0xff]
      %v1204 = vld [vmem:[#allocation2 + $0x26] sm:$0xff]
      %v1205 = vld [vmem:[#allocation2 + $0x2e] sm:$0xff]
      %v1206 = vld [vmem:[#allocation2 + $0x36] sm:$0xff]
      %v1207 = vld [vmem:[#allocation2 + $0x3e] sm:$0xff]
      %v1208 = vld [vmem:[#allocation2 + $0x46] sm:$0xff]
      %v1209 = vld [vmem:[#allocation2 + $0x4e] sm:$0xff]
      %v1210 = vld [vmem:[#allocation2 + $0x56] sm:$0xff]
      %v1211 = vld [vmem:[#allocation2 + $0x5e] sm:$0xff]
      %v1212 = vld [vmem:[#allocation2 + $0x66] sm:$0xff]
      %v1213 = vld [vmem:[#allocation2 + $0x6e] sm:$0xff]
      %v1214 = vld [vmem:[#allocation2 + $0x76] sm:$0xff]
      %v1215 = vld [vmem:[#allocation2 + $0x7e] sm:$0xff]
      %v1216 = vld [vmem:[#allocation2 + $0x86] sm:$0xff]
      %v1217 = vld [vmem:[#allocation2 + $0x8e] sm:$0xff]
      %v1218 = vld [vmem:[#allocation2 + $0x96] sm:$0xff]
      %v1219 = vld [vmem:[#allocation2 + $0x9e] sm:$0xff]
      %v1220 = vld [vmem:[#allocation2 + $0xa6] sm:$0xff]
      %v1221 = vld [vmem:[#allocation2 + $0xae] sm:$0xff]
      %v1222 = vld [vmem:[#allocation2 + $0xb6] sm:$0xff]
      %v1223 = vld [vmem:[#allocation2 + $0xbe] sm:$0xff]
      %v1224 = vld [vmem:[#allocation2 + $0xc6] sm:$0xff]
      %v1225 = vld [vmem:[#allocation2 + $0xce] sm:$0xff]
      %v1226 = vld [vmem:[#allocation2 + $0xd6] sm:$0xff]
      %v1227 = vld [vmem:[#allocation2 + $0xde] sm:$0xff]
      %v1228 = vld [vmem:[#allocation2 + $0xe6] sm:$0xff]
      %v1229 = vld [vmem:[#allocation2 + $0xee] sm:$0xff]
      %v1230 = vld [vmem:[#allocation2 + $0xf6] sm:$0xff]
      %v1231 = vld [vmem:[#allocation2 + $0xfe] sm:$0xff]
      %v1232 = vld [vmem:[#allocation2 + $0x106] sm:$0xff]
      %v1233 = vld [vmem:[#allocation2 + $0x10e] sm:$0xff]
      %v1234 = vld [vmem:[#allocation2 + $0x116] sm:$0xff]
      %v1235 = vld [vmem:[#allocation2 + $0x11e] sm:$0xff]
      %v1236 = vld [vmem:[#allocation2 + $0x126] sm:$0xff]
      %v1237 = vld [vmem:[#allocation2 + $0x12e] sm:$0xff]
      %v1238 = vld [vmem:[#allocation2 + $0x136] sm:$0xff]
      %v1239 = vld [vmem:[#allocation2 + $0x13e] sm:$0xff]
      %v1240 = vlaneseq
      %v1241 = vshrl.u32 %v1240, 7
      %v1242 = vsub.s32 0, %v1241
      %v1243 = vrot.slane %v1196, %v1242
      %v1244 = vmul.f32 %v1200, %v1243
      %v1245 = vmul.f32 %v1201, %v1243
      %v1246 = vmul.f32 %v1202, %v1243
      %v1247 = vmul.f32 %v1203, %v1243
      %v1248 = vmul.f32 %v1204, %v1243
      %v1249 = vmul.f32 %v1205, %v1243
      %v1250 = vmul.f32 %v1206, %v1243
      %v1251 = vmul.f32 %v1207, %v1243
      %v1252 = vmul.f32 %v1208, %v1243
      %v1253 = vmul.f32 %v1209, %v1243
      %v1254 = vmul.f32 %v1210, %v1243
      %v1255 = vmul.f32 %v1211, %v1243
      %v1256 = vmul.f32 %v1212, %v1243
      %v1257 = vmul.f32 %v1213, %v1243
      %v1258 = vmul.f32 %v1214, %v1243
      %v1259 = vmul.f32 %v1215, %v1243
      %v1260 = vmul.f32 %v1216, %v1243
      %v1261 = vmul.f32 %v1217, %v1243
      %v1262 = vmul.f32 %v1218, %v1243
      %v1263 = vmul.f32 %v1219, %v1243
      %v1264 = vmul.f32 %v1220, %v1243
      %v1265 = vmul.f32 %v1221, %v1243
      %v1266 = vmul.f32 %v1222, %v1243
      %v1267 = vmul.f32 %v1223, %v1243
      %v1268 = vmul.f32 %v1224, %v1243
      %v1269 = vmul.f32 %v1225, %v1243
      %v1270 = vmul.f32 %v1226, %v1243
      %v1271 = vmul.f32 %v1227, %v1243
      %v1272 = vmul.f32 %v1228, %v1243
      %v1273 = vmul.f32 %v1229, %v1243
      %v1274 = vmul.f32 %v1230, %v1243
      %v1275 = vmul.f32 %v1231, %v1243
      %v1276 = vadd.f32 %v1244, 0.0
      %v1277 = vadd.f32 %v1245, 0.0
      %v1278 = vadd.f32 %v1246, 0.0
      %v1279 = vadd.f32 %v1247, 0.0
      %v1280 = vadd.f32 %v1248, 0.0
      %v1281 = vadd.f32 %v1249, 0.0
      %v1282 = vadd.f32 %v1250, 0.0
      %v1283 = vadd.f32 %v1251, 0.0
      %v1284 = vadd.f32 %v1252, 0.0
      %v1285 = vadd.f32 %v1253, 0.0
      %v1286 = vadd.f32 %v1254, 0.0
      %v1287 = vadd.f32 %v1255, 0.0
      %v1288 = vadd.f32 %v1256, 0.0
      %v1289 = vadd.f32 %v1257, 0.0
      %v1290 = vadd.f32 %v1258, 0.0
      %v1291 = vadd.f32 %v1259, 0.0
      %v1292 = vadd.f32 %v1260, 0.0
      %v1293 = vadd.f32 %v1261, 0.0
      %v1294 = vadd.f32 %v1262, 0.0
      %v1295 = vadd.f32 %v1263, 0.0
      %v1296 = vadd.f32 %v1264, 0.0
      %v1297 = vadd.f32 %v1265, 0.0
      %v1298 = vadd.f32 %v1266, 0.0
      %v1299 = vadd.f32 %v1267, 0.0
      %v1300 = vadd.f32 %v1268, 0.0
      %v1301 = vadd.f32 %v1269, 0.0
      %v1302 = vadd.f32 %v1270, 0.0
      %v1303 = vadd.f32 %v1271, 0.0
      %v1304 = vadd.f32 %v1272, 0.0
      %v1305 = vadd.f32 %v1273, 0.0
      %v1306 = vadd.f32 %v1274, 0.0
      %v1307 = vadd.f32 %v1275, 0.0
      %v1308 = vlaneseq
      %v1309 = vshrl.u32 %v1308, 7
      %v1310 = vsub.s32 5, %v1309
      %v1311 = vrot.slane %v1196, %v1310
      %v1312 = vmul.f32 %v1202, %v1311
      %v1313 = vmul.f32 %v1203, %v1311
      %v1314 = vmul.f32 %v1204, %v1311
      %v1315 = vmul.f32 %v1205, %v1311
      %v1316 = vmul.f32 %v1206, %v1311
      %v1317 = vmul.f32 %v1207, %v1311
      %v1318 = vmul.f32 %v1208, %v1311
      %v1319 = vmul.f32 %v1209, %v1311
      %v1320 = vmul.f32 %v1210, %v1311
      %v1321 = vmul.f32 %v1211, %v1311
      %v1322 = vmul.f32 %v1212, %v1311
      %v1323 = vmul.f32 %v1213, %v1311
      %v1324 = vmul.f32 %v1214, %v1311
      %v1325 = vmul.f32 %v1215, %v1311
      %v1326 = vmul.f32 %v1216, %v1311
      %v1327 = vmul.f32 %v1217, %v1311
      %v1328 = vmul.f32 %v1218, %v1311
      %v1329 = vmul.f32 %v1219, %v1311
      %v1330 = vmul.f32 %v1220, %v1311
      %v1331 = vmul.f32 %v1221, %v1311
      %v1332 = vmul.f32 %v1222, %v1311
      %v1333 = vmul.f32 %v1223, %v1311
      %v1334 = vmul.f32 %v1224, %v1311
      %v1335 = vmul.f32 %v1225, %v1311
      %v1336 = vmul.f32 %v1226, %v1311
      %v1337 = vmul.f32 %v1227, %v1311
      %v1338 = vmul.f32 %v1228, %v1311
      %v1339 = vmul.f32 %v1229, %v1311
      %v1340 = vmul.f32 %v1230, %v1311
      %v1341 = vmul.f32 %v1231, %v1311
      %v1342 = vmul.f32 %v1232, %v1311
      %v1343 = vmul.f32 %v1233, %v1311
      %v1344 = vadd.f32 %v1276, %v1312
      %v1345 = vadd.f32 %v1277, %v1313
      %v1346 = vadd.f32 %v1278, %v1314
      %v1347 = vadd.f32 %v1279, %v1315
      %v1348 = vadd.f32 %v1280, %v1316
      %v1349 = vadd.f32 %v1281, %v1317
      %v1350 = vadd.f32 %v1282, %v1318
      %v1351 = vadd.f32 %v1283, %v1319
      %v1352 = vadd.f32 %v1284, %v1320
      %v1353 = vadd.f32 %v1285, %v1321
      %v1354 = vadd.f32 %v1286, %v1322
      %v1355 = vadd.f32 %v1287, %v1323
      %v1356 = vadd.f32 %v1288, %v1324
      %v1357 = vadd.f32 %v1289, %v1325
      %v1358 = vadd.f32 %v1290, %v1326
      %v1359 = vadd.f32 %v1291, %v1327
      %v1360 = vadd.f32 %v1292, %v1328
      %v1361 = vadd.f32 %v1293, %v1329
      %v1362 = vadd.f32 %v1294, %v1330
      %v1363 = vadd.f32 %v1295, %v1331
      %v1364 = vadd.f32 %v1296, %v1332
      %v1365 = vadd.f32 %v1297, %v1333
      %v1366 = vadd.f32 %v1298, %v1334
      %v1367 = vadd.f32 %v1299, %v1335
      %v1368 = vadd.f32 %v1300, %v1336
      %v1369 = vadd.f32 %v1301, %v1337
      %v1370 = vadd.f32 %v1302, %v1338
      %v1371 = vadd.f32 %v1303, %v1339
      %v1372 = vadd.f32 %v1304, %v1340
      %v1373 = vadd.f32 %v1305, %v1341
      %v1374 = vadd.f32 %v1306, %v1342
      %v1375 = vadd.f32 %v1307, %v1343
      %v1376 = vlaneseq
      %v1377 = vshrl.u32 %v1376, 7
      %v1378 = vsub.s32 2, %v1377
      %v1379 = vrot.slane %v1197, %v1378
      %v1380 = vmul.f32 %v1204, %v1379
      %v1381 = vmul.f32 %v1205, %v1379
      %v1382 = vmul.f32 %v1206, %v1379
      %v1383 = vmul.f32 %v1207, %v1379
      %v1384 = vmul.f32 %v1208, %v1379
      %v1385 = vmul.f32 %v1209, %v1379
      %v1386 = vmul.f32 %v1210, %v1379
      %v1387 = vmul.f32 %v1211, %v1379
      %v1388 = vmul.f32 %v1212, %v1379
      %v1389 = vmul.f32 %v1213, %v1379
      %v1390 = vmul.f32 %v1214, %v1379
      %v1391 = vmul.f32 %v1215, %v1379
      %v1392 = vmul.f32 %v1216, %v1379
      %v1393 = vmul.f32 %v1217, %v1379
      %v1394 = vmul.f32 %v1218, %v1379
      %v1395 = vmul.f32 %v1219, %v1379
      %v1396 = vmul.f32 %v1220, %v1379
      %v1397 = vmul.f32 %v1221, %v1379
      %v1398 = vmul.f32 %v1222, %v1379
      %v1399 = vmul.f32 %v1223, %v1379
      %v1400 = vmul.f32 %v1224, %v1379
      %v1401 = vmul.f32 %v1225, %v1379
      %v1402 = vmul.f32 %v1226, %v1379
      %v1403 = vmul.f32 %v1227, %v1379
      %v1404 = vmul.f32 %v1228, %v1379
      %v1405 = vmul.f32 %v1229, %v1379
      %v1406 = vmul.f32 %v1230, %v1379
      %v1407 = vmul.f32 %v1231, %v1379
      %v1408 = vmul.f32 %v1232, %v1379
      %v1409 = vmul.f32 %v1233, %v1379
      %v1410 = vmul.f32 %v1234, %v1379
      %v1411 = vmul.f32 %v1235, %v1379
      %v1412 = vadd.f32 %v1344, %v1380
      %v1413 = vadd.f32 %v1345, %v1381
      %v1414 = vadd.f32 %v1346, %v1382
      %v1415 = vadd.f32 %v1347, %v1383
      %v1416 = vadd.f32 %v1348, %v1384
      %v1417 = vadd.f32 %v1349, %v1385
      %v1418 = vadd.f32 %v1350, %v1386
      %v1419 = vadd.f32 %v1351, %v1387
      %v1420 = vadd.f32 %v1352, %v1388
      %v1421 = vadd.f32 %v1353, %v1389
      %v1422 = vadd.f32 %v1354, %v1390
      %v1423 = vadd.f32 %v1355, %v1391
      %v1424 = vadd.f32 %v1356, %v1392
      %v1425 = vadd.f32 %v1357, %v1393
      %v1426 = vadd.f32 %v1358, %v1394
      %v1427 = vadd.f32 %v1359, %v1395
      %v1428 = vadd.f32 %v1360, %v1396
      %v1429 = vadd.f32 %v1361, %v1397
      %v1430 = vadd.f32 %v1362, %v1398
      %v1431 = vadd.f32 %v1363, %v1399
      %v1432 = vadd.f32 %v1364, %v1400
      %v1433 = vadd.f32 %v1365, %v1401
      %v1434 = vadd.f32 %v1366, %v1402
      %v1435 = vadd.f32 %v1367, %v1403
      %v1436 = vadd.f32 %v1368, %v1404
      %v1437 = vadd.f32 %v1369, %v1405
      %v1438 = vadd.f32 %v1370, %v1406
      %v1439 = vadd.f32 %v1371, %v1407
      %v1440 = vadd.f32 %v1372, %v1408
      %v1441 = vadd.f32 %v1373, %v1409
      %v1442 = vadd.f32 %v1374, %v1410
      %v1443 = vadd.f32 %v1375, %v1411
      %v1444 = vlaneseq
      %v1445 = vshrl.u32 %v1444, 7
      %v1446 = vsub.s32 7, %v1445
      %v1447 = vrot.slane %v1197, %v1446
      %v1448 = vmul.f32 %v1206, %v1447
      %v1449 = vmul.f32 %v1207, %v1447
      %v1450 = vmul.f32 %v1208, %v1447
      %v1451 = vmul.f32 %v1209, %v1447
      %v1452 = vmul.f32 %v1210, %v1447
      %v1453 = vmul.f32 %v1211, %v1447
      %v1454 = vmul.f32 %v1212, %v1447
      %v1455 = vmul.f32 %v1213, %v1447
      %v1456 = vmul.f32 %v1214, %v1447
      %v1457 = vmul.f32 %v1215, %v1447
      %v1458 = vmul.f32 %v1216, %v1447
      %v1459 = vmul.f32 %v1217, %v1447
      %v1460 = vmul.f32 %v1218, %v1447
      %v1461 = vmul.f32 %v1219, %v1447
      %v1462 = vmul.f32 %v1220, %v1447
      %v1463 = vmul.f32 %v1221, %v1447
      %v1464 = vmul.f32 %v1222, %v1447
      %v1465 = vmul.f32 %v1223, %v1447
      %v1466 = vmul.f32 %v1224, %v1447
      %v1467 = vmul.f32 %v1225, %v1447
      %v1468 = vmul.f32 %v1226, %v1447
      %v1469 = vmul.f32 %v1227, %v1447
      %v1470 = vmul.f32 %v1228, %v1447
      %v1471 = vmul.f32 %v1229, %v1447
      %v1472 = vmul.f32 %v1230, %v1447
      %v1473 = vmul.f32 %v1231, %v1447
      %v1474 = vmul.f32 %v1232, %v1447
      %v1475 = vmul.f32 %v1233, %v1447
      %v1476 = vmul.f32 %v1234, %v1447
      %v1477 = vmul.f32 %v1235, %v1447
      %v1478 = vmul.f32 %v1236, %v1447
      %v1479 = vmul.f32 %v1237, %v1447
      %v1480 = vadd.f32 %v1412, %v1448
      %v1481 = vadd.f32 %v1413, %v1449
      %v1482 = vadd.f32 %v1414, %v1450
      %v1483 = vadd.f32 %v1415, %v1451
      %v1484 = vadd.f32 %v1416, %v1452
      %v1485 = vadd.f32 %v1417, %v1453
      %v1486 = vadd.f32 %v1418, %v1454
      %v1487 = vadd.f32 %v1419, %v1455
      %v1488 = vadd.f32 %v1420, %v1456
      %v1489 = vadd.f32 %v1421, %v1457
      %v1490 = vadd.f32 %v1422, %v1458
      %v1491 = vadd.f32 %v1423, %v1459
      %v1492 = vadd.f32 %v1424, %v1460
      %v1493 = vadd.f32 %v1425, %v1461
      %v1494 = vadd.f32 %v1426, %v1462
      %v1495 = vadd.f32 %v1427, %v1463
      %v1496 = vadd.f32 %v1428, %v1464
      %v1497 = vadd.f32 %v1429, %v1465
      %v1498 = vadd.f32 %v1430, %v1466
      %v1499 = vadd.f32 %v1431, %v1467
      %v1500 = vadd.f32 %v1432, %v1468
      %v1501 = vadd.f32 %v1433, %v1469
      %v1502 = vadd.f32 %v1434, %v1470
      %v1503 = vadd.f32 %v1435, %v1471
      %v1504 = vadd.f32 %v1436, %v1472
      %v1505 = vadd.f32 %v1437, %v1473
      %v1506 = vadd.f32 %v1438, %v1474
      %v1507 = vadd.f32 %v1439, %v1475
      %v1508 = vadd.f32 %v1440, %v1476
      %v1509 = vadd.f32 %v1441, %v1477
      %v1510 = vadd.f32 %v1442, %v1478
      %v1511 = vadd.f32 %v1443, %v1479
      %v1512 = vlaneseq
      %v1513 = vshrl.u32 %v1512, 7
      %v1514 = vsub.s32 4, %v1513
      %v1515 = vrot.slane %v1198, %v1514
      %v1516 = vmul.f32 %v1208, %v1515
      %v1517 = vmul.f32 %v1209, %v1515
      %v1518 = vmul.f32 %v1210, %v1515
      %v1519 = vmul.f32 %v1211, %v1515
      %v1520 = vmul.f32 %v1212, %v1515
      %v1521 = vmul.f32 %v1213, %v1515
      %v1522 = vmul.f32 %v1214, %v1515
      %v1523 = vmul.f32 %v1215, %v1515
      %v1524 = vmul.f32 %v1216, %v1515
      %v1525 = vmul.f32 %v1217, %v1515
      %v1526 = vmul.f32 %v1218, %v1515
      %v1527 = vmul.f32 %v1219, %v1515
      %v1528 = vmul.f32 %v1220, %v1515
      %v1529 = vmul.f32 %v1221, %v1515
      %v1530 = vmul.f32 %v1222, %v1515
      %v1531 = vmul.f32 %v1223, %v1515
      %v1532 = vmul.f32 %v1224, %v1515
      %v1533 = vmul.f32 %v1225, %v1515
      %v1534 = vmul.f32 %v1226, %v1515
      %v1535 = vmul.f32 %v1227, %v1515
      %v1536 = vmul.f32 %v1228, %v1515
      %v1537 = vmul.f32 %v1229, %v1515
      %v1538 = vmul.f32 %v1230, %v1515
      %v1539 = vmul.f32 %v1231, %v1515
      %v1540 = vmul.f32 %v1232, %v1515
      %v1541 = vmul.f32 %v1233, %v1515
      %v1542 = vmul.f32 %v1234, %v1515
      %v1543 = vmul.f32 %v1235, %v1515
      %v1544 = vmul.f32 %v1236, %v1515
      %v1545 = vmul.f32 %v1237, %v1515
      %v1546 = vmul.f32 %v1238, %v1515
      %v1547 = vmul.f32 %v1239, %v1515
      %v1548 = vadd.f32 %v1480, %v1516
      %v1549 = vadd.f32 %v1481, %v1517
      %v1550 = vadd.f32 %v1482, %v1518
      %v1551 = vadd.f32 %v1483, %v1519
      %v1552 = vadd.f32 %v1484, %v1520
      %v1553 = vadd.f32 %v1485, %v1521
      %v1554 = vadd.f32 %v1486, %v1522
      %v1555 = vadd.f32 %v1487, %v1523
      %v1556 = vadd.f32 %v1488, %v1524
      %v1557 = vadd.f32 %v1489, %v1525
      %v1558 = vadd.f32 %v1490, %v1526
      %v1559 = vadd.f32 %v1491, %v1527
      %v1560 = vadd.f32 %v1492, %v1528
      %v1561 = vadd.f32 %v1493, %v1529
      %v1562 = vadd.f32 %v1494, %v1530
      %v1563 = vadd.f32 %v1495, %v1531
      %v1564 = vadd.f32 %v1496, %v1532
      %v1565 = vadd.f32 %v1497, %v1533
      %v1566 = vadd.f32 %v1498, %v1534
      %v1567 = vadd.f32 %v1499, %v1535
      %v1568 = vadd.f32 %v1500, %v1536
      %v1569 = vadd.f32 %v1501, %v1537
      %v1570 = vadd.f32 %v1502, %v1538
      %v1571 = vadd.f32 %v1503, %v1539
      %v1572 = vadd.f32 %v1504, %v1540
      %v1573 = vadd.f32 %v1505, %v1541
      %v1574 = vadd.f32 %v1506, %v1542
      %v1575 = vadd.f32 %v1507, %v1543
      %v1576 = vadd.f32 %v1508, %v1544
      %v1577 = vadd.f32 %v1509, %v1545
      %v1578 = vadd.f32 %v1510, %v1546
      %v1579 = vadd.f32 %v1511, %v1547
      %1581 = vset.pattern.permute.xlu0 0
      %1582 = vperm.xlu0 %1581, %v527
      %v1583 = vpop.permute.xlu0 %1582
      %1586 = vset.pattern.permute.xlu0 0
      %1587 = vperm.xlu0 %1586, %v528
      %v1588 = vpop.permute.xlu0 %1587
      %1591 = vset.pattern.permute.xlu0 0
      %1592 = vperm.xlu0 %1591, %v529
      %v1593 = vpop.permute.xlu0 %1592
      %1596 = vset.pattern.permute.xlu0 0
      %1597 = vperm.xlu0 %1596, %v530
      %v1598 = vpop.permute.xlu0 %1597
      %1601 = vset.pattern.permute.xlu0 0
      %1602 = vperm.xlu0 %1601, %v531
      %v1603 = vpop.permute.xlu0 %1602
      %1606 = vset.pattern.permute.xlu0 0
      %1607 = vperm.xlu0 %1606, %v532
      %v1608 = vpop.permute.xlu0 %1607
      %1611 = vset.pattern.permute.xlu0 0
      %1612 = vperm.xlu0 %1611, %v533
      %v1613 = vpop.permute.xlu0 %1612
      %1616 = vset.pattern.permute.xlu0 0
      %1617 = vperm.xlu0 %1616, %v534
      %v1618 = vpop.permute.xlu0 %1617
      %1621 = vset.pattern.permute.xlu0 0
      %1622 = vperm.xlu0 %1621, %v535
      %v1623 = vpop.permute.xlu0 %1622
      %1626 = vset.pattern.permute.xlu0 0
      %1627 = vperm.xlu0 %1626, %v536
      %v1628 = vpop.permute.xlu0 %1627
      %1631 = vset.pattern.permute.xlu0 0
      %1632 = vperm.xlu0 %1631, %v537
      %v1633 = vpop.permute.xlu0 %1632
      %1636 = vset.pattern.permute.xlu0 0
      %1637 = vperm.xlu0 %1636, %v538
      %v1638 = vpop.permute.xlu0 %1637
      %1641 = vset.pattern.permute.xlu0 0
      %1642 = vperm.xlu0 %1641, %v539
      %v1643 = vpop.permute.xlu0 %1642
      %1646 = vset.pattern.permute.xlu0 0
      %1647 = vperm.xlu0 %1646, %v540
      %v1648 = vpop.permute.xlu0 %1647
      %1651 = vset.pattern.permute.xlu0 0
      %1652 = vperm.xlu0 %1651, %v541
      %v1653 = vpop.permute.xlu0 %1652
      %1656 = vset.pattern.permute.xlu0 0
      %1657 = vperm.xlu0 %1656, %v542
      %v1658 = vpop.permute.xlu0 %1657
      %1661 = vset.pattern.permute.xlu0 0
      %1662 = vperm.xlu0 %1661, %v543
      %v1663 = vpop.permute.xlu0 %1662
      %1666 = vset.pattern.permute.xlu0 0
      %1667 = vperm.xlu0 %1666, %v544
      %v1668 = vpop.permute.xlu0 %1667
      %1671 = vset.pattern.permute.xlu0 0
      %1672 = vperm.xlu0 %1671, %v545
      %v1673 = vpop.permute.xlu0 %1672
      %1676 = vset.pattern.permute.xlu0 0
      %1677 = vperm.xlu0 %1676, %v546
      %v1678 = vpop.permute.xlu0 %1677
      %1681 = vset.pattern.permute.xlu0 0
      %1682 = vperm.xlu0 %1681, %v547
      %v1683 = vpop.permute.xlu0 %1682
      %1686 = vset.pattern.permute.xlu0 0
      %1687 = vperm.xlu0 %1686, %v548
      %v1688 = vpop.permute.xlu0 %1687
      %1691 = vset.pattern.permute.xlu0 0
      %1692 = vperm.xlu0 %1691, %v549
      %v1693 = vpop.permute.xlu0 %1692
      %1696 = vset.pattern.permute.xlu0 0
      %1697 = vperm.xlu0 %1696, %v550
      %v1698 = vpop.permute.xlu0 %1697
      %1701 = vset.pattern.permute.xlu0 0
      %1702 = vperm.xlu0 %1701, %v551
      %v1703 = vpop.permute.xlu0 %1702
      %1706 = vset.pattern.permute.xlu0 0
      %1707 = vperm.xlu0 %1706, %v552
      %v1708 = vpop.permute.xlu0 %1707
      %1711 = vset.pattern.permute.xlu0 0
      %1712 = vperm.xlu0 %1711, %v553
      %v1713 = vpop.permute.xlu0 %1712
      %1716 = vset.pattern.permute.xlu0 0
      %1717 = vperm.xlu0 %1716, %v554
      %v1718 = vpop.permute.xlu0 %1717
      %1721 = vset.pattern.permute.xlu0 0
      %1722 = vperm.xlu0 %1721, %v555
      %v1723 = vpop.permute.xlu0 %1722
      %1726 = vset.pattern.permute.xlu0 0
      %1727 = vperm.xlu0 %1726, %v556
      %v1728 = vpop.permute.xlu0 %1727
      %1731 = vset.pattern.permute.xlu0 0
      %1732 = vperm.xlu0 %1731, %v557
      %v1733 = vpop.permute.xlu0 %1732
      %1736 = vset.pattern.permute.xlu0 0
      %1737 = vperm.xlu0 %1736, %v558
      %v1738 = vpop.permute.xlu0 %1737
      %v1740 = vmul.f32 %v1548, %v1583
      %v1741 = vmul.f32 %v1549, %v1588
      %v1742 = vmul.f32 %v1550, %v1593
      %v1743 = vmul.f32 %v1551, %v1598
      %v1744 = vmul.f32 %v1552, %v1603
      %v1745 = vmul.f32 %v1553, %v1608
      %v1746 = vmul.f32 %v1554, %v1613
      %v1747 = vmul.f32 %v1555, %v1618
      %v1748 = vmul.f32 %v1556, %v1623
      %v1749 = vmul.f32 %v1557, %v1628
      %v1750 = vmul.f32 %v1558, %v1633
      %v1751 = vmul.f32 %v1559, %v1638
      %v1752 = vmul.f32 %v1560, %v1643
      %v1753 = vmul.f32 %v1561, %v1648
      %v1754 = vmul.f32 %v1562, %v1653
      %v1755 = vmul.f32 %v1563, %v1658
      %v1756 = vmul.f32 %v1564, %v1663
      %v1757 = vmul.f32 %v1565, %v1668
      %v1758 = vmul.f32 %v1566, %v1673
      %v1759 = vmul.f32 %v1567, %v1678
      %v1760 = vmul.f32 %v1568, %v1683
      %v1761 = vmul.f32 %v1569, %v1688
      %v1762 = vmul.f32 %v1570, %v1693
      %v1763 = vmul.f32 %v1571, %v1698
      %v1764 = vmul.f32 %v1572, %v1703
      %v1765 = vmul.f32 %v1573, %v1708
      %v1766 = vmul.f32 %v1574, %v1713
      %v1767 = vmul.f32 %v1575, %v1718
      %v1768 = vmul.f32 %v1576, %v1723
      %v1769 = vmul.f32 %v1577, %v1728
      %v1770 = vmul.f32 %v1578, %v1733
      %v1771 = vmul.f32 %v1579, %v1738
      %v1772 = vadd.f32 %v1740, 0.0
      %v1773 = vadd.f32 %v1741, 0.0
      %v1774 = vadd.f32 %v1742, 0.0
      %v1775 = vadd.f32 %v1743, 0.0
      %v1776 = vadd.f32 %v1744, 0.0
      %v1777 = vadd.f32 %v1745, 0.0
      %v1778 = vadd.f32 %v1746, 0.0
      %v1779 = vadd.f32 %v1747, 0.0
      %v1780 = vadd.f32 %v1748, 0.0
      %v1781 = vadd.f32 %v1749, 0.0
      %v1782 = vadd.f32 %v1750, 0.0
      %v1783 = vadd.f32 %v1751, 0.0
      %v1784 = vadd.f32 %v1752, 0.0
      %v1785 = vadd.f32 %v1753, 0.0
      %v1786 = vadd.f32 %v1754, 0.0
      %v1787 = vadd.f32 %v1755, 0.0
      %v1788 = vadd.f32 %v1756, 0.0
      %v1789 = vadd.f32 %v1757, 0.0
      %v1790 = vadd.f32 %v1758, 0.0
      %v1791 = vadd.f32 %v1759, 0.0
      %v1792 = vadd.f32 %v1760, 0.0
      %v1793 = vadd.f32 %v1761, 0.0
      %v1794 = vadd.f32 %v1762, 0.0
      %v1795 = vadd.f32 %v1763, 0.0
      %v1796 = vadd.f32 %v1764, 0.0
      %v1797 = vadd.f32 %v1765, 0.0
      %v1798 = vadd.f32 %v1766, 0.0
      %v1799 = vadd.f32 %v1767, 0.0
      %v1800 = vadd.f32 %v1768, 0.0
      %v1801 = vadd.f32 %v1769, 0.0
      %v1802 = vadd.f32 %v1770, 0.0
      %v1803 = vadd.f32 %v1771, 0.0
      %v1804 = vld [vmem:[#allocation2 + $0x7] sm:$0xff]
      %v1805 = vld [vmem:[#allocation2 + $0xf] sm:$0xff]
      %v1806 = vld [vmem:[#allocation2 + $0x17] sm:$0xff]
      %v1807 = vld [vmem:[#allocation2 + $0x1f] sm:$0xff]
      %v1808 = vld [vmem:[#allocation2 + $0x27] sm:$0xff]
      %v1809 = vld [vmem:[#allocation2 + $0x2f] sm:$0xff]
      %v1810 = vld [vmem:[#allocation2 + $0x37] sm:$0xff]
      %v1811 = vld [vmem:[#allocation2 + $0x3f] sm:$0xff]
      %v1812 = vld [vmem:[#allocation2 + $0x47] sm:$0xff]
      %v1813 = vld [vmem:[#allocation2 + $0x4f] sm:$0xff]
      %v1814 = vld [vmem:[#allocation2 + $0x57] sm:$0xff]
      %v1815 = vld [vmem:[#allocation2 + $0x5f] sm:$0xff]
      %v1816 = vld [vmem:[#allocation2 + $0x67] sm:$0xff]
      %v1817 = vld [vmem:[#allocation2 + $0x6f] sm:$0xff]
      %v1818 = vld [vmem:[#allocation2 + $0x77] sm:$0xff]
      %v1819 = vld [vmem:[#allocation2 + $0x7f] sm:$0xff]
      %v1820 = vld [vmem:[#allocation2 + $0x87] sm:$0xff]
      %v1821 = vld [vmem:[#allocation2 + $0x8f] sm:$0xff]
      %v1822 = vld [vmem:[#allocation2 + $0x97] sm:$0xff]
      %v1823 = vld [vmem:[#allocation2 + $0x9f] sm:$0xff]
      %v1824 = vld [vmem:[#allocation2 + $0xa7] sm:$0xff]
      %v1825 = vld [vmem:[#allocation2 + $0xaf] sm:$0xff]
      %v1826 = vld [vmem:[#allocation2 + $0xb7] sm:$0xff]
      %v1827 = vld [vmem:[#allocation2 + $0xbf] sm:$0xff]
      %v1828 = vld [vmem:[#allocation2 + $0xc7] sm:$0xff]
      %v1829 = vld [vmem:[#allocation2 + $0xcf] sm:$0xff]
      %v1830 = vld [vmem:[#allocation2 + $0xd7] sm:$0xff]
      %v1831 = vld [vmem:[#allocation2 + $0xdf] sm:$0xff]
      %v1832 = vld [vmem:[#allocation2 + $0xe7] sm:$0xff]
      %v1833 = vld [vmem:[#allocation2 + $0xef] sm:$0xff]
      %v1834 = vld [vmem:[#allocation2 + $0xf7] sm:$0xff]
      %v1835 = vld [vmem:[#allocation2 + $0xff] sm:$0xff]
      %v1836 = vld [vmem:[#allocation2 + $0x107] sm:$0xff]
      %v1837 = vld [vmem:[#allocation2 + $0x10f] sm:$0xff]
      %v1838 = vld [vmem:[#allocation2 + $0x117] sm:$0xff]
      %v1839 = vld [vmem:[#allocation2 + $0x11f] sm:$0xff]
      %v1840 = vld [vmem:[#allocation2 + $0x127] sm:$0xff]
      %v1841 = vld [vmem:[#allocation2 + $0x12f] sm:$0xff]
      %v1842 = vld [vmem:[#allocation2 + $0x137] sm:$0xff]
      %v1843 = vld [vmem:[#allocation2 + $0x13f] sm:$0xff]
      %v1844 = vlaneseq
      %v1845 = vshrl.u32 %v1844, 7
      %v1846 = vsub.s32 1, %v1845
      %v1847 = vrot.slane %v1196, %v1846
      %v1848 = vmul.f32 %v1804, %v1847
      %v1849 = vmul.f32 %v1805, %v1847
      %v1850 = vmul.f32 %v1806, %v1847
      %v1851 = vmul.f32 %v1807, %v1847
      %v1852 = vmul.f32 %v1808, %v1847
      %v1853 = vmul.f32 %v1809, %v1847
      %v1854 = vmul.f32 %v1810, %v1847
      %v1855 = vmul.f32 %v1811, %v1847
      %v1856 = vmul.f32 %v1812, %v1847
      %v1857 = vmul.f32 %v1813, %v1847
      %v1858 = vmul.f32 %v1814, %v1847
      %v1859 = vmul.f32 %v1815, %v1847
      %v1860 = vmul.f32 %v1816, %v1847
      %v1861 = vmul.f32 %v1817, %v1847
      %v1862 = vmul.f32 %v1818, %v1847
      %v1863 = vmul.f32 %v1819, %v1847
      %v1864 = vmul.f32 %v1820, %v1847
      %v1865 = vmul.f32 %v1821, %v1847
      %v1866 = vmul.f32 %v1822, %v1847
      %v1867 = vmul.f32 %v1823, %v1847
      %v1868 = vmul.f32 %v1824, %v1847
      %v1869 = vmul.f32 %v1825, %v1847
      %v1870 = vmul.f32 %v1826, %v1847
      %v1871 = vmul.f32 %v1827, %v1847
      %v1872 = vmul.f32 %v1828, %v1847
      %v1873 = vmul.f32 %v1829, %v1847
      %v1874 = vmul.f32 %v1830, %v1847
      %v1875 = vmul.f32 %v1831, %v1847
      %v1876 = vmul.f32 %v1832, %v1847
      %v1877 = vmul.f32 %v1833, %v1847
      %v1878 = vmul.f32 %v1834, %v1847
      %v1879 = vmul.f32 %v1835, %v1847
      %v1880 = vadd.f32 %v1848, 0.0
      %v1881 = vadd.f32 %v1849, 0.0
      %v1882 = vadd.f32 %v1850, 0.0
      %v1883 = vadd.f32 %v1851, 0.0
      %v1884 = vadd.f32 %v1852, 0.0
      %v1885 = vadd.f32 %v1853, 0.0
      %v1886 = vadd.f32 %v1854, 0.0
      %v1887 = vadd.f32 %v1855, 0.0
      %v1888 = vadd.f32 %v1856, 0.0
      %v1889 = vadd.f32 %v1857, 0.0
      %v1890 = vadd.f32 %v1858, 0.0
      %v1891 = vadd.f32 %v1859, 0.0
      %v1892 = vadd.f32 %v1860, 0.0
      %v1893 = vadd.f32 %v1861, 0.0
      %v1894 = vadd.f32 %v1862, 0.0
      %v1895 = vadd.f32 %v1863, 0.0
      %v1896 = vadd.f32 %v1864, 0.0
      %v1897 = vadd.f32 %v1865, 0.0
      %v1898 = vadd.f32 %v1866, 0.0
      %v1899 = vadd.f32 %v1867, 0.0
      %v1900 = vadd.f32 %v1868, 0.0
      %v1901 = vadd.f32 %v1869, 0.0
      %v1902 = vadd.f32 %v1870, 0.0
      %v1903 = vadd.f32 %v1871, 0.0
      %v1904 = vadd.f32 %v1872, 0.0
      %v1905 = vadd.f32 %v1873, 0.0
      %v1906 = vadd.f32 %v1874, 0.0
      %v1907 = vadd.f32 %v1875, 0.0
      %v1908 = vadd.f32 %v1876, 0.0
      %v1909 = vadd.f32 %v1877, 0.0
      %v1910 = vadd.f32 %v1878, 0.0
      %v1911 = vadd.f32 %v1879, 0.0
      %v1912 = vlaneseq
      %v1913 = vshrl.u32 %v1912, 7
      %v1914 = vsub.s32 6, %v1913
      %v1915 = vrot.slane %v1196, %v1914
      %v1916 = vmul.f32 %v1806, %v1915
      %v1917 = vmul.f32 %v1807, %v1915
      %v1918 = vmul.f32 %v1808, %v1915
      %v1919 = vmul.f32 %v1809, %v1915
      %v1920 = vmul.f32 %v1810, %v1915
      %v1921 = vmul.f32 %v1811, %v1915
      %v1922 = vmul.f32 %v1812, %v1915
      %v1923 = vmul.f32 %v1813, %v1915
      %v1924 = vmul.f32 %v1814, %v1915
      %v1925 = vmul.f32 %v1815, %v1915
      %v1926 = vmul.f32 %v1816, %v1915
      %v1927 = vmul.f32 %v1817, %v1915
      %v1928 = vmul.f32 %v1818, %v1915
      %v1929 = vmul.f32 %v1819, %v1915
      %v1930 = vmul.f32 %v1820, %v1915
      %v1931 = vmul.f32 %v1821, %v1915
      %v1932 = vmul.f32 %v1822, %v1915
      %v1933 = vmul.f32 %v1823, %v1915
      %v1934 = vmul.f32 %v1824, %v1915
      %v1935 = vmul.f32 %v1825, %v1915
      %v1936 = vmul.f32 %v1826, %v1915
      %v1937 = vmul.f32 %v1827, %v1915
      %v1938 = vmul.f32 %v1828, %v1915
      %v1939 = vmul.f32 %v1829, %v1915
      %v1940 = vmul.f32 %v1830, %v1915
      %v1941 = vmul.f32 %v1831, %v1915
      %v1942 = vmul.f32 %v1832, %v1915
      %v1943 = vmul.f32 %v1833, %v1915
      %v1944 = vmul.f32 %v1834, %v1915
      %v1945 = vmul.f32 %v1835, %v1915
      %v1946 = vmul.f32 %v1836, %v1915
      %v1947 = vmul.f32 %v1837, %v1915
      %v1948 = vadd.f32 %v1880, %v1916
      %v1949 = vadd.f32 %v1881, %v1917
      %v1950 = vadd.f32 %v1882, %v1918
      %v1951 = vadd.f32 %v1883, %v1919
      %v1952 = vadd.f32 %v1884, %v1920
      %v1953 = vadd.f32 %v1885, %v1921
      %v1954 = vadd.f32 %v1886, %v1922
      %v1955 = vadd.f32 %v1887, %v1923
      %v1956 = vadd.f32 %v1888, %v1924
      %v1957 = vadd.f32 %v1889, %v1925
      %v1958 = vadd.f32 %v1890, %v1926
      %v1959 = vadd.f32 %v1891, %v1927
      %v1960 = vadd.f32 %v1892, %v1928
      %v1961 = vadd.f32 %v1893, %v1929
      %v1962 = vadd.f32 %v1894, %v1930
      %v1963 = vadd.f32 %v1895, %v1931
      %v1964 = vadd.f32 %v1896, %v1932
      %v1965 = vadd.f32 %v1897, %v1933
      %v1966 = vadd.f32 %v1898, %v1934
      %v1967 = vadd.f32 %v1899, %v1935
      %v1968 = vadd.f32 %v1900, %v1936
      %v1969 = vadd.f32 %v1901, %v1937
      %v1970 = vadd.f32 %v1902, %v1938
      %v1971 = vadd.f32 %v1903, %v1939
      %v1972 = vadd.f32 %v1904, %v1940
      %v1973 = vadd.f32 %v1905, %v1941
      %v1974 = vadd.f32 %v1906, %v1942
      %v1975 = vadd.f32 %v1907, %v1943
      %v1976 = vadd.f32 %v1908, %v1944
      %v1977 = vadd.f32 %v1909, %v1945
      %v1978 = vadd.f32 %v1910, %v1946
      %v1979 = vadd.f32 %v1911, %v1947
      %v1980 = vlaneseq
      %v1981 = vshrl.u32 %v1980, 7
      %v1982 = vsub.s32 3, %v1981
      %v1983 = vrot.slane %v1197, %v1982
      %v1984 = vmul.f32 %v1808, %v1983
      %v1985 = vmul.f32 %v1809, %v1983
      %v1986 = vmul.f32 %v1810, %v1983
      %v1987 = vmul.f32 %v1811, %v1983
      %v1988 = vmul.f32 %v1812, %v1983
      %v1989 = vmul.f32 %v1813, %v1983
      %v1990 = vmul.f32 %v1814, %v1983
      %v1991 = vmul.f32 %v1815, %v1983
      %v1992 = vmul.f32 %v1816, %v1983
      %v1993 = vmul.f32 %v1817, %v1983
      %v1994 = vmul.f32 %v1818, %v1983
      %v1995 = vmul.f32 %v1819, %v1983
      %v1996 = vmul.f32 %v1820, %v1983
      %v1997 = vmul.f32 %v1821, %v1983
      %v1998 = vmul.f32 %v1822, %v1983
      %v1999 = vmul.f32 %v1823, %v1983
      %v2000 = vmul.f32 %v1824, %v1983
      %v2001 = vmul.f32 %v1825, %v1983
      %v2002 = vmul.f32 %v1826, %v1983
      %v2003 = vmul.f32 %v1827, %v1983
      %v2004 = vmul.f32 %v1828, %v1983
      %v2005 = vmul.f32 %v1829, %v1983
      %v2006 = vmul.f32 %v1830, %v1983
      %v2007 = vmul.f32 %v1831, %v1983
      %v2008 = vmul.f32 %v1832, %v1983
      %v2009 = vmul.f32 %v1833, %v1983
      %v2010 = vmul.f32 %v1834, %v1983
      %v2011 = vmul.f32 %v1835, %v1983
      %v2012 = vmul.f32 %v1836, %v1983
      %v2013 = vmul.f32 %v1837, %v1983
      %v2014 = vmul.f32 %v1838, %v1983
      %v2015 = vmul.f32 %v1839, %v1983
      %v2016 = vadd.f32 %v1948, %v1984
      %v2017 = vadd.f32 %v1949, %v1985
      %v2018 = vadd.f32 %v1950, %v1986
      %v2019 = vadd.f32 %v1951, %v1987
      %v2020 = vadd.f32 %v1952, %v1988
      %v2021 = vadd.f32 %v1953, %v1989
      %v2022 = vadd.f32 %v1954, %v1990
      %v2023 = vadd.f32 %v1955, %v1991
      %v2024 = vadd.f32 %v1956, %v1992
      %v2025 = vadd.f32 %v1957, %v1993
      %v2026 = vadd.f32 %v1958, %v1994
      %v2027 = vadd.f32 %v1959, %v1995
      %v2028 = vadd.f32 %v1960, %v1996
      %v2029 = vadd.f32 %v1961, %v1997
      %v2030 = vadd.f32 %v1962, %v1998
      %v2031 = vadd.f32 %v1963, %v1999
      %v2032 = vadd.f32 %v1964, %v2000
      %v2033 = vadd.f32 %v1965, %v2001
      %v2034 = vadd.f32 %v1966, %v2002
      %v2035 = vadd.f32 %v1967, %v2003
      %v2036 = vadd.f32 %v1968, %v2004
      %v2037 = vadd.f32 %v1969, %v2005
      %v2038 = vadd.f32 %v1970, %v2006
      %v2039 = vadd.f32 %v1971, %v2007
      %v2040 = vadd.f32 %v1972, %v2008
      %v2041 = vadd.f32 %v1973, %v2009
      %v2042 = vadd.f32 %v1974, %v2010
      %v2043 = vadd.f32 %v1975, %v2011
      %v2044 = vadd.f32 %v1976, %v2012
      %v2045 = vadd.f32 %v1977, %v2013
      %v2046 = vadd.f32 %v1978, %v2014
      %v2047 = vadd.f32 %v1979, %v2015
      %v2048 = vlaneseq
      %v2049 = vshrl.u32 %v2048, 7
      %v2050 = vsub.s32 0, %v2049
      %v2051 = vrot.slane %v1198, %v2050
      %v2052 = vmul.f32 %v1810, %v2051
      %v2053 = vmul.f32 %v1811, %v2051
      %v2054 = vmul.f32 %v1812, %v2051
      %v2055 = vmul.f32 %v1813, %v2051
      %v2056 = vmul.f32 %v1814, %v2051
      %v2057 = vmul.f32 %v1815, %v2051
      %v2058 = vmul.f32 %v1816, %v2051
      %v2059 = vmul.f32 %v1817, %v2051
      %v2060 = vmul.f32 %v1818, %v2051
      %v2061 = vmul.f32 %v1819, %v2051
      %v2062 = vmul.f32 %v1820, %v2051
      %v2063 = vmul.f32 %v1821, %v2051
      %v2064 = vmul.f32 %v1822, %v2051
      %v2065 = vmul.f32 %v1823, %v2051
      %v2066 = vmul.f32 %v1824, %v2051
      %v2067 = vmul.f32 %v1825, %v2051
      %v2068 = vmul.f32 %v1826, %v2051
      %v2069 = vmul.f32 %v1827, %v2051
      %v2070 = vmul.f32 %v1828, %v2051
      %v2071 = vmul.f32 %v1829, %v2051
      %v2072 = vmul.f32 %v1830, %v2051
      %v2073 = vmul.f32 %v1831, %v2051
      %v2074 = vmul.f32 %v1832, %v2051
      %v2075 = vmul.f32 %v1833, %v2051
      %v2076 = vmul.f32 %v1834, %v2051
      %v2077 = vmul.f32 %v1835, %v2051
      %v2078 = vmul.f32 %v1836, %v2051
      %v2079 = vmul.f32 %v1837, %v2051
      %v2080 = vmul.f32 %v1838, %v2051
      %v2081 = vmul.f32 %v1839, %v2051
      %v2082 = vmul.f32 %v1840, %v2051
      %v2083 = vmul.f32 %v1841, %v2051
      %v2084 = vadd.f32 %v2016, %v2052
      %v2085 = vadd.f32 %v2017, %v2053
      %v2086 = vadd.f32 %v2018, %v2054
      %v2087 = vadd.f32 %v2019, %v2055
      %v2088 = vadd.f32 %v2020, %v2056
      %v2089 = vadd.f32 %v2021, %v2057
      %v2090 = vadd.f32 %v2022, %v2058
      %v2091 = vadd.f32 %v2023, %v2059
      %v2092 = vadd.f32 %v2024, %v2060
      %v2093 = vadd.f32 %v2025, %v2061
      %v2094 = vadd.f32 %v2026, %v2062
      %v2095 = vadd.f32 %v2027, %v2063
      %v2096 = vadd.f32 %v2028, %v2064
      %v2097 = vadd.f32 %v2029, %v2065
      %v2098 = vadd.f32 %v2030, %v2066
      %v2099 = vadd.f32 %v2031, %v2067
      %v2100 = vadd.f32 %v2032, %v2068
      %v2101 = vadd.f32 %v2033, %v2069
      %v2102 = vadd.f32 %v2034, %v2070
      %v2103 = vadd.f32 %v2035, %v2071
      %v2104 = vadd.f32 %v2036, %v2072
      %v2105 = vadd.f32 %v2037, %v2073
      %v2106 = vadd.f32 %v2038, %v2074
      %v2107 = vadd.f32 %v2039, %v2075
      %v2108 = vadd.f32 %v2040, %v2076
      %v2109 = vadd.f32 %v2041, %v2077
      %v2110 = vadd.f32 %v2042, %v2078
      %v2111 = vadd.f32 %v2043, %v2079
      %v2112 = vadd.f32 %v2044, %v2080
      %v2113 = vadd.f32 %v2045, %v2081
      %v2114 = vadd.f32 %v2046, %v2082
      %v2115 = vadd.f32 %v2047, %v2083
      %v2116 = vlaneseq
      %v2117 = vshrl.u32 %v2116, 7
      %v2118 = vsub.s32 5, %v2117
      %v2119 = vrot.slane %v1198, %v2118
      %v2120 = vmul.f32 %v1812, %v2119
      %v2121 = vmul.f32 %v1813, %v2119
      %v2122 = vmul.f32 %v1814, %v2119
      %v2123 = vmul.f32 %v1815, %v2119
      %v2124 = vmul.f32 %v1816, %v2119
      %v2125 = vmul.f32 %v1817, %v2119
      %v2126 = vmul.f32 %v1818, %v2119
      %v2127 = vmul.f32 %v1819, %v2119
      %v2128 = vmul.f32 %v1820, %v2119
      %v2129 = vmul.f32 %v1821, %v2119
      %v2130 = vmul.f32 %v1822, %v2119
      %v2131 = vmul.f32 %v1823, %v2119
      %v2132 = vmul.f32 %v1824, %v2119
      %v2133 = vmul.f32 %v1825, %v2119
      %v2134 = vmul.f32 %v1826, %v2119
      %v2135 = vmul.f32 %v1827, %v2119
      %v2136 = vmul.f32 %v1828, %v2119
      %v2137 = vmul.f32 %v1829, %v2119
      %v2138 = vmul.f32 %v1830, %v2119
      %v2139 = vmul.f32 %v1831, %v2119
      %v2140 = vmul.f32 %v1832, %v2119
      %v2141 = vmul.f32 %v1833, %v2119
      %v2142 = vmul.f32 %v1834, %v2119
      %v2143 = vmul.f32 %v1835, %v2119
      %v2144 = vmul.f32 %v1836, %v2119
      %v2145 = vmul.f32 %v1837, %v2119
      %v2146 = vmul.f32 %v1838, %v2119
      %v2147 = vmul.f32 %v1839, %v2119
      %v2148 = vmul.f32 %v1840, %v2119
      %v2149 = vmul.f32 %v1841, %v2119
      %v2150 = vmul.f32 %v1842, %v2119
      %v2151 = vmul.f32 %v1843, %v2119
      %v2152 = vadd.f32 %v2084, %v2120
      %v2153 = vadd.f32 %v2085, %v2121
      %v2154 = vadd.f32 %v2086, %v2122
      %v2155 = vadd.f32 %v2087, %v2123
      %v2156 = vadd.f32 %v2088, %v2124
      %v2157 = vadd.f32 %v2089, %v2125
      %v2158 = vadd.f32 %v2090, %v2126
      %v2159 = vadd.f32 %v2091, %v2127
      %v2160 = vadd.f32 %v2092, %v2128
      %v2161 = vadd.f32 %v2093, %v2129
      %v2162 = vadd.f32 %v2094, %v2130
      %v2163 = vadd.f32 %v2095, %v2131
      %v2164 = vadd.f32 %v2096, %v2132
      %v2165 = vadd.f32 %v2097, %v2133
      %v2166 = vadd.f32 %v2098, %v2134
      %v2167 = vadd.f32 %v2099, %v2135
      %v2168 = vadd.f32 %v2100, %v2136
      %v2169 = vadd.f32 %v2101, %v2137
      %v2170 = vadd.f32 %v2102, %v2138
      %v2171 = vadd.f32 %v2103, %v2139
      %v2172 = vadd.f32 %v2104, %v2140
      %v2173 = vadd.f32 %v2105, %v2141
      %v2174 = vadd.f32 %v2106, %v2142
      %v2175 = vadd.f32 %v2107, %v2143
      %v2176 = vadd.f32 %v2108, %v2144
      %v2177 = vadd.f32 %v2109, %v2145
      %v2178 = vadd.f32 %v2110, %v2146
      %v2179 = vadd.f32 %v2111, %v2147
      %v2180 = vadd.f32 %v2112, %v2148
      %v2181 = vadd.f32 %v2113, %v2149
      %v2182 = vadd.f32 %v2114, %v2150
      %v2183 = vadd.f32 %v2115, %v2151
      %2184 = vset.pattern.permute.xlu0 1
      %2185 = vperm.xlu0 %2184, %v527
      %v2186 = vpop.permute.xlu0 %2185
      %2188 = vset.pattern.permute.xlu0 1
      %2189 = vperm.xlu0 %2188, %v528
      %v2190 = vpop.permute.xlu0 %2189
      %2192 = vset.pattern.permute.xlu0 1
      %2193 = vperm.xlu0 %2192, %v529
      %v2194 = vpop.permute.xlu0 %2193
      %2196 = vset.pattern.permute.xlu0 1
      %2197 = vperm.xlu0 %2196, %v530
      %v2198 = vpop.permute.xlu0 %2197
      %2200 = vset.pattern.permute.xlu0 1
      %2201 = vperm.xlu0 %2200, %v531
      %v2202 = vpop.permute.xlu0 %2201
      %2204 = vset.pattern.permute.xlu0 1
      %2205 = vperm.xlu0 %2204, %v532
      %v2206 = vpop.permute.xlu0 %2205
      %2208 = vset.pattern.permute.xlu0 1
      %2209 = vperm.xlu0 %2208, %v533
      %v2210 = vpop.permute.xlu0 %2209
      %2212 = vset.pattern.permute.xlu0 1
      %2213 = vperm.xlu0 %2212, %v534
      %v2214 = vpop.permute.xlu0 %2213
      %2216 = vset.pattern.permute.xlu0 1
      %2217 = vperm.xlu0 %2216, %v535
      %v2218 = vpop.permute.xlu0 %2217
      %2220 = vset.pattern.permute.xlu0 1
      %2221 = vperm.xlu0 %2220, %v536
      %v2222 = vpop.permute.xlu0 %2221
      %2224 = vset.pattern.permute.xlu0 1
      %2225 = vperm.xlu0 %2224, %v537
      %v2226 = vpop.permute.xlu0 %2225
      %2228 = vset.pattern.permute.xlu0 1
      %2229 = vperm.xlu0 %2228, %v538
      %v2230 = vpop.permute.xlu0 %2229
      %2232 = vset.pattern.permute.xlu0 1
      %2233 = vperm.xlu0 %2232, %v539
      %v2234 = vpop.permute.xlu0 %2233
      %2236 = vset.pattern.permute.xlu0 1
      %2237 = vperm.xlu0 %2236, %v540
      %v2238 = vpop.permute.xlu0 %2237
      %2240 = vset.pattern.permute.xlu0 1
      %2241 = vperm.xlu0 %2240, %v541
      %v2242 = vpop.permute.xlu0 %2241
      %2244 = vset.pattern.permute.xlu0 1
      %2245 = vperm.xlu0 %2244, %v542
      %v2246 = vpop.permute.xlu0 %2245
      %2248 = vset.pattern.permute.xlu0 1
      %2249 = vperm.xlu0 %2248, %v543
      %v2250 = vpop.permute.xlu0 %2249
      %2252 = vset.pattern.permute.xlu0 1
      %2253 = vperm.xlu0 %2252, %v544
      %v2254 = vpop.permute.xlu0 %2253
      %2256 = vset.pattern.permute.xlu0 1
      %2257 = vperm.xlu0 %2256, %v545
      %v2258 = vpop.permute.xlu0 %2257
      %2260 = vset.pattern.permute.xlu0 1
      %2261 = vperm.xlu0 %2260, %v546
      %v2262 = vpop.permute.xlu0 %2261
      %2264 = vset.pattern.permute.xlu0 1
      %2265 = vperm.xlu0 %2264, %v547
      %v2266 = vpop.permute.xlu0 %2265
      %2268 = vset.pattern.permute.xlu0 1
      %2269 = vperm.xlu0 %2268, %v548
      %v2270 = vpop.permute.xlu0 %2269
      %2272 = vset.pattern.permute.xlu0 1
      %2273 = vperm.xlu0 %2272, %v549
      %v2274 = vpop.permute.xlu0 %2273
      %2276 = vset.pattern.permute.xlu0 1
      %2277 = vperm.xlu0 %2276, %v550
      %v2278 = vpop.permute.xlu0 %2277
      %2280 = vset.pattern.permute.xlu0 1
      %2281 = vperm.xlu0 %2280, %v551
      %v2282 = vpop.permute.xlu0 %2281
      %2284 = vset.pattern.permute.xlu0 1
      %2285 = vperm.xlu0 %2284, %v552
      %v2286 = vpop.permute.xlu0 %2285
      %2288 = vset.pattern.permute.xlu0 1
      %2289 = vperm.xlu0 %2288, %v553
      %v2290 = vpop.permute.xlu0 %2289
      %2292 = vset.pattern.permute.xlu0 1
      %2293 = vperm.xlu0 %2292, %v554
      %v2294 = vpop.permute.xlu0 %2293
      %2296 = vset.pattern.permute.xlu0 1
      %2297 = vperm.xlu0 %2296, %v555
      %v2298 = vpop.permute.xlu0 %2297
      %2300 = vset.pattern.permute.xlu0 1
      %2301 = vperm.xlu0 %2300, %v556
      %v2302 = vpop.permute.xlu0 %2301
      %2304 = vset.pattern.permute.xlu0 1
      %2305 = vperm.xlu0 %2304, %v557
      %v2306 = vpop.permute.xlu0 %2305
      %2308 = vset.pattern.permute.xlu0 1
      %2309 = vperm.xlu0 %2308, %v558
      %v2310 = vpop.permute.xlu0 %2309
      %v2312 = vmul.f32 %v2152, %v2186
      %v2313 = vmul.f32 %v2153, %v2190
      %v2314 = vmul.f32 %v2154, %v2194
      %v2315 = vmul.f32 %v2155, %v2198
      %v2316 = vmul.f32 %v2156, %v2202
      %v2317 = vmul.f32 %v2157, %v2206
      %v2318 = vmul.f32 %v2158, %v2210
      %v2319 = vmul.f32 %v2159, %v2214
      %v2320 = vmul.f32 %v2160, %v2218
      %v2321 = vmul.f32 %v2161, %v2222
      %v2322 = vmul.f32 %v2162, %v2226
      %v2323 = vmul.f32 %v2163, %v2230
      %v2324 = vmul.f32 %v2164, %v2234
      %v2325 = vmul.f32 %v2165, %v2238
      %v2326 = vmul.f32 %v2166, %v2242
      %v2327 = vmul.f32 %v2167, %v2246
      %v2328 = vmul.f32 %v2168, %v2250
      %v2329 = vmul.f32 %v2169, %v2254
      %v2330 = vmul.f32 %v2170, %v2258
      %v2331 = vmul.f32 %v2171, %v2262
      %v2332 = vmul.f32 %v2172, %v2266
      %v2333 = vmul.f32 %v2173, %v2270
      %v2334 = vmul.f32 %v2174, %v2274
      %v2335 = vmul.f32 %v2175, %v2278
      %v2336 = vmul.f32 %v2176, %v2282
      %v2337 = vmul.f32 %v2177, %v2286
      %v2338 = vmul.f32 %v2178, %v2290
      %v2339 = vmul.f32 %v2179, %v2294
      %v2340 = vmul.f32 %v2180, %v2298
      %v2341 = vmul.f32 %v2181, %v2302
      %v2342 = vmul.f32 %v2182, %v2306
      %v2343 = vmul.f32 %v2183, %v2310
      %v2344 = vadd.f32 %v1772, %v2312
      %v2345 = vadd.f32 %v1773, %v2313
      %v2346 = vadd.f32 %v1774, %v2314
      %v2347 = vadd.f32 %v1775, %v2315
      %v2348 = vadd.f32 %v1776, %v2316
      %v2349 = vadd.f32 %v1777, %v2317
      %v2350 = vadd.f32 %v1778, %v2318
      %v2351 = vadd.f32 %v1779, %v2319
      %v2352 = vadd.f32 %v1780, %v2320
      %v2353 = vadd.f32 %v1781, %v2321
      %v2354 = vadd.f32 %v1782, %v2322
      %v2355 = vadd.f32 %v1783, %v2323
      %v2356 = vadd.f32 %v1784, %v2324
      %v2357 = vadd.f32 %v1785, %v2325
      %v2358 = vadd.f32 %v1786, %v2326
      %v2359 = vadd.f32 %v1787, %v2327
      %v2360 = vadd.f32 %v1788, %v2328
      %v2361 = vadd.f32 %v1789, %v2329
      %v2362 = vadd.f32 %v1790, %v2330
      %v2363 = vadd.f32 %v1791, %v2331
      %v2364 = vadd.f32 %v1792, %v2332
      %v2365 = vadd.f32 %v1793, %v2333
      %v2366 = vadd.f32 %v1794, %v2334
      %v2367 = vadd.f32 %v1795, %v2335
      %v2368 = vadd.f32 %v1796, %v2336
      %v2369 = vadd.f32 %v1797, %v2337
      %v2370 = vadd.f32 %v1798, %v2338
      %v2371 = vadd.f32 %v1799, %v2339
      %v2372 = vadd.f32 %v1800, %v2340
      %v2373 = vadd.f32 %v1801, %v2341
      %v2374 = vadd.f32 %v1802, %v2342
      %v2375 = vadd.f32 %v1803, %v2343
      %v2376 = vld [vmem:[#allocation2 + $0x8] sm:$0xff]
      %v2377 = vld [vmem:[#allocation2 + $0x10] sm:$0xff]
      %v2378 = vld [vmem:[#allocation2 + $0x18] sm:$0xff]
      %v2379 = vld [vmem:[#allocation2 + $0x20] sm:$0xff]
      %v2380 = vld [vmem:[#allocation2 + $0x28] sm:$0xff]
      %v2381 = vld [vmem:[#allocation2 + $0x30] sm:$0xff]
      %v2382 = vld [vmem:[#allocation2 + $0x38] sm:$0xff]
      %v2383 = vld [vmem:[#allocation2 + $0x40] sm:$0xff]
      %v2384 = vld [vmem:[#allocation2 + $0x48] sm:$0xff]
      %v2385 = vld [vmem:[#allocation2 + $0x50] sm:$0xff]
      %v2386 = vld [vmem:[#allocation2 + $0x58] sm:$0xff]
      %v2387 = vld [vmem:[#allocation2 + $0x60] sm:$0xff]
      %v2388 = vld [vmem:[#allocation2 + $0x68] sm:$0xff]
      %v2389 = vld [vmem:[#allocation2 + $0x70] sm:$0xff]
      %v2390 = vld [vmem:[#allocation2 + $0x78] sm:$0xff]
      %v2391 = vld [vmem:[#allocation2 + $0x80] sm:$0xff]
      %v2392 = vld [vmem:[#allocation2 + $0x88] sm:$0xff]
      %v2393 = vld [vmem:[#allocation2 + $0x90] sm:$0xff]
      %v2394 = vld [vmem:[#allocation2 + $0x98] sm:$0xff]
      %v2395 = vld [vmem:[#allocation2 + $0xa0] sm:$0xff]
      %v2396 = vld [vmem:[#allocation2 + $0xa8] sm:$0xff]
      %v2397 = vld [vmem:[#allocation2 + $0xb0] sm:$0xff]
      %v2398 = vld [vmem:[#allocation2 + $0xb8] sm:$0xff]
      %v2399 = vld [vmem:[#allocation2 + $0xc0] sm:$0xff]
      %v2400 = vld [vmem:[#allocation2 + $0xc8] sm:$0xff]
      %v2401 = vld [vmem:[#allocation2 + $0xd0] sm:$0xff]
      %v2402 = vld [vmem:[#allocation2 + $0xd8] sm:$0xff]
      %v2403 = vld [vmem:[#allocation2 + $0xe0] sm:$0xff]
      %v2404 = vld [vmem:[#allocation2 + $0xe8] sm:$0xff]
      %v2405 = vld [vmem:[#allocation2 + $0xf0] sm:$0xff]
      %v2406 = vld [vmem:[#allocation2 + $0xf8] sm:$0xff]
      %v2407 = vld [vmem:[#allocation2 + $0x100] sm:$0xff]
      %v2408 = vld [vmem:[#allocation2 + $0x108] sm:$0xff]
      %v2409 = vld [vmem:[#allocation2 + $0x110] sm:$0xff]
      %v2410 = vld [vmem:[#allocation2 + $0x118] sm:$0xff]
      %v2411 = vld [vmem:[#allocation2 + $0x120] sm:$0xff]
      %v2412 = vld [vmem:[#allocation2 + $0x128] sm:$0xff]
      %v2413 = vld [vmem:[#allocation2 + $0x130] sm:$0xff]
      %v2414 = vld [vmem:[#allocation2 + $0x138] sm:$0xff]
      %v2415 = vld [vmem:[#allocation2 + $0x140] sm:$0xff]
      %v2416 = vlaneseq
      %v2417 = vshrl.u32 %v2416, 7
      %v2418 = vsub.s32 2, %v2417
      %v2419 = vrot.slane %v1196, %v2418
      %v2420 = vmul.f32 %v2376, %v2419
      %v2421 = vmul.f32 %v2377, %v2419
      %v2422 = vmul.f32 %v2378, %v2419
      %v2423 = vmul.f32 %v2379, %v2419
      %v2424 = vmul.f32 %v2380, %v2419
      %v2425 = vmul.f32 %v2381, %v2419
      %v2426 = vmul.f32 %v2382, %v2419
      %v2427 = vmul.f32 %v2383, %v2419
      %v2428 = vmul.f32 %v2384, %v2419
      %v2429 = vmul.f32 %v2385, %v2419
      %v2430 = vmul.f32 %v2386, %v2419
      %v2431 = vmul.f32 %v2387, %v2419
      %v2432 = vmul.f32 %v2388, %v2419
      %v2433 = vmul.f32 %v2389, %v2419
      %v2434 = vmul.f32 %v2390, %v2419
      %v2435 = vmul.f32 %v2391, %v2419
      %v2436 = vmul.f32 %v2392, %v2419
      %v2437 = vmul.f32 %v2393, %v2419
      %v2438 = vmul.f32 %v2394, %v2419
      %v2439 = vmul.f32 %v2395, %v2419
      %v2440 = vmul.f32 %v2396, %v2419
      %v2441 = vmul.f32 %v2397, %v2419
      %v2442 = vmul.f32 %v2398, %v2419
      %v2443 = vmul.f32 %v2399, %v2419
      %v2444 = vmul.f32 %v2400, %v2419
      %v2445 = vmul.f32 %v2401, %v2419
      %v2446 = vmul.f32 %v2402, %v2419
      %v2447 = vmul.f32 %v2403, %v2419
      %v2448 = vmul.f32 %v2404, %v2419
      %v2449 = vmul.f32 %v2405, %v2419
      %v2450 = vmul.f32 %v2406, %v2419
      %v2451 = vmul.f32 %v2407, %v2419
      %v2452 = vadd.f32 %v2420, 0.0
      %v2453 = vadd.f32 %v2421, 0.0
      %v2454 = vadd.f32 %v2422, 0.0
      %v2455 = vadd.f32 %v2423, 0.0
      %v2456 = vadd.f32 %v2424, 0.0
      %v2457 = vadd.f32 %v2425, 0.0
      %v2458 = vadd.f32 %v2426, 0.0
      %v2459 = vadd.f32 %v2427, 0.0
      %v2460 = vadd.f32 %v2428, 0.0
      %v2461 = vadd.f32 %v2429, 0.0
      %v2462 = vadd.f32 %v2430, 0.0
      %v2463 = vadd.f32 %v2431, 0.0
      %v2464 = vadd.f32 %v2432, 0.0
      %v2465 = vadd.f32 %v2433, 0.0
      %v2466 = vadd.f32 %v2434, 0.0
      %v2467 = vadd.f32 %v2435, 0.0
      %v2468 = vadd.f32 %v2436, 0.0
      %v2469 = vadd.f32 %v2437, 0.0
      %v2470 = vadd.f32 %v2438, 0.0
      %v2471 = vadd.f32 %v2439, 0.0
      %v2472 = vadd.f32 %v2440, 0.0
      %v2473 = vadd.f32 %v2441, 0.0
      %v2474 = vadd.f32 %v2442, 0.0
      %v2475 = vadd.f32 %v2443, 0.0
      %v2476 = vadd.f32 %v2444, 0.0
      %v2477 = vadd.f32 %v2445, 0.0
      %v2478 = vadd.f32 %v2446, 0.0
      %v2479 = vadd.f32 %v2447, 0.0
      %v2480 = vadd.f32 %v2448, 0.0
      %v2481 = vadd.f32 %v2449, 0.0
      %v2482 = vadd.f32 %v2450, 0.0
      %v2483 = vadd.f32 %v2451, 0.0
      %v2484 = vlaneseq
      %v2485 = vshrl.u32 %v2484, 7
      %v2486 = vsub.s32 7, %v2485
      %v2487 = vrot.slane %v1196, %v2486
      %v2488 = vmul.f32 %v2378, %v2487
      %v2489 = vmul.f32 %v2379, %v2487
      %v2490 = vmul.f32 %v2380, %v2487
      %v2491 = vmul.f32 %v2381, %v2487
      %v2492 = vmul.f32 %v2382, %v2487
      %v2493 = vmul.f32 %v2383, %v2487
      %v2494 = vmul.f32 %v2384, %v2487
      %v2495 = vmul.f32 %v2385, %v2487
      %v2496 = vmul.f32 %v2386, %v2487
      %v2497 = vmul.f32 %v2387, %v2487
      %v2498 = vmul.f32 %v2388, %v2487
      %v2499 = vmul.f32 %v2389, %v2487
      %v2500 = vmul.f32 %v2390, %v2487
      %v2501 = vmul.f32 %v2391, %v2487
      %v2502 = vmul.f32 %v2392, %v2487
      %v2503 = vmul.f32 %v2393, %v2487
      %v2504 = vmul.f32 %v2394, %v2487
      %v2505 = vmul.f32 %v2395, %v2487
      %v2506 = vmul.f32 %v2396, %v2487
      %v2507 = vmul.f32 %v2397, %v2487
      %v2508 = vmul.f32 %v2398, %v2487
      %v2509 = vmul.f32 %v2399, %v2487
      %v2510 = vmul.f32 %v2400, %v2487
      %v2511 = vmul.f32 %v2401, %v2487
      %v2512 = vmul.f32 %v2402, %v2487
      %v2513 = vmul.f32 %v2403, %v2487
      %v2514 = vmul.f32 %v2404, %v2487
      %v2515 = vmul.f32 %v2405, %v2487
      %v2516 = vmul.f32 %v2406, %v2487
      %v2517 = vmul.f32 %v2407, %v2487
      %v2518 = vmul.f32 %v2408, %v2487
      %v2519 = vmul.f32 %v2409, %v2487
      %v2520 = vadd.f32 %v2452, %v2488
      %v2521 = vadd.f32 %v2453, %v2489
      %v2522 = vadd.f32 %v2454, %v2490
      %v2523 = vadd.f32 %v2455, %v2491
      %v2524 = vadd.f32 %v2456, %v2492
      %v2525 = vadd.f32 %v2457, %v2493
      %v2526 = vadd.f32 %v2458, %v2494
      %v2527 = vadd.f32 %v2459, %v2495
      %v2528 = vadd.f32 %v2460, %v2496
      %v2529 = vadd.f32 %v2461, %v2497
      %v2530 = vadd.f32 %v2462, %v2498
      %v2531 = vadd.f32 %v2463, %v2499
      %v2532 = vadd.f32 %v2464, %v2500
      %v2533 = vadd.f32 %v2465, %v2501
      %v2534 = vadd.f32 %v2466, %v2502
      %v2535 = vadd.f32 %v2467, %v2503
      %v2536 = vadd.f32 %v2468, %v2504
      %v2537 = vadd.f32 %v2469, %v2505
      %v2538 = vadd.f32 %v2470, %v2506
      %v2539 = vadd.f32 %v2471, %v2507
      %v2540 = vadd.f32 %v2472, %v2508
      %v2541 = vadd.f32 %v2473, %v2509
      %v2542 = vadd.f32 %v2474, %v2510
      %v2543 = vadd.f32 %v2475, %v2511
      %v2544 = vadd.f32 %v2476, %v2512
      %v2545 = vadd.f32 %v2477, %v2513
      %v2546 = vadd.f32 %v2478, %v2514
      %v2547 = vadd.f32 %v2479, %v2515
      %v2548 = vadd.f32 %v2480, %v2516
      %v2549 = vadd.f32 %v2481, %v2517
      %v2550 = vadd.f32 %v2482, %v2518
      %v2551 = vadd.f32 %v2483, %v2519
      %v2552 = vlaneseq
      %v2553 = vshrl.u32 %v2552, 7
      %v2554 = vsub.s32 4, %v2553
      %v2555 = vrot.slane %v1197, %v2554
      %v2556 = vmul.f32 %v2380, %v2555
      %v2557 = vmul.f32 %v2381, %v2555
      %v2558 = vmul.f32 %v2382, %v2555
      %v2559 = vmul.f32 %v2383, %v2555
      %v2560 = vmul.f32 %v2384, %v2555
      %v2561 = vmul.f32 %v2385, %v2555
      %v2562 = vmul.f32 %v2386, %v2555
      %v2563 = vmul.f32 %v2387, %v2555
      %v2564 = vmul.f32 %v2388, %v2555
      %v2565 = vmul.f32 %v2389, %v2555
      %v2566 = vmul.f32 %v2390, %v2555
      %v2567 = vmul.f32 %v2391, %v2555
      %v2568 = vmul.f32 %v2392, %v2555
      %v2569 = vmul.f32 %v2393, %v2555
      %v2570 = vmul.f32 %v2394, %v2555
      %v2571 = vmul.f32 %v2395, %v2555
      %v2572 = vmul.f32 %v2396, %v2555
      %v2573 = vmul.f32 %v2397, %v2555
      %v2574 = vmul.f32 %v2398, %v2555
      %v2575 = vmul.f32 %v2399, %v2555
      %v2576 = vmul.f32 %v2400, %v2555
      %v2577 = vmul.f32 %v2401, %v2555
      %v2578 = vmul.f32 %v2402, %v2555
      %v2579 = vmul.f32 %v2403, %v2555
      %v2580 = vmul.f32 %v2404, %v2555
      %v2581 = vmul.f32 %v2405, %v2555
      %v2582 = vmul.f32 %v2406, %v2555
      %v2583 = vmul.f32 %v2407, %v2555
      %v2584 = vmul.f32 %v2408, %v2555
      %v2585 = vmul.f32 %v2409, %v2555
      %v2586 = vmul.f32 %v2410, %v2555
      %v2587 = vmul.f32 %v2411, %v2555
      %v2588 = vadd.f32 %v2520, %v2556
      %v2589 = vadd.f32 %v2521, %v2557
      %v2590 = vadd.f32 %v2522, %v2558
      %v2591 = vadd.f32 %v2523, %v2559
      %v2592 = vadd.f32 %v2524, %v2560
      %v2593 = vadd.f32 %v2525, %v2561
      %v2594 = vadd.f32 %v2526, %v2562
      %v2595 = vadd.f32 %v2527, %v2563
      %v2596 = vadd.f32 %v2528, %v2564
      %v2597 = vadd.f32 %v2529, %v2565
      %v2598 = vadd.f32 %v2530, %v2566
      %v2599 = vadd.f32 %v2531, %v2567
      %v2600 = vadd.f32 %v2532, %v2568
      %v2601 = vadd.f32 %v2533, %v2569
      %v2602 = vadd.f32 %v2534, %v2570
      %v2603 = vadd.f32 %v2535, %v2571
      %v2604 = vadd.f32 %v2536, %v2572
      %v2605 = vadd.f32 %v2537, %v2573
      %v2606 = vadd.f32 %v2538, %v2574
      %v2607 = vadd.f32 %v2539, %v2575
      %v2608 = vadd.f32 %v2540, %v2576
      %v2609 = vadd.f32 %v2541, %v2577
      %v2610 = vadd.f32 %v2542, %v2578
      %v2611 = vadd.f32 %v2543, %v2579
      %v2612 = vadd.f32 %v2544, %v2580
      %v2613 = vadd.f32 %v2545, %v2581
      %v2614 = vadd.f32 %v2546, %v2582
      %v2615 = vadd.f32 %v2547, %v2583
      %v2616 = vadd.f32 %v2548, %v2584
      %v2617 = vadd.f32 %v2549, %v2585
      %v2618 = vadd.f32 %v2550, %v2586
      %v2619 = vadd.f32 %v2551, %v2587
      %v2620 = vlaneseq
      %v2621 = vshrl.u32 %v2620, 7
      %v2622 = vsub.s32 1, %v2621
      %v2623 = vrot.slane %v1198, %v2622
      %v2624 = vmul.f32 %v2382, %v2623
      %v2625 = vmul.f32 %v2383, %v2623
      %v2626 = vmul.f32 %v2384, %v2623
      %v2627 = vmul.f32 %v2385, %v2623
      %v2628 = vmul.f32 %v2386, %v2623
      %v2629 = vmul.f32 %v2387, %v2623
      %v2630 = vmul.f32 %v2388, %v2623
      %v2631 = vmul.f32 %v2389, %v2623
      %v2632 = vmul.f32 %v2390, %v2623
      %v2633 = vmul.f32 %v2391, %v2623
      %v2634 = vmul.f32 %v2392, %v2623
      %v2635 = vmul.f32 %v2393, %v2623
      %v2636 = vmul.f32 %v2394, %v2623
      %v2637 = vmul.f32 %v2395, %v2623
      %v2638 = vmul.f32 %v2396, %v2623
      %v2639 = vmul.f32 %v2397, %v2623
      %v2640 = vmul.f32 %v2398, %v2623
      %v2641 = vmul.f32 %v2399, %v2623
      %v2642 = vmul.f32 %v2400, %v2623
      %v2643 = vmul.f32 %v2401, %v2623
      %v2644 = vmul.f32 %v2402, %v2623
      %v2645 = vmul.f32 %v2403, %v2623
      %v2646 = vmul.f32 %v2404, %v2623
      %v2647 = vmul.f32 %v2405, %v2623
      %v2648 = vmul.f32 %v2406, %v2623
      %v2649 = vmul.f32 %v2407, %v2623
      %v2650 = vmul.f32 %v2408, %v2623
      %v2651 = vmul.f32 %v2409, %v2623
      %v2652 = vmul.f32 %v2410, %v2623
      %v2653 = vmul.f32 %v2411, %v2623
      %v2654 = vmul.f32 %v2412, %v2623
      %v2655 = vmul.f32 %v2413, %v2623
      %v2656 = vadd.f32 %v2588, %v2624
      %v2657 = vadd.f32 %v2589, %v2625
      %v2658 = vadd.f32 %v2590, %v2626
      %v2659 = vadd.f32 %v2591, %v2627
      %v2660 = vadd.f32 %v2592, %v2628
      %v2661 = vadd.f32 %v2593, %v2629
      %v2662 = vadd.f32 %v2594, %v2630
      %v2663 = vadd.f32 %v2595, %v2631
      %v2664 = vadd.f32 %v2596, %v2632
      %v2665 = vadd.f32 %v2597, %v2633
      %v2666 = vadd.f32 %v2598, %v2634
      %v2667 = vadd.f32 %v2599, %v2635
      %v2668 = vadd.f32 %v2600, %v2636
      %v2669 = vadd.f32 %v2601, %v2637
      %v2670 = vadd.f32 %v2602, %v2638
      %v2671 = vadd.f32 %v2603, %v2639
      %v2672 = vadd.f32 %v2604, %v2640
      %v2673 = vadd.f32 %v2605, %v2641
      %v2674 = vadd.f32 %v2606, %v2642
      %v2675 = vadd.f32 %v2607, %v2643
      %v2676 = vadd.f32 %v2608, %v2644
      %v2677 = vadd.f32 %v2609, %v2645
      %v2678 = vadd.f32 %v2610, %v2646
      %v2679 = vadd.f32 %v2611, %v2647
      %v2680 = vadd.f32 %v2612, %v2648
      %v2681 = vadd.f32 %v2613, %v2649
      %v2682 = vadd.f32 %v2614, %v2650
      %v2683 = vadd.f32 %v2615, %v2651
      %v2684 = vadd.f32 %v2616, %v2652
      %v2685 = vadd.f32 %v2617, %v2653
      %v2686 = vadd.f32 %v2618, %v2654
      %v2687 = vadd.f32 %v2619, %v2655
      %v2688 = vlaneseq
      %v2689 = vshrl.u32 %v2688, 7
      %v2690 = vsub.s32 6, %v2689
      %v2691 = vrot.slane %v1198, %v2690
      %v2692 = vmul.f32 %v2384, %v2691
      %v2693 = vmul.f32 %v2385, %v2691
      %v2694 = vmul.f32 %v2386, %v2691
      %v2695 = vmul.f32 %v2387, %v2691
      %v2696 = vmul.f32 %v2388, %v2691
      %v2697 = vmul.f32 %v2389, %v2691
      %v2698 = vmul.f32 %v2390, %v2691
      %v2699 = vmul.f32 %v2391, %v2691
      %v2700 = vmul.f32 %v2392, %v2691
      %v2701 = vmul.f32 %v2393, %v2691
      %v2702 = vmul.f32 %v2394, %v2691
      %v2703 = vmul.f32 %v2395, %v2691
      %v2704 = vmul.f32 %v2396, %v2691
      %v2705 = vmul.f32 %v2397, %v2691
      %v2706 = vmul.f32 %v2398, %v2691
      %v2707 = vmul.f32 %v2399, %v2691
      %v2708 = vmul.f32 %v2400, %v2691
      %v2709 = vmul.f32 %v2401, %v2691
      %v2710 = vmul.f32 %v2402, %v2691
      %v2711 = vmul.f32 %v2403, %v2691
      %v2712 = vmul.f32 %v2404, %v2691
      %v2713 = vmul.f32 %v2405, %v2691
      %v2714 = vmul.f32 %v2406, %v2691
      %v2715 = vmul.f32 %v2407, %v2691
      %v2716 = vmul.f32 %v2408, %v2691
      %v2717 = vmul.f32 %v2409, %v2691
      %v2718 = vmul.f32 %v2410, %v2691
      %v2719 = vmul.f32 %v2411, %v2691
      %v2720 = vmul.f32 %v2412, %v2691
      %v2721 = vmul.f32 %v2413, %v2691
      %v2722 = vmul.f32 %v2414, %v2691
      %v2723 = vmul.f32 %v2415, %v2691
      %v2724 = vadd.f32 %v2656, %v2692
      %v2725 = vadd.f32 %v2657, %v2693
      %v2726 = vadd.f32 %v2658, %v2694
      %v2727 = vadd.f32 %v2659, %v2695
      %v2728 = vadd.f32 %v2660, %v2696
      %v2729 = vadd.f32 %v2661, %v2697
      %v2730 = vadd.f32 %v2662, %v2698
      %v2731 = vadd.f32 %v2663, %v2699
      %v2732 = vadd.f32 %v2664, %v2700
      %v2733 = vadd.f32 %v2665, %v2701
      %v2734 = vadd.f32 %v2666, %v2702
      %v2735 = vadd.f32 %v2667, %v2703
      %v2736 = vadd.f32 %v2668, %v2704
      %v2737 = vadd.f32 %v2669, %v2705
      %v2738 = vadd.f32 %v2670, %v2706
      %v2739 = vadd.f32 %v2671, %v2707
      %v2740 = vadd.f32 %v2672, %v2708
      %v2741 = vadd.f32 %v2673, %v2709
      %v2742 = vadd.f32 %v2674, %v2710
      %v2743 = vadd.f32 %v2675, %v2711
      %v2744 = vadd.f32 %v2676, %v2712
      %v2745 = vadd.f32 %v2677, %v2713
      %v2746 = vadd.f32 %v2678, %v2714
      %v2747 = vadd.f32 %v2679, %v2715
      %v2748 = vadd.f32 %v2680, %v2716
      %v2749 = vadd.f32 %v2681, %v2717
      %v2750 = vadd.f32 %v2682, %v2718
      %v2751 = vadd.f32 %v2683, %v2719
      %v2752 = vadd.f32 %v2684, %v2720
      %v2753 = vadd.f32 %v2685, %v2721
      %v2754 = vadd.f32 %v2686, %v2722
      %v2755 = vadd.f32 %v2687, %v2723
      %v2756 = vadd.f32 %v2344, %v2724
      %v2757 = vadd.f32 %v2345, %v2725
      %v2758 = vadd.f32 %v2346, %v2726
      %v2759 = vadd.f32 %v2347, %v2727
      %v2760 = vadd.f32 %v2348, %v2728
      %v2761 = vadd.f32 %v2349, %v2729
      %v2762 = vadd.f32 %v2350, %v2730
      %v2763 = vadd.f32 %v2351, %v2731
      %v2764 = vadd.f32 %v2352, %v2732
      %v2765 = vadd.f32 %v2353, %v2733
      %v2766 = vadd.f32 %v2354, %v2734
      %v2767 = vadd.f32 %v2355, %v2735
      %v2768 = vadd.f32 %v2356, %v2736
      %v2769 = vadd.f32 %v2357, %v2737
      %v2770 = vadd.f32 %v2358, %v2738
      %v2771 = vadd.f32 %v2359, %v2739
      %v2772 = vadd.f32 %v2360, %v2740
      %v2773 = vadd.f32 %v2361, %v2741
      %v2774 = vadd.f32 %v2362, %v2742
      %v2775 = vadd.f32 %v2363, %v2743
      %v2776 = vadd.f32 %v2364, %v2744
      %v2777 = vadd.f32 %v2365, %v2745
      %v2778 = vadd.f32 %v2366, %v2746
      %v2779 = vadd.f32 %v2367, %v2747
      %v2780 = vadd.f32 %v2368, %v2748
      %v2781 = vadd.f32 %v2369, %v2749
      %v2782 = vadd.f32 %v2370, %v2750
      %v2783 = vadd.f32 %v2371, %v2751
      %v2784 = vadd.f32 %v2372, %v2752
      %v2785 = vadd.f32 %v2373, %v2753
      %v2786 = vadd.f32 %v2374, %v2754
      %v2787 = vadd.f32 %v2375, %v2755
      %v2788 = vld [vmem:[#allocation2 + $0x9] sm:$0xff]
      %v2789 = vld [vmem:[#allocation2 + $0x11] sm:$0xff]
      %v2790 = vld [vmem:[#allocation2 + $0x19] sm:$0xff]
      %v2791 = vld [vmem:[#allocation2 + $0x21] sm:$0xff]
      %v2792 = vld [vmem:[#allocation2 + $0x29] sm:$0xff]
      %v2793 = vld [vmem:[#allocation2 + $0x31] sm:$0xff]
      %v2794 = vld [vmem:[#allocation2 + $0x39] sm:$0xff]
      %v2795 = vld [vmem:[#allocation2 + $0x41] sm:$0xff]
      %v2796 = vld [vmem:[#allocation2 + $0x49] sm:$0xff]
      %v2797 = vld [vmem:[#allocation2 + $0x51] sm:$0xff]
      %v2798 = vld [vmem:[#allocation2 + $0x59] sm:$0xff]
      %v2799 = vld [vmem:[#allocation2 + $0x61] sm:$0xff]
      %v2800 = vld [vmem:[#allocation2 + $0x69] sm:$0xff]
      %v2801 = vld [vmem:[#allocation2 + $0x71] sm:$0xff]
      %v2802 = vld [vmem:[#allocation2 + $0x79] sm:$0xff]
      %v2803 = vld [vmem:[#allocation2 + $0x81] sm:$0xff]
      %v2804 = vld [vmem:[#allocation2 + $0x89] sm:$0xff]
      %v2805 = vld [vmem:[#allocation2 + $0x91] sm:$0xff]
      %v2806 = vld [vmem:[#allocation2 + $0x99] sm:$0xff]
      %v2807 = vld [vmem:[#allocation2 + $0xa1] sm:$0xff]
      %v2808 = vld [vmem:[#allocation2 + $0xa9] sm:$0xff]
      %v2809 = vld [vmem:[#allocation2 + $0xb1] sm:$0xff]
      %v2810 = vld [vmem:[#allocation2 + $0xb9] sm:$0xff]
      %v2811 = vld [vmem:[#allocation2 + $0xc1] sm:$0xff]
      %v2812 = vld [vmem:[#allocation2 + $0xc9] sm:$0xff]
      %v2813 = vld [vmem:[#allocation2 + $0xd1] sm:$0xff]
      %v2814 = vld [vmem:[#allocation2 + $0xd9] sm:$0xff]
      %v2815 = vld [vmem:[#allocation2 + $0xe1] sm:$0xff]
      %v2816 = vld [vmem:[#allocation2 + $0xe9] sm:$0xff]
      %v2817 = vld [vmem:[#allocation2 + $0xf1] sm:$0xff]
      %v2818 = vld [vmem:[#allocation2 + $0xf9] sm:$0xff]
      %v2819 = vld [vmem:[#allocation2 + $0x101] sm:$0xff]
      %v2820 = vld [vmem:[#allocation2 + $0x109] sm:$0xff]
      %v2821 = vld [vmem:[#allocation2 + $0x111] sm:$0xff]
      %v2822 = vld [vmem:[#allocation2 + $0x119] sm:$0xff]
      %v2823 = vld [vmem:[#allocation2 + $0x121] sm:$0xff]
      %v2824 = vld [vmem:[#allocation2 + $0x129] sm:$0xff]
      %v2825 = vld [vmem:[#allocation2 + $0x131] sm:$0xff]
      %v2826 = vld [vmem:[#allocation2 + $0x139] sm:$0xff]
      %v2827 = vld [vmem:[#allocation2 + $0x141] sm:$0xff]
      %v2828 = vlaneseq
      %v2829 = vshrl.u32 %v2828, 7
      %v2830 = vsub.s32 3, %v2829
      %v2831 = vrot.slane %v1196, %v2830
      %v2832 = vmul.f32 %v2788, %v2831
      %v2833 = vmul.f32 %v2789, %v2831
      %v2834 = vmul.f32 %v2790, %v2831
      %v2835 = vmul.f32 %v2791, %v2831
      %v2836 = vmul.f32 %v2792, %v2831
      %v2837 = vmul.f32 %v2793, %v2831
      %v2838 = vmul.f32 %v2794, %v2831
      %v2839 = vmul.f32 %v2795, %v2831
      %v2840 = vmul.f32 %v2796, %v2831
      %v2841 = vmul.f32 %v2797, %v2831
      %v2842 = vmul.f32 %v2798, %v2831
      %v2843 = vmul.f32 %v2799, %v2831
      %v2844 = vmul.f32 %v2800, %v2831
      %v2845 = vmul.f32 %v2801, %v2831
      %v2846 = vmul.f32 %v2802, %v2831
      %v2847 = vmul.f32 %v2803, %v2831
      %v2848 = vmul.f32 %v2804, %v2831
      %v2849 = vmul.f32 %v2805, %v2831
      %v2850 = vmul.f32 %v2806, %v2831
      %v2851 = vmul.f32 %v2807, %v2831
      %v2852 = vmul.f32 %v2808, %v2831
      %v2853 = vmul.f32 %v2809, %v2831
      %v2854 = vmul.f32 %v2810, %v2831
      %v2855 = vmul.f32 %v2811, %v2831
      %v2856 = vmul.f32 %v2812, %v2831
      %v2857 = vmul.f32 %v2813, %v2831
      %v2858 = vmul.f32 %v2814, %v2831
      %v2859 = vmul.f32 %v2815, %v2831
      %v2860 = vmul.f32 %v2816, %v2831
      %v2861 = vmul.f32 %v2817, %v2831
      %v2862 = vmul.f32 %v2818, %v2831
      %v2863 = vmul.f32 %v2819, %v2831
      %v2864 = vadd.f32 %v2832, 0.0
      %v2865 = vadd.f32 %v2833, 0.0
      %v2866 = vadd.f32 %v2834, 0.0
      %v2867 = vadd.f32 %v2835, 0.0
      %v2868 = vadd.f32 %v2836, 0.0
      %v2869 = vadd.f32 %v2837, 0.0
      %v2870 = vadd.f32 %v2838, 0.0
      %v2871 = vadd.f32 %v2839, 0.0
      %v2872 = vadd.f32 %v2840, 0.0
      %v2873 = vadd.f32 %v2841, 0.0
      %v2874 = vadd.f32 %v2842, 0.0
      %v2875 = vadd.f32 %v2843, 0.0
      %v2876 = vadd.f32 %v2844, 0.0
      %v2877 = vadd.f32 %v2845, 0.0
      %v2878 = vadd.f32 %v2846, 0.0
      %v2879 = vadd.f32 %v2847, 0.0
      %v2880 = vadd.f32 %v2848, 0.0
      %v2881 = vadd.f32 %v2849, 0.0
      %v2882 = vadd.f32 %v2850, 0.0
      %v2883 = vadd.f32 %v2851, 0.0
      %v2884 = vadd.f32 %v2852, 0.0
      %v2885 = vadd.f32 %v2853, 0.0
      %v2886 = vadd.f32 %v2854, 0.0
      %v2887 = vadd.f32 %v2855, 0.0
      %v2888 = vadd.f32 %v2856, 0.0
      %v2889 = vadd.f32 %v2857, 0.0
      %v2890 = vadd.f32 %v2858, 0.0
      %v2891 = vadd.f32 %v2859, 0.0
      %v2892 = vadd.f32 %v2860, 0.0
      %v2893 = vadd.f32 %v2861, 0.0
      %v2894 = vadd.f32 %v2862, 0.0
      %v2895 = vadd.f32 %v2863, 0.0
      %v2896 = vlaneseq
      %v2897 = vshrl.u32 %v2896, 7
      %v2898 = vsub.s32 0, %v2897
      %v2899 = vrot.slane %v1197, %v2898
      %v2900 = vmul.f32 %v2790, %v2899
      %v2901 = vmul.f32 %v2791, %v2899
      %v2902 = vmul.f32 %v2792, %v2899
      %v2903 = vmul.f32 %v2793, %v2899
      %v2904 = vmul.f32 %v2794, %v2899
      %v2905 = vmul.f32 %v2795, %v2899
      %v2906 = vmul.f32 %v2796, %v2899
      %v2907 = vmul.f32 %v2797, %v2899
      %v2908 = vmul.f32 %v2798, %v2899
      %v2909 = vmul.f32 %v2799, %v2899
      %v2910 = vmul.f32 %v2800, %v2899
      %v2911 = vmul.f32 %v2801, %v2899
      %v2912 = vmul.f32 %v2802, %v2899
      %v2913 = vmul.f32 %v2803, %v2899
      %v2914 = vmul.f32 %v2804, %v2899
      %v2915 = vmul.f32 %v2805, %v2899
      %v2916 = vmul.f32 %v2806, %v2899
      %v2917 = vmul.f32 %v2807, %v2899
      %v2918 = vmul.f32 %v2808, %v2899
      %v2919 = vmul.f32 %v2809, %v2899
      %v2920 = vmul.f32 %v2810, %v2899
      %v2921 = vmul.f32 %v2811, %v2899
      %v2922 = vmul.f32 %v2812, %v2899
      %v2923 = vmul.f32 %v2813, %v2899
      %v2924 = vmul.f32 %v2814, %v2899
      %v2925 = vmul.f32 %v2815, %v2899
      %v2926 = vmul.f32 %v2816, %v2899
      %v2927 = vmul.f32 %v2817, %v2899
      %v2928 = vmul.f32 %v2818, %v2899
      %v2929 = vmul.f32 %v2819, %v2899
      %v2930 = vmul.f32 %v2820, %v2899
      %v2931 = vmul.f32 %v2821, %v2899
      %v2932 = vadd.f32 %v2864, %v2900
      %v2933 = vadd.f32 %v2865, %v2901
      %v2934 = vadd.f32 %v2866, %v2902
      %v2935 = vadd.f32 %v2867, %v2903
      %v2936 = vadd.f32 %v2868, %v2904
      %v2937 = vadd.f32 %v2869, %v2905
      %v2938 = vadd.f32 %v2870, %v2906
      %v2939 = vadd.f32 %v2871, %v2907
      %v2940 = vadd.f32 %v2872, %v2908
      %v2941 = vadd.f32 %v2873, %v2909
      %v2942 = vadd.f32 %v2874, %v2910
      %v2943 = vadd.f32 %v2875, %v2911
      %v2944 = vadd.f32 %v2876, %v2912
      %v2945 = vadd.f32 %v2877, %v2913
      %v2946 = vadd.f32 %v2878, %v2914
      %v2947 = vadd.f32 %v2879, %v2915
      %v2948 = vadd.f32 %v2880, %v2916
      %v2949 = vadd.f32 %v2881, %v2917
      %v2950 = vadd.f32 %v2882, %v2918
      %v2951 = vadd.f32 %v2883, %v2919
      %v2952 = vadd.f32 %v2884, %v2920
      %v2953 = vadd.f32 %v2885, %v2921
      %v2954 = vadd.f32 %v2886, %v2922
      %v2955 = vadd.f32 %v2887, %v2923
      %v2956 = vadd.f32 %v2888, %v2924
      %v2957 = vadd.f32 %v2889, %v2925
      %v2958 = vadd.f32 %v2890, %v2926
      %v2959 = vadd.f32 %v2891, %v2927
      %v2960 = vadd.f32 %v2892, %v2928
      %v2961 = vadd.f32 %v2893, %v2929
      %v2962 = vadd.f32 %v2894, %v2930
      %v2963 = vadd.f32 %v2895, %v2931
      %v2964 = vlaneseq
      %v2965 = vshrl.u32 %v2964, 7
      %v2966 = vsub.s32 5, %v2965
      %v2967 = vrot.slane %v1197, %v2966
      %v2968 = vmul.f32 %v2792, %v2967
      %v2969 = vmul.f32 %v2793, %v2967
      %v2970 = vmul.f32 %v2794, %v2967
      %v2971 = vmul.f32 %v2795, %v2967
      %v2972 = vmul.f32 %v2796, %v2967
      %v2973 = vmul.f32 %v2797, %v2967
      %v2974 = vmul.f32 %v2798, %v2967
      %v2975 = vmul.f32 %v2799, %v2967
      %v2976 = vmul.f32 %v2800, %v2967
      %v2977 = vmul.f32 %v2801, %v2967
      %v2978 = vmul.f32 %v2802, %v2967
      %v2979 = vmul.f32 %v2803, %v2967
      %v2980 = vmul.f32 %v2804, %v2967
      %v2981 = vmul.f32 %v2805, %v2967
      %v2982 = vmul.f32 %v2806, %v2967
      %v2983 = vmul.f32 %v2807, %v2967
      %v2984 = vmul.f32 %v2808, %v2967
      %v2985 = vmul.f32 %v2809, %v2967
      %v2986 = vmul.f32 %v2810, %v2967
      %v2987 = vmul.f32 %v2811, %v2967
      %v2988 = vmul.f32 %v2812, %v2967
      %v2989 = vmul.f32 %v2813, %v2967
      %v2990 = vmul.f32 %v2814, %v2967
      %v2991 = vmul.f32 %v2815, %v2967
      %v2992 = vmul.f32 %v2816, %v2967
      %v2993 = vmul.f32 %v2817, %v2967
      %v2994 = vmul.f32 %v2818, %v2967
      %v2995 = vmul.f32 %v2819, %v2967
      %v2996 = vmul.f32 %v2820, %v2967
      %v2997 = vmul.f32 %v2821, %v2967
      %v2998 = vmul.f32 %v2822, %v2967
      %v2999 = vmul.f32 %v2823, %v2967
      %v3000 = vadd.f32 %v2932, %v2968
      %v3001 = vadd.f32 %v2933, %v2969
      %v3002 = vadd.f32 %v2934, %v2970
      %v3003 = vadd.f32 %v2935, %v2971
      %v3004 = vadd.f32 %v2936, %v2972
      %v3005 = vadd.f32 %v2937, %v2973
      %v3006 = vadd.f32 %v2938, %v2974
      %v3007 = vadd.f32 %v2939, %v2975
      %v3008 = vadd.f32 %v2940, %v2976
      %v3009 = vadd.f32 %v2941, %v2977
      %v3010 = vadd.f32 %v2942, %v2978
      %v3011 = vadd.f32 %v2943, %v2979
      %v3012 = vadd.f32 %v2944, %v2980
      %v3013 = vadd.f32 %v2945, %v2981
      %v3014 = vadd.f32 %v2946, %v2982
      %v3015 = vadd.f32 %v2947, %v2983
      %v3016 = vadd.f32 %v2948, %v2984
      %v3017 = vadd.f32 %v2949, %v2985
      %v3018 = vadd.f32 %v2950, %v2986
      %v3019 = vadd.f32 %v2951, %v2987
      %v3020 = vadd.f32 %v2952, %v2988
      %v3021 = vadd.f32 %v2953, %v2989
      %v3022 = vadd.f32 %v2954, %v2990
      %v3023 = vadd.f32 %v2955, %v2991
      %v3024 = vadd.f32 %v2956, %v2992
      %v3025 = vadd.f32 %v2957, %v2993
      %v3026 = vadd.f32 %v2958, %v2994
      %v3027 = vadd.f32 %v2959, %v2995
      %v3028 = vadd.f32 %v2960, %v2996
      %v3029 = vadd.f32 %v2961, %v2997
      %v3030 = vadd.f32 %v2962, %v2998
      %v3031 = vadd.f32 %v2963, %v2999
      %v3032 = vlaneseq
      %v3033 = vshrl.u32 %v3032, 7
      %v3034 = vsub.s32 2, %v3033
      %v3035 = vrot.slane %v1198, %v3034
      %v3036 = vmul.f32 %v2794, %v3035
      %v3037 = vmul.f32 %v2795, %v3035
      %v3038 = vmul.f32 %v2796, %v3035
      %v3039 = vmul.f32 %v2797, %v3035
      %v3040 = vmul.f32 %v2798, %v3035
      %v3041 = vmul.f32 %v2799, %v3035
      %v3042 = vmul.f32 %v2800, %v3035
      %v3043 = vmul.f32 %v2801, %v3035
      %v3044 = vmul.f32 %v2802, %v3035
      %v3045 = vmul.f32 %v2803, %v3035
      %v3046 = vmul.f32 %v2804, %v3035
      %v3047 = vmul.f32 %v2805, %v3035
      %v3048 = vmul.f32 %v2806, %v3035
      %v3049 = vmul.f32 %v2807, %v3035
      %v3050 = vmul.f32 %v2808, %v3035
      %v3051 = vmul.f32 %v2809, %v3035
      %v3052 = vmul.f32 %v2810, %v3035
      %v3053 = vmul.f32 %v2811, %v3035
      %v3054 = vmul.f32 %v2812, %v3035
      %v3055 = vmul.f32 %v2813, %v3035
      %v3056 = vmul.f32 %v2814, %v3035
      %v3057 = vmul.f32 %v2815, %v3035
      %v3058 = vmul.f32 %v2816, %v3035
      %v3059 = vmul.f32 %v2817, %v3035
      %v3060 = vmul.f32 %v2818, %v3035
      %v3061 = vmul.f32 %v2819, %v3035
      %v3062 = vmul.f32 %v2820, %v3035
      %v3063 = vmul.f32 %v2821, %v3035
      %v3064 = vmul.f32 %v2822, %v3035
      %v3065 = vmul.f32 %v2823, %v3035
      %v3066 = vmul.f32 %v2824, %v3035
      %v3067 = vmul.f32 %v2825, %v3035
      %v3068 = vadd.f32 %v3000, %v3036
      %v3069 = vadd.f32 %v3001, %v3037
      %v3070 = vadd.f32 %v3002, %v3038
      %v3071 = vadd.f32 %v3003, %v3039
      %v3072 = vadd.f32 %v3004, %v3040
      %v3073 = vadd.f32 %v3005, %v3041
      %v3074 = vadd.f32 %v3006, %v3042
      %v3075 = vadd.f32 %v3007, %v3043
      %v3076 = vadd.f32 %v3008, %v3044
      %v3077 = vadd.f32 %v3009, %v3045
      %v3078 = vadd.f32 %v3010, %v3046
      %v3079 = vadd.f32 %v3011, %v3047
      %v3080 = vadd.f32 %v3012, %v3048
      %v3081 = vadd.f32 %v3013, %v3049
      %v3082 = vadd.f32 %v3014, %v3050
      %v3083 = vadd.f32 %v3015, %v3051
      %v3084 = vadd.f32 %v3016, %v3052
      %v3085 = vadd.f32 %v3017, %v3053
      %v3086 = vadd.f32 %v3018, %v3054
      %v3087 = vadd.f32 %v3019, %v3055
      %v3088 = vadd.f32 %v3020, %v3056
      %v3089 = vadd.f32 %v3021, %v3057
      %v3090 = vadd.f32 %v3022, %v3058
      %v3091 = vadd.f32 %v3023, %v3059
      %v3092 = vadd.f32 %v3024, %v3060
      %v3093 = vadd.f32 %v3025, %v3061
      %v3094 = vadd.f32 %v3026, %v3062
      %v3095 = vadd.f32 %v3027, %v3063
      %v3096 = vadd.f32 %v3028, %v3064
      %v3097 = vadd.f32 %v3029, %v3065
      %v3098 = vadd.f32 %v3030, %v3066
      %v3099 = vadd.f32 %v3031, %v3067
      %v3100 = vlaneseq
      %v3101 = vshrl.u32 %v3100, 7
      %v3102 = vsub.s32 7, %v3101
      %v3103 = vrot.slane %v1198, %v3102
      %v3104 = vmul.f32 %v2796, %v3103
      %v3105 = vmul.f32 %v2797, %v3103
      %v3106 = vmul.f32 %v2798, %v3103
      %v3107 = vmul.f32 %v2799, %v3103
      %v3108 = vmul.f32 %v2800, %v3103
      %v3109 = vmul.f32 %v2801, %v3103
      %v3110 = vmul.f32 %v2802, %v3103
      %v3111 = vmul.f32 %v2803, %v3103
      %v3112 = vmul.f32 %v2804, %v3103
      %v3113 = vmul.f32 %v2805, %v3103
      %v3114 = vmul.f32 %v2806, %v3103
      %v3115 = vmul.f32 %v2807, %v3103
      %v3116 = vmul.f32 %v2808, %v3103
      %v3117 = vmul.f32 %v2809, %v3103
      %v3118 = vmul.f32 %v2810, %v3103
      %v3119 = vmul.f32 %v2811, %v3103
      %v3120 = vmul.f32 %v2812, %v3103
      %v3121 = vmul.f32 %v2813, %v3103
      %v3122 = vmul.f32 %v2814, %v3103
      %v3123 = vmul.f32 %v2815, %v3103
      %v3124 = vmul.f32 %v2816, %v3103
      %v3125 = vmul.f32 %v2817, %v3103
      %v3126 = vmul.f32 %v2818, %v3103
      %v3127 = vmul.f32 %v2819, %v3103
      %v3128 = vmul.f32 %v2820, %v3103
      %v3129 = vmul.f32 %v2821, %v3103
      %v3130 = vmul.f32 %v2822, %v3103
      %v3131 = vmul.f32 %v2823, %v3103
      %v3132 = vmul.f32 %v2824, %v3103
      %v3133 = vmul.f32 %v2825, %v3103
      %v3134 = vmul.f32 %v2826, %v3103
      %v3135 = vmul.f32 %v2827, %v3103
      %v3136 = vadd.f32 %v3068, %v3104
      %v3137 = vadd.f32 %v3069, %v3105
      %v3138 = vadd.f32 %v3070, %v3106
      %v3139 = vadd.f32 %v3071, %v3107
      %v3140 = vadd.f32 %v3072, %v3108
      %v3141 = vadd.f32 %v3073, %v3109
      %v3142 = vadd.f32 %v3074, %v3110
      %v3143 = vadd.f32 %v3075, %v3111
      %v3144 = vadd.f32 %v3076, %v3112
      %v3145 = vadd.f32 %v3077, %v3113
      %v3146 = vadd.f32 %v3078, %v3114
      %v3147 = vadd.f32 %v3079, %v3115
      %v3148 = vadd.f32 %v3080, %v3116
      %v3149 = vadd.f32 %v3081, %v3117
      %v3150 = vadd.f32 %v3082, %v3118
      %v3151 = vadd.f32 %v3083, %v3119
      %v3152 = vadd.f32 %v3084, %v3120
      %v3153 = vadd.f32 %v3085, %v3121
      %v3154 = vadd.f32 %v3086, %v3122
      %v3155 = vadd.f32 %v3087, %v3123
      %v3156 = vadd.f32 %v3088, %v3124
      %v3157 = vadd.f32 %v3089, %v3125
      %v3158 = vadd.f32 %v3090, %v3126
      %v3159 = vadd.f32 %v3091, %v3127
      %v3160 = vadd.f32 %v3092, %v3128
      %v3161 = vadd.f32 %v3093, %v3129
      %v3162 = vadd.f32 %v3094, %v3130
      %v3163 = vadd.f32 %v3095, %v3131
      %v3164 = vadd.f32 %v3096, %v3132
      %v3165 = vadd.f32 %v3097, %v3133
      %v3166 = vadd.f32 %v3098, %v3134
      %v3167 = vadd.f32 %v3099, %v3135
      %3168 = vset.pattern.permute.xlu0 3
      %3169 = vperm.xlu0 %3168, %v527
      %v3170 = vpop.permute.xlu0 %3169
      %3172 = vset.pattern.permute.xlu0 3
      %3173 = vperm.xlu0 %3172, %v528
      %v3174 = vpop.permute.xlu0 %3173
      %3176 = vset.pattern.permute.xlu0 3
      %3177 = vperm.xlu0 %3176, %v529
      %v3178 = vpop.permute.xlu0 %3177
      %3180 = vset.pattern.permute.xlu0 3
      %3181 = vperm.xlu0 %3180, %v530
      %v3182 = vpop.permute.xlu0 %3181
      %3184 = vset.pattern.permute.xlu0 3
      %3185 = vperm.xlu0 %3184, %v531
      %v3186 = vpop.permute.xlu0 %3185
      %3188 = vset.pattern.permute.xlu0 3
      %3189 = vperm.xlu0 %3188, %v532
      %v3190 = vpop.permute.xlu0 %3189
      %3192 = vset.pattern.permute.xlu0 3
      %3193 = vperm.xlu0 %3192, %v533
      %v3194 = vpop.permute.xlu0 %3193
      %3196 = vset.pattern.permute.xlu0 3
      %3197 = vperm.xlu0 %3196, %v534
      %v3198 = vpop.permute.xlu0 %3197
      %3200 = vset.pattern.permute.xlu0 3
      %3201 = vperm.xlu0 %3200, %v535
      %v3202 = vpop.permute.xlu0 %3201
      %3204 = vset.pattern.permute.xlu0 3
      %3205 = vperm.xlu0 %3204, %v536
      %v3206 = vpop.permute.xlu0 %3205
      %3208 = vset.pattern.permute.xlu0 3
      %3209 = vperm.xlu0 %3208, %v537
      %v3210 = vpop.permute.xlu0 %3209
      %3212 = vset.pattern.permute.xlu0 3
      %3213 = vperm.xlu0 %3212, %v538
      %v3214 = vpop.permute.xlu0 %3213
      %3216 = vset.pattern.permute.xlu0 3
      %3217 = vperm.xlu0 %3216, %v539
      %v3218 = vpop.permute.xlu0 %3217
      %3220 = vset.pattern.permute.xlu0 3
      %3221 = vperm.xlu0 %3220, %v540
      %v3222 = vpop.permute.xlu0 %3221
      %3224 = vset.pattern.permute.xlu0 3
      %3225 = vperm.xlu0 %3224, %v541
      %v3226 = vpop.permute.xlu0 %3225
      %3228 = vset.pattern.permute.xlu0 3
      %3229 = vperm.xlu0 %3228, %v542
      %v3230 = vpop.permute.xlu0 %3229
      %3232 = vset.pattern.permute.xlu0 3
      %3233 = vperm.xlu0 %3232, %v543
      %v3234 = vpop.permute.xlu0 %3233
      %3236 = vset.pattern.permute.xlu0 3
      %3237 = vperm.xlu0 %3236, %v544
      %v3238 = vpop.permute.xlu0 %3237
      %3240 = vset.pattern.permute.xlu0 3
      %3241 = vperm.xlu0 %3240, %v545
      %v3242 = vpop.permute.xlu0 %3241
      %3244 = vset.pattern.permute.xlu0 3
      %3245 = vperm.xlu0 %3244, %v546
      %v3246 = vpop.permute.xlu0 %3245
      %3248 = vset.pattern.permute.xlu0 3
      %3249 = vperm.xlu0 %3248, %v547
      %v3250 = vpop.permute.xlu0 %3249
      %3252 = vset.pattern.permute.xlu0 3
      %3253 = vperm.xlu0 %3252, %v548
      %v3254 = vpop.permute.xlu0 %3253
      %3256 = vset.pattern.permute.xlu0 3
      %3257 = vperm.xlu0 %3256, %v549
      %v3258 = vpop.permute.xlu0 %3257
      %3260 = vset.pattern.permute.xlu0 3
      %3261 = vperm.xlu0 %3260, %v550
      %v3262 = vpop.permute.xlu0 %3261
      %3264 = vset.pattern.permute.xlu0 3
      %3265 = vperm.xlu0 %3264, %v551
      %v3266 = vpop.permute.xlu0 %3265
      %3268 = vset.pattern.permute.xlu0 3
      %3269 = vperm.xlu0 %3268, %v552
      %v3270 = vpop.permute.xlu0 %3269
      %3272 = vset.pattern.permute.xlu0 3
      %3273 = vperm.xlu0 %3272, %v553
      %v3274 = vpop.permute.xlu0 %3273
      %3276 = vset.pattern.permute.xlu0 3
      %3277 = vperm.xlu0 %3276, %v554
      %v3278 = vpop.permute.xlu0 %3277
      %3280 = vset.pattern.permute.xlu0 3
      %3281 = vperm.xlu0 %3280, %v555
      %v3282 = vpop.permute.xlu0 %3281
      %3284 = vset.pattern.permute.xlu0 3
      %3285 = vperm.xlu0 %3284, %v556
      %v3286 = vpop.permute.xlu0 %3285
      %3288 = vset.pattern.permute.xlu0 3
      %3289 = vperm.xlu0 %3288, %v557
      %v3290 = vpop.permute.xlu0 %3289
      %3292 = vset.pattern.permute.xlu0 3
      %3293 = vperm.xlu0 %3292, %v558
      %v3294 = vpop.permute.xlu0 %3293
      %v3296 = vmul.f32 %v3136, %v3170
      %v3297 = vmul.f32 %v3137, %v3174
      %v3298 = vmul.f32 %v3138, %v3178
      %v3299 = vmul.f32 %v3139, %v3182
      %v3300 = vmul.f32 %v3140, %v3186
      %v3301 = vmul.f32 %v3141, %v3190
      %v3302 = vmul.f32 %v3142, %v3194
      %v3303 = vmul.f32 %v3143, %v3198
      %v3304 = vmul.f32 %v3144, %v3202
      %v3305 = vmul.f32 %v3145, %v3206
      %v3306 = vmul.f32 %v3146, %v3210
      %v3307 = vmul.f32 %v3147, %v3214
      %v3308 = vmul.f32 %v3148, %v3218
      %v3309 = vmul.f32 %v3149, %v3222
      %v3310 = vmul.f32 %v3150, %v3226
      %v3311 = vmul.f32 %v3151, %v3230
      %v3312 = vmul.f32 %v3152, %v3234
      %v3313 = vmul.f32 %v3153, %v3238
      %v3314 = vmul.f32 %v3154, %v3242
      %v3315 = vmul.f32 %v3155, %v3246
      %v3316 = vmul.f32 %v3156, %v3250
      %v3317 = vmul.f32 %v3157, %v3254
      %v3318 = vmul.f32 %v3158, %v3258
      %v3319 = vmul.f32 %v3159, %v3262
      %v3320 = vmul.f32 %v3160, %v3266
      %v3321 = vmul.f32 %v3161, %v3270
      %v3322 = vmul.f32 %v3162, %v3274
      %v3323 = vmul.f32 %v3163, %v3278
      %v3324 = vmul.f32 %v3164, %v3282
      %v3325 = vmul.f32 %v3165, %v3286
      %v3326 = vmul.f32 %v3166, %v3290
      %v3327 = vmul.f32 %v3167, %v3294
      %v3328 = vadd.f32 %v2756, %v3296
      %v3329 = vadd.f32 %v2757, %v3297
      %v3330 = vadd.f32 %v2758, %v3298
      %v3331 = vadd.f32 %v2759, %v3299
      %v3332 = vadd.f32 %v2760, %v3300
      %v3333 = vadd.f32 %v2761, %v3301
      %v3334 = vadd.f32 %v2762, %v3302
      %v3335 = vadd.f32 %v2763, %v3303
      %v3336 = vadd.f32 %v2764, %v3304
      %v3337 = vadd.f32 %v2765, %v3305
      %v3338 = vadd.f32 %v2766, %v3306
      %v3339 = vadd.f32 %v2767, %v3307
      %v3340 = vadd.f32 %v2768, %v3308
      %v3341 = vadd.f32 %v2769, %v3309
      %v3342 = vadd.f32 %v2770, %v3310
      %v3343 = vadd.f32 %v2771, %v3311
      %v3344 = vadd.f32 %v2772, %v3312
      %v3345 = vadd.f32 %v2773, %v3313
      %v3346 = vadd.f32 %v2774, %v3314
      %v3347 = vadd.f32 %v2775, %v3315
      %v3348 = vadd.f32 %v2776, %v3316
      %v3349 = vadd.f32 %v2777, %v3317
      %v3350 = vadd.f32 %v2778, %v3318
      %v3351 = vadd.f32 %v2779, %v3319
      %v3352 = vadd.f32 %v2780, %v3320
      %v3353 = vadd.f32 %v2781, %v3321
      %v3354 = vadd.f32 %v2782, %v3322
      %v3355 = vadd.f32 %v2783, %v3323
      %v3356 = vadd.f32 %v2784, %v3324
      %v3357 = vadd.f32 %v2785, %v3325
      %v3358 = vadd.f32 %v2786, %v3326
      %v3359 = vadd.f32 %v2787, %v3327
      %v3360 = vld [vmem:[#allocation2 + $0xa] sm:$0xff]
      %v3361 = vld [vmem:[#allocation2 + $0x12] sm:$0xff]
      %v3362 = vld [vmem:[#allocation2 + $0x1a] sm:$0xff]
      %v3363 = vld [vmem:[#allocation2 + $0x22] sm:$0xff]
      %v3364 = vld [vmem:[#allocation2 + $0x2a] sm:$0xff]
      %v3365 = vld [vmem:[#allocation2 + $0x32] sm:$0xff]
      %v3366 = vld [vmem:[#allocation2 + $0x3a] sm:$0xff]
      %v3367 = vld [vmem:[#allocation2 + $0x42] sm:$0xff]
      %v3368 = vld [vmem:[#allocation2 + $0x4a] sm:$0xff]
      %v3369 = vld [vmem:[#allocation2 + $0x52] sm:$0xff]
      %v3370 = vld [vmem:[#allocation2 + $0x5a] sm:$0xff]
      %v3371 = vld [vmem:[#allocation2 + $0x62] sm:$0xff]
      %v3372 = vld [vmem:[#allocation2 + $0x6a] sm:$0xff]
      %v3373 = vld [vmem:[#allocation2 + $0x72] sm:$0xff]
      %v3374 = vld [vmem:[#allocation2 + $0x7a] sm:$0xff]
      %v3375 = vld [vmem:[#allocation2 + $0x82] sm:$0xff]
      %v3376 = vld [vmem:[#allocation2 + $0x8a] sm:$0xff]
      %v3377 = vld [vmem:[#allocation2 + $0x92] sm:$0xff]
      %v3378 = vld [vmem:[#allocation2 + $0x9a] sm:$0xff]
      %v3379 = vld [vmem:[#allocation2 + $0xa2] sm:$0xff]
      %v3380 = vld [vmem:[#allocation2 + $0xaa] sm:$0xff]
      %v3381 = vld [vmem:[#allocation2 + $0xb2] sm:$0xff]
      %v3382 = vld [vmem:[#allocation2 + $0xba] sm:$0xff]
      %v3383 = vld [vmem:[#allocation2 + $0xc2] sm:$0xff]
      %v3384 = vld [vmem:[#allocation2 + $0xca] sm:$0xff]
      %v3385 = vld [vmem:[#allocation2 + $0xd2] sm:$0xff]
      %v3386 = vld [vmem:[#allocation2 + $0xda] sm:$0xff]
      %v3387 = vld [vmem:[#allocation2 + $0xe2] sm:$0xff]
      %v3388 = vld [vmem:[#allocation2 + $0xea] sm:$0xff]
      %v3389 = vld [vmem:[#allocation2 + $0xf2] sm:$0xff]
      %v3390 = vld [vmem:[#allocation2 + $0xfa] sm:$0xff]
      %v3391 = vld [vmem:[#allocation2 + $0x102] sm:$0xff]
      %v3392 = vld [vmem:[#allocation2 + $0x10a] sm:$0xff]
      %v3393 = vld [vmem:[#allocation2 + $0x112] sm:$0xff]
      %v3394 = vld [vmem:[#allocation2 + $0x11a] sm:$0xff]
      %v3395 = vld [vmem:[#allocation2 + $0x122] sm:$0xff]
      %v3396 = vld [vmem:[#allocation2 + $0x12a] sm:$0xff]
      %v3397 = vld [vmem:[#allocation2 + $0x132] sm:$0xff]
      %v3398 = vld [vmem:[#allocation2 + $0x13a] sm:$0xff]
      %v3399 = vld [vmem:[#allocation2 + $0x142] sm:$0xff]
      %v3400 = vlaneseq
      %v3401 = vshrl.u32 %v3400, 7
      %v3402 = vsub.s32 4, %v3401
      %v3403 = vrot.slane %v1196, %v3402
      %v3404 = vmul.f32 %v3360, %v3403
      %v3405 = vmul.f32 %v3361, %v3403
      %v3406 = vmul.f32 %v3362, %v3403
      %v3407 = vmul.f32 %v3363, %v3403
      %v3408 = vmul.f32 %v3364, %v3403
      %v3409 = vmul.f32 %v3365, %v3403
      %v3410 = vmul.f32 %v3366, %v3403
      %v3411 = vmul.f32 %v3367, %v3403
      %v3412 = vmul.f32 %v3368, %v3403
      %v3413 = vmul.f32 %v3369, %v3403
      %v3414 = vmul.f32 %v3370, %v3403
      %v3415 = vmul.f32 %v3371, %v3403
      %v3416 = vmul.f32 %v3372, %v3403
      %v3417 = vmul.f32 %v3373, %v3403
      %v3418 = vmul.f32 %v3374, %v3403
      %v3419 = vmul.f32 %v3375, %v3403
      %v3420 = vmul.f32 %v3376, %v3403
      %v3421 = vmul.f32 %v3377, %v3403
      %v3422 = vmul.f32 %v3378, %v3403
      %v3423 = vmul.f32 %v3379, %v3403
      %v3424 = vmul.f32 %v3380, %v3403
      %v3425 = vmul.f32 %v3381, %v3403
      %v3426 = vmul.f32 %v3382, %v3403
      %v3427 = vmul.f32 %v3383, %v3403
      %v3428 = vmul.f32 %v3384, %v3403
      %v3429 = vmul.f32 %v3385, %v3403
      %v3430 = vmul.f32 %v3386, %v3403
      %v3431 = vmul.f32 %v3387, %v3403
      %v3432 = vmul.f32 %v3388, %v3403
      %v3433 = vmul.f32 %v3389, %v3403
      %v3434 = vmul.f32 %v3390, %v3403
      %v3435 = vmul.f32 %v3391, %v3403
      %v3436 = vadd.f32 %v3404, 0.0
      %v3437 = vadd.f32 %v3405, 0.0
      %v3438 = vadd.f32 %v3406, 0.0
      %v3439 = vadd.f32 %v3407, 0.0
      %v3440 = vadd.f32 %v3408, 0.0
      %v3441 = vadd.f32 %v3409, 0.0
      %v3442 = vadd.f32 %v3410, 0.0
      %v3443 = vadd.f32 %v3411, 0.0
      %v3444 = vadd.f32 %v3412, 0.0
      %v3445 = vadd.f32 %v3413, 0.0
      %v3446 = vadd.f32 %v3414, 0.0
      %v3447 = vadd.f32 %v3415, 0.0
      %v3448 = vadd.f32 %v3416, 0.0
      %v3449 = vadd.f32 %v3417, 0.0
      %v3450 = vadd.f32 %v3418, 0.0
      %v3451 = vadd.f32 %v3419, 0.0
      %v3452 = vadd.f32 %v3420, 0.0
      %v3453 = vadd.f32 %v3421, 0.0
      %v3454 = vadd.f32 %v3422, 0.0
      %v3455 = vadd.f32 %v3423, 0.0
      %v3456 = vadd.f32 %v3424, 0.0
      %v3457 = vadd.f32 %v3425, 0.0
      %v3458 = vadd.f32 %v3426, 0.0
      %v3459 = vadd.f32 %v3427, 0.0
      %v3460 = vadd.f32 %v3428, 0.0
      %v3461 = vadd.f32 %v3429, 0.0
      %v3462 = vadd.f32 %v3430, 0.0
      %v3463 = vadd.f32 %v3431, 0.0
      %v3464 = vadd.f32 %v3432, 0.0
      %v3465 = vadd.f32 %v3433, 0.0
      %v3466 = vadd.f32 %v3434, 0.0
      %v3467 = vadd.f32 %v3435, 0.0
      %v3468 = vlaneseq
      %v3469 = vshrl.u32 %v3468, 7
      %v3470 = vsub.s32 1, %v3469
      %v3471 = vrot.slane %v1197, %v3470
      %v3472 = vmul.f32 %v3362, %v3471
      %v3473 = vmul.f32 %v3363, %v3471
      %v3474 = vmul.f32 %v3364, %v3471
      %v3475 = vmul.f32 %v3365, %v3471
      %v3476 = vmul.f32 %v3366, %v3471
      %v3477 = vmul.f32 %v3367, %v3471
      %v3478 = vmul.f32 %v3368, %v3471
      %v3479 = vmul.f32 %v3369, %v3471
      %v3480 = vmul.f32 %v3370, %v3471
      %v3481 = vmul.f32 %v3371, %v3471
      %v3482 = vmul.f32 %v3372, %v3471
      %v3483 = vmul.f32 %v3373, %v3471
      %v3484 = vmul.f32 %v3374, %v3471
      %v3485 = vmul.f32 %v3375, %v3471
      %v3486 = vmul.f32 %v3376, %v3471
      %v3487 = vmul.f32 %v3377, %v3471
      %v3488 = vmul.f32 %v3378, %v3471
      %v3489 = vmul.f32 %v3379, %v3471
      %v3490 = vmul.f32 %v3380, %v3471
      %v3491 = vmul.f32 %v3381, %v3471
      %v3492 = vmul.f32 %v3382, %v3471
      %v3493 = vmul.f32 %v3383, %v3471
      %v3494 = vmul.f32 %v3384, %v3471
      %v3495 = vmul.f32 %v3385, %v3471
      %v3496 = vmul.f32 %v3386, %v3471
      %v3497 = vmul.f32 %v3387, %v3471
      %v3498 = vmul.f32 %v3388, %v3471
      %v3499 = vmul.f32 %v3389, %v3471
      %v3500 = vmul.f32 %v3390, %v3471
      %v3501 = vmul.f32 %v3391, %v3471
      %v3502 = vmul.f32 %v3392, %v3471
      %v3503 = vmul.f32 %v3393, %v3471
      %v3504 = vadd.f32 %v3436, %v3472
      %v3505 = vadd.f32 %v3437, %v3473
      %v3506 = vadd.f32 %v3438, %v3474
      %v3507 = vadd.f32 %v3439, %v3475
      %v3508 = vadd.f32 %v3440, %v3476
      %v3509 = vadd.f32 %v3441, %v3477
      %v3510 = vadd.f32 %v3442, %v3478
      %v3511 = vadd.f32 %v3443, %v3479
      %v3512 = vadd.f32 %v3444, %v3480
      %v3513 = vadd.f32 %v3445, %v3481
      %v3514 = vadd.f32 %v3446, %v3482
      %v3515 = vadd.f32 %v3447, %v3483
      %v3516 = vadd.f32 %v3448, %v3484
      %v3517 = vadd.f32 %v3449, %v3485
      %v3518 = vadd.f32 %v3450, %v3486
      %v3519 = vadd.f32 %v3451, %v3487
      %v3520 = vadd.f32 %v3452, %v3488
      %v3521 = vadd.f32 %v3453, %v3489
      %v3522 = vadd.f32 %v3454, %v3490
      %v3523 = vadd.f32 %v3455, %v3491
      %v3524 = vadd.f32 %v3456, %v3492
      %v3525 = vadd.f32 %v3457, %v3493
      %v3526 = vadd.f32 %v3458, %v3494
      %v3527 = vadd.f32 %v3459, %v3495
      %v3528 = vadd.f32 %v3460, %v3496
      %v3529 = vadd.f32 %v3461, %v3497
      %v3530 = vadd.f32 %v3462, %v3498
      %v3531 = vadd.f32 %v3463, %v3499
      %v3532 = vadd.f32 %v3464, %v3500
      %v3533 = vadd.f32 %v3465, %v3501
      %v3534 = vadd.f32 %v3466, %v3502
      %v3535 = vadd.f32 %v3467, %v3503
      %v3536 = vlaneseq
      %v3537 = vshrl.u32 %v3536, 7
      %v3538 = vsub.s32 6, %v3537
      %v3539 = vrot.slane %v1197, %v3538
      %v3540 = vmul.f32 %v3364, %v3539
      %v3541 = vmul.f32 %v3365, %v3539
      %v3542 = vmul.f32 %v3366, %v3539
      %v3543 = vmul.f32 %v3367, %v3539
      %v3544 = vmul.f32 %v3368, %v3539
      %v3545 = vmul.f32 %v3369, %v3539
      %v3546 = vmul.f32 %v3370, %v3539
      %v3547 = vmul.f32 %v3371, %v3539
      %v3548 = vmul.f32 %v3372, %v3539
      %v3549 = vmul.f32 %v3373, %v3539
      %v3550 = vmul.f32 %v3374, %v3539
      %v3551 = vmul.f32 %v3375, %v3539
      %v3552 = vmul.f32 %v3376, %v3539
      %v3553 = vmul.f32 %v3377, %v3539
      %v3554 = vmul.f32 %v3378, %v3539
      %v3555 = vmul.f32 %v3379, %v3539
      %v3556 = vmul.f32 %v3380, %v3539
      %v3557 = vmul.f32 %v3381, %v3539
      %v3558 = vmul.f32 %v3382, %v3539
      %v3559 = vmul.f32 %v3383, %v3539
      %v3560 = vmul.f32 %v3384, %v3539
      %v3561 = vmul.f32 %v3385, %v3539
      %v3562 = vmul.f32 %v3386, %v3539
      %v3563 = vmul.f32 %v3387, %v3539
      %v3564 = vmul.f32 %v3388, %v3539
      %v3565 = vmul.f32 %v3389, %v3539
      %v3566 = vmul.f32 %v3390, %v3539
      %v3567 = vmul.f32 %v3391, %v3539
      %v3568 = vmul.f32 %v3392, %v3539
      %v3569 = vmul.f32 %v3393, %v3539
      %v3570 = vmul.f32 %v3394, %v3539
      %v3571 = vmul.f32 %v3395, %v3539
      %v3572 = vadd.f32 %v3504, %v3540
      %v3573 = vadd.f32 %v3505, %v3541
      %v3574 = vadd.f32 %v3506, %v3542
      %v3575 = vadd.f32 %v3507, %v3543
      %v3576 = vadd.f32 %v3508, %v3544
      %v3577 = vadd.f32 %v3509, %v3545
      %v3578 = vadd.f32 %v3510, %v3546
      %v3579 = vadd.f32 %v3511, %v3547
      %v3580 = vadd.f32 %v3512, %v3548
      %v3581 = vadd.f32 %v3513, %v3549
      %v3582 = vadd.f32 %v3514, %v3550
      %v3583 = vadd.f32 %v3515, %v3551
      %v3584 = vadd.f32 %v3516, %v3552
      %v3585 = vadd.f32 %v3517, %v3553
      %v3586 = vadd.f32 %v3518, %v3554
      %v3587 = vadd.f32 %v3519, %v3555
      %v3588 = vadd.f32 %v3520, %v3556
      %v3589 = vadd.f32 %v3521, %v3557
      %v3590 = vadd.f32 %v3522, %v3558
      %v3591 = vadd.f32 %v3523, %v3559
      %v3592 = vadd.f32 %v3524, %v3560
      %v3593 = vadd.f32 %v3525, %v3561
      %v3594 = vadd.f32 %v3526, %v3562
      %v3595 = vadd.f32 %v3527, %v3563
      %v3596 = vadd.f32 %v3528, %v3564
      %v3597 = vadd.f32 %v3529, %v3565
      %v3598 = vadd.f32 %v3530, %v3566
      %v3599 = vadd.f32 %v3531, %v3567
      %v3600 = vadd.f32 %v3532, %v3568
      %v3601 = vadd.f32 %v3533, %v3569
      %v3602 = vadd.f32 %v3534, %v3570
      %v3603 = vadd.f32 %v3535, %v3571
      %v3604 = vlaneseq
      %v3605 = vshrl.u32 %v3604, 7
      %v3606 = vsub.s32 3, %v3605
      %v3607 = vrot.slane %v1198, %v3606
      %v3608 = vmul.f32 %v3366, %v3607
      %v3609 = vmul.f32 %v3367, %v3607
      %v3610 = vmul.f32 %v3368, %v3607
      %v3611 = vmul.f32 %v3369, %v3607
      %v3612 = vmul.f32 %v3370, %v3607
      %v3613 = vmul.f32 %v3371, %v3607
      %v3614 = vmul.f32 %v3372, %v3607
      %v3615 = vmul.f32 %v3373, %v3607
      %v3616 = vmul.f32 %v3374, %v3607
      %v3617 = vmul.f32 %v3375, %v3607
      %v3618 = vmul.f32 %v3376, %v3607
      %v3619 = vmul.f32 %v3377, %v3607
      %v3620 = vmul.f32 %v3378, %v3607
      %v3621 = vmul.f32 %v3379, %v3607
      %v3622 = vmul.f32 %v3380, %v3607
      %v3623 = vmul.f32 %v3381, %v3607
      %v3624 = vmul.f32 %v3382, %v3607
      %v3625 = vmul.f32 %v3383, %v3607
      %v3626 = vmul.f32 %v3384, %v3607
      %v3627 = vmul.f32 %v3385, %v3607
      %v3628 = vmul.f32 %v3386, %v3607
      %v3629 = vmul.f32 %v3387, %v3607
      %v3630 = vmul.f32 %v3388, %v3607
      %v3631 = vmul.f32 %v3389, %v3607
      %v3632 = vmul.f32 %v3390, %v3607
      %v3633 = vmul.f32 %v3391, %v3607
      %v3634 = vmul.f32 %v3392, %v3607
      %v3635 = vmul.f32 %v3393, %v3607
      %v3636 = vmul.f32 %v3394, %v3607
      %v3637 = vmul.f32 %v3395, %v3607
      %v3638 = vmul.f32 %v3396, %v3607
      %v3639 = vmul.f32 %v3397, %v3607
      %v3640 = vadd.f32 %v3572, %v3608
      %v3641 = vadd.f32 %v3573, %v3609
      %v3642 = vadd.f32 %v3574, %v3610
      %v3643 = vadd.f32 %v3575, %v3611
      %v3644 = vadd.f32 %v3576, %v3612
      %v3645 = vadd.f32 %v3577, %v3613
      %v3646 = vadd.f32 %v3578, %v3614
      %v3647 = vadd.f32 %v3579, %v3615
      %v3648 = vadd.f32 %v3580, %v3616
      %v3649 = vadd.f32 %v3581, %v3617
      %v3650 = vadd.f32 %v3582, %v3618
      %v3651 = vadd.f32 %v3583, %v3619
      %v3652 = vadd.f32 %v3584, %v3620
      %v3653 = vadd.f32 %v3585, %v3621
      %v3654 = vadd.f32 %v3586, %v3622
      %v3655 = vadd.f32 %v3587, %v3623
      %v3656 = vadd.f32 %v3588, %v3624
      %v3657 = vadd.f32 %v3589, %v3625
      %v3658 = vadd.f32 %v3590, %v3626
      %v3659 = vadd.f32 %v3591, %v3627
      %v3660 = vadd.f32 %v3592, %v3628
      %v3661 = vadd.f32 %v3593, %v3629
      %v3662 = vadd.f32 %v3594, %v3630
      %v3663 = vadd.f32 %v3595, %v3631
      %v3664 = vadd.f32 %v3596, %v3632
      %v3665 = vadd.f32 %v3597, %v3633
      %v3666 = vadd.f32 %v3598, %v3634
      %v3667 = vadd.f32 %v3599, %v3635
      %v3668 = vadd.f32 %v3600, %v3636
      %v3669 = vadd.f32 %v3601, %v3637
      %v3670 = vadd.f32 %v3602, %v3638
      %v3671 = vadd.f32 %v3603, %v3639
      %v3672 = vlaneseq
      %v3673 = vshrl.u32 %v3672, 7
      %v3674 = vsub.s32 0, %v3673
      %v3675 = vrot.slane %v1199, %v3674
      %v3676 = vmul.f32 %v3368, %v3675
      %v3677 = vmul.f32 %v3369, %v3675
      %v3678 = vmul.f32 %v3370, %v3675
      %v3679 = vmul.f32 %v3371, %v3675
      %v3680 = vmul.f32 %v3372, %v3675
      %v3681 = vmul.f32 %v3373, %v3675
      %v3682 = vmul.f32 %v3374, %v3675
      %v3683 = vmul.f32 %v3375, %v3675
      %v3684 = vmul.f32 %v3376, %v3675
      %v3685 = vmul.f32 %v3377, %v3675
      %v3686 = vmul.f32 %v3378, %v3675
      %v3687 = vmul.f32 %v3379, %v3675
      %v3688 = vmul.f32 %v3380, %v3675
      %v3689 = vmul.f32 %v3381, %v3675
      %v3690 = vmul.f32 %v3382, %v3675
      %v3691 = vmul.f32 %v3383, %v3675
      %v3692 = vmul.f32 %v3384, %v3675
      %v3693 = vmul.f32 %v3385, %v3675
      %v3694 = vmul.f32 %v3386, %v3675
      %v3695 = vmul.f32 %v3387, %v3675
      %v3696 = vmul.f32 %v3388, %v3675
      %v3697 = vmul.f32 %v3389, %v3675
      %v3698 = vmul.f32 %v3390, %v3675
      %v3699 = vmul.f32 %v3391, %v3675
      %v3700 = vmul.f32 %v3392, %v3675
      %v3701 = vmul.f32 %v3393, %v3675
      %v3702 = vmul.f32 %v3394, %v3675
      %v3703 = vmul.f32 %v3395, %v3675
      %v3704 = vmul.f32 %v3396, %v3675
      %v3705 = vmul.f32 %v3397, %v3675
      %v3706 = vmul.f32 %v3398, %v3675
      %v3707 = vmul.f32 %v3399, %v3675
      %v3708 = vadd.f32 %v3640, %v3676
      %v3709 = vadd.f32 %v3641, %v3677
      %v3710 = vadd.f32 %v3642, %v3678
      %v3711 = vadd.f32 %v3643, %v3679
      %v3712 = vadd.f32 %v3644, %v3680
      %v3713 = vadd.f32 %v3645, %v3681
      %v3714 = vadd.f32 %v3646, %v3682
      %v3715 = vadd.f32 %v3647, %v3683
      %v3716 = vadd.f32 %v3648, %v3684
      %v3717 = vadd.f32 %v3649, %v3685
      %v3718 = vadd.f32 %v3650, %v3686
      %v3719 = vadd.f32 %v3651, %v3687
      %v3720 = vadd.f32 %v3652, %v3688
      %v3721 = vadd.f32 %v3653, %v3689
      %v3722 = vadd.f32 %v3654, %v3690
      %v3723 = vadd.f32 %v3655, %v3691
      %v3724 = vadd.f32 %v3656, %v3692
      %v3725 = vadd.f32 %v3657, %v3693
      %v3726 = vadd.f32 %v3658, %v3694
      %v3727 = vadd.f32 %v3659, %v3695
      %v3728 = vadd.f32 %v3660, %v3696
      %v3729 = vadd.f32 %v3661, %v3697
      %v3730 = vadd.f32 %v3662, %v3698
      %v3731 = vadd.f32 %v3663, %v3699
      %v3732 = vadd.f32 %v3664, %v3700
      %v3733 = vadd.f32 %v3665, %v3701
      %v3734 = vadd.f32 %v3666, %v3702
      %v3735 = vadd.f32 %v3667, %v3703
      %v3736 = vadd.f32 %v3668, %v3704
      %v3737 = vadd.f32 %v3669, %v3705
      %v3738 = vadd.f32 %v3670, %v3706
      %v3739 = vadd.f32 %v3671, %v3707
      %3740 = vset.pattern.permute.xlu0 4
      %3741 = vperm.xlu0 %3740, %v527
      %v3742 = vpop.permute.xlu0 %3741
      %3744 = vset.pattern.permute.xlu0 4
      %3745 = vperm.xlu0 %3744, %v528
      %v3746 = vpop.permute.xlu0 %3745
      %3748 = vset.pattern.permute.xlu0 4
      %3749 = vperm.xlu0 %3748, %v529
      %v3750 = vpop.permute.xlu0 %3749
      %3752 = vset.pattern.permute.xlu0 4
      %3753 = vperm.xlu0 %3752, %v530
      %v3754 = vpop.permute.xlu0 %3753
      %3756 = vset.pattern.permute.xlu0 4
      %3757 = vperm.xlu0 %3756, %v531
      %v3758 = vpop.permute.xlu0 %3757
      %3760 = vset.pattern.permute.xlu0 4
      %3761 = vperm.xlu0 %3760, %v532
      %v3762 = vpop.permute.xlu0 %3761
      %3764 = vset.pattern.permute.xlu0 4
      %3765 = vperm.xlu0 %3764, %v533
      %v3766 = vpop.permute.xlu0 %3765
      %3768 = vset.pattern.permute.xlu0 4
      %3769 = vperm.xlu0 %3768, %v534
      %v3770 = vpop.permute.xlu0 %3769
      %3772 = vset.pattern.permute.xlu0 4
      %3773 = vperm.xlu0 %3772, %v535
      %v3774 = vpop.permute.xlu0 %3773
      %3776 = vset.pattern.permute.xlu0 4
      %3777 = vperm.xlu0 %3776, %v536
      %v3778 = vpop.permute.xlu0 %3777
      %3780 = vset.pattern.permute.xlu0 4
      %3781 = vperm.xlu0 %3780, %v537
      %v3782 = vpop.permute.xlu0 %3781
      %3784 = vset.pattern.permute.xlu0 4
      %3785 = vperm.xlu0 %3784, %v538
      %v3786 = vpop.permute.xlu0 %3785
      %3788 = vset.pattern.permute.xlu0 4
      %3789 = vperm.xlu0 %3788, %v539
      %v3790 = vpop.permute.xlu0 %3789
      %3792 = vset.pattern.permute.xlu0 4
      %3793 = vperm.xlu0 %3792, %v540
      %v3794 = vpop.permute.xlu0 %3793
      %3796 = vset.pattern.permute.xlu0 4
      %3797 = vperm.xlu0 %3796, %v541
      %v3798 = vpop.permute.xlu0 %3797
      %3800 = vset.pattern.permute.xlu0 4
      %3801 = vperm.xlu0 %3800, %v542
      %v3802 = vpop.permute.xlu0 %3801
      %3804 = vset.pattern.permute.xlu0 4
      %3805 = vperm.xlu0 %3804, %v543
      %v3806 = vpop.permute.xlu0 %3805
      %3808 = vset.pattern.permute.xlu0 4
      %3809 = vperm.xlu0 %3808, %v544
      %v3810 = vpop.permute.xlu0 %3809
      %3812 = vset.pattern.permute.xlu0 4
      %3813 = vperm.xlu0 %3812, %v545
      %v3814 = vpop.permute.xlu0 %3813
      %3816 = vset.pattern.permute.xlu0 4
      %3817 = vperm.xlu0 %3816, %v546
      %v3818 = vpop.permute.xlu0 %3817
      %3820 = vset.pattern.permute.xlu0 4
      %3821 = vperm.xlu0 %3820, %v547
      %v3822 = vpop.permute.xlu0 %3821
      %3824 = vset.pattern.permute.xlu0 4
      %3825 = vperm.xlu0 %3824, %v548
      %v3826 = vpop.permute.xlu0 %3825
      %3828 = vset.pattern.permute.xlu0 4
      %3829 = vperm.xlu0 %3828, %v549
      %v3830 = vpop.permute.xlu0 %3829
      %3832 = vset.pattern.permute.xlu0 4
      %3833 = vperm.xlu0 %3832, %v550
      %v3834 = vpop.permute.xlu0 %3833
      %3836 = vset.pattern.permute.xlu0 4
      %3837 = vperm.xlu0 %3836, %v551
      %v3838 = vpop.permute.xlu0 %3837
      %3840 = vset.pattern.permute.xlu0 4
      %3841 = vperm.xlu0 %3840, %v552
      %v3842 = vpop.permute.xlu0 %3841
      %3844 = vset.pattern.permute.xlu0 4
      %3845 = vperm.xlu0 %3844, %v553
      %v3846 = vpop.permute.xlu0 %3845
      %3848 = vset.pattern.permute.xlu0 4
      %3849 = vperm.xlu0 %3848, %v554
      %v3850 = vpop.permute.xlu0 %3849
      %3852 = vset.pattern.permute.xlu0 4
      %3853 = vperm.xlu0 %3852, %v555
      %v3854 = vpop.permute.xlu0 %3853
      %3856 = vset.pattern.permute.xlu0 4
      %3857 = vperm.xlu0 %3856, %v556
      %v3858 = vpop.permute.xlu0 %3857
      %3860 = vset.pattern.permute.xlu0 4
      %3861 = vperm.xlu0 %3860, %v557
      %v3862 = vpop.permute.xlu0 %3861
      %3864 = vset.pattern.permute.xlu0 4
      %3865 = vperm.xlu0 %3864, %v558
      %v3866 = vpop.permute.xlu0 %3865
      %v3868 = vmul.f32 %v3708, %v3742
      %v3869 = vmul.f32 %v3709, %v3746
      %v3870 = vmul.f32 %v3710, %v3750
      %v3871 = vmul.f32 %v3711, %v3754
      %v3872 = vmul.f32 %v3712, %v3758
      %v3873 = vmul.f32 %v3713, %v3762
      %v3874 = vmul.f32 %v3714, %v3766
      %v3875 = vmul.f32 %v3715, %v3770
      %v3876 = vmul.f32 %v3716, %v3774
      %v3877 = vmul.f32 %v3717, %v3778
      %v3878 = vmul.f32 %v3718, %v3782
      %v3879 = vmul.f32 %v3719, %v3786
      %v3880 = vmul.f32 %v3720, %v3790
      %v3881 = vmul.f32 %v3721, %v3794
      %v3882 = vmul.f32 %v3722, %v3798
      %v3883 = vmul.f32 %v3723, %v3802
      %v3884 = vmul.f32 %v3724, %v3806
      %v3885 = vmul.f32 %v3725, %v3810
      %v3886 = vmul.f32 %v3726, %v3814
      %v3887 = vmul.f32 %v3727, %v3818
      %v3888 = vmul.f32 %v3728, %v3822
      %v3889 = vmul.f32 %v3729, %v3826
      %v3890 = vmul.f32 %v3730, %v3830
      %v3891 = vmul.f32 %v3731, %v3834
      %v3892 = vmul.f32 %v3732, %v3838
      %v3893 = vmul.f32 %v3733, %v3842
      %v3894 = vmul.f32 %v3734, %v3846
      %v3895 = vmul.f32 %v3735, %v3850
      %v3896 = vmul.f32 %v3736, %v3854
      %v3897 = vmul.f32 %v3737, %v3858
      %v3898 = vmul.f32 %v3738, %v3862
      %v3899 = vmul.f32 %v3739, %v3866
      %v3900 = vadd.f32 %v3328, %v3868
      %v3901 = vadd.f32 %v3329, %v3869
      %v3902 = vadd.f32 %v3330, %v3870
      %v3903 = vadd.f32 %v3331, %v3871
      %v3904 = vadd.f32 %v3332, %v3872
      %v3905 = vadd.f32 %v3333, %v3873
      %v3906 = vadd.f32 %v3334, %v3874
      %v3907 = vadd.f32 %v3335, %v3875
      %v3908 = vadd.f32 %v3336, %v3876
      %v3909 = vadd.f32 %v3337, %v3877
      %v3910 = vadd.f32 %v3338, %v3878
      %v3911 = vadd.f32 %v3339, %v3879
      %v3912 = vadd.f32 %v3340, %v3880
      %v3913 = vadd.f32 %v3341, %v3881
      %v3914 = vadd.f32 %v3342, %v3882
      %v3915 = vadd.f32 %v3343, %v3883
      %v3916 = vadd.f32 %v3344, %v3884
      %v3917 = vadd.f32 %v3345, %v3885
      %v3918 = vadd.f32 %v3346, %v3886
      %v3919 = vadd.f32 %v3347, %v3887
      %v3920 = vadd.f32 %v3348, %v3888
      %v3921 = vadd.f32 %v3349, %v3889
      %v3922 = vadd.f32 %v3350, %v3890
      %v3923 = vadd.f32 %v3351, %v3891
      %v3924 = vadd.f32 %v3352, %v3892
      %v3925 = vadd.f32 %v3353, %v3893
      %v3926 = vadd.f32 %v3354, %v3894
      %v3927 = vadd.f32 %v3355, %v3895
      %v3928 = vadd.f32 %v3356, %v3896
      %v3929 = vadd.f32 %v3357, %v3897
      %v3930 = vadd.f32 %v3358, %v3898
      %v3931 = vadd.f32 %v3359, %v3899
      %v3932 = vld [vmem:[%s9] sm:$0x1]
      %v3934 = vlaneseq
      %v3935 = vshrl.u32 %v3934, 7
      %v3936 = vsub.s32 0, %v3935
      %v3937 = vrot.slane %v3932, %v3936
      %v3939 = vmul.f32 %v3900, %v3937
      %v3940 = vmul.f32 %v3901, %v3937
      %v3941 = vmul.f32 %v3902, %v3937
      %v3942 = vmul.f32 %v3903, %v3937
      %v3943 = vmul.f32 %v3904, %v3937
      %v3944 = vmul.f32 %v3905, %v3937
      %v3945 = vmul.f32 %v3906, %v3937
      %v3946 = vmul.f32 %v3907, %v3937
      %v3947 = vmul.f32 %v3908, %v3937
      %v3948 = vmul.f32 %v3909, %v3937
      %v3949 = vmul.f32 %v3910, %v3937
      %v3950 = vmul.f32 %v3911, %v3937
      %v3951 = vmul.f32 %v3912, %v3937
      %v3952 = vmul.f32 %v3913, %v3937
      %v3953 = vmul.f32 %v3914, %v3937
      %v3954 = vmul.f32 %v3915, %v3937
      %v3955 = vmul.f32 %v3916, %v3937
      %v3956 = vmul.f32 %v3917, %v3937
      %v3957 = vmul.f32 %v3918, %v3937
      %v3958 = vmul.f32 %v3919, %v3937
      %v3959 = vmul.f32 %v3920, %v3937
      %v3960 = vmul.f32 %v3921, %v3937
      %v3961 = vmul.f32 %v3922, %v3937
      %v3962 = vmul.f32 %v3923, %v3937
      %v3963 = vmul.f32 %v3924, %v3937
      %v3964 = vmul.f32 %v3925, %v3937
      %v3965 = vmul.f32 %v3926, %v3937
      %v3966 = vmul.f32 %v3927, %v3937
      %v3967 = vmul.f32 %v3928, %v3937
      %v3968 = vmul.f32 %v3929, %v3937
      %v3969 = vmul.f32 %v3930, %v3937
      %v3970 = vmul.f32 %v3931, %v3937
      %v3971 = vld [vmem:[%s10] sm:$0x1]
      %v3973 = vlaneseq
      %v3974 = vshrl.u32 %v3973, 7
      %v3975 = vsub.s32 0, %v3974
      %v3976 = vrot.slane %v3971, %v3975
      %v3978 = vadd.f32 %v3939, %v3976
      %v3979 = vadd.f32 %v3940, %v3976
      %v3980 = vadd.f32 %v3941, %v3976
      %v3981 = vadd.f32 %v3942, %v3976
      %v3982 = vadd.f32 %v3943, %v3976
      %v3983 = vadd.f32 %v3944, %v3976
      %v3984 = vadd.f32 %v3945, %v3976
      %v3985 = vadd.f32 %v3946, %v3976
      %v3986 = vadd.f32 %v3947, %v3976
      %v3987 = vadd.f32 %v3948, %v3976
      %v3988 = vadd.f32 %v3949, %v3976
      %v3989 = vadd.f32 %v3950, %v3976
      %v3990 = vadd.f32 %v3951, %v3976
      %v3991 = vadd.f32 %v3952, %v3976
      %v3992 = vadd.f32 %v3953, %v3976
      %v3993 = vadd.f32 %v3954, %v3976
      %v3994 = vadd.f32 %v3955, %v3976
      %v3995 = vadd.f32 %v3956, %v3976
      %v3996 = vadd.f32 %v3957, %v3976
      %v3997 = vadd.f32 %v3958, %v3976
      %v3998 = vadd.f32 %v3959, %v3976
      %v3999 = vadd.f32 %v3960, %v3976
      %v4000 = vadd.f32 %v3961, %v3976
      %v4001 = vadd.f32 %v3962, %v3976
      %v4002 = vadd.f32 %v3963, %v3976
      %v4003 = vadd.f32 %v3964, %v3976
      %v4004 = vadd.f32 %v3965, %v3976
      %v4005 = vadd.f32 %v3966, %v3976
      %v4006 = vadd.f32 %v3967, %v3976
      %v4007 = vadd.f32 %v3968, %v3976
      %v4008 = vadd.f32 %v3969, %v3976
      %v4009 = vadd.f32 %v3970, %v3976
      %v4010 = vsub.f32 0.0, %v3978
      %v4011 = vsub.f32 0.0, %v3979
      %v4012 = vsub.f32 0.0, %v3980
      %v4013 = vsub.f32 0.0, %v3981
      %v4014 = vsub.f32 0.0, %v3982
      %v4015 = vsub.f32 0.0, %v3983
      %v4016 = vsub.f32 0.0, %v3984
      %v4017 = vsub.f32 0.0, %v3985
      %v4018 = vsub.f32 0.0, %v3986
      %v4019 = vsub.f32 0.0, %v3987
      %v4020 = vsub.f32 0.0, %v3988
      %v4021 = vsub.f32 0.0, %v3989
      %v4022 = vsub.f32 0.0, %v3990
      %v4023 = vsub.f32 0.0, %v3991
      %v4024 = vsub.f32 0.0, %v3992
      %v4025 = vsub.f32 0.0, %v3993
      %v4026 = vsub.f32 0.0, %v3994
      %v4027 = vsub.f32 0.0, %v3995
      %v4028 = vsub.f32 0.0, %v3996
      %v4029 = vsub.f32 0.0, %v3997
      %v4030 = vsub.f32 0.0, %v3998
      %v4031 = vsub.f32 0.0, %v3999
      %v4032 = vsub.f32 0.0, %v4000
      %v4033 = vsub.f32 0.0, %v4001
      %v4034 = vsub.f32 0.0, %v4002
      %v4035 = vsub.f32 0.0, %v4003
      %v4036 = vsub.f32 0.0, %v4004
      %v4037 = vsub.f32 0.0, %v4005
      %v4038 = vsub.f32 0.0, %v4006
      %v4039 = vsub.f32 0.0, %v4007
      %v4040 = vsub.f32 0.0, %v4008
      %v4041 = vsub.f32 0.0, %v4009
      %v4042 = vmul.f32 %v4010, 1.442695
      %v4043 = vpow.pop %v4042
      %v4044 = vmul.f32 %v4011, 1.442695
      %v4045 = vpow.pop %v4044
      %v4046 = vmul.f32 %v4012, 1.442695
      %v4047 = vpow.pop %v4046
      %v4048 = vmul.f32 %v4013, 1.442695
      %v4049 = vpow.pop %v4048
      %v4050 = vmul.f32 %v4014, 1.442695
      %v4051 = vpow.pop %v4050
      %v4052 = vmul.f32 %v4015, 1.442695
      %v4053 = vpow.pop %v4052
      %v4054 = vmul.f32 %v4016, 1.442695
      %v4055 = vpow.pop %v4054
      %v4056 = vmul.f32 %v4017, 1.442695
      %v4057 = vpow.pop %v4056
      %v4058 = vmul.f32 %v4018, 1.442695
      %v4059 = vpow.pop %v4058
      %v4060 = vmul.f32 %v4019, 1.442695
      %v4061 = vpow.pop %v4060
      %v4062 = vmul.f32 %v4020, 1.442695
      %v4063 = vpow.pop %v4062
      %v4064 = vmul.f32 %v4021, 1.442695
      %v4065 = vpow.pop %v4064
      %v4066 = vmul.f32 %v4022, 1.442695
      %v4067 = vpow.pop %v4066
      %v4068 = vmul.f32 %v4023, 1.442695
      %v4069 = vpow.pop %v4068
      %v4070 = vmul.f32 %v4024, 1.442695
      %v4071 = vpow.pop %v4070
      %v4072 = vmul.f32 %v4025, 1.442695
      %v4073 = vpow.pop %v4072
      %v4074 = vmul.f32 %v4026, 1.442695
      %v4075 = vpow.pop %v4074
      %v4076 = vmul.f32 %v4027, 1.442695
      %v4077 = vpow.pop %v4076
      %v4078 = vmul.f32 %v4028, 1.442695
      %v4079 = vpow.pop %v4078
      %v4080 = vmul.f32 %v4029, 1.442695
      %v4081 = vpow.pop %v4080
      %v4082 = vmul.f32 %v4030, 1.442695
      %v4083 = vpow.pop %v4082
      %v4084 = vmul.f32 %v4031, 1.442695
      %v4085 = vpow.pop %v4084
      %v4086 = vmul.f32 %v4032, 1.442695
      %v4087 = vpow.pop %v4086
      %v4088 = vmul.f32 %v4033, 1.442695
      %v4089 = vpow.pop %v4088
      %v4090 = vmul.f32 %v4034, 1.442695
      %v4091 = vpow.pop %v4090
      %v4092 = vmul.f32 %v4035, 1.442695
      %v4093 = vpow.pop %v4092
      %v4094 = vmul.f32 %v4036, 1.442695
      %v4095 = vpow.pop %v4094
      %v4096 = vmul.f32 %v4037, 1.442695
      %v4097 = vpow.pop %v4096
      %v4098 = vmul.f32 %v4038, 1.442695
      %v4099 = vpow.pop %v4098
      %v4100 = vmul.f32 %v4039, 1.442695
      %v4101 = vpow.pop %v4100
      %v4102 = vmul.f32 %v4040, 1.442695
      %v4103 = vpow.pop %v4102
      %v4104 = vmul.f32 %v4041, 1.442695
      %v4105 = vpow.pop %v4104
      %v4106 = vadd.f32 %v4043, 1.0
      %v4107 = vadd.f32 %v4045, 1.0
      %v4108 = vadd.f32 %v4047, 1.0
      %v4109 = vadd.f32 %v4049, 1.0
      %v4110 = vadd.f32 %v4051, 1.0
      %v4111 = vadd.f32 %v4053, 1.0
      %v4112 = vadd.f32 %v4055, 1.0
      %v4113 = vadd.f32 %v4057, 1.0
      %v4114 = vadd.f32 %v4059, 1.0
      %v4115 = vadd.f32 %v4061, 1.0
      %v4116 = vadd.f32 %v4063, 1.0
      %v4117 = vadd.f32 %v4065, 1.0
      %v4118 = vadd.f32 %v4067, 1.0
      %v4119 = vadd.f32 %v4069, 1.0
      %v4120 = vadd.f32 %v4071, 1.0
      %v4121 = vadd.f32 %v4073, 1.0
      %v4122 = vadd.f32 %v4075, 1.0
      %v4123 = vadd.f32 %v4077, 1.0
      %v4124 = vadd.f32 %v4079, 1.0
      %v4125 = vadd.f32 %v4081, 1.0
      %v4126 = vadd.f32 %v4083, 1.0
      %v4127 = vadd.f32 %v4085, 1.0
      %v4128 = vadd.f32 %v4087, 1.0
      %v4129 = vadd.f32 %v4089, 1.0
      %v4130 = vadd.f32 %v4091, 1.0
      %v4131 = vadd.f32 %v4093, 1.0
      %v4132 = vadd.f32 %v4095, 1.0
      %v4133 = vadd.f32 %v4097, 1.0
      %v4134 = vadd.f32 %v4099, 1.0
      %v4135 = vadd.f32 %v4101, 1.0
      %v4136 = vadd.f32 %v4103, 1.0
      %v4137 = vadd.f32 %v4105, 1.0
      %v4138 = vrcp.pop %v4106
      %v4139 = vrcp.pop %v4107
      %v4140 = vrcp.pop %v4108
      %v4141 = vrcp.pop %v4109
      %v4142 = vrcp.pop %v4110
      %v4143 = vrcp.pop %v4111
      %v4144 = vrcp.pop %v4112
      %v4145 = vrcp.pop %v4113
      %v4146 = vrcp.pop %v4114
      %v4147 = vrcp.pop %v4115
      %v4148 = vrcp.pop %v4116
      %v4149 = vrcp.pop %v4117
      %v4150 = vrcp.pop %v4118
      %v4151 = vrcp.pop %v4119
      %v4152 = vrcp.pop %v4120
      %v4153 = vrcp.pop %v4121
      %v4154 = vrcp.pop %v4122
      %v4155 = vrcp.pop %v4123
      %v4156 = vrcp.pop %v4124
      %v4157 = vrcp.pop %v4125
      %v4158 = vrcp.pop %v4126
      %v4159 = vrcp.pop %v4127
      %v4160 = vrcp.pop %v4128
      %v4161 = vrcp.pop %v4129
      %v4162 = vrcp.pop %v4130
      %v4163 = vrcp.pop %v4131
      %v4164 = vrcp.pop %v4132
      %v4165 = vrcp.pop %v4133
      %v4166 = vrcp.pop %v4134
      %v4167 = vrcp.pop %v4135
      %v4168 = vrcp.pop %v4136
      %v4169 = vrcp.pop %v4137
      %v4170 = vmul.f32 %v3978, %v4138
      %v4171 = vmul.f32 %v3979, %v4139
      %v4172 = vmul.f32 %v3980, %v4140
      %v4173 = vmul.f32 %v3981, %v4141
      %v4174 = vmul.f32 %v3982, %v4142
      %v4175 = vmul.f32 %v3983, %v4143
      %v4176 = vmul.f32 %v3984, %v4144
      %v4177 = vmul.f32 %v3985, %v4145
      %v4178 = vmul.f32 %v3986, %v4146
      %v4179 = vmul.f32 %v3987, %v4147
      %v4180 = vmul.f32 %v3988, %v4148
      %v4181 = vmul.f32 %v3989, %v4149
      %v4182 = vmul.f32 %v3990, %v4150
      %v4183 = vmul.f32 %v3991, %v4151
      %v4184 = vmul.f32 %v3992, %v4152
      %v4185 = vmul.f32 %v3993, %v4153
      %v4186 = vmul.f32 %v3994, %v4154
      %v4187 = vmul.f32 %v3995, %v4155
      %v4188 = vmul.f32 %v3996, %v4156
      %v4189 = vmul.f32 %v3997, %v4157
      %v4190 = vmul.f32 %v3998, %v4158
      %v4191 = vmul.f32 %v3999, %v4159
      %v4192 = vmul.f32 %v4000, %v4160
      %v4193 = vmul.f32 %v4001, %v4161
      %v4194 = vmul.f32 %v4002, %v4162
      %v4195 = vmul.f32 %v4003, %v4163
      %v4196 = vmul.f32 %v4004, %v4164
      %v4197 = vmul.f32 %v4005, %v4165
      %v4198 = vmul.f32 %v4006, %v4166
      %v4199 = vmul.f32 %v4007, %v4167
      %v4200 = vmul.f32 %v4008, %v4168
      %v4201 = vmul.f32 %v4009, %v4169
      %v4202 = vld [vmem:[%s4] sm:$0xf]
      %v4203 = vld [vmem:[%s5] sm:$0xf]
      %v4205 = vsel %vm1153, %v4170, 0
      %v4208 = vsel %vm1153, %v4171, 0
      %v4211 = vsel %vm1153, %v4172, 0
      %v4214 = vsel %vm1153, %v4173, 0
      %v4217 = vsel %vm1153, %v4174, 0
      %v4220 = vsel %vm1153, %v4175, 0
      %v4223 = vsel %vm1153, %v4176, 0
      %v4226 = vsel %vm1153, %v4177, 0
      %v4229 = vsel %vm1153, %v4178, 0
      %v4232 = vsel %vm1153, %v4179, 0
      %v4235 = vsel %vm1153, %v4180, 0
      %v4238 = vsel %vm1153, %v4181, 0
      %v4241 = vsel %vm1153, %v4182, 0
      %v4244 = vsel %vm1153, %v4183, 0
      %v4247 = vsel %vm1153, %v4184, 0
      %v4250 = vsel %vm1153, %v4185, 0
      %v4253 = vsel %vm1153, %v4186, 0
      %v4256 = vsel %vm1153, %v4187, 0
      %v4259 = vsel %vm1153, %v4188, 0
      %v4262 = vsel %vm1153, %v4189, 0
      %v4265 = vsel %vm1153, %v4190, 0
      %v4268 = vsel %vm1153, %v4191, 0
      %v4271 = vsel %vm1153, %v4192, 0
      %v4274 = vsel %vm1153, %v4193, 0
      %v4277 = vsel %vm1153, %v4194, 0
      %v4280 = vsel %vm1153, %v4195, 0
      %v4283 = vsel %vm1153, %v4196, 0
      %v4286 = vsel %vm1153, %v4197, 0
      %v4289 = vsel %vm1153, %v4198, 0
      %v4292 = vsel %vm1153, %v4199, 0
      %v4295 = vsel %vm1153, %v4200, 0
      %v4298 = vsel %vm1153, %v4201, 0
      %vm4300 = vcmask 1043456
      %v4302 = vsel %vm4300, %v4203, 0
      %4304 = vmatprep.subr.mxu0 0.0
      %4305 = vmatpush1.msra.mxu0 %v4302
      %4306 = vmatprep.subr.mxu0 0.0
      %4307 = vmatpush1.msra.mxu0 0.0
      %4308 = vmatprep.subr.mxu0 0.0
      %4309 = vmatpush1.msra.mxu0 0.0
      %4310 = vmatprep.subr.mxu0 0.0
      %4311 = vmatpush1.msra.mxu0 0.0
      %4312 = vmatprep.subr.mxu0 0.0
      %4313 = vmatpush1.msra.mxu0 0.0
      %4314 = vmatprep.subr.mxu0 0.0
      %4315 = vmatpush1.msra.mxu0 0.0
      %4316 = vmatprep.subr.mxu0 0.0
      %4317 = vmatpush1.msra.mxu0 0.0
      %4318 = vmatprep.subr.mxu0 0.0
      %4319 = vmatpush1.msra.mxu0 0.0
      %4320 = vmatprep.subr.mxu0 0.0
      %4321 = vmatpush1.msra.mxu0 0.0
      %4322 = vmatprep.subr.mxu0 0.0
      %4323 = vmatpush1.msra.mxu0 0.0
      %4324 = vmatprep.subr.mxu0 0.0
      %4325 = vmatpush1.msra.mxu0 0.0
      %4326 = vmatprep.subr.mxu0 0.0
      %4327 = vmatpush1.msra.mxu0 0.0
      %4328 = vmatprep.subr.mxu0 0.0
      %4329 = vmatpush1.msra.mxu0 0.0
      %4330 = vmatprep.subr.mxu0 0.0
      %4331 = vmatpush1.msra.mxu0 0.0
      %4332 = vmatprep.subr.mxu0 0.0
      %4333 = vmatpush1.msra.mxu0 0.0
      %4334 = vmatprep.subr.mxu0 0.0
      %4335 = vmatpush1.msra.mxu0 0.0
      %4336 = vmatprep.subr.mxu0 0.0
      %4337 = vmatpush1.msra.mxu0 0.0
      %4338 = vmatprep.subr.mxu0 0.0
      %4339 = vmatpush1.msra.mxu0 0.0
      %4340 = vmatprep.subr.mxu0 0.0
      %4341 = vmatpush1.msra.mxu0 0.0
      %4342 = vmatprep.subr.mxu0 0.0
      %4343 = vmatpush1.msra.mxu0 0.0
      %4344 = vmatprep.subr.mxu0 0.0
      %4345 = vmatpush1.msra.mxu0 0.0
      %4346 = vmatprep.subr.mxu0 0.0
      %4347 = vmatpush1.msra.mxu0 0.0
      %4348 = vmatprep.subr.mxu0 0.0
      %4349 = vmatpush1.msra.mxu0 0.0
      %4350 = vmatprep.subr.mxu0 0.0
      %4351 = vmatpush1.msra.mxu0 0.0
      %4352 = vmatprep.subr.mxu0 0.0
      %4353 = vmatpush1.msra.mxu0 0.0
      %4354 = vmatprep.subr.mxu0 0.0
      %4355 = vmatpush1.msra.mxu0 0.0
      %4356 = vmatprep.subr.mxu0 0.0
      %4357 = vmatpush1.msra.mxu0 0.0
      %4358 = vmatprep.subr.mxu0 0.0
      %4359 = vmatpush1.msra.mxu0 0.0
      %4360 = vmatprep.subr.mxu0 0.0
      %4361 = vmatpush1.msra.mxu0 0.0
      %4362 = vmatprep.subr.mxu0 0.0
      %4363 = vmatpush1.msra.mxu0 0.0
      %4364 = vmatprep.subr.mxu0 0.0
      %4365 = vmatpush1.msra.mxu0 0.0
      %4366 = vmatprep.subr.mxu0 0.0
      %4367 = vmatpush1.msra.mxu0 0.0
      %4368 = vmatprep.mubr.f32.mxu0 0.0
      %4369 = vmatmul.mubr.f32.gmra.mrb[0].mxu0 %v4205
      %v4370 = vpop.f32.mrb[0].mxu0
      %v4371 = vadd.f32 0.0, %v4370
      %v4372 = vpop.f32.mrb[0].mxu0
      %4373 = vmatprep.mubr.f32.mxu0 0.0
      %4374 = vmatmul.mubr.f32.gmra.mrb[0].mxu0 %v4208
      %v4375 = vpop.f32.mrb[0].mxu0
      %v4376 = vadd.f32 0.0, %v4375
      %v4377 = vpop.f32.mrb[0].mxu0
      %4378 = vmatprep.mubr.f32.mxu0 0.0
      %4379 = vmatmul.mubr.f32.gmra.mrb[0].mxu0 %v4211
      %v4380 = vpop.f32.mrb[0].mxu0
      %v4381 = vadd.f32 0.0, %v4380
      %v4382 = vpop.f32.mrb[0].mxu0
      %4383 = vmatprep.mubr.f32.mxu0 0.0
      %4384 = vmatmul.mubr.f32.gmra.mrb[0].mxu0 %v4214
      %v4385 = vpop.f32.mrb[0].mxu0
      %v4386 = vadd.f32 0.0, %v4385
      %v4387 = vpop.f32.mrb[0].mxu0
      %4388 = vmatprep.mubr.f32.mxu0 0.0
      %4389 = vmatmul.mubr.f32.gmra.mrb[0].mxu0 %v4217
      %v4390 = vpop.f32.mrb[0].mxu0
      %v4391 = vadd.f32 0.0, %v4390
      %v4392 = vpop.f32.mrb[0].mxu0
      %4393 = vmatprep.mubr.f32.mxu0 0.0
      %4394 = vmatmul.mubr.f32.gmra.mrb[0].mxu0 %v4220
      %v4395 = vpop.f32.mrb[0].mxu0
      %v4396 = vadd.f32 0.0, %v4395
      %v4397 = vpop.f32.mrb[0].mxu0
      %4398 = vmatprep.mubr.f32.mxu0 0.0
      %4399 = vmatmul.mubr.f32.gmra.mrb[0].mxu0 %v4223
      %v4400 = vpop.f32.mrb[0].mxu0
      %v4401 = vadd.f32 0.0, %v4400
      %v4402 = vpop.f32.mrb[0].mxu0
      %4403 = vmatprep.mubr.f32.mxu0 0.0
      %4404 = vmatmul.mubr.f32.gmra.mrb[0].mxu0 %v4226
      %v4405 = vpop.f32.mrb[0].mxu0
      %v4406 = vadd.f32 0.0, %v4405
      %v4407 = vpop.f32.mrb[0].mxu0
      %4408 = vmatprep.mubr.f32.mxu0 0.0
      %4409 = vmatmul.mubr.f32.gmra.mrb[0].mxu0 %v4229
      %v4410 = vpop.f32.mrb[0].mxu0
      %v4411 = vadd.f32 0.0, %v4410
      %v4412 = vpop.f32.mrb[0].mxu0
      %4413 = vmatprep.mubr.f32.mxu0 0.0
      %4414 = vmatmul.mubr.f32.gmra.mrb[0].mxu0 %v4232
      %v4415 = vpop.f32.mrb[0].mxu0
      %v4416 = vadd.f32 0.0, %v4415
      %v4417 = vpop.f32.mrb[0].mxu0
      %4418 = vmatprep.mubr.f32.mxu0 0.0
      %4419 = vmatmul.mubr.f32.gmra.mrb[0].mxu0 %v4235
      %v4420 = vpop.f32.mrb[0].mxu0
      %v4421 = vadd.f32 0.0, %v4420
      %v4422 = vpop.f32.mrb[0].mxu0
      %4423 = vmatprep.mubr.f32.mxu0 0.0
      %4424 = vmatmul.mubr.f32.gmra.mrb[0].mxu0 %v4238
      %v4425 = vpop.f32.mrb[0].mxu0
      %v4426 = vadd.f32 0.0, %v4425
      %v4427 = vpop.f32.mrb[0].mxu0
      %4428 = vmatprep.mubr.f32.mxu0 0.0
      %4429 = vmatmul.mubr.f32.gmra.mrb[0].mxu0 %v4241
      %v4430 = vpop.f32.mrb[0].mxu0
      %v4431 = vadd.f32 0.0, %v4430
      %v4432 = vpop.f32.mrb[0].mxu0
      %4433 = vmatprep.mubr.f32.mxu0 0.0
      %4434 = vmatmul.mubr.f32.gmra.mrb[0].mxu0 %v4244
      %v4435 = vpop.f32.mrb[0].mxu0
      %v4436 = vadd.f32 0.0, %v4435
      %v4437 = vpop.f32.mrb[0].mxu0
      %4438 = vmatprep.mubr.f32.mxu0 0.0
      %4439 = vmatmul.mubr.f32.gmra.mrb[0].mxu0 %v4247
      %v4440 = vpop.f32.mrb[0].mxu0
      %v4441 = vadd.f32 0.0, %v4440
      %v4442 = vpop.f32.mrb[0].mxu0
      %4443 = vmatprep.mubr.f32.mxu0 0.0
      %4444 = vmatmul.mubr.f32.gmra.mrb[0].mxu0 %v4250
      %v4445 = vpop.f32.mrb[0].mxu0
      %v4446 = vadd.f32 0.0, %v4445
      %v4447 = vpop.f32.mrb[0].mxu0
      %4448 = vmatprep.mubr.f32.mxu0 0.0
      %4449 = vmatmul.mubr.f32.gmra.mrb[0].mxu0 %v4253
      %v4450 = vpop.f32.mrb[0].mxu0
      %v4451 = vadd.f32 0.0, %v4450
      %v4452 = vpop.f32.mrb[0].mxu0
      %4453 = vmatprep.mubr.f32.mxu0 0.0
      %4454 = vmatmul.mubr.f32.gmra.mrb[0].mxu0 %v4256
      %v4455 = vpop.f32.mrb[0].mxu0
      %v4456 = vadd.f32 0.0, %v4455
      %v4457 = vpop.f32.mrb[0].mxu0
      %4458 = vmatprep.mubr.f32.mxu0 0.0
      %4459 = vmatmul.mubr.f32.gmra.mrb[0].mxu0 %v4259
      %v4460 = vpop.f32.mrb[0].mxu0
      %v4461 = vadd.f32 0.0, %v4460
      %v4462 = vpop.f32.mrb[0].mxu0
      %4463 = vmatprep.mubr.f32.mxu0 0.0
      %4464 = vmatmul.mubr.f32.gmra.mrb[0].mxu0 %v4262
      %v4465 = vpop.f32.mrb[0].mxu0
      %v4466 = vadd.f32 0.0, %v4465
      %v4467 = vpop.f32.mrb[0].mxu0
      %4468 = vmatprep.mubr.f32.mxu0 0.0
      %4469 = vmatmul.mubr.f32.gmra.mrb[0].mxu0 %v4265
      %v4470 = vpop.f32.mrb[0].mxu0
      %v4471 = vadd.f32 0.0, %v4470
      %v4472 = vpop.f32.mrb[0].mxu0
      %4473 = vmatprep.mubr.f32.mxu0 0.0
      %4474 = vmatmul.mubr.f32.gmra.mrb[0].mxu0 %v4268
      %v4475 = vpop.f32.mrb[0].mxu0
      %v4476 = vadd.f32 0.0, %v4475
      %v4477 = vpop.f32.mrb[0].mxu0
      %4478 = vmatprep.mubr.f32.mxu0 0.0
      %4479 = vmatmul.mubr.f32.gmra.mrb[0].mxu0 %v4271
      %v4480 = vpop.f32.mrb[0].mxu0
      %v4481 = vadd.f32 0.0, %v4480
      %v4482 = vpop.f32.mrb[0].mxu0
      %4483 = vmatprep.mubr.f32.mxu0 0.0
      %4484 = vmatmul.mubr.f32.gmra.mrb[0].mxu0 %v4274
      %v4485 = vpop.f32.mrb[0].mxu0
      %v4486 = vadd.f32 0.0, %v4485
      %v4487 = vpop.f32.mrb[0].mxu0
      %4488 = vmatprep.mubr.f32.mxu0 0.0
      %4489 = vmatmul.mubr.f32.gmra.mrb[0].mxu0 %v4277
      %v4490 = vpop.f32.mrb[0].mxu0
      %v4491 = vadd.f32 0.0, %v4490
      %v4492 = vpop.f32.mrb[0].mxu0
      %4493 = vmatprep.mubr.f32.mxu0 0.0
      %4494 = vmatmul.mubr.f32.gmra.mrb[0].mxu0 %v4280
      %v4495 = vpop.f32.mrb[0].mxu0
      %v4496 = vadd.f32 0.0, %v4495
      %v4497 = vpop.f32.mrb[0].mxu0
      %4498 = vmatprep.mubr.f32.mxu0 0.0
      %4499 = vmatmul.mubr.f32.gmra.mrb[0].mxu0 %v4283
      %v4500 = vpop.f32.mrb[0].mxu0
      %v4501 = vadd.f32 0.0, %v4500
      %v4502 = vpop.f32.mrb[0].mxu0
      %4503 = vmatprep.mubr.f32.mxu0 0.0
      %4504 = vmatmul.mubr.f32.gmra.mrb[0].mxu0 %v4286
      %v4505 = vpop.f32.mrb[0].mxu0
      %v4506 = vadd.f32 0.0, %v4505
      %v4507 = vpop.f32.mrb[0].mxu0
      %4508 = vmatprep.mubr.f32.mxu0 0.0
      %4509 = vmatmul.mubr.f32.gmra.mrb[0].mxu0 %v4289
      %v4510 = vpop.f32.mrb[0].mxu0
      %v4511 = vadd.f32 0.0, %v4510
      %v4512 = vpop.f32.mrb[0].mxu0
      %4513 = vmatprep.mubr.f32.mxu0 0.0
      %4514 = vmatmul.mubr.f32.gmra.mrb[0].mxu0 %v4292
      %v4515 = vpop.f32.mrb[0].mxu0
      %v4516 = vadd.f32 0.0, %v4515
      %v4517 = vpop.f32.mrb[0].mxu0
      %4518 = vmatprep.mubr.f32.mxu0 0.0
      %4519 = vmatmul.mubr.f32.gmra.mrb[0].mxu0 %v4295
      %v4520 = vpop.f32.mrb[0].mxu0
      %v4521 = vadd.f32 0.0, %v4520
      %v4522 = vpop.f32.mrb[0].mxu0
      %4523 = vmatprep.mubr.f32.mxu0 0.0
      %4524 = vmatmul.mubr.f32.gmra.mrb[0].mxu0 %v4298
      %v4525 = vpop.f32.mrb[0].mxu0
      %v4526 = vadd.f32 0.0, %v4525
      %v4527 = vpop.f32.mrb[0].mxu0
      %4528 = vdwg.mxu0
      %v4530 = vsel %vm1153, %v1121, 0
      %v4533 = vsel %vm1153, %v1122, 0
      %v4536 = vsel %vm1153, %v1123, 0
      %v4539 = vsel %vm1153, %v1124, 0
      %v4542 = vsel %vm1153, %v1125, 0
      %v4545 = vsel %vm1153, %v1126, 0
      %v4548 = vsel %vm1153, %v1127, 0
      %v4551 = vsel %vm1153, %v1128, 0
      %v4554 = vsel %vm1153, %v1129, 0
      %v4557 = vsel %vm1153, %v1130, 0
      %v4560 = vsel %vm1153, %v1131, 0
      %v4563 = vsel %vm1153, %v1132, 0
      %v4566 = vsel %vm1153, %v1133, 0
      %v4569 = vsel %vm1153, %v1134, 0
      %v4572 = vsel %vm1153, %v1135, 0
      %v4575 = vsel %vm1153, %v1136, 0
      %v4578 = vsel %vm1153, %v1137, 0
      %v4581 = vsel %vm1153, %v1138, 0
      %v4584 = vsel %vm1153, %v1139, 0
      %v4587 = vsel %vm1153, %v1140, 0
      %v4590 = vsel %vm1153, %v1141, 0
      %v4593 = vsel %vm1153, %v1142, 0
      %v4596 = vsel %vm1153, %v1143, 0
      %v4599 = vsel %vm1153, %v1144, 0
      %v4602 = vsel %vm1153, %v1145, 0
      %v4605 = vsel %vm1153, %v1146, 0
      %v4608 = vsel %vm1153, %v1147, 0
      %v4611 = vsel %vm1153, %v1148, 0
      %v4614 = vsel %vm1153, %v1149, 0
      %v4617 = vsel %vm1153, %v1150, 0
      %v4620 = vsel %vm1153, %v1151, 0
      %v4623 = vsel %vm1153, %v1152, 0
      %v4626 = vsel %vm4300, %v4202, 0
      %4628 = vmatprep.subr.mxu0 0.0
      %4629 = vmatpush1.msra.mxu0 %v4626
      %4630 = vmatprep.subr.mxu0 0.0
      %4631 = vmatpush1.msra.mxu0 0.0
      %4632 = vmatprep.subr.mxu0 0.0
      %4633 = vmatpush1.msra.mxu0 0.0
      %4634 = vmatprep.subr.mxu0 0.0
      %4635 = vmatpush1.msra.mxu0 0.0
      %4636 = vmatprep.subr.mxu0 0.0
      %4637 = vmatpush1.msra.mxu0 0.0
      %4638 = vmatprep.subr.mxu0 0.0
      %4639 = vmatpush1.msra.mxu0 0.0
      %4640 = vmatprep.subr.mxu0 0.0
      %4641 = vmatpush1.msra.mxu0 0.0
      %4642 = vmatprep.subr.mxu0 0.0
      %4643 = vmatpush1.msra.mxu0 0.0
      %4644 = vmatprep.subr.mxu0 0.0
      %4645 = vmatpush1.msra.mxu0 0.0
      %4646 = vmatprep.subr.mxu0 0.0
      %4647 = vmatpush1.msra.mxu0 0.0
      %4648 = vmatprep.subr.mxu0 0.0
      %4649 = vmatpush1.msra.mxu0 0.0
      %4650 = vmatprep.subr.mxu0 0.0
      %4651 = vmatpush1.msra.mxu0 0.0
      %4652 = vmatprep.subr.mxu0 0.0
      %4653 = vmatpush1.msra.mxu0 0.0
      %4654 = vmatprep.subr.mxu0 0.0
      %4655 = vmatpush1.msra.mxu0 0.0
      %4656 = vmatprep.subr.mxu0 0.0
      %4657 = vmatpush1.msra.mxu0 0.0
      %4658 = vmatprep.subr.mxu0 0.0
      %4659 = vmatpush1.msra.mxu0 0.0
      %4660 = vmatprep.subr.mxu0 0.0
      %4661 = vmatpush1.msra.mxu0 0.0
      %4662 = vmatprep.subr.mxu0 0.0
      %4663 = vmatpush1.msra.mxu0 0.0
      %4664 = vmatprep.subr.mxu0 0.0
      %4665 = vmatpush1.msra.mxu0 0.0
      %4666 = vmatprep.subr.mxu0 0.0
      %4667 = vmatpush1.msra.mxu0 0.0
      %4668 = vmatprep.subr.mxu0 0.0
      %4669 = vmatpush1.msra.mxu0 0.0
      %4670 = vmatprep.subr.mxu0 0.0
      %4671 = vmatpush1.msra.mxu0 0.0
      %4672 = vmatprep.subr.mxu0 0.0
      %4673 = vmatpush1.msra.mxu0 0.0
      %4674 = vmatprep.subr.mxu0 0.0
      %4675 = vmatpush1.msra.mxu0 0.0
      %4676 = vmatprep.subr.mxu0 0.0
      %4677 = vmatpush1.msra.mxu0 0.0
      %4678 = vmatprep.subr.mxu0 0.0
      %4679 = vmatpush1.msra.mxu0 0.0
      %4680 = vmatprep.subr.mxu0 0.0
      %4681 = vmatpush1.msra.mxu0 0.0
      %4682 = vmatprep.subr.mxu0 0.0
      %4683 = vmatpush1.msra.mxu0 0.0
      %4684 = vmatprep.subr.mxu0 0.0
      %4685 = vmatpush1.msra.mxu0 0.0
      %4686 = vmatprep.subr.mxu0 0.0
      %4687 = vmatpush1.msra.mxu0 0.0
      %4688 = vmatprep.subr.mxu0 0.0
      %4689 = vmatpush1.msra.mxu0 0.0
      %4690 = vmatprep.subr.mxu0 0.0
      %4691 = vmatpush1.msra.mxu0 0.0
      %4692 = vmatprep.mubr.f32.mxu0 0.0
      %4693 = vmatmul.mubr.f32.gmra.mrb[0].mxu0 %v4530
      %v4694 = vpop.f32.mrb[0].mxu0
      %v4695 = vadd.f32 %v4371, %v4694
      %v4696 = vpop.f32.mrb[0].mxu0
      %4697 = vmatprep.mubr.f32.mxu0 0.0
      %4698 = vmatmul.mubr.f32.gmra.mrb[0].mxu0 %v4533
      %v4699 = vpop.f32.mrb[0].mxu0
      %v4700 = vadd.f32 %v4376, %v4699
      %v4701 = vpop.f32.mrb[0].mxu0
      %4702 = vmatprep.mubr.f32.mxu0 0.0
      %4703 = vmatmul.mubr.f32.gmra.mrb[0].mxu0 %v4536
      %v4704 = vpop.f32.mrb[0].mxu0
      %v4705 = vadd.f32 %v4381, %v4704
      %v4706 = vpop.f32.mrb[0].mxu0
      %4707 = vmatprep.mubr.f32.mxu0 0.0
      %4708 = vmatmul.mubr.f32.gmra.mrb[0].mxu0 %v4539
      %v4709 = vpop.f32.mrb[0].mxu0
      %v4710 = vadd.f32 %v4386, %v4709
      %v4711 = vpop.f32.mrb[0].mxu0
      %4712 = vmatprep.mubr.f32.mxu0 0.0
      %4713 = vmatmul.mubr.f32.gmra.mrb[0].mxu0 %v4542
      %v4714 = vpop.f32.mrb[0].mxu0
      %v4715 = vadd.f32 %v4391, %v4714
      %v4716 = vpop.f32.mrb[0].mxu0
      %4717 = vmatprep.mubr.f32.mxu0 0.0
      %4718 = vmatmul.mubr.f32.gmra.mrb[0].mxu0 %v4545
      %v4719 = vpop.f32.mrb[0].mxu0
      %v4720 = vadd.f32 %v4396, %v4719
      %v4721 = vpop.f32.mrb[0].mxu0
      %4722 = vmatprep.mubr.f32.mxu0 0.0
      %4723 = vmatmul.mubr.f32.gmra.mrb[0].mxu0 %v4548
      %v4724 = vpop.f32.mrb[0].mxu0
      %v4725 = vadd.f32 %v4401, %v4724
      %v4726 = vpop.f32.mrb[0].mxu0
      %4727 = vmatprep.mubr.f32.mxu0 0.0
      %4728 = vmatmul.mubr.f32.gmra.mrb[0].mxu0 %v4551
      %v4729 = vpop.f32.mrb[0].mxu0
      %v4730 = vadd.f32 %v4406, %v4729
      %v4731 = vpop.f32.mrb[0].mxu0
      %4732 = vmatprep.mubr.f32.mxu0 0.0
      %4733 = vmatmul.mubr.f32.gmra.mrb[0].mxu0 %v4554
      %v4734 = vpop.f32.mrb[0].mxu0
      %v4735 = vadd.f32 %v4411, %v4734
      %v4736 = vpop.f32.mrb[0].mxu0
      %4737 = vmatprep.mubr.f32.mxu0 0.0
      %4738 = vmatmul.mubr.f32.gmra.mrb[0].mxu0 %v4557
      %v4739 = vpop.f32.mrb[0].mxu0
      %v4740 = vadd.f32 %v4416, %v4739
      %v4741 = vpop.f32.mrb[0].mxu0
      %4742 = vmatprep.mubr.f32.mxu0 0.0
      %4743 = vmatmul.mubr.f32.gmra.mrb[0].mxu0 %v4560
      %v4744 = vpop.f32.mrb[0].mxu0
      %v4745 = vadd.f32 %v4421, %v4744
      %v4746 = vpop.f32.mrb[0].mxu0
      %4747 = vmatprep.mubr.f32.mxu0 0.0
      %4748 = vmatmul.mubr.f32.gmra.mrb[0].mxu0 %v4563
      %v4749 = vpop.f32.mrb[0].mxu0
      %v4750 = vadd.f32 %v4426, %v4749
      %v4751 = vpop.f32.mrb[0].mxu0
      %4752 = vmatprep.mubr.f32.mxu0 0.0
      %4753 = vmatmul.mubr.f32.gmra.mrb[0].mxu0 %v4566
      %v4754 = vpop.f32.mrb[0].mxu0
      %v4755 = vadd.f32 %v4431, %v4754
      %v4756 = vpop.f32.mrb[0].mxu0
      %4757 = vmatprep.mubr.f32.mxu0 0.0
      %4758 = vmatmul.mubr.f32.gmra.mrb[0].mxu0 %v4569
      %v4759 = vpop.f32.mrb[0].mxu0
      %v4760 = vadd.f32 %v4436, %v4759
      %v4761 = vpop.f32.mrb[0].mxu0
      %4762 = vmatprep.mubr.f32.mxu0 0.0
      %4763 = vmatmul.mubr.f32.gmra.mrb[0].mxu0 %v4572
      %v4764 = vpop.f32.mrb[0].mxu0
      %v4765 = vadd.f32 %v4441, %v4764
      %v4766 = vpop.f32.mrb[0].mxu0
      %4767 = vmatprep.mubr.f32.mxu0 0.0
      %4768 = vmatmul.mubr.f32.gmra.mrb[0].mxu0 %v4575
      %v4769 = vpop.f32.mrb[0].mxu0
      %v4770 = vadd.f32 %v4446, %v4769
      %v4771 = vpop.f32.mrb[0].mxu0
      %4772 = vmatprep.mubr.f32.mxu0 0.0
      %4773 = vmatmul.mubr.f32.gmra.mrb[0].mxu0 %v4578
      %v4774 = vpop.f32.mrb[0].mxu0
      %v4775 = vadd.f32 %v4451, %v4774
      %v4776 = vpop.f32.mrb[0].mxu0
      %4777 = vmatprep.mubr.f32.mxu0 0.0
      %4778 = vmatmul.mubr.f32.gmra.mrb[0].mxu0 %v4581
      %v4779 = vpop.f32.mrb[0].mxu0
      %v4780 = vadd.f32 %v4456, %v4779
      %v4781 = vpop.f32.mrb[0].mxu0
      %4782 = vmatprep.mubr.f32.mxu0 0.0
      %4783 = vmatmul.mubr.f32.gmra.mrb[0].mxu0 %v4584
      %v4784 = vpop.f32.mrb[0].mxu0
      %v4785 = vadd.f32 %v4461, %v4784
      %v4786 = vpop.f32.mrb[0].mxu0
      %4787 = vmatprep.mubr.f32.mxu0 0.0
      %4788 = vmatmul.mubr.f32.gmra.mrb[0].mxu0 %v4587
      %v4789 = vpop.f32.mrb[0].mxu0
      %v4790 = vadd.f32 %v4466, %v4789
      %v4791 = vpop.f32.mrb[0].mxu0
      %4792 = vmatprep.mubr.f32.mxu0 0.0
      %4793 = vmatmul.mubr.f32.gmra.mrb[0].mxu0 %v4590
      %v4794 = vpop.f32.mrb[0].mxu0
      %v4795 = vadd.f32 %v4471, %v4794
      %v4796 = vpop.f32.mrb[0].mxu0
      %4797 = vmatprep.mubr.f32.mxu0 0.0
      %4798 = vmatmul.mubr.f32.gmra.mrb[0].mxu0 %v4593
      %v4799 = vpop.f32.mrb[0].mxu0
      %v4800 = vadd.f32 %v4476, %v4799
      %v4801 = vpop.f32.mrb[0].mxu0
      %4802 = vmatprep.mubr.f32.mxu0 0.0
      %4803 = vmatmul.mubr.f32.gmra.mrb[0].mxu0 %v4596
      %v4804 = vpop.f32.mrb[0].mxu0
      %v4805 = vadd.f32 %v4481, %v4804
      %v4806 = vpop.f32.mrb[0].mxu0
      %4807 = vmatprep.mubr.f32.mxu0 0.0
      %4808 = vmatmul.mubr.f32.gmra.mrb[0].mxu0 %v4599
      %v4809 = vpop.f32.mrb[0].mxu0
      %v4810 = vadd.f32 %v4486, %v4809
      %v4811 = vpop.f32.mrb[0].mxu0
      %4812 = vmatprep.mubr.f32.mxu0 0.0
      %4813 = vmatmul.mubr.f32.gmra.mrb[0].mxu0 %v4602
      %v4814 = vpop.f32.mrb[0].mxu0
      %v4815 = vadd.f32 %v4491, %v4814
      %v4816 = vpop.f32.mrb[0].mxu0
      %4817 = vmatprep.mubr.f32.mxu0 0.0
      %4818 = vmatmul.mubr.f32.gmra.mrb[0].mxu0 %v4605
      %v4819 = vpop.f32.mrb[0].mxu0
      %v4820 = vadd.f32 %v4496, %v4819
      %v4821 = vpop.f32.mrb[0].mxu0
      %4822 = vmatprep.mubr.f32.mxu0 0.0
      %4823 = vmatmul.mubr.f32.gmra.mrb[0].mxu0 %v4608
      %v4824 = vpop.f32.mrb[0].mxu0
      %v4825 = vadd.f32 %v4501, %v4824
      %v4826 = vpop.f32.mrb[0].mxu0
      %4827 = vmatprep.mubr.f32.mxu0 0.0
      %4828 = vmatmul.mubr.f32.gmra.mrb[0].mxu0 %v4611
      %v4829 = vpop.f32.mrb[0].mxu0
      %v4830 = vadd.f32 %v4506, %v4829
      %v4831 = vpop.f32.mrb[0].mxu0
      %4832 = vmatprep.mubr.f32.mxu0 0.0
      %4833 = vmatmul.mubr.f32.gmra.mrb[0].mxu0 %v4614
      %v4834 = vpop.f32.mrb[0].mxu0
      %v4835 = vadd.f32 %v4511, %v4834
      %v4836 = vpop.f32.mrb[0].mxu0
      %4837 = vmatprep.mubr.f32.mxu0 0.0
      %4838 = vmatmul.mubr.f32.gmra.mrb[0].mxu0 %v4617
      %v4839 = vpop.f32.mrb[0].mxu0
      %v4840 = vadd.f32 %v4516, %v4839
      %v4841 = vpop.f32.mrb[0].mxu0
      %4842 = vmatprep.mubr.f32.mxu0 0.0
      %4843 = vmatmul.mubr.f32.gmra.mrb[0].mxu0 %v4620
      %v4844 = vpop.f32.mrb[0].mxu0
      %v4845 = vadd.f32 %v4521, %v4844
      %v4846 = vpop.f32.mrb[0].mxu0
      %4847 = vmatprep.mubr.f32.mxu0 0.0
      %4848 = vmatmul.mubr.f32.gmra.mrb[0].mxu0 %v4623
      %v4849 = vpop.f32.mrb[0].mxu0
      %v4850 = vadd.f32 %v4526, %v4849
      %v4851 = vpop.f32.mrb[0].mxu0
      %4852 = vdwg.mxu0
      %v4853 = vld [vmem:[%s11] sm:$0x1]
      %v4855 = vlaneseq
      %v4856 = vshrl.u32 %v4855, 7
      %v4857 = vsub.s32 0, %v4856
      %v4858 = vrot.slane %v4853, %v4857
      %v4860 = vmul.f32 %v4695, %v4858
      %v4861 = vmul.f32 %v4700, %v4858
      %v4862 = vmul.f32 %v4705, %v4858
      %v4863 = vmul.f32 %v4710, %v4858
      %v4864 = vmul.f32 %v4715, %v4858
      %v4865 = vmul.f32 %v4720, %v4858
      %v4866 = vmul.f32 %v4725, %v4858
      %v4867 = vmul.f32 %v4730, %v4858
      %v4868 = vmul.f32 %v4735, %v4858
      %v4869 = vmul.f32 %v4740, %v4858
      %v4870 = vmul.f32 %v4745, %v4858
      %v4871 = vmul.f32 %v4750, %v4858
      %v4872 = vmul.f32 %v4755, %v4858
      %v4873 = vmul.f32 %v4760, %v4858
      %v4874 = vmul.f32 %v4765, %v4858
      %v4875 = vmul.f32 %v4770, %v4858
      %v4876 = vmul.f32 %v4775, %v4858
      %v4877 = vmul.f32 %v4780, %v4858
      %v4878 = vmul.f32 %v4785, %v4858
      %v4879 = vmul.f32 %v4790, %v4858
      %v4880 = vmul.f32 %v4795, %v4858
      %v4881 = vmul.f32 %v4800, %v4858
      %v4882 = vmul.f32 %v4805, %v4858
      %v4883 = vmul.f32 %v4810, %v4858
      %v4884 = vmul.f32 %v4815, %v4858
      %v4885 = vmul.f32 %v4820, %v4858
      %v4886 = vmul.f32 %v4825, %v4858
      %v4887 = vmul.f32 %v4830, %v4858
      %v4888 = vmul.f32 %v4835, %v4858
      %v4889 = vmul.f32 %v4840, %v4858
      %v4890 = vmul.f32 %v4845, %v4858
      %v4891 = vmul.f32 %v4850, %v4858
      %v4892 = vld [vmem:[%s12] sm:$0x1]
      %v4894 = vlaneseq
      %v4895 = vshrl.u32 %v4894, 7
      %v4896 = vsub.s32 0, %v4895
      %v4897 = vrot.slane %v4892, %v4896
      %v4899 = vadd.f32 %v4860, %v4897
      %v4900 = vadd.f32 %v4861, %v4897
      %v4901 = vadd.f32 %v4862, %v4897
      %v4902 = vadd.f32 %v4863, %v4897
      %v4903 = vadd.f32 %v4864, %v4897
      %v4904 = vadd.f32 %v4865, %v4897
      %v4905 = vadd.f32 %v4866, %v4897
      %v4906 = vadd.f32 %v4867, %v4897
      %v4907 = vadd.f32 %v4868, %v4897
      %v4908 = vadd.f32 %v4869, %v4897
      %v4909 = vadd.f32 %v4870, %v4897
      %v4910 = vadd.f32 %v4871, %v4897
      %v4911 = vadd.f32 %v4872, %v4897
      %v4912 = vadd.f32 %v4873, %v4897
      %v4913 = vadd.f32 %v4874, %v4897
      %v4914 = vadd.f32 %v4875, %v4897
      %v4915 = vadd.f32 %v4876, %v4897
      %v4916 = vadd.f32 %v4877, %v4897
      %v4917 = vadd.f32 %v4878, %v4897
      %v4918 = vadd.f32 %v4879, %v4897
      %v4919 = vadd.f32 %v4880, %v4897
      %v4920 = vadd.f32 %v4881, %v4897
      %v4921 = vadd.f32 %v4882, %v4897
      %v4922 = vadd.f32 %v4883, %v4897
      %v4923 = vadd.f32 %v4884, %v4897
      %v4924 = vadd.f32 %v4885, %v4897
      %v4925 = vadd.f32 %v4886, %v4897
      %v4926 = vadd.f32 %v4887, %v4897
      %v4927 = vadd.f32 %v4888, %v4897
      %v4928 = vadd.f32 %v4889, %v4897
      %v4929 = vadd.f32 %v4890, %v4897
      %v4930 = vadd.f32 %v4891, %v4897
      %vm4931 = vcmask 64512
      %4932 = vst.msk [vmem:[#allocation3] sm:$0xff] %vm4931, 0.0
      %4933 = vst.msk [vmem:[#allocation3 + $0x8] sm:$0xff] %vm4931, 0.0
      %4934 = vst.msk [vmem:[#allocation3 + $0x10] sm:$0xff] %vm4931, 0.0
      %4935 = vst.msk [vmem:[#allocation3 + $0x18] sm:$0xff] %vm4931, 0.0
      %4936 = vst.msk [vmem:[#allocation3 + $0x20] sm:$0xff] %vm4931, 0.0
      %4937 = vst.msk [vmem:[#allocation3 + $0x128] sm:$0xff] %vm4931, 0.0
      %4938 = vst.msk [vmem:[#allocation3 + $0x130] sm:$0xff] %vm4931, 0.0
      %4939 = vst.msk [vmem:[#allocation3 + $0x138] sm:$0xff] %vm4931, 0.0
      %4940 = vst.msk [vmem:[#allocation3 + $0x140] sm:$0xff] %vm4931, 0.0
      %4941 = vst.msk [vmem:[#allocation3 + $0x148] sm:$0xff] %vm4931, 0.0
      %4942 = vst.msk [vmem:[#allocation3 + $0x28] sm:$0xff] %vm4931, %v4899
      %4943 = vst.msk [vmem:[#allocation3 + $0x30] sm:$0xff] %vm4931, %v4900
      %4944 = vst.msk [vmem:[#allocation3 + $0x38] sm:$0xff] %vm4931, %v4901
      %4945 = vst.msk [vmem:[#allocation3 + $0x40] sm:$0xff] %vm4931, %v4902
      %4946 = vst.msk [vmem:[#allocation3 + $0x48] sm:$0xff] %vm4931, %v4903
      %4947 = vst.msk [vmem:[#allocation3 + $0x50] sm:$0xff] %vm4931, %v4904
      %4948 = vst.msk [vmem:[#allocation3 + $0x58] sm:$0xff] %vm4931, %v4905
      %4949 = vst.msk [vmem:[#allocation3 + $0x60] sm:$0xff] %vm4931, %v4906
      %4950 = vst.msk [vmem:[#allocation3 + $0x68] sm:$0xff] %vm4931, %v4907
      %4951 = vst.msk [vmem:[#allocation3 + $0x70] sm:$0xff] %vm4931, %v4908
      %4952 = vst.msk [vmem:[#allocation3 + $0x78] sm:$0xff] %vm4931, %v4909
      %4953 = vst.msk [vmem:[#allocation3 + $0x80] sm:$0xff] %vm4931, %v4910
      %4954 = vst.msk [vmem:[#allocation3 + $0x88] sm:$0xff] %vm4931, %v4911
      %4955 = vst.msk [vmem:[#allocation3 + $0x90] sm:$0xff] %vm4931, %v4912
      %4956 = vst.msk [vmem:[#allocation3 + $0x98] sm:$0xff] %vm4931, %v4913
      %4957 = vst.msk [vmem:[#allocation3 + $0xa0] sm:$0xff] %vm4931, %v4914
      %4958 = vst.msk [vmem:[#allocation3 + $0xa8] sm:$0xff] %vm4931, %v4915
      %4959 = vst.msk [vmem:[#allocation3 + $0xb0] sm:$0xff] %vm4931, %v4916
      %4960 = vst.msk [vmem:[#allocation3 + $0xb8] sm:$0xff] %vm4931, %v4917
      %4961 = vst.msk [vmem:[#allocation3 + $0xc0] sm:$0xff] %vm4931, %v4918
      %4962 = vst.msk [vmem:[#allocation3 + $0xc8] sm:$0xff] %vm4931, %v4919
      %4963 = vst.msk [vmem:[#allocation3 + $0xd0] sm:$0xff] %vm4931, %v4920
      %4964 = vst.msk [vmem:[#allocation3 + $0xd8] sm:$0xff] %vm4931, %v4921
      %4965 = vst.msk [vmem:[#allocation3 + $0xe0] sm:$0xff] %vm4931, %v4922
      %4966 = vst.msk [vmem:[#allocation3 + $0xe8] sm:$0xff] %vm4931, %v4923
      %4967 = vst.msk [vmem:[#allocation3 + $0xf0] sm:$0xff] %vm4931, %v4924
      %4968 = vst.msk [vmem:[#allocation3 + $0xf8] sm:$0xff] %vm4931, %v4925
      %4969 = vst.msk [vmem:[#allocation3 + $0x100] sm:$0xff] %vm4931, %v4926
      %4970 = vst.msk [vmem:[#allocation3 + $0x108] sm:$0xff] %vm4931, %v4927
      %4971 = vst.msk [vmem:[#allocation3 + $0x110] sm:$0xff] %vm4931, %v4928
      %4972 = vst.msk [vmem:[#allocation3 + $0x118] sm:$0xff] %vm4931, %v4929
      %4973 = vst.msk [vmem:[#allocation3 + $0x120] sm:$0xff] %vm4931, %v4930
      %v4974 = vld [vmem:[%s6] sm:$0xff]
      %v4975 = vld [vmem:[%s6 + $0x8] sm:$0xff]
      %v4976 = vld [vmem:[%s6 + $0x10] sm:$0xff]
      %v4977 = vld [vmem:[%s6 + $0x18] sm:$0x1]
      %v4978 = vld [vmem:[#allocation3 + $0x6] sm:$0xff]
      %v4979 = vld [vmem:[#allocation3 + $0xe] sm:$0xff]
      %v4980 = vld [vmem:[#allocation3 + $0x16] sm:$0xff]
      %v4981 = vld [vmem:[#allocation3 + $0x1e] sm:$0xff]
      %v4982 = vld [vmem:[#allocation3 + $0x26] sm:$0xff]
      %v4983 = vld [vmem:[#allocation3 + $0x2e] sm:$0xff]
      %v4984 = vld [vmem:[#allocation3 + $0x36] sm:$0xff]
      %v4985 = vld [vmem:[#allocation3 + $0x3e] sm:$0xff]
      %v4986 = vld [vmem:[#allocation3 + $0x46] sm:$0xff]
      %v4987 = vld [vmem:[#allocation3 + $0x4e] sm:$0xff]
      %v4988 = vld [vmem:[#allocation3 + $0x56] sm:$0xff]
      %v4989 = vld [vmem:[#allocation3 + $0x5e] sm:$0xff]
      %v4990 = vld [vmem:[#allocation3 + $0x66] sm:$0xff]
      %v4991 = vld [vmem:[#allocation3 + $0x6e] sm:$0xff]
      %v4992 = vld [vmem:[#allocation3 + $0x76] sm:$0xff]
      %v4993 = vld [vmem:[#allocation3 + $0x7e] sm:$0xff]
      %v4994 = vld [vmem:[#allocation3 + $0x86] sm:$0xff]
      %v4995 = vld [vmem:[#allocation3 + $0x8e] sm:$0xff]
      %v4996 = vld [vmem:[#allocation3 + $0x96] sm:$0xff]
      %v4997 = vld [vmem:[#allocation3 + $0x9e] sm:$0xff]
      %v4998 = vld [vmem:[#allocation3 + $0xa6] sm:$0xff]
      %v4999 = vld [vmem:[#allocation3 + $0xae] sm:$0xff]
      %v5000 = vld [vmem:[#allocation3 + $0xb6] sm:$0xff]
      %v5001 = vld [vmem:[#allocation3 + $0xbe] sm:$0xff]
      %v5002 = vld [vmem:[#allocation3 + $0xc6] sm:$0xff]
      %v5003 = vld [vmem:[#allocation3 + $0xce] sm:$0xff]
      %v5004 = vld [vmem:[#allocation3 + $0xd6] sm:$0xff]
      %v5005 = vld [vmem:[#allocation3 + $0xde] sm:$0xff]
      %v5006 = vld [vmem:[#allocation3 + $0xe6] sm:$0xff]
      %v5007 = vld [vmem:[#allocation3 + $0xee] sm:$0xff]
      %v5008 = vld [vmem:[#allocation3 + $0xf6] sm:$0xff]
      %v5009 = vld [vmem:[#allocation3 + $0xfe] sm:$0xff]
      %v5010 = vld [vmem:[#allocation3 + $0x106] sm:$0xff]
      %v5011 = vld [vmem:[#allocation3 + $0x10e] sm:$0xff]
      %v5012 = vld [vmem:[#allocation3 + $0x116] sm:$0xff]
      %v5013 = vld [vmem:[#allocation3 + $0x11e] sm:$0xff]
      %v5014 = vld [vmem:[#allocation3 + $0x126] sm:$0xff]
      %v5015 = vld [vmem:[#allocation3 + $0x12e] sm:$0xff]
      %v5016 = vld [vmem:[#allocation3 + $0x136] sm:$0xff]
      %v5017 = vld [vmem:[#allocation3 + $0x13e] sm:$0xff]
      %v5018 = vlaneseq
      %v5019 = vshrl.u32 %v5018, 7
      %v5020 = vsub.s32 0, %v5019
      %v5021 = vrot.slane %v4974, %v5020
      %v5022 = vmul.f32 %v4978, %v5021
      %v5023 = vmul.f32 %v4979, %v5021
      %v5024 = vmul.f32 %v4980, %v5021
      %v5025 = vmul.f32 %v4981, %v5021
      %v5026 = vmul.f32 %v4982, %v5021
      %v5027 = vmul.f32 %v4983, %v5021
      %v5028 = vmul.f32 %v4984, %v5021
      %v5029 = vmul.f32 %v4985, %v5021
      %v5030 = vmul.f32 %v4986, %v5021
      %v5031 = vmul.f32 %v4987, %v5021
      %v5032 = vmul.f32 %v4988, %v5021
      %v5033 = vmul.f32 %v4989, %v5021
      %v5034 = vmul.f32 %v4990, %v5021
      %v5035 = vmul.f32 %v4991, %v5021
      %v5036 = vmul.f32 %v4992, %v5021
      %v5037 = vmul.f32 %v4993, %v5021
      %v5038 = vmul.f32 %v4994, %v5021
      %v5039 = vmul.f32 %v4995, %v5021
      %v5040 = vmul.f32 %v4996, %v5021
      %v5041 = vmul.f32 %v4997, %v5021
      %v5042 = vmul.f32 %v4998, %v5021
      %v5043 = vmul.f32 %v4999, %v5021
      %v5044 = vmul.f32 %v5000, %v5021
      %v5045 = vmul.f32 %v5001, %v5021
      %v5046 = vmul.f32 %v5002, %v5021
      %v5047 = vmul.f32 %v5003, %v5021
      %v5048 = vmul.f32 %v5004, %v5021
      %v5049 = vmul.f32 %v5005, %v5021
      %v5050 = vmul.f32 %v5006, %v5021
      %v5051 = vmul.f32 %v5007, %v5021
      %v5052 = vmul.f32 %v5008, %v5021
      %v5053 = vmul.f32 %v5009, %v5021
      %v5054 = vadd.f32 %v5022, 0.0
      %v5055 = vadd.f32 %v5023, 0.0
      %v5056 = vadd.f32 %v5024, 0.0
      %v5057 = vadd.f32 %v5025, 0.0
      %v5058 = vadd.f32 %v5026, 0.0
      %v5059 = vadd.f32 %v5027, 0.0
      %v5060 = vadd.f32 %v5028, 0.0
      %v5061 = vadd.f32 %v5029, 0.0
      %v5062 = vadd.f32 %v5030, 0.0
      %v5063 = vadd.f32 %v5031, 0.0
      %v5064 = vadd.f32 %v5032, 0.0
      %v5065 = vadd.f32 %v5033, 0.0
      %v5066 = vadd.f32 %v5034, 0.0
      %v5067 = vadd.f32 %v5035, 0.0
      %v5068 = vadd.f32 %v5036, 0.0
      %v5069 = vadd.f32 %v5037, 0.0
      %v5070 = vadd.f32 %v5038, 0.0
      %v5071 = vadd.f32 %v5039, 0.0
      %v5072 = vadd.f32 %v5040, 0.0
      %v5073 = vadd.f32 %v5041, 0.0
      %v5074 = vadd.f32 %v5042, 0.0
      %v5075 = vadd.f32 %v5043, 0.0
      %v5076 = vadd.f32 %v5044, 0.0
      %v5077 = vadd.f32 %v5045, 0.0
      %v5078 = vadd.f32 %v5046, 0.0
      %v5079 = vadd.f32 %v5047, 0.0
      %v5080 = vadd.f32 %v5048, 0.0
      %v5081 = vadd.f32 %v5049, 0.0
      %v5082 = vadd.f32 %v5050, 0.0
      %v5083 = vadd.f32 %v5051, 0.0
      %v5084 = vadd.f32 %v5052, 0.0
      %v5085 = vadd.f32 %v5053, 0.0
      %v5086 = vlaneseq
      %v5087 = vshrl.u32 %v5086, 7
      %v5088 = vsub.s32 5, %v5087
      %v5089 = vrot.slane %v4974, %v5088
      %v5090 = vmul.f32 %v4980, %v5089
      %v5091 = vmul.f32 %v4981, %v5089
      %v5092 = vmul.f32 %v4982, %v5089
      %v5093 = vmul.f32 %v4983, %v5089
      %v5094 = vmul.f32 %v4984, %v5089
      %v5095 = vmul.f32 %v4985, %v5089
      %v5096 = vmul.f32 %v4986, %v5089
      %v5097 = vmul.f32 %v4987, %v5089
      %v5098 = vmul.f32 %v4988, %v5089
      %v5099 = vmul.f32 %v4989, %v5089
      %v5100 = vmul.f32 %v4990, %v5089
      %v5101 = vmul.f32 %v4991, %v5089
      %v5102 = vmul.f32 %v4992, %v5089
      %v5103 = vmul.f32 %v4993, %v5089
      %v5104 = vmul.f32 %v4994, %v5089
      %v5105 = vmul.f32 %v4995, %v5089
      %v5106 = vmul.f32 %v4996, %v5089
      %v5107 = vmul.f32 %v4997, %v5089
      %v5108 = vmul.f32 %v4998, %v5089
      %v5109 = vmul.f32 %v4999, %v5089
      %v5110 = vmul.f32 %v5000, %v5089
      %v5111 = vmul.f32 %v5001, %v5089
      %v5112 = vmul.f32 %v5002, %v5089
      %v5113 = vmul.f32 %v5003, %v5089
      %v5114 = vmul.f32 %v5004, %v5089
      %v5115 = vmul.f32 %v5005, %v5089
      %v5116 = vmul.f32 %v5006, %v5089
      %v5117 = vmul.f32 %v5007, %v5089
      %v5118 = vmul.f32 %v5008, %v5089
      %v5119 = vmul.f32 %v5009, %v5089
      %v5120 = vmul.f32 %v5010, %v5089
      %v5121 = vmul.f32 %v5011, %v5089
      %v5122 = vadd.f32 %v5054, %v5090
      %v5123 = vadd.f32 %v5055, %v5091
      %v5124 = vadd.f32 %v5056, %v5092
      %v5125 = vadd.f32 %v5057, %v5093
      %v5126 = vadd.f32 %v5058, %v5094
      %v5127 = vadd.f32 %v5059, %v5095
      %v5128 = vadd.f32 %v5060, %v5096
      %v5129 = vadd.f32 %v5061, %v5097
      %v5130 = vadd.f32 %v5062, %v5098
      %v5131 = vadd.f32 %v5063, %v5099
      %v5132 = vadd.f32 %v5064, %v5100
      %v5133 = vadd.f32 %v5065, %v5101
      %v5134 = vadd.f32 %v5066, %v5102
      %v5135 = vadd.f32 %v5067, %v5103
      %v5136 = vadd.f32 %v5068, %v5104
      %v5137 = vadd.f32 %v5069, %v5105
      %v5138 = vadd.f32 %v5070, %v5106
      %v5139 = vadd.f32 %v5071, %v5107
      %v5140 = vadd.f32 %v5072, %v5108
      %v5141 = vadd.f32 %v5073, %v5109
      %v5142 = vadd.f32 %v5074, %v5110
      %v5143 = vadd.f32 %v5075, %v5111
      %v5144 = vadd.f32 %v5076, %v5112
      %v5145 = vadd.f32 %v5077, %v5113
      %v5146 = vadd.f32 %v5078, %v5114
      %v5147 = vadd.f32 %v5079, %v5115
      %v5148 = vadd.f32 %v5080, %v5116
      %v5149 = vadd.f32 %v5081, %v5117
      %v5150 = vadd.f32 %v5082, %v5118
      %v5151 = vadd.f32 %v5083, %v5119
      %v5152 = vadd.f32 %v5084, %v5120
      %v5153 = vadd.f32 %v5085, %v5121
      %v5154 = vlaneseq
      %v5155 = vshrl.u32 %v5154, 7
      %v5156 = vsub.s32 2, %v5155
      %v5157 = vrot.slane %v4975, %v5156
      %v5158 = vmul.f32 %v4982, %v5157
      %v5159 = vmul.f32 %v4983, %v5157
      %v5160 = vmul.f32 %v4984, %v5157
      %v5161 = vmul.f32 %v4985, %v5157
      %v5162 = vmul.f32 %v4986, %v5157
      %v5163 = vmul.f32 %v4987, %v5157
      %v5164 = vmul.f32 %v4988, %v5157
      %v5165 = vmul.f32 %v4989, %v5157
      %v5166 = vmul.f32 %v4990, %v5157
      %v5167 = vmul.f32 %v4991, %v5157
      %v5168 = vmul.f32 %v4992, %v5157
      %v5169 = vmul.f32 %v4993, %v5157
      %v5170 = vmul.f32 %v4994, %v5157
      %v5171 = vmul.f32 %v4995, %v5157
      %v5172 = vmul.f32 %v4996, %v5157
      %v5173 = vmul.f32 %v4997, %v5157
      %v5174 = vmul.f32 %v4998, %v5157
      %v5175 = vmul.f32 %v4999, %v5157
      %v5176 = vmul.f32 %v5000, %v5157
      %v5177 = vmul.f32 %v5001, %v5157
      %v5178 = vmul.f32 %v5002, %v5157
      %v5179 = vmul.f32 %v5003, %v5157
      %v5180 = vmul.f32 %v5004, %v5157
      %v5181 = vmul.f32 %v5005, %v5157
      %v5182 = vmul.f32 %v5006, %v5157
      %v5183 = vmul.f32 %v5007, %v5157
      %v5184 = vmul.f32 %v5008, %v5157
      %v5185 = vmul.f32 %v5009, %v5157
      %v5186 = vmul.f32 %v5010, %v5157
      %v5187 = vmul.f32 %v5011, %v5157
      %v5188 = vmul.f32 %v5012, %v5157
      %v5189 = vmul.f32 %v5013, %v5157
      %v5190 = vadd.f32 %v5122, %v5158
      %v5191 = vadd.f32 %v5123, %v5159
      %v5192 = vadd.f32 %v5124, %v5160
      %v5193 = vadd.f32 %v5125, %v5161
      %v5194 = vadd.f32 %v5126, %v5162
      %v5195 = vadd.f32 %v5127, %v5163
      %v5196 = vadd.f32 %v5128, %v5164
      %v5197 = vadd.f32 %v5129, %v5165
      %v5198 = vadd.f32 %v5130, %v5166
      %v5199 = vadd.f32 %v5131, %v5167
      %v5200 = vadd.f32 %v5132, %v5168
      %v5201 = vadd.f32 %v5133, %v5169
      %v5202 = vadd.f32 %v5134, %v5170
      %v5203 = vadd.f32 %v5135, %v5171
      %v5204 = vadd.f32 %v5136, %v5172
      %v5205 = vadd.f32 %v5137, %v5173
      %v5206 = vadd.f32 %v5138, %v5174
      %v5207 = vadd.f32 %v5139, %v5175
      %v5208 = vadd.f32 %v5140, %v5176
      %v5209 = vadd.f32 %v5141, %v5177
      %v5210 = vadd.f32 %v5142, %v5178
      %v5211 = vadd.f32 %v5143, %v5179
      %v5212 = vadd.f32 %v5144, %v5180
      %v5213 = vadd.f32 %v5145, %v5181
      %v5214 = vadd.f32 %v5146, %v5182
      %v5215 = vadd.f32 %v5147, %v5183
      %v5216 = vadd.f32 %v5148, %v5184
      %v5217 = vadd.f32 %v5149, %v5185
      %v5218 = vadd.f32 %v5150, %v5186
      %v5219 = vadd.f32 %v5151, %v5187
      %v5220 = vadd.f32 %v5152, %v5188
      %v5221 = vadd.f32 %v5153, %v5189
      %v5222 = vlaneseq
      %v5223 = vshrl.u32 %v5222, 7
      %v5224 = vsub.s32 7, %v5223
      %v5225 = vrot.slane %v4975, %v5224
      %v5226 = vmul.f32 %v4984, %v5225
      %v5227 = vmul.f32 %v4985, %v5225
      %v5228 = vmul.f32 %v4986, %v5225
      %v5229 = vmul.f32 %v4987, %v5225
      %v5230 = vmul.f32 %v4988, %v5225
      %v5231 = vmul.f32 %v4989, %v5225
      %v5232 = vmul.f32 %v4990, %v5225
      %v5233 = vmul.f32 %v4991, %v5225
      %v5234 = vmul.f32 %v4992, %v5225
      %v5235 = vmul.f32 %v4993, %v5225
      %v5236 = vmul.f32 %v4994, %v5225
      %v5237 = vmul.f32 %v4995, %v5225
      %v5238 = vmul.f32 %v4996, %v5225
      %v5239 = vmul.f32 %v4997, %v5225
      %v5240 = vmul.f32 %v4998, %v5225
      %v5241 = vmul.f32 %v4999, %v5225
      %v5242 = vmul.f32 %v5000, %v5225
      %v5243 = vmul.f32 %v5001, %v5225
      %v5244 = vmul.f32 %v5002, %v5225
      %v5245 = vmul.f32 %v5003, %v5225
      %v5246 = vmul.f32 %v5004, %v5225
      %v5247 = vmul.f32 %v5005, %v5225
      %v5248 = vmul.f32 %v5006, %v5225
      %v5249 = vmul.f32 %v5007, %v5225
      %v5250 = vmul.f32 %v5008, %v5225
      %v5251 = vmul.f32 %v5009, %v5225
      %v5252 = vmul.f32 %v5010, %v5225
      %v5253 = vmul.f32 %v5011, %v5225
      %v5254 = vmul.f32 %v5012, %v5225
      %v5255 = vmul.f32 %v5013, %v5225
      %v5256 = vmul.f32 %v5014, %v5225
      %v5257 = vmul.f32 %v5015, %v5225
      %v5258 = vadd.f32 %v5190, %v5226
      %v5259 = vadd.f32 %v5191, %v5227
      %v5260 = vadd.f32 %v5192, %v5228
      %v5261 = vadd.f32 %v5193, %v5229
      %v5262 = vadd.f32 %v5194, %v5230
      %v5263 = vadd.f32 %v5195, %v5231
      %v5264 = vadd.f32 %v5196, %v5232
      %v5265 = vadd.f32 %v5197, %v5233
      %v5266 = vadd.f32 %v5198, %v5234
      %v5267 = vadd.f32 %v5199, %v5235
      %v5268 = vadd.f32 %v5200, %v5236
      %v5269 = vadd.f32 %v5201, %v5237
      %v5270 = vadd.f32 %v5202, %v5238
      %v5271 = vadd.f32 %v5203, %v5239
      %v5272 = vadd.f32 %v5204, %v5240
      %v5273 = vadd.f32 %v5205, %v5241
      %v5274 = vadd.f32 %v5206, %v5242
      %v5275 = vadd.f32 %v5207, %v5243
      %v5276 = vadd.f32 %v5208, %v5244
      %v5277 = vadd.f32 %v5209, %v5245
      %v5278 = vadd.f32 %v5210, %v5246
      %v5279 = vadd.f32 %v5211, %v5247
      %v5280 = vadd.f32 %v5212, %v5248
      %v5281 = vadd.f32 %v5213, %v5249
      %v5282 = vadd.f32 %v5214, %v5250
      %v5283 = vadd.f32 %v5215, %v5251
      %v5284 = vadd.f32 %v5216, %v5252
      %v5285 = vadd.f32 %v5217, %v5253
      %v5286 = vadd.f32 %v5218, %v5254
      %v5287 = vadd.f32 %v5219, %v5255
      %v5288 = vadd.f32 %v5220, %v5256
      %v5289 = vadd.f32 %v5221, %v5257
      %v5290 = vlaneseq
      %v5291 = vshrl.u32 %v5290, 7
      %v5292 = vsub.s32 4, %v5291
      %v5293 = vrot.slane %v4976, %v5292
      %v5294 = vmul.f32 %v4986, %v5293
      %v5295 = vmul.f32 %v4987, %v5293
      %v5296 = vmul.f32 %v4988, %v5293
      %v5297 = vmul.f32 %v4989, %v5293
      %v5298 = vmul.f32 %v4990, %v5293
      %v5299 = vmul.f32 %v4991, %v5293
      %v5300 = vmul.f32 %v4992, %v5293
      %v5301 = vmul.f32 %v4993, %v5293
      %v5302 = vmul.f32 %v4994, %v5293
      %v5303 = vmul.f32 %v4995, %v5293
      %v5304 = vmul.f32 %v4996, %v5293
      %v5305 = vmul.f32 %v4997, %v5293
      %v5306 = vmul.f32 %v4998, %v5293
      %v5307 = vmul.f32 %v4999, %v5293
      %v5308 = vmul.f32 %v5000, %v5293
      %v5309 = vmul.f32 %v5001, %v5293
      %v5310 = vmul.f32 %v5002, %v5293
      %v5311 = vmul.f32 %v5003, %v5293
      %v5312 = vmul.f32 %v5004, %v5293
      %v5313 = vmul.f32 %v5005, %v5293
      %v5314 = vmul.f32 %v5006, %v5293
      %v5315 = vmul.f32 %v5007, %v5293
      %v5316 = vmul.f32 %v5008, %v5293
      %v5317 = vmul.f32 %v5009, %v5293
      %v5318 = vmul.f32 %v5010, %v5293
      %v5319 = vmul.f32 %v5011, %v5293
      %v5320 = vmul.f32 %v5012, %v5293
      %v5321 = vmul.f32 %v5013, %v5293
      %v5322 = vmul.f32 %v5014, %v5293
      %v5323 = vmul.f32 %v5015, %v5293
      %v5324 = vmul.f32 %v5016, %v5293
      %v5325 = vmul.f32 %v5017, %v5293
      %v5326 = vadd.f32 %v5258, %v5294
      %v5327 = vadd.f32 %v5259, %v5295
      %v5328 = vadd.f32 %v5260, %v5296
      %v5329 = vadd.f32 %v5261, %v5297
      %v5330 = vadd.f32 %v5262, %v5298
      %v5331 = vadd.f32 %v5263, %v5299
      %v5332 = vadd.f32 %v5264, %v5300
      %v5333 = vadd.f32 %v5265, %v5301
      %v5334 = vadd.f32 %v5266, %v5302
      %v5335 = vadd.f32 %v5267, %v5303
      %v5336 = vadd.f32 %v5268, %v5304
      %v5337 = vadd.f32 %v5269, %v5305
      %v5338 = vadd.f32 %v5270, %v5306
      %v5339 = vadd.f32 %v5271, %v5307
      %v5340 = vadd.f32 %v5272, %v5308
      %v5341 = vadd.f32 %v5273, %v5309
      %v5342 = vadd.f32 %v5274, %v5310
      %v5343 = vadd.f32 %v5275, %v5311
      %v5344 = vadd.f32 %v5276, %v5312
      %v5345 = vadd.f32 %v5277, %v5313
      %v5346 = vadd.f32 %v5278, %v5314
      %v5347 = vadd.f32 %v5279, %v5315
      %v5348 = vadd.f32 %v5280, %v5316
      %v5349 = vadd.f32 %v5281, %v5317
      %v5350 = vadd.f32 %v5282, %v5318
      %v5351 = vadd.f32 %v5283, %v5319
      %v5352 = vadd.f32 %v5284, %v5320
      %v5353 = vadd.f32 %v5285, %v5321
      %v5354 = vadd.f32 %v5286, %v5322
      %v5355 = vadd.f32 %v5287, %v5323
      %v5356 = vadd.f32 %v5288, %v5324
      %v5357 = vadd.f32 %v5289, %v5325
      %v5358 = vmul.f32 %v5326, %v1583
      %v5359 = vmul.f32 %v5327, %v1588
      %v5360 = vmul.f32 %v5328, %v1593
      %v5361 = vmul.f32 %v5329, %v1598
      %v5362 = vmul.f32 %v5330, %v1603
      %v5363 = vmul.f32 %v5331, %v1608
      %v5364 = vmul.f32 %v5332, %v1613
      %v5365 = vmul.f32 %v5333, %v1618
      %v5366 = vmul.f32 %v5334, %v1623
      %v5367 = vmul.f32 %v5335, %v1628
      %v5368 = vmul.f32 %v5336, %v1633
      %v5369 = vmul.f32 %v5337, %v1638
      %v5370 = vmul.f32 %v5338, %v1643
      %v5371 = vmul.f32 %v5339, %v1648
      %v5372 = vmul.f32 %v5340, %v1653
      %v5373 = vmul.f32 %v5341, %v1658
      %v5374 = vmul.f32 %v5342, %v1663
      %v5375 = vmul.f32 %v5343, %v1668
      %v5376 = vmul.f32 %v5344, %v1673
      %v5377 = vmul.f32 %v5345, %v1678
      %v5378 = vmul.f32 %v5346, %v1683
      %v5379 = vmul.f32 %v5347, %v1688
      %v5380 = vmul.f32 %v5348, %v1693
      %v5381 = vmul.f32 %v5349, %v1698
      %v5382 = vmul.f32 %v5350, %v1703
      %v5383 = vmul.f32 %v5351, %v1708
      %v5384 = vmul.f32 %v5352, %v1713
      %v5385 = vmul.f32 %v5353, %v1718
      %v5386 = vmul.f32 %v5354, %v1723
      %v5387 = vmul.f32 %v5355, %v1728
      %v5388 = vmul.f32 %v5356, %v1733
      %v5389 = vmul.f32 %v5357, %v1738
      %v5390 = vadd.f32 %v5358, 0.0
      %v5391 = vadd.f32 %v5359, 0.0
      %v5392 = vadd.f32 %v5360, 0.0
      %v5393 = vadd.f32 %v5361, 0.0
      %v5394 = vadd.f32 %v5362, 0.0
      %v5395 = vadd.f32 %v5363, 0.0
      %v5396 = vadd.f32 %v5364, 0.0
      %v5397 = vadd.f32 %v5365, 0.0
      %v5398 = vadd.f32 %v5366, 0.0
      %v5399 = vadd.f32 %v5367, 0.0
      %v5400 = vadd.f32 %v5368, 0.0
      %v5401 = vadd.f32 %v5369, 0.0
      %v5402 = vadd.f32 %v5370, 0.0
      %v5403 = vadd.f32 %v5371, 0.0
      %v5404 = vadd.f32 %v5372, 0.0
      %v5405 = vadd.f32 %v5373, 0.0
      %v5406 = vadd.f32 %v5374, 0.0
      %v5407 = vadd.f32 %v5375, 0.0
      %v5408 = vadd.f32 %v5376, 0.0
      %v5409 = vadd.f32 %v5377, 0.0
      %v5410 = vadd.f32 %v5378, 0.0
      %v5411 = vadd.f32 %v5379, 0.0
      %v5412 = vadd.f32 %v5380, 0.0
      %v5413 = vadd.f32 %v5381, 0.0
      %v5414 = vadd.f32 %v5382, 0.0
      %v5415 = vadd.f32 %v5383, 0.0
      %v5416 = vadd.f32 %v5384, 0.0
      %v5417 = vadd.f32 %v5385, 0.0
      %v5418 = vadd.f32 %v5386, 0.0
      %v5419 = vadd.f32 %v5387, 0.0
      %v5420 = vadd.f32 %v5388, 0.0
      %v5421 = vadd.f32 %v5389, 0.0
      %v5422 = vld [vmem:[#allocation3 + $0x7] sm:$0xff]
      %v5423 = vld [vmem:[#allocation3 + $0xf] sm:$0xff]
      %v5424 = vld [vmem:[#allocation3 + $0x17] sm:$0xff]
      %v5425 = vld [vmem:[#allocation3 + $0x1f] sm:$0xff]
      %v5426 = vld [vmem:[#allocation3 + $0x27] sm:$0xff]
      %v5427 = vld [vmem:[#allocation3 + $0x2f] sm:$0xff]
      %v5428 = vld [vmem:[#allocation3 + $0x37] sm:$0xff]
      %v5429 = vld [vmem:[#allocation3 + $0x3f] sm:$0xff]
      %v5430 = vld [vmem:[#allocation3 + $0x47] sm:$0xff]
      %v5431 = vld [vmem:[#allocation3 + $0x4f] sm:$0xff]
      %v5432 = vld [vmem:[#allocation3 + $0x57] sm:$0xff]
      %v5433 = vld [vmem:[#allocation3 + $0x5f] sm:$0xff]
      %v5434 = vld [vmem:[#allocation3 + $0x67] sm:$0xff]
      %v5435 = vld [vmem:[#allocation3 + $0x6f] sm:$0xff]
      %v5436 = vld [vmem:[#allocation3 + $0x77] sm:$0xff]
      %v5437 = vld [vmem:[#allocation3 + $0x7f] sm:$0xff]
      %v5438 = vld [vmem:[#allocation3 + $0x87] sm:$0xff]
      %v5439 = vld [vmem:[#allocation3 + $0x8f] sm:$0xff]
      %v5440 = vld [vmem:[#allocation3 + $0x97] sm:$0xff]
      %v5441 = vld [vmem:[#allocation3 + $0x9f] sm:$0xff]
      %v5442 = vld [vmem:[#allocation3 + $0xa7] sm:$0xff]
      %v5443 = vld [vmem:[#allocation3 + $0xaf] sm:$0xff]
      %v5444 = vld [vmem:[#allocation3 + $0xb7] sm:$0xff]
      %v5445 = vld [vmem:[#allocation3 + $0xbf] sm:$0xff]
      %v5446 = vld [vmem:[#allocation3 + $0xc7] sm:$0xff]
      %v5447 = vld [vmem:[#allocation3 + $0xcf] sm:$0xff]
      %v5448 = vld [vmem:[#allocation3 + $0xd7] sm:$0xff]
      %v5449 = vld [vmem:[#allocation3 + $0xdf] sm:$0xff]
      %v5450 = vld [vmem:[#allocation3 + $0xe7] sm:$0xff]
      %v5451 = vld [vmem:[#allocation3 + $0xef] sm:$0xff]
      %v5452 = vld [vmem:[#allocation3 + $0xf7] sm:$0xff]
      %v5453 = vld [vmem:[#allocation3 + $0xff] sm:$0xff]
      %v5454 = vld [vmem:[#allocation3 + $0x107] sm:$0xff]
      %v5455 = vld [vmem:[#allocation3 + $0x10f] sm:$0xff]
      %v5456 = vld [vmem:[#allocation3 + $0x117] sm:$0xff]
      %v5457 = vld [vmem:[#allocation3 + $0x11f] sm:$0xff]
      %v5458 = vld [vmem:[#allocation3 + $0x127] sm:$0xff]
      %v5459 = vld [vmem:[#allocation3 + $0x12f] sm:$0xff]
      %v5460 = vld [vmem:[#allocation3 + $0x137] sm:$0xff]
      %v5461 = vld [vmem:[#allocation3 + $0x13f] sm:$0xff]
      %v5462 = vlaneseq
      %v5463 = vshrl.u32 %v5462, 7
      %v5464 = vsub.s32 1, %v5463
      %v5465 = vrot.slane %v4974, %v5464
      %v5466 = vmul.f32 %v5422, %v5465
      %v5467 = vmul.f32 %v5423, %v5465
      %v5468 = vmul.f32 %v5424, %v5465
      %v5469 = vmul.f32 %v5425, %v5465
      %v5470 = vmul.f32 %v5426, %v5465
      %v5471 = vmul.f32 %v5427, %v5465
      %v5472 = vmul.f32 %v5428, %v5465
      %v5473 = vmul.f32 %v5429, %v5465
      %v5474 = vmul.f32 %v5430, %v5465
      %v5475 = vmul.f32 %v5431, %v5465
      %v5476 = vmul.f32 %v5432, %v5465
      %v5477 = vmul.f32 %v5433, %v5465
      %v5478 = vmul.f32 %v5434, %v5465
      %v5479 = vmul.f32 %v5435, %v5465
      %v5480 = vmul.f32 %v5436, %v5465
      %v5481 = vmul.f32 %v5437, %v5465
      %v5482 = vmul.f32 %v5438, %v5465
      %v5483 = vmul.f32 %v5439, %v5465
      %v5484 = vmul.f32 %v5440, %v5465
      %v5485 = vmul.f32 %v5441, %v5465
      %v5486 = vmul.f32 %v5442, %v5465
      %v5487 = vmul.f32 %v5443, %v5465
      %v5488 = vmul.f32 %v5444, %v5465
      %v5489 = vmul.f32 %v5445, %v5465
      %v5490 = vmul.f32 %v5446, %v5465
      %v5491 = vmul.f32 %v5447, %v5465
      %v5492 = vmul.f32 %v5448, %v5465
      %v5493 = vmul.f32 %v5449, %v5465
      %v5494 = vmul.f32 %v5450, %v5465
      %v5495 = vmul.f32 %v5451, %v5465
      %v5496 = vmul.f32 %v5452, %v5465
      %v5497 = vmul.f32 %v5453, %v5465
      %v5498 = vadd.f32 %v5466, 0.0
      %v5499 = vadd.f32 %v5467, 0.0
      %v5500 = vadd.f32 %v5468, 0.0
      %v5501 = vadd.f32 %v5469, 0.0
      %v5502 = vadd.f32 %v5470, 0.0
      %v5503 = vadd.f32 %v5471, 0.0
      %v5504 = vadd.f32 %v5472, 0.0
      %v5505 = vadd.f32 %v5473, 0.0
      %v5506 = vadd.f32 %v5474, 0.0
      %v5507 = vadd.f32 %v5475, 0.0
      %v5508 = vadd.f32 %v5476, 0.0
      %v5509 = vadd.f32 %v5477, 0.0
      %v5510 = vadd.f32 %v5478, 0.0
      %v5511 = vadd.f32 %v5479, 0.0
      %v5512 = vadd.f32 %v5480, 0.0
      %v5513 = vadd.f32 %v5481, 0.0
      %v5514 = vadd.f32 %v5482, 0.0
      %v5515 = vadd.f32 %v5483, 0.0
      %v5516 = vadd.f32 %v5484, 0.0
      %v5517 = vadd.f32 %v5485, 0.0
      %v5518 = vadd.f32 %v5486, 0.0
      %v5519 = vadd.f32 %v5487, 0.0
      %v5520 = vadd.f32 %v5488, 0.0
      %v5521 = vadd.f32 %v5489, 0.0
      %v5522 = vadd.f32 %v5490, 0.0
      %v5523 = vadd.f32 %v5491, 0.0
      %v5524 = vadd.f32 %v5492, 0.0
      %v5525 = vadd.f32 %v5493, 0.0
      %v5526 = vadd.f32 %v5494, 0.0
      %v5527 = vadd.f32 %v5495, 0.0
      %v5528 = vadd.f32 %v5496, 0.0
      %v5529 = vadd.f32 %v5497, 0.0
      %v5530 = vlaneseq
      %v5531 = vshrl.u32 %v5530, 7
      %v5532 = vsub.s32 6, %v5531
      %v5533 = vrot.slane %v4974, %v5532
      %v5534 = vmul.f32 %v5424, %v5533
      %v5535 = vmul.f32 %v5425, %v5533
      %v5536 = vmul.f32 %v5426, %v5533
      %v5537 = vmul.f32 %v5427, %v5533
      %v5538 = vmul.f32 %v5428, %v5533
      %v5539 = vmul.f32 %v5429, %v5533
      %v5540 = vmul.f32 %v5430, %v5533
      %v5541 = vmul.f32 %v5431, %v5533
      %v5542 = vmul.f32 %v5432, %v5533
      %v5543 = vmul.f32 %v5433, %v5533
      %v5544 = vmul.f32 %v5434, %v5533
      %v5545 = vmul.f32 %v5435, %v5533
      %v5546 = vmul.f32 %v5436, %v5533
      %v5547 = vmul.f32 %v5437, %v5533
      %v5548 = vmul.f32 %v5438, %v5533
      %v5549 = vmul.f32 %v5439, %v5533
      %v5550 = vmul.f32 %v5440, %v5533
      %v5551 = vmul.f32 %v5441, %v5533
      %v5552 = vmul.f32 %v5442, %v5533
      %v5553 = vmul.f32 %v5443, %v5533
      %v5554 = vmul.f32 %v5444, %v5533
      %v5555 = vmul.f32 %v5445, %v5533
      %v5556 = vmul.f32 %v5446, %v5533
      %v5557 = vmul.f32 %v5447, %v5533
      %v5558 = vmul.f32 %v5448, %v5533
      %v5559 = vmul.f32 %v5449, %v5533
      %v5560 = vmul.f32 %v5450, %v5533
      %v5561 = vmul.f32 %v5451, %v5533
      %v5562 = vmul.f32 %v5452, %v5533
      %v5563 = vmul.f32 %v5453, %v5533
      %v5564 = vmul.f32 %v5454, %v5533
      %v5565 = vmul.f32 %v5455, %v5533
      %v5566 = vadd.f32 %v5498, %v5534
      %v5567 = vadd.f32 %v5499, %v5535
      %v5568 = vadd.f32 %v5500, %v5536
      %v5569 = vadd.f32 %v5501, %v5537
      %v5570 = vadd.f32 %v5502, %v5538
      %v5571 = vadd.f32 %v5503, %v5539
      %v5572 = vadd.f32 %v5504, %v5540
      %v5573 = vadd.f32 %v5505, %v5541
      %v5574 = vadd.f32 %v5506, %v5542
      %v5575 = vadd.f32 %v5507, %v5543
      %v5576 = vadd.f32 %v5508, %v5544
      %v5577 = vadd.f32 %v5509, %v5545
      %v5578 = vadd.f32 %v5510, %v5546
      %v5579 = vadd.f32 %v5511, %v5547
      %v5580 = vadd.f32 %v5512, %v5548
      %v5581 = vadd.f32 %v5513, %v5549
      %v5582 = vadd.f32 %v5514, %v5550
      %v5583 = vadd.f32 %v5515, %v5551
      %v5584 = vadd.f32 %v5516, %v5552
      %v5585 = vadd.f32 %v5517, %v5553
      %v5586 = vadd.f32 %v5518, %v5554
      %v5587 = vadd.f32 %v5519, %v5555
      %v5588 = vadd.f32 %v5520, %v5556
      %v5589 = vadd.f32 %v5521, %v5557
      %v5590 = vadd.f32 %v5522, %v5558
      %v5591 = vadd.f32 %v5523, %v5559
      %v5592 = vadd.f32 %v5524, %v5560
      %v5593 = vadd.f32 %v5525, %v5561
      %v5594 = vadd.f32 %v5526, %v5562
      %v5595 = vadd.f32 %v5527, %v5563
      %v5596 = vadd.f32 %v5528, %v5564
      %v5597 = vadd.f32 %v5529, %v5565
      %v5598 = vlaneseq
      %v5599 = vshrl.u32 %v5598, 7
      %v5600 = vsub.s32 3, %v5599
      %v5601 = vrot.slane %v4975, %v5600
      %v5602 = vmul.f32 %v5426, %v5601
      %v5603 = vmul.f32 %v5427, %v5601
      %v5604 = vmul.f32 %v5428, %v5601
      %v5605 = vmul.f32 %v5429, %v5601
      %v5606 = vmul.f32 %v5430, %v5601
      %v5607 = vmul.f32 %v5431, %v5601
      %v5608 = vmul.f32 %v5432, %v5601
      %v5609 = vmul.f32 %v5433, %v5601
      %v5610 = vmul.f32 %v5434, %v5601
      %v5611 = vmul.f32 %v5435, %v5601
      %v5612 = vmul.f32 %v5436, %v5601
      %v5613 = vmul.f32 %v5437, %v5601
      %v5614 = vmul.f32 %v5438, %v5601
      %v5615 = vmul.f32 %v5439, %v5601
      %v5616 = vmul.f32 %v5440, %v5601
      %v5617 = vmul.f32 %v5441, %v5601
      %v5618 = vmul.f32 %v5442, %v5601
      %v5619 = vmul.f32 %v5443, %v5601
      %v5620 = vmul.f32 %v5444, %v5601
      %v5621 = vmul.f32 %v5445, %v5601
      %v5622 = vmul.f32 %v5446, %v5601
      %v5623 = vmul.f32 %v5447, %v5601
      %v5624 = vmul.f32 %v5448, %v5601
      %v5625 = vmul.f32 %v5449, %v5601
      %v5626 = vmul.f32 %v5450, %v5601
      %v5627 = vmul.f32 %v5451, %v5601
      %v5628 = vmul.f32 %v5452, %v5601
      %v5629 = vmul.f32 %v5453, %v5601
      %v5630 = vmul.f32 %v5454, %v5601
      %v5631 = vmul.f32 %v5455, %v5601
      %v5632 = vmul.f32 %v5456, %v5601
      %v5633 = vmul.f32 %v5457, %v5601
      %v5634 = vadd.f32 %v5566, %v5602
      %v5635 = vadd.f32 %v5567, %v5603
      %v5636 = vadd.f32 %v5568, %v5604
      %v5637 = vadd.f32 %v5569, %v5605
      %v5638 = vadd.f32 %v5570, %v5606
      %v5639 = vadd.f32 %v5571, %v5607
      %v5640 = vadd.f32 %v5572, %v5608
      %v5641 = vadd.f32 %v5573, %v5609
      %v5642 = vadd.f32 %v5574, %v5610
      %v5643 = vadd.f32 %v5575, %v5611
      %v5644 = vadd.f32 %v5576, %v5612
      %v5645 = vadd.f32 %v5577, %v5613
      %v5646 = vadd.f32 %v5578, %v5614
      %v5647 = vadd.f32 %v5579, %v5615
      %v5648 = vadd.f32 %v5580, %v5616
      %v5649 = vadd.f32 %v5581, %v5617
      %v5650 = vadd.f32 %v5582, %v5618
      %v5651 = vadd.f32 %v5583, %v5619
      %v5652 = vadd.f32 %v5584, %v5620
      %v5653 = vadd.f32 %v5585, %v5621
      %v5654 = vadd.f32 %v5586, %v5622
      %v5655 = vadd.f32 %v5587, %v5623
      %v5656 = vadd.f32 %v5588, %v5624
      %v5657 = vadd.f32 %v5589, %v5625
      %v5658 = vadd.f32 %v5590, %v5626
      %v5659 = vadd.f32 %v5591, %v5627
      %v5660 = vadd.f32 %v5592, %v5628
      %v5661 = vadd.f32 %v5593, %v5629
      %v5662 = vadd.f32 %v5594, %v5630
      %v5663 = vadd.f32 %v5595, %v5631
      %v5664 = vadd.f32 %v5596, %v5632
      %v5665 = vadd.f32 %v5597, %v5633
      %v5666 = vlaneseq
      %v5667 = vshrl.u32 %v5666, 7
      %v5668 = vsub.s32 0, %v5667
      %v5669 = vrot.slane %v4976, %v5668
      %v5670 = vmul.f32 %v5428, %v5669
      %v5671 = vmul.f32 %v5429, %v5669
      %v5672 = vmul.f32 %v5430, %v5669
      %v5673 = vmul.f32 %v5431, %v5669
      %v5674 = vmul.f32 %v5432, %v5669
      %v5675 = vmul.f32 %v5433, %v5669
      %v5676 = vmul.f32 %v5434, %v5669
      %v5677 = vmul.f32 %v5435, %v5669
      %v5678 = vmul.f32 %v5436, %v5669
      %v5679 = vmul.f32 %v5437, %v5669
      %v5680 = vmul.f32 %v5438, %v5669
      %v5681 = vmul.f32 %v5439, %v5669
      %v5682 = vmul.f32 %v5440, %v5669
      %v5683 = vmul.f32 %v5441, %v5669
      %v5684 = vmul.f32 %v5442, %v5669
      %v5685 = vmul.f32 %v5443, %v5669
      %v5686 = vmul.f32 %v5444, %v5669
      %v5687 = vmul.f32 %v5445, %v5669
      %v5688 = vmul.f32 %v5446, %v5669
      %v5689 = vmul.f32 %v5447, %v5669
      %v5690 = vmul.f32 %v5448, %v5669
      %v5691 = vmul.f32 %v5449, %v5669
      %v5692 = vmul.f32 %v5450, %v5669
      %v5693 = vmul.f32 %v5451, %v5669
      %v5694 = vmul.f32 %v5452, %v5669
      %v5695 = vmul.f32 %v5453, %v5669
      %v5696 = vmul.f32 %v5454, %v5669
      %v5697 = vmul.f32 %v5455, %v5669
      %v5698 = vmul.f32 %v5456, %v5669
      %v5699 = vmul.f32 %v5457, %v5669
      %v5700 = vmul.f32 %v5458, %v5669
      %v5701 = vmul.f32 %v5459, %v5669
      %v5702 = vadd.f32 %v5634, %v5670
      %v5703 = vadd.f32 %v5635, %v5671
      %v5704 = vadd.f32 %v5636, %v5672
      %v5705 = vadd.f32 %v5637, %v5673
      %v5706 = vadd.f32 %v5638, %v5674
      %v5707 = vadd.f32 %v5639, %v5675
      %v5708 = vadd.f32 %v5640, %v5676
      %v5709 = vadd.f32 %v5641, %v5677
      %v5710 = vadd.f32 %v5642, %v5678
      %v5711 = vadd.f32 %v5643, %v5679
      %v5712 = vadd.f32 %v5644, %v5680
      %v5713 = vadd.f32 %v5645, %v5681
      %v5714 = vadd.f32 %v5646, %v5682
      %v5715 = vadd.f32 %v5647, %v5683
      %v5716 = vadd.f32 %v5648, %v5684
      %v5717 = vadd.f32 %v5649, %v5685
      %v5718 = vadd.f32 %v5650, %v5686
      %v5719 = vadd.f32 %v5651, %v5687
      %v5720 = vadd.f32 %v5652, %v5688
      %v5721 = vadd.f32 %v5653, %v5689
      %v5722 = vadd.f32 %v5654, %v5690
      %v5723 = vadd.f32 %v5655, %v5691
      %v5724 = vadd.f32 %v5656, %v5692
      %v5725 = vadd.f32 %v5657, %v5693
      %v5726 = vadd.f32 %v5658, %v5694
      %v5727 = vadd.f32 %v5659, %v5695
      %v5728 = vadd.f32 %v5660, %v5696
      %v5729 = vadd.f32 %v5661, %v5697
      %v5730 = vadd.f32 %v5662, %v5698
      %v5731 = vadd.f32 %v5663, %v5699
      %v5732 = vadd.f32 %v5664, %v5700
      %v5733 = vadd.f32 %v5665, %v5701
      %v5734 = vlaneseq
      %v5735 = vshrl.u32 %v5734, 7
      %v5736 = vsub.s32 5, %v5735
      %v5737 = vrot.slane %v4976, %v5736
      %v5738 = vmul.f32 %v5430, %v5737
      %v5739 = vmul.f32 %v5431, %v5737
      %v5740 = vmul.f32 %v5432, %v5737
      %v5741 = vmul.f32 %v5433, %v5737
      %v5742 = vmul.f32 %v5434, %v5737
      %v5743 = vmul.f32 %v5435, %v5737
      %v5744 = vmul.f32 %v5436, %v5737
      %v5745 = vmul.f32 %v5437, %v5737
      %v5746 = vmul.f32 %v5438, %v5737
      %v5747 = vmul.f32 %v5439, %v5737
      %v5748 = vmul.f32 %v5440, %v5737
      %v5749 = vmul.f32 %v5441, %v5737
      %v5750 = vmul.f32 %v5442, %v5737
      %v5751 = vmul.f32 %v5443, %v5737
      %v5752 = vmul.f32 %v5444, %v5737
      %v5753 = vmul.f32 %v5445, %v5737
      %v5754 = vmul.f32 %v5446, %v5737
      %v5755 = vmul.f32 %v5447, %v5737
      %v5756 = vmul.f32 %v5448, %v5737
      %v5757 = vmul.f32 %v5449, %v5737
      %v5758 = vmul.f32 %v5450, %v5737
      %v5759 = vmul.f32 %v5451, %v5737
      %v5760 = vmul.f32 %v5452, %v5737
      %v5761 = vmul.f32 %v5453, %v5737
      %v5762 = vmul.f32 %v5454, %v5737
      %v5763 = vmul.f32 %v5455, %v5737
      %v5764 = vmul.f32 %v5456, %v5737
      %v5765 = vmul.f32 %v5457, %v5737
      %v5766 = vmul.f32 %v5458, %v5737
      %v5767 = vmul.f32 %v5459, %v5737
      %v5768 = vmul.f32 %v5460, %v5737
      %v5769 = vmul.f32 %v5461, %v5737
      %v5770 = vadd.f32 %v5702, %v5738
      %v5771 = vadd.f32 %v5703, %v5739
      %v5772 = vadd.f32 %v5704, %v5740
      %v5773 = vadd.f32 %v5705, %v5741
      %v5774 = vadd.f32 %v5706, %v5742
      %v5775 = vadd.f32 %v5707, %v5743
      %v5776 = vadd.f32 %v5708, %v5744
      %v5777 = vadd.f32 %v5709, %v5745
      %v5778 = vadd.f32 %v5710, %v5746
      %v5779 = vadd.f32 %v5711, %v5747
      %v5780 = vadd.f32 %v5712, %v5748
      %v5781 = vadd.f32 %v5713, %v5749
      %v5782 = vadd.f32 %v5714, %v5750
      %v5783 = vadd.f32 %v5715, %v5751
      %v5784 = vadd.f32 %v5716, %v5752
      %v5785 = vadd.f32 %v5717, %v5753
      %v5786 = vadd.f32 %v5718, %v5754
      %v5787 = vadd.f32 %v5719, %v5755
      %v5788 = vadd.f32 %v5720, %v5756
      %v5789 = vadd.f32 %v5721, %v5757
      %v5790 = vadd.f32 %v5722, %v5758
      %v5791 = vadd.f32 %v5723, %v5759
      %v5792 = vadd.f32 %v5724, %v5760
      %v5793 = vadd.f32 %v5725, %v5761
      %v5794 = vadd.f32 %v5726, %v5762
      %v5795 = vadd.f32 %v5727, %v5763
      %v5796 = vadd.f32 %v5728, %v5764
      %v5797 = vadd.f32 %v5729, %v5765
      %v5798 = vadd.f32 %v5730, %v5766
      %v5799 = vadd.f32 %v5731, %v5767
      %v5800 = vadd.f32 %v5732, %v5768
      %v5801 = vadd.f32 %v5733, %v5769
      %v5802 = vmul.f32 %v5770, %v2186
      %v5803 = vmul.f32 %v5771, %v2190
      %v5804 = vmul.f32 %v5772, %v2194
      %v5805 = vmul.f32 %v5773, %v2198
      %v5806 = vmul.f32 %v5774, %v2202
      %v5807 = vmul.f32 %v5775, %v2206
      %v5808 = vmul.f32 %v5776, %v2210
      %v5809 = vmul.f32 %v5777, %v2214
      %v5810 = vmul.f32 %v5778, %v2218
      %v5811 = vmul.f32 %v5779, %v2222
      %v5812 = vmul.f32 %v5780, %v2226
      %v5813 = vmul.f32 %v5781, %v2230
      %v5814 = vmul.f32 %v5782, %v2234
      %v5815 = vmul.f32 %v5783, %v2238
      %v5816 = vmul.f32 %v5784, %v2242
      %v5817 = vmul.f32 %v5785, %v2246
      %v5818 = vmul.f32 %v5786, %v2250
      %v5819 = vmul.f32 %v5787, %v2254
      %v5820 = vmul.f32 %v5788, %v2258
      %v5821 = vmul.f32 %v5789, %v2262
      %v5822 = vmul.f32 %v5790, %v2266
      %v5823 = vmul.f32 %v5791, %v2270
      %v5824 = vmul.f32 %v5792, %v2274
      %v5825 = vmul.f32 %v5793, %v2278
      %v5826 = vmul.f32 %v5794, %v2282
      %v5827 = vmul.f32 %v5795, %v2286
      %v5828 = vmul.f32 %v5796, %v2290
      %v5829 = vmul.f32 %v5797, %v2294
      %v5830 = vmul.f32 %v5798, %v2298
      %v5831 = vmul.f32 %v5799, %v2302
      %v5832 = vmul.f32 %v5800, %v2306
      %v5833 = vmul.f32 %v5801, %v2310
      %v5834 = vadd.f32 %v5390, %v5802
      %v5835 = vadd.f32 %v5391, %v5803
      %v5836 = vadd.f32 %v5392, %v5804
      %v5837 = vadd.f32 %v5393, %v5805
      %v5838 = vadd.f32 %v5394, %v5806
      %v5839 = vadd.f32 %v5395, %v5807
      %v5840 = vadd.f32 %v5396, %v5808
      %v5841 = vadd.f32 %v5397, %v5809
      %v5842 = vadd.f32 %v5398, %v5810
      %v5843 = vadd.f32 %v5399, %v5811
      %v5844 = vadd.f32 %v5400, %v5812
      %v5845 = vadd.f32 %v5401, %v5813
      %v5846 = vadd.f32 %v5402, %v5814
      %v5847 = vadd.f32 %v5403, %v5815
      %v5848 = vadd.f32 %v5404, %v5816
      %v5849 = vadd.f32 %v5405, %v5817
      %v5850 = vadd.f32 %v5406, %v5818
      %v5851 = vadd.f32 %v5407, %v5819
      %v5852 = vadd.f32 %v5408, %v5820
      %v5853 = vadd.f32 %v5409, %v5821
      %v5854 = vadd.f32 %v5410, %v5822
      %v5855 = vadd.f32 %v5411, %v5823
      %v5856 = vadd.f32 %v5412, %v5824
      %v5857 = vadd.f32 %v5413, %v5825
      %v5858 = vadd.f32 %v5414, %v5826
      %v5859 = vadd.f32 %v5415, %v5827
      %v5860 = vadd.f32 %v5416, %v5828
      %v5861 = vadd.f32 %v5417, %v5829
      %v5862 = vadd.f32 %v5418, %v5830
      %v5863 = vadd.f32 %v5419, %v5831
      %v5864 = vadd.f32 %v5420, %v5832
      %v5865 = vadd.f32 %v5421, %v5833
      %v5866 = vld [vmem:[#allocation3 + $0x8] sm:$0xff]
      %v5867 = vld [vmem:[#allocation3 + $0x10] sm:$0xff]
      %v5868 = vld [vmem:[#allocation3 + $0x18] sm:$0xff]
      %v5869 = vld [vmem:[#allocation3 + $0x20] sm:$0xff]
      %v5870 = vld [vmem:[#allocation3 + $0x28] sm:$0xff]
      %v5871 = vld [vmem:[#allocation3 + $0x30] sm:$0xff]
      %v5872 = vld [vmem:[#allocation3 + $0x38] sm:$0xff]
      %v5873 = vld [vmem:[#allocation3 + $0x40] sm:$0xff]
      %v5874 = vld [vmem:[#allocation3 + $0x48] sm:$0xff]
      %v5875 = vld [vmem:[#allocation3 + $0x50] sm:$0xff]
      %v5876 = vld [vmem:[#allocation3 + $0x58] sm:$0xff]
      %v5877 = vld [vmem:[#allocation3 + $0x60] sm:$0xff]
      %v5878 = vld [vmem:[#allocation3 + $0x68] sm:$0xff]
      %v5879 = vld [vmem:[#allocation3 + $0x70] sm:$0xff]
      %v5880 = vld [vmem:[#allocation3 + $0x78] sm:$0xff]
      %v5881 = vld [vmem:[#allocation3 + $0x80] sm:$0xff]
      %v5882 = vld [vmem:[#allocation3 + $0x88] sm:$0xff]
      %v5883 = vld [vmem:[#allocation3 + $0x90] sm:$0xff]
      %v5884 = vld [vmem:[#allocation3 + $0x98] sm:$0xff]
      %v5885 = vld [vmem:[#allocation3 + $0xa0] sm:$0xff]
      %v5886 = vld [vmem:[#allocation3 + $0xa8] sm:$0xff]
      %v5887 = vld [vmem:[#allocation3 + $0xb0] sm:$0xff]
      %v5888 = vld [vmem:[#allocation3 + $0xb8] sm:$0xff]
      %v5889 = vld [vmem:[#allocation3 + $0xc0] sm:$0xff]
      %v5890 = vld [vmem:[#allocation3 + $0xc8] sm:$0xff]
      %v5891 = vld [vmem:[#allocation3 + $0xd0] sm:$0xff]
      %v5892 = vld [vmem:[#allocation3 + $0xd8] sm:$0xff]
      %v5893 = vld [vmem:[#allocation3 + $0xe0] sm:$0xff]
      %v5894 = vld [vmem:[#allocation3 + $0xe8] sm:$0xff]
      %v5895 = vld [vmem:[#allocation3 + $0xf0] sm:$0xff]
      %v5896 = vld [vmem:[#allocation3 + $0xf8] sm:$0xff]
      %v5897 = vld [vmem:[#allocation3 + $0x100] sm:$0xff]
      %v5898 = vld [vmem:[#allocation3 + $0x108] sm:$0xff]
      %v5899 = vld [vmem:[#allocation3 + $0x110] sm:$0xff]
      %v5900 = vld [vmem:[#allocation3 + $0x118] sm:$0xff]
      %v5901 = vld [vmem:[#allocation3 + $0x120] sm:$0xff]
      %v5902 = vld [vmem:[#allocation3 + $0x128] sm:$0xff]
      %v5903 = vld [vmem:[#allocation3 + $0x130] sm:$0xff]
      %v5904 = vld [vmem:[#allocation3 + $0x138] sm:$0xff]
      %v5905 = vld [vmem:[#allocation3 + $0x140] sm:$0xff]
      %v5906 = vlaneseq
      %v5907 = vshrl.u32 %v5906, 7
      %v5908 = vsub.s32 2, %v5907
      %v5909 = vrot.slane %v4974, %v5908
      %v5910 = vmul.f32 %v5866, %v5909
      %v5911 = vmul.f32 %v5867, %v5909
      %v5912 = vmul.f32 %v5868, %v5909
      %v5913 = vmul.f32 %v5869, %v5909
      %v5914 = vmul.f32 %v5870, %v5909
      %v5915 = vmul.f32 %v5871, %v5909
      %v5916 = vmul.f32 %v5872, %v5909
      %v5917 = vmul.f32 %v5873, %v5909
      %v5918 = vmul.f32 %v5874, %v5909
      %v5919 = vmul.f32 %v5875, %v5909
      %v5920 = vmul.f32 %v5876, %v5909
      %v5921 = vmul.f32 %v5877, %v5909
      %v5922 = vmul.f32 %v5878, %v5909
      %v5923 = vmul.f32 %v5879, %v5909
      %v5924 = vmul.f32 %v5880, %v5909
      %v5925 = vmul.f32 %v5881, %v5909
      %v5926 = vmul.f32 %v5882, %v5909
      %v5927 = vmul.f32 %v5883, %v5909
      %v5928 = vmul.f32 %v5884, %v5909
      %v5929 = vmul.f32 %v5885, %v5909
      %v5930 = vmul.f32 %v5886, %v5909
      %v5931 = vmul.f32 %v5887, %v5909
      %v5932 = vmul.f32 %v5888, %v5909
      %v5933 = vmul.f32 %v5889, %v5909
      %v5934 = vmul.f32 %v5890, %v5909
      %v5935 = vmul.f32 %v5891, %v5909
      %v5936 = vmul.f32 %v5892, %v5909
      %v5937 = vmul.f32 %v5893, %v5909
      %v5938 = vmul.f32 %v5894, %v5909
      %v5939 = vmul.f32 %v5895, %v5909
      %v5940 = vmul.f32 %v5896, %v5909
      %v5941 = vmul.f32 %v5897, %v5909
      %v5942 = vadd.f32 %v5910, 0.0
      %v5943 = vadd.f32 %v5911, 0.0
      %v5944 = vadd.f32 %v5912, 0.0
      %v5945 = vadd.f32 %v5913, 0.0
      %v5946 = vadd.f32 %v5914, 0.0
      %v5947 = vadd.f32 %v5915, 0.0
      %v5948 = vadd.f32 %v5916, 0.0
      %v5949 = vadd.f32 %v5917, 0.0
      %v5950 = vadd.f32 %v5918, 0.0
      %v5951 = vadd.f32 %v5919, 0.0
      %v5952 = vadd.f32 %v5920, 0.0
      %v5953 = vadd.f32 %v5921, 0.0
      %v5954 = vadd.f32 %v5922, 0.0
      %v5955 = vadd.f32 %v5923, 0.0
      %v5956 = vadd.f32 %v5924, 0.0
      %v5957 = vadd.f32 %v5925, 0.0
      %v5958 = vadd.f32 %v5926, 0.0
      %v5959 = vadd.f32 %v5927, 0.0
      %v5960 = vadd.f32 %v5928, 0.0
      %v5961 = vadd.f32 %v5929, 0.0
      %v5962 = vadd.f32 %v5930, 0.0
      %v5963 = vadd.f32 %v5931, 0.0
      %v5964 = vadd.f32 %v5932, 0.0
      %v5965 = vadd.f32 %v5933, 0.0
      %v5966 = vadd.f32 %v5934, 0.0
      %v5967 = vadd.f32 %v5935, 0.0
      %v5968 = vadd.f32 %v5936, 0.0
      %v5969 = vadd.f32 %v5937, 0.0
      %v5970 = vadd.f32 %v5938, 0.0
      %v5971 = vadd.f32 %v5939, 0.0
      %v5972 = vadd.f32 %v5940, 0.0
      %v5973 = vadd.f32 %v5941, 0.0
      %v5974 = vlaneseq
      %v5975 = vshrl.u32 %v5974, 7
      %v5976 = vsub.s32 7, %v5975
      %v5977 = vrot.slane %v4974, %v5976
      %v5978 = vmul.f32 %v5868, %v5977
      %v5979 = vmul.f32 %v5869, %v5977
      %v5980 = vmul.f32 %v5870, %v5977
      %v5981 = vmul.f32 %v5871, %v5977
      %v5982 = vmul.f32 %v5872, %v5977
      %v5983 = vmul.f32 %v5873, %v5977
      %v5984 = vmul.f32 %v5874, %v5977
      %v5985 = vmul.f32 %v5875, %v5977
      %v5986 = vmul.f32 %v5876, %v5977
      %v5987 = vmul.f32 %v5877, %v5977
      %v5988 = vmul.f32 %v5878, %v5977
      %v5989 = vmul.f32 %v5879, %v5977
      %v5990 = vmul.f32 %v5880, %v5977
      %v5991 = vmul.f32 %v5881, %v5977
      %v5992 = vmul.f32 %v5882, %v5977
      %v5993 = vmul.f32 %v5883, %v5977
      %v5994 = vmul.f32 %v5884, %v5977
      %v5995 = vmul.f32 %v5885, %v5977
      %v5996 = vmul.f32 %v5886, %v5977
      %v5997 = vmul.f32 %v5887, %v5977
      %v5998 = vmul.f32 %v5888, %v5977
      %v5999 = vmul.f32 %v5889, %v5977
      %v6000 = vmul.f32 %v5890, %v5977
      %v6001 = vmul.f32 %v5891, %v5977
      %v6002 = vmul.f32 %v5892, %v5977
      %v6003 = vmul.f32 %v5893, %v5977
      %v6004 = vmul.f32 %v5894, %v5977
      %v6005 = vmul.f32 %v5895, %v5977
      %v6006 = vmul.f32 %v5896, %v5977
      %v6007 = vmul.f32 %v5897, %v5977
      %v6008 = vmul.f32 %v5898, %v5977
      %v6009 = vmul.f32 %v5899, %v5977
      %v6010 = vadd.f32 %v5942, %v5978
      %v6011 = vadd.f32 %v5943, %v5979
      %v6012 = vadd.f32 %v5944, %v5980
      %v6013 = vadd.f32 %v5945, %v5981
      %v6014 = vadd.f32 %v5946, %v5982
      %v6015 = vadd.f32 %v5947, %v5983
      %v6016 = vadd.f32 %v5948, %v5984
      %v6017 = vadd.f32 %v5949, %v5985
      %v6018 = vadd.f32 %v5950, %v5986
      %v6019 = vadd.f32 %v5951, %v5987
      %v6020 = vadd.f32 %v5952, %v5988
      %v6021 = vadd.f32 %v5953, %v5989
      %v6022 = vadd.f32 %v5954, %v5990
      %v6023 = vadd.f32 %v5955, %v5991
      %v6024 = vadd.f32 %v5956, %v5992
      %v6025 = vadd.f32 %v5957, %v5993
      %v6026 = vadd.f32 %v5958, %v5994
      %v6027 = vadd.f32 %v5959, %v5995
      %v6028 = vadd.f32 %v5960, %v5996
      %v6029 = vadd.f32 %v5961, %v5997
      %v6030 = vadd.f32 %v5962, %v5998
      %v6031 = vadd.f32 %v5963, %v5999
      %v6032 = vadd.f32 %v5964, %v6000
      %v6033 = vadd.f32 %v5965, %v6001
      %v6034 = vadd.f32 %v5966, %v6002
      %v6035 = vadd.f32 %v5967, %v6003
      %v6036 = vadd.f32 %v5968, %v6004
      %v6037 = vadd.f32 %v5969, %v6005
      %v6038 = vadd.f32 %v5970, %v6006
      %v6039 = vadd.f32 %v5971, %v6007
      %v6040 = vadd.f32 %v5972, %v6008
      %v6041 = vadd.f32 %v5973, %v6009
      %v6042 = vlaneseq
      %v6043 = vshrl.u32 %v6042, 7
      %v6044 = vsub.s32 4, %v6043
      %v6045 = vrot.slane %v4975, %v6044
      %v6046 = vmul.f32 %v5870, %v6045
      %v6047 = vmul.f32 %v5871, %v6045
      %v6048 = vmul.f32 %v5872, %v6045
      %v6049 = vmul.f32 %v5873, %v6045
      %v6050 = vmul.f32 %v5874, %v6045
      %v6051 = vmul.f32 %v5875, %v6045
      %v6052 = vmul.f32 %v5876, %v6045
      %v6053 = vmul.f32 %v5877, %v6045
      %v6054 = vmul.f32 %v5878, %v6045
      %v6055 = vmul.f32 %v5879, %v6045
      %v6056 = vmul.f32 %v5880, %v6045
      %v6057 = vmul.f32 %v5881, %v6045
      %v6058 = vmul.f32 %v5882, %v6045
      %v6059 = vmul.f32 %v5883, %v6045
      %v6060 = vmul.f32 %v5884, %v6045
      %v6061 = vmul.f32 %v5885, %v6045
      %v6062 = vmul.f32 %v5886, %v6045
      %v6063 = vmul.f32 %v5887, %v6045
      %v6064 = vmul.f32 %v5888, %v6045
      %v6065 = vmul.f32 %v5889, %v6045
      %v6066 = vmul.f32 %v5890, %v6045
      %v6067 = vmul.f32 %v5891, %v6045
      %v6068 = vmul.f32 %v5892, %v6045
      %v6069 = vmul.f32 %v5893, %v6045
      %v6070 = vmul.f32 %v5894, %v6045
      %v6071 = vmul.f32 %v5895, %v6045
      %v6072 = vmul.f32 %v5896, %v6045
      %v6073 = vmul.f32 %v5897, %v6045
      %v6074 = vmul.f32 %v5898, %v6045
      %v6075 = vmul.f32 %v5899, %v6045
      %v6076 = vmul.f32 %v5900, %v6045
      %v6077 = vmul.f32 %v5901, %v6045
      %v6078 = vadd.f32 %v6010, %v6046
      %v6079 = vadd.f32 %v6011, %v6047
      %v6080 = vadd.f32 %v6012, %v6048
      %v6081 = vadd.f32 %v6013, %v6049
      %v6082 = vadd.f32 %v6014, %v6050
      %v6083 = vadd.f32 %v6015, %v6051
      %v6084 = vadd.f32 %v6016, %v6052
      %v6085 = vadd.f32 %v6017, %v6053
      %v6086 = vadd.f32 %v6018, %v6054
      %v6087 = vadd.f32 %v6019, %v6055
      %v6088 = vadd.f32 %v6020, %v6056
      %v6089 = vadd.f32 %v6021, %v6057
      %v6090 = vadd.f32 %v6022, %v6058
      %v6091 = vadd.f32 %v6023, %v6059
      %v6092 = vadd.f32 %v6024, %v6060
      %v6093 = vadd.f32 %v6025, %v6061
      %v6094 = vadd.f32 %v6026, %v6062
      %v6095 = vadd.f32 %v6027, %v6063
      %v6096 = vadd.f32 %v6028, %v6064
      %v6097 = vadd.f32 %v6029, %v6065
      %v6098 = vadd.f32 %v6030, %v6066
      %v6099 = vadd.f32 %v6031, %v6067
      %v6100 = vadd.f32 %v6032, %v6068
      %v6101 = vadd.f32 %v6033, %v6069
      %v6102 = vadd.f32 %v6034, %v6070
      %v6103 = vadd.f32 %v6035, %v6071
      %v6104 = vadd.f32 %v6036, %v6072
      %v6105 = vadd.f32 %v6037, %v6073
      %v6106 = vadd.f32 %v6038, %v6074
      %v6107 = vadd.f32 %v6039, %v6075
      %v6108 = vadd.f32 %v6040, %v6076
      %v6109 = vadd.f32 %v6041, %v6077
      %v6110 = vlaneseq
      %v6111 = vshrl.u32 %v6110, 7
      %v6112 = vsub.s32 1, %v6111
      %v6113 = vrot.slane %v4976, %v6112
      %v6114 = vmul.f32 %v5872, %v6113
      %v6115 = vmul.f32 %v5873, %v6113
      %v6116 = vmul.f32 %v5874, %v6113
      %v6117 = vmul.f32 %v5875, %v6113
      %v6118 = vmul.f32 %v5876, %v6113
      %v6119 = vmul.f32 %v5877, %v6113
      %v6120 = vmul.f32 %v5878, %v6113
      %v6121 = vmul.f32 %v5879, %v6113
      %v6122 = vmul.f32 %v5880, %v6113
      %v6123 = vmul.f32 %v5881, %v6113
      %v6124 = vmul.f32 %v5882, %v6113
      %v6125 = vmul.f32 %v5883, %v6113
      %v6126 = vmul.f32 %v5884, %v6113
      %v6127 = vmul.f32 %v5885, %v6113
      %v6128 = vmul.f32 %v5886, %v6113
      %v6129 = vmul.f32 %v5887, %v6113
      %v6130 = vmul.f32 %v5888, %v6113
      %v6131 = vmul.f32 %v5889, %v6113
      %v6132 = vmul.f32 %v5890, %v6113
      %v6133 = vmul.f32 %v5891, %v6113
      %v6134 = vmul.f32 %v5892, %v6113
      %v6135 = vmul.f32 %v5893, %v6113
      %v6136 = vmul.f32 %v5894, %v6113
      %v6137 = vmul.f32 %v5895, %v6113
      %v6138 = vmul.f32 %v5896, %v6113
      %v6139 = vmul.f32 %v5897, %v6113
      %v6140 = vmul.f32 %v5898, %v6113
      %v6141 = vmul.f32 %v5899, %v6113
      %v6142 = vmul.f32 %v5900, %v6113
      %v6143 = vmul.f32 %v5901, %v6113
      %v6144 = vmul.f32 %v5902, %v6113
      %v6145 = vmul.f32 %v5903, %v6113
      %v6146 = vadd.f32 %v6078, %v6114
      %v6147 = vadd.f32 %v6079, %v6115
      %v6148 = vadd.f32 %v6080, %v6116
      %v6149 = vadd.f32 %v6081, %v6117
      %v6150 = vadd.f32 %v6082, %v6118
      %v6151 = vadd.f32 %v6083, %v6119
      %v6152 = vadd.f32 %v6084, %v6120
      %v6153 = vadd.f32 %v6085, %v6121
      %v6154 = vadd.f32 %v6086, %v6122
      %v6155 = vadd.f32 %v6087, %v6123
      %v6156 = vadd.f32 %v6088, %v6124
      %v6157 = vadd.f32 %v6089, %v6125
      %v6158 = vadd.f32 %v6090, %v6126
      %v6159 = vadd.f32 %v6091, %v6127
      %v6160 = vadd.f32 %v6092, %v6128
      %v6161 = vadd.f32 %v6093, %v6129
      %v6162 = vadd.f32 %v6094, %v6130
      %v6163 = vadd.f32 %v6095, %v6131
      %v6164 = vadd.f32 %v6096, %v6132
      %v6165 = vadd.f32 %v6097, %v6133
      %v6166 = vadd.f32 %v6098, %v6134
      %v6167 = vadd.f32 %v6099, %v6135
      %v6168 = vadd.f32 %v6100, %v6136
      %v6169 = vadd.f32 %v6101, %v6137
      %v6170 = vadd.f32 %v6102, %v6138
      %v6171 = vadd.f32 %v6103, %v6139
      %v6172 = vadd.f32 %v6104, %v6140
      %v6173 = vadd.f32 %v6105, %v6141
      %v6174 = vadd.f32 %v6106, %v6142
      %v6175 = vadd.f32 %v6107, %v6143
      %v6176 = vadd.f32 %v6108, %v6144
      %v6177 = vadd.f32 %v6109, %v6145
      %v6178 = vlaneseq
      %v6179 = vshrl.u32 %v6178, 7
      %v6180 = vsub.s32 6, %v6179
      %v6181 = vrot.slane %v4976, %v6180
      %v6182 = vmul.f32 %v5874, %v6181
      %v6183 = vmul.f32 %v5875, %v6181
      %v6184 = vmul.f32 %v5876, %v6181
      %v6185 = vmul.f32 %v5877, %v6181
      %v6186 = vmul.f32 %v5878, %v6181
      %v6187 = vmul.f32 %v5879, %v6181
      %v6188 = vmul.f32 %v5880, %v6181
      %v6189 = vmul.f32 %v5881, %v6181
      %v6190 = vmul.f32 %v5882, %v6181
      %v6191 = vmul.f32 %v5883, %v6181
      %v6192 = vmul.f32 %v5884, %v6181
      %v6193 = vmul.f32 %v5885, %v6181
      %v6194 = vmul.f32 %v5886, %v6181
      %v6195 = vmul.f32 %v5887, %v6181
      %v6196 = vmul.f32 %v5888, %v6181
      %v6197 = vmul.f32 %v5889, %v6181
      %v6198 = vmul.f32 %v5890, %v6181
      %v6199 = vmul.f32 %v5891, %v6181
      %v6200 = vmul.f32 %v5892, %v6181
      %v6201 = vmul.f32 %v5893, %v6181
      %v6202 = vmul.f32 %v5894, %v6181
      %v6203 = vmul.f32 %v5895, %v6181
      %v6204 = vmul.f32 %v5896, %v6181
      %v6205 = vmul.f32 %v5897, %v6181
      %v6206 = vmul.f32 %v5898, %v6181
      %v6207 = vmul.f32 %v5899, %v6181
      %v6208 = vmul.f32 %v5900, %v6181
      %v6209 = vmul.f32 %v5901, %v6181
      %v6210 = vmul.f32 %v5902, %v6181
      %v6211 = vmul.f32 %v5903, %v6181
      %v6212 = vmul.f32 %v5904, %v6181
      %v6213 = vmul.f32 %v5905, %v6181
      %v6214 = vadd.f32 %v6146, %v6182
      %v6215 = vadd.f32 %v6147, %v6183
      %v6216 = vadd.f32 %v6148, %v6184
      %v6217 = vadd.f32 %v6149, %v6185
      %v6218 = vadd.f32 %v6150, %v6186
      %v6219 = vadd.f32 %v6151, %v6187
      %v6220 = vadd.f32 %v6152, %v6188
      %v6221 = vadd.f32 %v6153, %v6189
      %v6222 = vadd.f32 %v6154, %v6190
      %v6223 = vadd.f32 %v6155, %v6191
      %v6224 = vadd.f32 %v6156, %v6192
      %v6225 = vadd.f32 %v6157, %v6193
      %v6226 = vadd.f32 %v6158, %v6194
      %v6227 = vadd.f32 %v6159, %v6195
      %v6228 = vadd.f32 %v6160, %v6196
      %v6229 = vadd.f32 %v6161, %v6197
      %v6230 = vadd.f32 %v6162, %v6198
      %v6231 = vadd.f32 %v6163, %v6199
      %v6232 = vadd.f32 %v6164, %v6200
      %v6233 = vadd.f32 %v6165, %v6201
      %v6234 = vadd.f32 %v6166, %v6202
      %v6235 = vadd.f32 %v6167, %v6203
      %v6236 = vadd.f32 %v6168, %v6204
      %v6237 = vadd.f32 %v6169, %v6205
      %v6238 = vadd.f32 %v6170, %v6206
      %v6239 = vadd.f32 %v6171, %v6207
      %v6240 = vadd.f32 %v6172, %v6208
      %v6241 = vadd.f32 %v6173, %v6209
      %v6242 = vadd.f32 %v6174, %v6210
      %v6243 = vadd.f32 %v6175, %v6211
      %v6244 = vadd.f32 %v6176, %v6212
      %v6245 = vadd.f32 %v6177, %v6213
      %v6246 = vadd.f32 %v5834, %v6214
      %v6247 = vadd.f32 %v5835, %v6215
      %v6248 = vadd.f32 %v5836, %v6216
      %v6249 = vadd.f32 %v5837, %v6217
      %v6250 = vadd.f32 %v5838, %v6218
      %v6251 = vadd.f32 %v5839, %v6219
      %v6252 = vadd.f32 %v5840, %v6220
      %v6253 = vadd.f32 %v5841, %v6221
      %v6254 = vadd.f32 %v5842, %v6222
      %v6255 = vadd.f32 %v5843, %v6223
      %v6256 = vadd.f32 %v5844, %v6224
      %v6257 = vadd.f32 %v5845, %v6225
      %v6258 = vadd.f32 %v5846, %v6226
      %v6259 = vadd.f32 %v5847, %v6227
      %v6260 = vadd.f32 %v5848, %v6228
      %v6261 = vadd.f32 %v5849, %v6229
      %v6262 = vadd.f32 %v5850, %v6230
      %v6263 = vadd.f32 %v5851, %v6231
      %v6264 = vadd.f32 %v5852, %v6232
      %v6265 = vadd.f32 %v5853, %v6233
      %v6266 = vadd.f32 %v5854, %v6234
      %v6267 = vadd.f32 %v5855, %v6235
      %v6268 = vadd.f32 %v5856, %v6236
      %v6269 = vadd.f32 %v5857, %v6237
      %v6270 = vadd.f32 %v5858, %v6238
      %v6271 = vadd.f32 %v5859, %v6239
      %v6272 = vadd.f32 %v5860, %v6240
      %v6273 = vadd.f32 %v5861, %v6241
      %v6274 = vadd.f32 %v5862, %v6242
      %v6275 = vadd.f32 %v5863, %v6243
      %v6276 = vadd.f32 %v5864, %v6244
      %v6277 = vadd.f32 %v5865, %v6245
      %v6278 = vld [vmem:[#allocation3 + $0x9] sm:$0xff]
      %v6279 = vld [vmem:[#allocation3 + $0x11] sm:$0xff]
      %v6280 = vld [vmem:[#allocation3 + $0x19] sm:$0xff]
      %v6281 = vld [vmem:[#allocation3 + $0x21] sm:$0xff]
      %v6282 = vld [vmem:[#allocation3 + $0x29] sm:$0xff]
      %v6283 = vld [vmem:[#allocation3 + $0x31] sm:$0xff]
      %v6284 = vld [vmem:[#allocation3 + $0x39] sm:$0xff]
      %v6285 = vld [vmem:[#allocation3 + $0x41] sm:$0xff]
      %v6286 = vld [vmem:[#allocation3 + $0x49] sm:$0xff]
      %v6287 = vld [vmem:[#allocation3 + $0x51] sm:$0xff]
      %v6288 = vld [vmem:[#allocation3 + $0x59] sm:$0xff]
      %v6289 = vld [vmem:[#allocation3 + $0x61] sm:$0xff]
      %v6290 = vld [vmem:[#allocation3 + $0x69] sm:$0xff]
      %v6291 = vld [vmem:[#allocation3 + $0x71] sm:$0xff]
      %v6292 = vld [vmem:[#allocation3 + $0x79] sm:$0xff]
      %v6293 = vld [vmem:[#allocation3 + $0x81] sm:$0xff]
      %v6294 = vld [vmem:[#allocation3 + $0x89] sm:$0xff]
      %v6295 = vld [vmem:[#allocation3 + $0x91] sm:$0xff]
      %v6296 = vld [vmem:[#allocation3 + $0x99] sm:$0xff]
      %v6297 = vld [vmem:[#allocation3 + $0xa1] sm:$0xff]
      %v6298 = vld [vmem:[#allocation3 + $0xa9] sm:$0xff]
      %v6299 = vld [vmem:[#allocation3 + $0xb1] sm:$0xff]
      %v6300 = vld [vmem:[#allocation3 + $0xb9] sm:$0xff]
      %v6301 = vld [vmem:[#allocation3 + $0xc1] sm:$0xff]
      %v6302 = vld [vmem:[#allocation3 + $0xc9] sm:$0xff]
      %v6303 = vld [vmem:[#allocation3 + $0xd1] sm:$0xff]
      %v6304 = vld [vmem:[#allocation3 + $0xd9] sm:$0xff]
      %v6305 = vld [vmem:[#allocation3 + $0xe1] sm:$0xff]
      %v6306 = vld [vmem:[#allocation3 + $0xe9] sm:$0xff]
      %v6307 = vld [vmem:[#allocation3 + $0xf1] sm:$0xff]
      %v6308 = vld [vmem:[#allocation3 + $0xf9] sm:$0xff]
      %v6309 = vld [vmem:[#allocation3 + $0x101] sm:$0xff]
      %v6310 = vld [vmem:[#allocation3 + $0x109] sm:$0xff]
      %v6311 = vld [vmem:[#allocation3 + $0x111] sm:$0xff]
      %v6312 = vld [vmem:[#allocation3 + $0x119] sm:$0xff]
      %v6313 = vld [vmem:[#allocation3 + $0x121] sm:$0xff]
      %v6314 = vld [vmem:[#allocation3 + $0x129] sm:$0xff]
      %v6315 = vld [vmem:[#allocation3 + $0x131] sm:$0xff]
      %v6316 = vld [vmem:[#allocation3 + $0x139] sm:$0xff]
      %v6317 = vld [vmem:[#allocation3 + $0x141] sm:$0xff]
      %v6318 = vlaneseq
      %v6319 = vshrl.u32 %v6318, 7
      %v6320 = vsub.s32 3, %v6319
      %v6321 = vrot.slane %v4974, %v6320
      %v6322 = vmul.f32 %v6278, %v6321
      %v6323 = vmul.f32 %v6279, %v6321
      %v6324 = vmul.f32 %v6280, %v6321
      %v6325 = vmul.f32 %v6281, %v6321
      %v6326 = vmul.f32 %v6282, %v6321
      %v6327 = vmul.f32 %v6283, %v6321
      %v6328 = vmul.f32 %v6284, %v6321
      %v6329 = vmul.f32 %v6285, %v6321
      %v6330 = vmul.f32 %v6286, %v6321
      %v6331 = vmul.f32 %v6287, %v6321
      %v6332 = vmul.f32 %v6288, %v6321
      %v6333 = vmul.f32 %v6289, %v6321
      %v6334 = vmul.f32 %v6290, %v6321
      %v6335 = vmul.f32 %v6291, %v6321
      %v6336 = vmul.f32 %v6292, %v6321
      %v6337 = vmul.f32 %v6293, %v6321
      %v6338 = vmul.f32 %v6294, %v6321
      %v6339 = vmul.f32 %v6295, %v6321
      %v6340 = vmul.f32 %v6296, %v6321
      %v6341 = vmul.f32 %v6297, %v6321
      %v6342 = vmul.f32 %v6298, %v6321
      %v6343 = vmul.f32 %v6299, %v6321
      %v6344 = vmul.f32 %v6300, %v6321
      %v6345 = vmul.f32 %v6301, %v6321
      %v6346 = vmul.f32 %v6302, %v6321
      %v6347 = vmul.f32 %v6303, %v6321
      %v6348 = vmul.f32 %v6304, %v6321
      %v6349 = vmul.f32 %v6305, %v6321
      %v6350 = vmul.f32 %v6306, %v6321
      %v6351 = vmul.f32 %v6307, %v6321
      %v6352 = vmul.f32 %v6308, %v6321
      %v6353 = vmul.f32 %v6309, %v6321
      %v6354 = vadd.f32 %v6322, 0.0
      %v6355 = vadd.f32 %v6323, 0.0
      %v6356 = vadd.f32 %v6324, 0.0
      %v6357 = vadd.f32 %v6325, 0.0
      %v6358 = vadd.f32 %v6326, 0.0
      %v6359 = vadd.f32 %v6327, 0.0
      %v6360 = vadd.f32 %v6328, 0.0
      %v6361 = vadd.f32 %v6329, 0.0
      %v6362 = vadd.f32 %v6330, 0.0
      %v6363 = vadd.f32 %v6331, 0.0
      %v6364 = vadd.f32 %v6332, 0.0
      %v6365 = vadd.f32 %v6333, 0.0
      %v6366 = vadd.f32 %v6334, 0.0
      %v6367 = vadd.f32 %v6335, 0.0
      %v6368 = vadd.f32 %v6336, 0.0
      %v6369 = vadd.f32 %v6337, 0.0
      %v6370 = vadd.f32 %v6338, 0.0
      %v6371 = vadd.f32 %v6339, 0.0
      %v6372 = vadd.f32 %v6340, 0.0
      %v6373 = vadd.f32 %v6341, 0.0
      %v6374 = vadd.f32 %v6342, 0.0
      %v6375 = vadd.f32 %v6343, 0.0
      %v6376 = vadd.f32 %v6344, 0.0
      %v6377 = vadd.f32 %v6345, 0.0
      %v6378 = vadd.f32 %v6346, 0.0
      %v6379 = vadd.f32 %v6347, 0.0
      %v6380 = vadd.f32 %v6348, 0.0
      %v6381 = vadd.f32 %v6349, 0.0
      %v6382 = vadd.f32 %v6350, 0.0
      %v6383 = vadd.f32 %v6351, 0.0
      %v6384 = vadd.f32 %v6352, 0.0
      %v6385 = vadd.f32 %v6353, 0.0
      %v6386 = vlaneseq
      %v6387 = vshrl.u32 %v6386, 7
      %v6388 = vsub.s32 0, %v6387
      %v6389 = vrot.slane %v4975, %v6388
      %v6390 = vmul.f32 %v6280, %v6389
      %v6391 = vmul.f32 %v6281, %v6389
      %v6392 = vmul.f32 %v6282, %v6389
      %v6393 = vmul.f32 %v6283, %v6389
      %v6394 = vmul.f32 %v6284, %v6389
      %v6395 = vmul.f32 %v6285, %v6389
      %v6396 = vmul.f32 %v6286, %v6389
      %v6397 = vmul.f32 %v6287, %v6389
      %v6398 = vmul.f32 %v6288, %v6389
      %v6399 = vmul.f32 %v6289, %v6389
      %v6400 = vmul.f32 %v6290, %v6389
      %v6401 = vmul.f32 %v6291, %v6389
      %v6402 = vmul.f32 %v6292, %v6389
      %v6403 = vmul.f32 %v6293, %v6389
      %v6404 = vmul.f32 %v6294, %v6389
      %v6405 = vmul.f32 %v6295, %v6389
      %v6406 = vmul.f32 %v6296, %v6389
      %v6407 = vmul.f32 %v6297, %v6389
      %v6408 = vmul.f32 %v6298, %v6389
      %v6409 = vmul.f32 %v6299, %v6389
      %v6410 = vmul.f32 %v6300, %v6389
      %v6411 = vmul.f32 %v6301, %v6389
      %v6412 = vmul.f32 %v6302, %v6389
      %v6413 = vmul.f32 %v6303, %v6389
      %v6414 = vmul.f32 %v6304, %v6389
      %v6415 = vmul.f32 %v6305, %v6389
      %v6416 = vmul.f32 %v6306, %v6389
      %v6417 = vmul.f32 %v6307, %v6389
      %v6418 = vmul.f32 %v6308, %v6389
      %v6419 = vmul.f32 %v6309, %v6389
      %v6420 = vmul.f32 %v6310, %v6389
      %v6421 = vmul.f32 %v6311, %v6389
      %v6422 = vadd.f32 %v6354, %v6390
      %v6423 = vadd.f32 %v6355, %v6391
      %v6424 = vadd.f32 %v6356, %v6392
      %v6425 = vadd.f32 %v6357, %v6393
      %v6426 = vadd.f32 %v6358, %v6394
      %v6427 = vadd.f32 %v6359, %v6395
      %v6428 = vadd.f32 %v6360, %v6396
      %v6429 = vadd.f32 %v6361, %v6397
      %v6430 = vadd.f32 %v6362, %v6398
      %v6431 = vadd.f32 %v6363, %v6399
      %v6432 = vadd.f32 %v6364, %v6400
      %v6433 = vadd.f32 %v6365, %v6401
      %v6434 = vadd.f32 %v6366, %v6402
      %v6435 = vadd.f32 %v6367, %v6403
      %v6436 = vadd.f32 %v6368, %v6404
      %v6437 = vadd.f32 %v6369, %v6405
      %v6438 = vadd.f32 %v6370, %v6406
      %v6439 = vadd.f32 %v6371, %v6407
      %v6440 = vadd.f32 %v6372, %v6408
      %v6441 = vadd.f32 %v6373, %v6409
      %v6442 = vadd.f32 %v6374, %v6410
      %v6443 = vadd.f32 %v6375, %v6411
      %v6444 = vadd.f32 %v6376, %v6412
      %v6445 = vadd.f32 %v6377, %v6413
      %v6446 = vadd.f32 %v6378, %v6414
      %v6447 = vadd.f32 %v6379, %v6415
      %v6448 = vadd.f32 %v6380, %v6416
      %v6449 = vadd.f32 %v6381, %v6417
      %v6450 = vadd.f32 %v6382, %v6418
      %v6451 = vadd.f32 %v6383, %v6419
      %v6452 = vadd.f32 %v6384, %v6420
      %v6453 = vadd.f32 %v6385, %v6421
      %v6454 = vlaneseq
      %v6455 = vshrl.u32 %v6454, 7
      %v6456 = vsub.s32 5, %v6455
      %v6457 = vrot.slane %v4975, %v6456
      %v6458 = vmul.f32 %v6282, %v6457
      %v6459 = vmul.f32 %v6283, %v6457
      %v6460 = vmul.f32 %v6284, %v6457
      %v6461 = vmul.f32 %v6285, %v6457
      %v6462 = vmul.f32 %v6286, %v6457
      %v6463 = vmul.f32 %v6287, %v6457
      %v6464 = vmul.f32 %v6288, %v6457
      %v6465 = vmul.f32 %v6289, %v6457
      %v6466 = vmul.f32 %v6290, %v6457
      %v6467 = vmul.f32 %v6291, %v6457
      %v6468 = vmul.f32 %v6292, %v6457
      %v6469 = vmul.f32 %v6293, %v6457
      %v6470 = vmul.f32 %v6294, %v6457
      %v6471 = vmul.f32 %v6295, %v6457
      %v6472 = vmul.f32 %v6296, %v6457
      %v6473 = vmul.f32 %v6297, %v6457
      %v6474 = vmul.f32 %v6298, %v6457
      %v6475 = vmul.f32 %v6299, %v6457
      %v6476 = vmul.f32 %v6300, %v6457
      %v6477 = vmul.f32 %v6301, %v6457
      %v6478 = vmul.f32 %v6302, %v6457
      %v6479 = vmul.f32 %v6303, %v6457
      %v6480 = vmul.f32 %v6304, %v6457
      %v6481 = vmul.f32 %v6305, %v6457
      %v6482 = vmul.f32 %v6306, %v6457
      %v6483 = vmul.f32 %v6307, %v6457
      %v6484 = vmul.f32 %v6308, %v6457
      %v6485 = vmul.f32 %v6309, %v6457
      %v6486 = vmul.f32 %v6310, %v6457
      %v6487 = vmul.f32 %v6311, %v6457
      %v6488 = vmul.f32 %v6312, %v6457
      %v6489 = vmul.f32 %v6313, %v6457
      %v6490 = vadd.f32 %v6422, %v6458
      %v6491 = vadd.f32 %v6423, %v6459
      %v6492 = vadd.f32 %v6424, %v6460
      %v6493 = vadd.f32 %v6425, %v6461
      %v6494 = vadd.f32 %v6426, %v6462
      %v6495 = vadd.f32 %v6427, %v6463
      %v6496 = vadd.f32 %v6428, %v6464
      %v6497 = vadd.f32 %v6429, %v6465
      %v6498 = vadd.f32 %v6430, %v6466
      %v6499 = vadd.f32 %v6431, %v6467
      %v6500 = vadd.f32 %v6432, %v6468
      %v6501 = vadd.f32 %v6433, %v6469
      %v6502 = vadd.f32 %v6434, %v6470
      %v6503 = vadd.f32 %v6435, %v6471
      %v6504 = vadd.f32 %v6436, %v6472
      %v6505 = vadd.f32 %v6437, %v6473
      %v6506 = vadd.f32 %v6438, %v6474
      %v6507 = vadd.f32 %v6439, %v6475
      %v6508 = vadd.f32 %v6440, %v6476
      %v6509 = vadd.f32 %v6441, %v6477
      %v6510 = vadd.f32 %v6442, %v6478
      %v6511 = vadd.f32 %v6443, %v6479
      %v6512 = vadd.f32 %v6444, %v6480
      %v6513 = vadd.f32 %v6445, %v6481
      %v6514 = vadd.f32 %v6446, %v6482
      %v6515 = vadd.f32 %v6447, %v6483
      %v6516 = vadd.f32 %v6448, %v6484
      %v6517 = vadd.f32 %v6449, %v6485
      %v6518 = vadd.f32 %v6450, %v6486
      %v6519 = vadd.f32 %v6451, %v6487
      %v6520 = vadd.f32 %v6452, %v6488
      %v6521 = vadd.f32 %v6453, %v6489
      %v6522 = vlaneseq
      %v6523 = vshrl.u32 %v6522, 7
      %v6524 = vsub.s32 2, %v6523
      %v6525 = vrot.slane %v4976, %v6524
      %v6526 = vmul.f32 %v6284, %v6525
      %v6527 = vmul.f32 %v6285, %v6525
      %v6528 = vmul.f32 %v6286, %v6525
      %v6529 = vmul.f32 %v6287, %v6525
      %v6530 = vmul.f32 %v6288, %v6525
      %v6531 = vmul.f32 %v6289, %v6525
      %v6532 = vmul.f32 %v6290, %v6525
      %v6533 = vmul.f32 %v6291, %v6525
      %v6534 = vmul.f32 %v6292, %v6525
      %v6535 = vmul.f32 %v6293, %v6525
      %v6536 = vmul.f32 %v6294, %v6525
      %v6537 = vmul.f32 %v6295, %v6525
      %v6538 = vmul.f32 %v6296, %v6525
      %v6539 = vmul.f32 %v6297, %v6525
      %v6540 = vmul.f32 %v6298, %v6525
      %v6541 = vmul.f32 %v6299, %v6525
      %v6542 = vmul.f32 %v6300, %v6525
      %v6543 = vmul.f32 %v6301, %v6525
      %v6544 = vmul.f32 %v6302, %v6525
      %v6545 = vmul.f32 %v6303, %v6525
      %v6546 = vmul.f32 %v6304, %v6525
      %v6547 = vmul.f32 %v6305, %v6525
      %v6548 = vmul.f32 %v6306, %v6525
      %v6549 = vmul.f32 %v6307, %v6525
      %v6550 = vmul.f32 %v6308, %v6525
      %v6551 = vmul.f32 %v6309, %v6525
      %v6552 = vmul.f32 %v6310, %v6525
      %v6553 = vmul.f32 %v6311, %v6525
      %v6554 = vmul.f32 %v6312, %v6525
      %v6555 = vmul.f32 %v6313, %v6525
      %v6556 = vmul.f32 %v6314, %v6525
      %v6557 = vmul.f32 %v6315, %v6525
      %v6558 = vadd.f32 %v6490, %v6526
      %v6559 = vadd.f32 %v6491, %v6527
      %v6560 = vadd.f32 %v6492, %v6528
      %v6561 = vadd.f32 %v6493, %v6529
      %v6562 = vadd.f32 %v6494, %v6530
      %v6563 = vadd.f32 %v6495, %v6531
      %v6564 = vadd.f32 %v6496, %v6532
      %v6565 = vadd.f32 %v6497, %v6533
      %v6566 = vadd.f32 %v6498, %v6534
      %v6567 = vadd.f32 %v6499, %v6535
      %v6568 = vadd.f32 %v6500, %v6536
      %v6569 = vadd.f32 %v6501, %v6537
      %v6570 = vadd.f32 %v6502, %v6538
      %v6571 = vadd.f32 %v6503, %v6539
      %v6572 = vadd.f32 %v6504, %v6540
      %v6573 = vadd.f32 %v6505, %v6541
      %v6574 = vadd.f32 %v6506, %v6542
      %v6575 = vadd.f32 %v6507, %v6543
      %v6576 = vadd.f32 %v6508, %v6544
      %v6577 = vadd.f32 %v6509, %v6545
      %v6578 = vadd.f32 %v6510, %v6546
      %v6579 = vadd.f32 %v6511, %v6547
      %v6580 = vadd.f32 %v6512, %v6548
      %v6581 = vadd.f32 %v6513, %v6549
      %v6582 = vadd.f32 %v6514, %v6550
      %v6583 = vadd.f32 %v6515, %v6551
      %v6584 = vadd.f32 %v6516, %v6552
      %v6585 = vadd.f32 %v6517, %v6553
      %v6586 = vadd.f32 %v6518, %v6554
      %v6587 = vadd.f32 %v6519, %v6555
      %v6588 = vadd.f32 %v6520, %v6556
      %v6589 = vadd.f32 %v6521, %v6557
      %v6590 = vlaneseq
      %v6591 = vshrl.u32 %v6590, 7
      %v6592 = vsub.s32 7, %v6591
      %v6593 = vrot.slane %v4976, %v6592
      %v6594 = vmul.f32 %v6286, %v6593
      %v6595 = vmul.f32 %v6287, %v6593
      %v6596 = vmul.f32 %v6288, %v6593
      %v6597 = vmul.f32 %v6289, %v6593
      %v6598 = vmul.f32 %v6290, %v6593
      %v6599 = vmul.f32 %v6291, %v6593
      %v6600 = vmul.f32 %v6292, %v6593
      %v6601 = vmul.f32 %v6293, %v6593
      %v6602 = vmul.f32 %v6294, %v6593
      %v6603 = vmul.f32 %v6295, %v6593
      %v6604 = vmul.f32 %v6296, %v6593
      %v6605 = vmul.f32 %v6297, %v6593
      %v6606 = vmul.f32 %v6298, %v6593
      %v6607 = vmul.f32 %v6299, %v6593
      %v6608 = vmul.f32 %v6300, %v6593
      %v6609 = vmul.f32 %v6301, %v6593
      %v6610 = vmul.f32 %v6302, %v6593
      %v6611 = vmul.f32 %v6303, %v6593
      %v6612 = vmul.f32 %v6304, %v6593
      %v6613 = vmul.f32 %v6305, %v6593
      %v6614 = vmul.f32 %v6306, %v6593
      %v6615 = vmul.f32 %v6307, %v6593
      %v6616 = vmul.f32 %v6308, %v6593
      %v6617 = vmul.f32 %v6309, %v6593
      %v6618 = vmul.f32 %v6310, %v6593
      %v6619 = vmul.f32 %v6311, %v6593
      %v6620 = vmul.f32 %v6312, %v6593
      %v6621 = vmul.f32 %v6313, %v6593
      %v6622 = vmul.f32 %v6314, %v6593
      %v6623 = vmul.f32 %v6315, %v6593
      %v6624 = vmul.f32 %v6316, %v6593
      %v6625 = vmul.f32 %v6317, %v6593
      %v6626 = vadd.f32 %v6558, %v6594
      %v6627 = vadd.f32 %v6559, %v6595
      %v6628 = vadd.f32 %v6560, %v6596
      %v6629 = vadd.f32 %v6561, %v6597
      %v6630 = vadd.f32 %v6562, %v6598
      %v6631 = vadd.f32 %v6563, %v6599
      %v6632 = vadd.f32 %v6564, %v6600
      %v6633 = vadd.f32 %v6565, %v6601
      %v6634 = vadd.f32 %v6566, %v6602
      %v6635 = vadd.f32 %v6567, %v6603
      %v6636 = vadd.f32 %v6568, %v6604
      %v6637 = vadd.f32 %v6569, %v6605
      %v6638 = vadd.f32 %v6570, %v6606
      %v6639 = vadd.f32 %v6571, %v6607
      %v6640 = vadd.f32 %v6572, %v6608
      %v6641 = vadd.f32 %v6573, %v6609
      %v6642 = vadd.f32 %v6574, %v6610
      %v6643 = vadd.f32 %v6575, %v6611
      %v6644 = vadd.f32 %v6576, %v6612
      %v6645 = vadd.f32 %v6577, %v6613
      %v6646 = vadd.f32 %v6578, %v6614
      %v6647 = vadd.f32 %v6579, %v6615
      %v6648 = vadd.f32 %v6580, %v6616
      %v6649 = vadd.f32 %v6581, %v6617
      %v6650 = vadd.f32 %v6582, %v6618
      %v6651 = vadd.f32 %v6583, %v6619
      %v6652 = vadd.f32 %v6584, %v6620
      %v6653 = vadd.f32 %v6585, %v6621
      %v6654 = vadd.f32 %v6586, %v6622
      %v6655 = vadd.f32 %v6587, %v6623
      %v6656 = vadd.f32 %v6588, %v6624
      %v6657 = vadd.f32 %v6589, %v6625
      %v6658 = vmul.f32 %v6626, %v3170
      %v6659 = vmul.f32 %v6627, %v3174
      %v6660 = vmul.f32 %v6628, %v3178
      %v6661 = vmul.f32 %v6629, %v3182
      %v6662 = vmul.f32 %v6630, %v3186
      %v6663 = vmul.f32 %v6631, %v3190
      %v6664 = vmul.f32 %v6632, %v3194
      %v6665 = vmul.f32 %v6633, %v3198
      %v6666 = vmul.f32 %v6634, %v3202
      %v6667 = vmul.f32 %v6635, %v3206
      %v6668 = vmul.f32 %v6636, %v3210
      %v6669 = vmul.f32 %v6637, %v3214
      %v6670 = vmul.f32 %v6638, %v3218
      %v6671 = vmul.f32 %v6639, %v3222
      %v6672 = vmul.f32 %v6640, %v3226
      %v6673 = vmul.f32 %v6641, %v3230
      %v6674 = vmul.f32 %v6642, %v3234
      %v6675 = vmul.f32 %v6643, %v3238
      %v6676 = vmul.f32 %v6644, %v3242
      %v6677 = vmul.f32 %v6645, %v3246
      %v6678 = vmul.f32 %v6646, %v3250
      %v6679 = vmul.f32 %v6647, %v3254
      %v6680 = vmul.f32 %v6648, %v3258
      %v6681 = vmul.f32 %v6649, %v3262
      %v6682 = vmul.f32 %v6650, %v3266
      %v6683 = vmul.f32 %v6651, %v3270
      %v6684 = vmul.f32 %v6652, %v3274
      %v6685 = vmul.f32 %v6653, %v3278
      %v6686 = vmul.f32 %v6654, %v3282
      %v6687 = vmul.f32 %v6655, %v3286
      %v6688 = vmul.f32 %v6656, %v3290
      %v6689 = vmul.f32 %v6657, %v3294
      %v6690 = vadd.f32 %v6246, %v6658
      %v6691 = vadd.f32 %v6247, %v6659
      %v6692 = vadd.f32 %v6248, %v6660
      %v6693 = vadd.f32 %v6249, %v6661
      %v6694 = vadd.f32 %v6250, %v6662
      %v6695 = vadd.f32 %v6251, %v6663
      %v6696 = vadd.f32 %v6252, %v6664
      %v6697 = vadd.f32 %v6253, %v6665
      %v6698 = vadd.f32 %v6254, %v6666
      %v6699 = vadd.f32 %v6255, %v6667
      %v6700 = vadd.f32 %v6256, %v6668
      %v6701 = vadd.f32 %v6257, %v6669
      %v6702 = vadd.f32 %v6258, %v6670
      %v6703 = vadd.f32 %v6259, %v6671
      %v6704 = vadd.f32 %v6260, %v6672
      %v6705 = vadd.f32 %v6261, %v6673
      %v6706 = vadd.f32 %v6262, %v6674
      %v6707 = vadd.f32 %v6263, %v6675
      %v6708 = vadd.f32 %v6264, %v6676
      %v6709 = vadd.f32 %v6265, %v6677
      %v6710 = vadd.f32 %v6266, %v6678
      %v6711 = vadd.f32 %v6267, %v6679
      %v6712 = vadd.f32 %v6268, %v6680
      %v6713 = vadd.f32 %v6269, %v6681
      %v6714 = vadd.f32 %v6270, %v6682
      %v6715 = vadd.f32 %v6271, %v6683
      %v6716 = vadd.f32 %v6272, %v6684
      %v6717 = vadd.f32 %v6273, %v6685
      %v6718 = vadd.f32 %v6274, %v6686
      %v6719 = vadd.f32 %v6275, %v6687
      %v6720 = vadd.f32 %v6276, %v6688
      %v6721 = vadd.f32 %v6277, %v6689
      %v6722 = vld [vmem:[#allocation3 + $0xa] sm:$0xff]
      %v6723 = vld [vmem:[#allocation3 + $0x12] sm:$0xff]
      %v6724 = vld [vmem:[#allocation3 + $0x1a] sm:$0xff]
      %v6725 = vld [vmem:[#allocation3 + $0x22] sm:$0xff]
      %v6726 = vld [vmem:[#allocation3 + $0x2a] sm:$0xff]
      %v6727 = vld [vmem:[#allocation3 + $0x32] sm:$0xff]
      %v6728 = vld [vmem:[#allocation3 + $0x3a] sm:$0xff]
      %v6729 = vld [vmem:[#allocation3 + $0x42] sm:$0xff]
      %v6730 = vld [vmem:[#allocation3 + $0x4a] sm:$0xff]
      %v6731 = vld [vmem:[#allocation3 + $0x52] sm:$0xff]
      %v6732 = vld [vmem:[#allocation3 + $0x5a] sm:$0xff]
      %v6733 = vld [vmem:[#allocation3 + $0x62] sm:$0xff]
      %v6734 = vld [vmem:[#allocation3 + $0x6a] sm:$0xff]
      %v6735 = vld [vmem:[#allocation3 + $0x72] sm:$0xff]
      %v6736 = vld [vmem:[#allocation3 + $0x7a] sm:$0xff]
      %v6737 = vld [vmem:[#allocation3 + $0x82] sm:$0xff]
      %v6738 = vld [vmem:[#allocation3 + $0x8a] sm:$0xff]
      %v6739 = vld [vmem:[#allocation3 + $0x92] sm:$0xff]
      %v6740 = vld [vmem:[#allocation3 + $0x9a] sm:$0xff]
      %v6741 = vld [vmem:[#allocation3 + $0xa2] sm:$0xff]
      %v6742 = vld [vmem:[#allocation3 + $0xaa] sm:$0xff]
      %v6743 = vld [vmem:[#allocation3 + $0xb2] sm:$0xff]
      %v6744 = vld [vmem:[#allocation3 + $0xba] sm:$0xff]
      %v6745 = vld [vmem:[#allocation3 + $0xc2] sm:$0xff]
      %v6746 = vld [vmem:[#allocation3 + $0xca] sm:$0xff]
      %v6747 = vld [vmem:[#allocation3 + $0xd2] sm:$0xff]
      %v6748 = vld [vmem:[#allocation3 + $0xda] sm:$0xff]
      %v6749 = vld [vmem:[#allocation3 + $0xe2] sm:$0xff]
      %v6750 = vld [vmem:[#allocation3 + $0xea] sm:$0xff]
      %v6751 = vld [vmem:[#allocation3 + $0xf2] sm:$0xff]
      %v6752 = vld [vmem:[#allocation3 + $0xfa] sm:$0xff]
      %v6753 = vld [vmem:[#allocation3 + $0x102] sm:$0xff]
      %v6754 = vld [vmem:[#allocation3 + $0x10a] sm:$0xff]
      %v6755 = vld [vmem:[#allocation3 + $0x112] sm:$0xff]
      %v6756 = vld [vmem:[#allocation3 + $0x11a] sm:$0xff]
      %v6757 = vld [vmem:[#allocation3 + $0x122] sm:$0xff]
      %v6758 = vld [vmem:[#allocation3 + $0x12a] sm:$0xff]
      %v6759 = vld [vmem:[#allocation3 + $0x132] sm:$0xff]
      %v6760 = vld [vmem:[#allocation3 + $0x13a] sm:$0xff]
      %v6761 = vld [vmem:[#allocation3 + $0x142] sm:$0xff]
      %v6762 = vlaneseq
      %v6763 = vshrl.u32 %v6762, 7
      %v6764 = vsub.s32 4, %v6763
      %v6765 = vrot.slane %v4974, %v6764
      %v6766 = vmul.f32 %v6722, %v6765
      %v6767 = vmul.f32 %v6723, %v6765
      %v6768 = vmul.f32 %v6724, %v6765
      %v6769 = vmul.f32 %v6725, %v6765
      %v6770 = vmul.f32 %v6726, %v6765
      %v6771 = vmul.f32 %v6727, %v6765
      %v6772 = vmul.f32 %v6728, %v6765
      %v6773 = vmul.f32 %v6729, %v6765
      %v6774 = vmul.f32 %v6730, %v6765
      %v6775 = vmul.f32 %v6731, %v6765
      %v6776 = vmul.f32 %v6732, %v6765
      %v6777 = vmul.f32 %v6733, %v6765
      %v6778 = vmul.f32 %v6734, %v6765
      %v6779 = vmul.f32 %v6735, %v6765
      %v6780 = vmul.f32 %v6736, %v6765
      %v6781 = vmul.f32 %v6737, %v6765
      %v6782 = vmul.f32 %v6738, %v6765
      %v6783 = vmul.f32 %v6739, %v6765
      %v6784 = vmul.f32 %v6740, %v6765
      %v6785 = vmul.f32 %v6741, %v6765
      %v6786 = vmul.f32 %v6742, %v6765
      %v6787 = vmul.f32 %v6743, %v6765
      %v6788 = vmul.f32 %v6744, %v6765
      %v6789 = vmul.f32 %v6745, %v6765
      %v6790 = vmul.f32 %v6746, %v6765
      %v6791 = vmul.f32 %v6747, %v6765
      %v6792 = vmul.f32 %v6748, %v6765
      %v6793 = vmul.f32 %v6749, %v6765
      %v6794 = vmul.f32 %v6750, %v6765
      %v6795 = vmul.f32 %v6751, %v6765
      %v6796 = vmul.f32 %v6752, %v6765
      %v6797 = vmul.f32 %v6753, %v6765
      %v6798 = vadd.f32 %v6766, 0.0
      %v6799 = vadd.f32 %v6767, 0.0
      %v6800 = vadd.f32 %v6768, 0.0
      %v6801 = vadd.f32 %v6769, 0.0
      %v6802 = vadd.f32 %v6770, 0.0
      %v6803 = vadd.f32 %v6771, 0.0
      %v6804 = vadd.f32 %v6772, 0.0
      %v6805 = vadd.f32 %v6773, 0.0
      %v6806 = vadd.f32 %v6774, 0.0
      %v6807 = vadd.f32 %v6775, 0.0
      %v6808 = vadd.f32 %v6776, 0.0
      %v6809 = vadd.f32 %v6777, 0.0
      %v6810 = vadd.f32 %v6778, 0.0
      %v6811 = vadd.f32 %v6779, 0.0
      %v6812 = vadd.f32 %v6780, 0.0
      %v6813 = vadd.f32 %v6781, 0.0
      %v6814 = vadd.f32 %v6782, 0.0
      %v6815 = vadd.f32 %v6783, 0.0
      %v6816 = vadd.f32 %v6784, 0.0
      %v6817 = vadd.f32 %v6785, 0.0
      %v6818 = vadd.f32 %v6786, 0.0
      %v6819 = vadd.f32 %v6787, 0.0
      %v6820 = vadd.f32 %v6788, 0.0
      %v6821 = vadd.f32 %v6789, 0.0
      %v6822 = vadd.f32 %v6790, 0.0
      %v6823 = vadd.f32 %v6791, 0.0
      %v6824 = vadd.f32 %v6792, 0.0
      %v6825 = vadd.f32 %v6793, 0.0
      %v6826 = vadd.f32 %v6794, 0.0
      %v6827 = vadd.f32 %v6795, 0.0
      %v6828 = vadd.f32 %v6796, 0.0
      %v6829 = vadd.f32 %v6797, 0.0
      %v6830 = vlaneseq
      %v6831 = vshrl.u32 %v6830, 7
      %v6832 = vsub.s32 1, %v6831
      %v6833 = vrot.slane %v4975, %v6832
      %v6834 = vmul.f32 %v6724, %v6833
      %v6835 = vmul.f32 %v6725, %v6833
      %v6836 = vmul.f32 %v6726, %v6833
      %v6837 = vmul.f32 %v6727, %v6833
      %v6838 = vmul.f32 %v6728, %v6833
      %v6839 = vmul.f32 %v6729, %v6833
      %v6840 = vmul.f32 %v6730, %v6833
      %v6841 = vmul.f32 %v6731, %v6833
      %v6842 = vmul.f32 %v6732, %v6833
      %v6843 = vmul.f32 %v6733, %v6833
      %v6844 = vmul.f32 %v6734, %v6833
      %v6845 = vmul.f32 %v6735, %v6833
      %v6846 = vmul.f32 %v6736, %v6833
      %v6847 = vmul.f32 %v6737, %v6833
      %v6848 = vmul.f32 %v6738, %v6833
      %v6849 = vmul.f32 %v6739, %v6833
      %v6850 = vmul.f32 %v6740, %v6833
      %v6851 = vmul.f32 %v6741, %v6833
      %v6852 = vmul.f32 %v6742, %v6833
      %v6853 = vmul.f32 %v6743, %v6833
      %v6854 = vmul.f32 %v6744, %v6833
      %v6855 = vmul.f32 %v6745, %v6833
      %v6856 = vmul.f32 %v6746, %v6833
      %v6857 = vmul.f32 %v6747, %v6833
      %v6858 = vmul.f32 %v6748, %v6833
      %v6859 = vmul.f32 %v6749, %v6833
      %v6860 = vmul.f32 %v6750, %v6833
      %v6861 = vmul.f32 %v6751, %v6833
      %v6862 = vmul.f32 %v6752, %v6833
      %v6863 = vmul.f32 %v6753, %v6833
      %v6864 = vmul.f32 %v6754, %v6833
      %v6865 = vmul.f32 %v6755, %v6833
      %v6866 = vadd.f32 %v6798, %v6834
      %v6867 = vadd.f32 %v6799, %v6835
      %v6868 = vadd.f32 %v6800, %v6836
      %v6869 = vadd.f32 %v6801, %v6837
      %v6870 = vadd.f32 %v6802, %v6838
      %v6871 = vadd.f32 %v6803, %v6839
      %v6872 = vadd.f32 %v6804, %v6840
      %v6873 = vadd.f32 %v6805, %v6841
      %v6874 = vadd.f32 %v6806, %v6842
      %v6875 = vadd.f32 %v6807, %v6843
      %v6876 = vadd.f32 %v6808, %v6844
      %v6877 = vadd.f32 %v6809, %v6845
      %v6878 = vadd.f32 %v6810, %v6846
      %v6879 = vadd.f32 %v6811, %v6847
      %v6880 = vadd.f32 %v6812, %v6848
      %v6881 = vadd.f32 %v6813, %v6849
      %v6882 = vadd.f32 %v6814, %v6850
      %v6883 = vadd.f32 %v6815, %v6851
      %v6884 = vadd.f32 %v6816, %v6852
      %v6885 = vadd.f32 %v6817, %v6853
      %v6886 = vadd.f32 %v6818, %v6854
      %v6887 = vadd.f32 %v6819, %v6855
      %v6888 = vadd.f32 %v6820, %v6856
      %v6889 = vadd.f32 %v6821, %v6857
      %v6890 = vadd.f32 %v6822, %v6858
      %v6891 = vadd.f32 %v6823, %v6859
      %v6892 = vadd.f32 %v6824, %v6860
      %v6893 = vadd.f32 %v6825, %v6861
      %v6894 = vadd.f32 %v6826, %v6862
      %v6895 = vadd.f32 %v6827, %v6863
      %v6896 = vadd.f32 %v6828, %v6864
      %v6897 = vadd.f32 %v6829, %v6865
      %v6898 = vlaneseq
      %v6899 = vshrl.u32 %v6898, 7
      %v6900 = vsub.s32 6, %v6899
      %v6901 = vrot.slane %v4975, %v6900
      %v6902 = vmul.f32 %v6726, %v6901
      %v6903 = vmul.f32 %v6727, %v6901
      %v6904 = vmul.f32 %v6728, %v6901
      %v6905 = vmul.f32 %v6729, %v6901
      %v6906 = vmul.f32 %v6730, %v6901
      %v6907 = vmul.f32 %v6731, %v6901
      %v6908 = vmul.f32 %v6732, %v6901
      %v6909 = vmul.f32 %v6733, %v6901
      %v6910 = vmul.f32 %v6734, %v6901
      %v6911 = vmul.f32 %v6735, %v6901
      %v6912 = vmul.f32 %v6736, %v6901
      %v6913 = vmul.f32 %v6737, %v6901
      %v6914 = vmul.f32 %v6738, %v6901
      %v6915 = vmul.f32 %v6739, %v6901
      %v6916 = vmul.f32 %v6740, %v6901
      %v6917 = vmul.f32 %v6741, %v6901
      %v6918 = vmul.f32 %v6742, %v6901
      %v6919 = vmul.f32 %v6743, %v6901
      %v6920 = vmul.f32 %v6744, %v6901
      %v6921 = vmul.f32 %v6745, %v6901
      %v6922 = vmul.f32 %v6746, %v6901
      %v6923 = vmul.f32 %v6747, %v6901
      %v6924 = vmul.f32 %v6748, %v6901
      %v6925 = vmul.f32 %v6749, %v6901
      %v6926 = vmul.f32 %v6750, %v6901
      %v6927 = vmul.f32 %v6751, %v6901
      %v6928 = vmul.f32 %v6752, %v6901
      %v6929 = vmul.f32 %v6753, %v6901
      %v6930 = vmul.f32 %v6754, %v6901
      %v6931 = vmul.f32 %v6755, %v6901
      %v6932 = vmul.f32 %v6756, %v6901
      %v6933 = vmul.f32 %v6757, %v6901
      %v6934 = vadd.f32 %v6866, %v6902
      %v6935 = vadd.f32 %v6867, %v6903
      %v6936 = vadd.f32 %v6868, %v6904
      %v6937 = vadd.f32 %v6869, %v6905
      %v6938 = vadd.f32 %v6870, %v6906
      %v6939 = vadd.f32 %v6871, %v6907
      %v6940 = vadd.f32 %v6872, %v6908
      %v6941 = vadd.f32 %v6873, %v6909
      %v6942 = vadd.f32 %v6874, %v6910
      %v6943 = vadd.f32 %v6875, %v6911
      %v6944 = vadd.f32 %v6876, %v6912
      %v6945 = vadd.f32 %v6877, %v6913
      %v6946 = vadd.f32 %v6878, %v6914
      %v6947 = vadd.f32 %v6879, %v6915
      %v6948 = vadd.f32 %v6880, %v6916
      %v6949 = vadd.f32 %v6881, %v6917
      %v6950 = vadd.f32 %v6882, %v6918
      %v6951 = vadd.f32 %v6883, %v6919
      %v6952 = vadd.f32 %v6884, %v6920
      %v6953 = vadd.f32 %v6885, %v6921
      %v6954 = vadd.f32 %v6886, %v6922
      %v6955 = vadd.f32 %v6887, %v6923
      %v6956 = vadd.f32 %v6888, %v6924
      %v6957 = vadd.f32 %v6889, %v6925
      %v6958 = vadd.f32 %v6890, %v6926
      %v6959 = vadd.f32 %v6891, %v6927
      %v6960 = vadd.f32 %v6892, %v6928
      %v6961 = vadd.f32 %v6893, %v6929
      %v6962 = vadd.f32 %v6894, %v6930
      %v6963 = vadd.f32 %v6895, %v6931
      %v6964 = vadd.f32 %v6896, %v6932
      %v6965 = vadd.f32 %v6897, %v6933
      %v6966 = vlaneseq
      %v6967 = vshrl.u32 %v6966, 7
      %v6968 = vsub.s32 3, %v6967
      %v6969 = vrot.slane %v4976, %v6968
      %v6970 = vmul.f32 %v6728, %v6969
      %v6971 = vmul.f32 %v6729, %v6969
      %v6972 = vmul.f32 %v6730, %v6969
      %v6973 = vmul.f32 %v6731, %v6969
      %v6974 = vmul.f32 %v6732, %v6969
      %v6975 = vmul.f32 %v6733, %v6969
      %v6976 = vmul.f32 %v6734, %v6969
      %v6977 = vmul.f32 %v6735, %v6969
      %v6978 = vmul.f32 %v6736, %v6969
      %v6979 = vmul.f32 %v6737, %v6969
      %v6980 = vmul.f32 %v6738, %v6969
      %v6981 = vmul.f32 %v6739, %v6969
      %v6982 = vmul.f32 %v6740, %v6969
      %v6983 = vmul.f32 %v6741, %v6969
      %v6984 = vmul.f32 %v6742, %v6969
      %v6985 = vmul.f32 %v6743, %v6969
      %v6986 = vmul.f32 %v6744, %v6969
      %v6987 = vmul.f32 %v6745, %v6969
      %v6988 = vmul.f32 %v6746, %v6969
      %v6989 = vmul.f32 %v6747, %v6969
      %v6990 = vmul.f32 %v6748, %v6969
      %v6991 = vmul.f32 %v6749, %v6969
      %v6992 = vmul.f32 %v6750, %v6969
      %v6993 = vmul.f32 %v6751, %v6969
      %v6994 = vmul.f32 %v6752, %v6969
      %v6995 = vmul.f32 %v6753, %v6969
      %v6996 = vmul.f32 %v6754, %v6969
      %v6997 = vmul.f32 %v6755, %v6969
      %v6998 = vmul.f32 %v6756, %v6969
      %v6999 = vmul.f32 %v6757, %v6969
      %v7000 = vmul.f32 %v6758, %v6969
      %v7001 = vmul.f32 %v6759, %v6969
      %v7002 = vadd.f32 %v6934, %v6970
      %v7003 = vadd.f32 %v6935, %v6971
      %v7004 = vadd.f32 %v6936, %v6972
      %v7005 = vadd.f32 %v6937, %v6973
      %v7006 = vadd.f32 %v6938, %v6974
      %v7007 = vadd.f32 %v6939, %v6975
      %v7008 = vadd.f32 %v6940, %v6976
      %v7009 = vadd.f32 %v6941, %v6977
      %v7010 = vadd.f32 %v6942, %v6978
      %v7011 = vadd.f32 %v6943, %v6979
      %v7012 = vadd.f32 %v6944, %v6980
      %v7013 = vadd.f32 %v6945, %v6981
      %v7014 = vadd.f32 %v6946, %v6982
      %v7015 = vadd.f32 %v6947, %v6983
      %v7016 = vadd.f32 %v6948, %v6984
      %v7017 = vadd.f32 %v6949, %v6985
      %v7018 = vadd.f32 %v6950, %v6986
      %v7019 = vadd.f32 %v6951, %v6987
      %v7020 = vadd.f32 %v6952, %v6988
      %v7021 = vadd.f32 %v6953, %v6989
      %v7022 = vadd.f32 %v6954, %v6990
      %v7023 = vadd.f32 %v6955, %v6991
      %v7024 = vadd.f32 %v6956, %v6992
      %v7025 = vadd.f32 %v6957, %v6993
      %v7026 = vadd.f32 %v6958, %v6994
      %v7027 = vadd.f32 %v6959, %v6995
      %v7028 = vadd.f32 %v6960, %v6996
      %v7029 = vadd.f32 %v6961, %v6997
      %v7030 = vadd.f32 %v6962, %v6998
      %v7031 = vadd.f32 %v6963, %v6999
      %v7032 = vadd.f32 %v6964, %v7000
      %v7033 = vadd.f32 %v6965, %v7001
      %v7034 = vlaneseq
      %v7035 = vshrl.u32 %v7034, 7
      %v7036 = vsub.s32 0, %v7035
      %v7037 = vrot.slane %v4977, %v7036
      %v7038 = vmul.f32 %v6730, %v7037
      %v7039 = vmul.f32 %v6731, %v7037
      %v7040 = vmul.f32 %v6732, %v7037
      %v7041 = vmul.f32 %v6733, %v7037
      %v7042 = vmul.f32 %v6734, %v7037
      %v7043 = vmul.f32 %v6735, %v7037
      %v7044 = vmul.f32 %v6736, %v7037
      %v7045 = vmul.f32 %v6737, %v7037
      %v7046 = vmul.f32 %v6738, %v7037
      %v7047 = vmul.f32 %v6739, %v7037
      %v7048 = vmul.f32 %v6740, %v7037
      %v7049 = vmul.f32 %v6741, %v7037
      %v7050 = vmul.f32 %v6742, %v7037
      %v7051 = vmul.f32 %v6743, %v7037
      %v7052 = vmul.f32 %v6744, %v7037
      %v7053 = vmul.f32 %v6745, %v7037
      %v7054 = vmul.f32 %v6746, %v7037
      %v7055 = vmul.f32 %v6747, %v7037
      %v7056 = vmul.f32 %v6748, %v7037
      %v7057 = vmul.f32 %v6749, %v7037
      %v7058 = vmul.f32 %v6750, %v7037
      %v7059 = vmul.f32 %v6751, %v7037
      %v7060 = vmul.f32 %v6752, %v7037
      %v7061 = vmul.f32 %v6753, %v7037
      %v7062 = vmul.f32 %v6754, %v7037
      %v7063 = vmul.f32 %v6755, %v7037
      %v7064 = vmul.f32 %v6756, %v7037
      %v7065 = vmul.f32 %v6757, %v7037
      %v7066 = vmul.f32 %v6758, %v7037
      %v7067 = vmul.f32 %v6759, %v7037
      %v7068 = vmul.f32 %v6760, %v7037
      %v7069 = vmul.f32 %v6761, %v7037
      %v7070 = vadd.f32 %v7002, %v7038
      %v7071 = vadd.f32 %v7003, %v7039
      %v7072 = vadd.f32 %v7004, %v7040
      %v7073 = vadd.f32 %v7005, %v7041
      %v7074 = vadd.f32 %v7006, %v7042
      %v7075 = vadd.f32 %v7007, %v7043
      %v7076 = vadd.f32 %v7008, %v7044
      %v7077 = vadd.f32 %v7009, %v7045
      %v7078 = vadd.f32 %v7010, %v7046
      %v7079 = vadd.f32 %v7011, %v7047
      %v7080 = vadd.f32 %v7012, %v7048
      %v7081 = vadd.f32 %v7013, %v7049
      %v7082 = vadd.f32 %v7014, %v7050
      %v7083 = vadd.f32 %v7015, %v7051
      %v7084 = vadd.f32 %v7016, %v7052
      %v7085 = vadd.f32 %v7017, %v7053
      %v7086 = vadd.f32 %v7018, %v7054
      %v7087 = vadd.f32 %v7019, %v7055
      %v7088 = vadd.f32 %v7020, %v7056
      %v7089 = vadd.f32 %v7021, %v7057
      %v7090 = vadd.f32 %v7022, %v7058
      %v7091 = vadd.f32 %v7023, %v7059
      %v7092 = vadd.f32 %v7024, %v7060
      %v7093 = vadd.f32 %v7025, %v7061
      %v7094 = vadd.f32 %v7026, %v7062
      %v7095 = vadd.f32 %v7027, %v7063
      %v7096 = vadd.f32 %v7028, %v7064
      %v7097 = vadd.f32 %v7029, %v7065
      %v7098 = vadd.f32 %v7030, %v7066
      %v7099 = vadd.f32 %v7031, %v7067
      %v7100 = vadd.f32 %v7032, %v7068
      %v7101 = vadd.f32 %v7033, %v7069
      %v7102 = vmul.f32 %v7070, %v3742
      %v7103 = vmul.f32 %v7071, %v3746
      %v7104 = vmul.f32 %v7072, %v3750
      %v7105 = vmul.f32 %v7073, %v3754
      %v7106 = vmul.f32 %v7074, %v3758
      %v7107 = vmul.f32 %v7075, %v3762
      %v7108 = vmul.f32 %v7076, %v3766
      %v7109 = vmul.f32 %v7077, %v3770
      %v7110 = vmul.f32 %v7078, %v3774
      %v7111 = vmul.f32 %v7079, %v3778
      %v7112 = vmul.f32 %v7080, %v3782
      %v7113 = vmul.f32 %v7081, %v3786
      %v7114 = vmul.f32 %v7082, %v3790
      %v7115 = vmul.f32 %v7083, %v3794
      %v7116 = vmul.f32 %v7084, %v3798
      %v7117 = vmul.f32 %v7085, %v3802
      %v7118 = vmul.f32 %v7086, %v3806
      %v7119 = vmul.f32 %v7087, %v3810
      %v7120 = vmul.f32 %v7088, %v3814
      %v7121 = vmul.f32 %v7089, %v3818
      %v7122 = vmul.f32 %v7090, %v3822
      %v7123 = vmul.f32 %v7091, %v3826
      %v7124 = vmul.f32 %v7092, %v3830
      %v7125 = vmul.f32 %v7093, %v3834
      %v7126 = vmul.f32 %v7094, %v3838
      %v7127 = vmul.f32 %v7095, %v3842
      %v7128 = vmul.f32 %v7096, %v3846
      %v7129 = vmul.f32 %v7097, %v3850
      %v7130 = vmul.f32 %v7098, %v3854
      %v7131 = vmul.f32 %v7099, %v3858
      %v7132 = vmul.f32 %v7100, %v3862
      %v7133 = vmul.f32 %v7101, %v3866
      %v7134 = vadd.f32 %v6690, %v7102
      %v7135 = vadd.f32 %v6691, %v7103
      %v7136 = vadd.f32 %v6692, %v7104
      %v7137 = vadd.f32 %v6693, %v7105
      %v7138 = vadd.f32 %v6694, %v7106
      %v7139 = vadd.f32 %v6695, %v7107
      %v7140 = vadd.f32 %v6696, %v7108
      %v7141 = vadd.f32 %v6697, %v7109
      %v7142 = vadd.f32 %v6698, %v7110
      %v7143 = vadd.f32 %v6699, %v7111
      %v7144 = vadd.f32 %v6700, %v7112
      %v7145 = vadd.f32 %v6701, %v7113
      %v7146 = vadd.f32 %v6702, %v7114
      %v7147 = vadd.f32 %v6703, %v7115
      %v7148 = vadd.f32 %v6704, %v7116
      %v7149 = vadd.f32 %v6705, %v7117
      %v7150 = vadd.f32 %v6706, %v7118
      %v7151 = vadd.f32 %v6707, %v7119
      %v7152 = vadd.f32 %v6708, %v7120
      %v7153 = vadd.f32 %v6709, %v7121
      %v7154 = vadd.f32 %v6710, %v7122
      %v7155 = vadd.f32 %v6711, %v7123
      %v7156 = vadd.f32 %v6712, %v7124
      %v7157 = vadd.f32 %v6713, %v7125
      %v7158 = vadd.f32 %v6714, %v7126
      %v7159 = vadd.f32 %v6715, %v7127
      %v7160 = vadd.f32 %v6716, %v7128
      %v7161 = vadd.f32 %v6717, %v7129
      %v7162 = vadd.f32 %v6718, %v7130
      %v7163 = vadd.f32 %v6719, %v7131
      %v7164 = vadd.f32 %v6720, %v7132
      %v7165 = vadd.f32 %v6721, %v7133
      %v7166 = vld [vmem:[%s13] sm:$0x1]
      %v7168 = vlaneseq
      %v7169 = vshrl.u32 %v7168, 7
      %v7170 = vsub.s32 0, %v7169
      %v7171 = vrot.slane %v7166, %v7170
      %v7173 = vmul.f32 %v7134, %v7171
      %v7174 = vmul.f32 %v7135, %v7171
      %v7175 = vmul.f32 %v7136, %v7171
      %v7176 = vmul.f32 %v7137, %v7171
      %v7177 = vmul.f32 %v7138, %v7171
      %v7178 = vmul.f32 %v7139, %v7171
      %v7179 = vmul.f32 %v7140, %v7171
      %v7180 = vmul.f32 %v7141, %v7171
      %v7181 = vmul.f32 %v7142, %v7171
      %v7182 = vmul.f32 %v7143, %v7171
      %v7183 = vmul.f32 %v7144, %v7171
      %v7184 = vmul.f32 %v7145, %v7171
      %v7185 = vmul.f32 %v7146, %v7171
      %v7186 = vmul.f32 %v7147, %v7171
      %v7187 = vmul.f32 %v7148, %v7171
      %v7188 = vmul.f32 %v7149, %v7171
      %v7189 = vmul.f32 %v7150, %v7171
      %v7190 = vmul.f32 %v7151, %v7171
      %v7191 = vmul.f32 %v7152, %v7171
      %v7192 = vmul.f32 %v7153, %v7171
      %v7193 = vmul.f32 %v7154, %v7171
      %v7194 = vmul.f32 %v7155, %v7171
      %v7195 = vmul.f32 %v7156, %v7171
      %v7196 = vmul.f32 %v7157, %v7171
      %v7197 = vmul.f32 %v7158, %v7171
      %v7198 = vmul.f32 %v7159, %v7171
      %v7199 = vmul.f32 %v7160, %v7171
      %v7200 = vmul.f32 %v7161, %v7171
      %v7201 = vmul.f32 %v7162, %v7171
      %v7202 = vmul.f32 %v7163, %v7171
      %v7203 = vmul.f32 %v7164, %v7171
      %v7204 = vmul.f32 %v7165, %v7171
      %v7205 = vld [vmem:[%s14] sm:$0x1]
      %v7207 = vlaneseq
      %v7208 = vshrl.u32 %v7207, 7
      %v7209 = vsub.s32 0, %v7208
      %v7210 = vrot.slane %v7205, %v7209
      %v7212 = vadd.f32 %v7173, %v7210
      %v7213 = vadd.f32 %v7174, %v7210
      %v7214 = vadd.f32 %v7175, %v7210
      %v7215 = vadd.f32 %v7176, %v7210
      %v7216 = vadd.f32 %v7177, %v7210
      %v7217 = vadd.f32 %v7178, %v7210
      %v7218 = vadd.f32 %v7179, %v7210
      %v7219 = vadd.f32 %v7180, %v7210
      %v7220 = vadd.f32 %v7181, %v7210
      %v7221 = vadd.f32 %v7182, %v7210
      %v7222 = vadd.f32 %v7183, %v7210
      %v7223 = vadd.f32 %v7184, %v7210
      %v7224 = vadd.f32 %v7185, %v7210
      %v7225 = vadd.f32 %v7186, %v7210
      %v7226 = vadd.f32 %v7187, %v7210
      %v7227 = vadd.f32 %v7188, %v7210
      %v7228 = vadd.f32 %v7189, %v7210
      %v7229 = vadd.f32 %v7190, %v7210
      %v7230 = vadd.f32 %v7191, %v7210
      %v7231 = vadd.f32 %v7192, %v7210
      %v7232 = vadd.f32 %v7193, %v7210
      %v7233 = vadd.f32 %v7194, %v7210
      %v7234 = vadd.f32 %v7195, %v7210
      %v7235 = vadd.f32 %v7196, %v7210
      %v7236 = vadd.f32 %v7197, %v7210
      %v7237 = vadd.f32 %v7198, %v7210
      %v7238 = vadd.f32 %v7199, %v7210
      %v7239 = vadd.f32 %v7200, %v7210
      %v7240 = vadd.f32 %v7201, %v7210
      %v7241 = vadd.f32 %v7202, %v7210
      %v7242 = vadd.f32 %v7203, %v7210
      %v7243 = vadd.f32 %v7204, %v7210
      %7276 = vrot.lane.b32.xlu0 %v7212, 8
      %v7277 = vpop.permute.xlu0 %7276
      %7278 = vrot.lane.b32.xlu0 %v7213, 8
      %v7279 = vpop.permute.xlu0 %7278
      %7280 = vrot.lane.b32.xlu0 %v7214, 8
      %v7281 = vpop.permute.xlu0 %7280
      %7282 = vrot.lane.b32.xlu0 %v7215, 8
      %v7283 = vpop.permute.xlu0 %7282
      %7284 = vrot.lane.b32.xlu0 %v7216, 8
      %v7285 = vpop.permute.xlu0 %7284
      %7286 = vrot.lane.b32.xlu0 %v7217, 8
      %v7287 = vpop.permute.xlu0 %7286
      %7288 = vrot.lane.b32.xlu0 %v7218, 8
      %v7289 = vpop.permute.xlu0 %7288
      %7290 = vrot.lane.b32.xlu0 %v7219, 8
      %v7291 = vpop.permute.xlu0 %7290
      %7292 = vrot.lane.b32.xlu0 %v7220, 8
      %v7293 = vpop.permute.xlu0 %7292
      %7294 = vrot.lane.b32.xlu0 %v7221, 8
      %v7295 = vpop.permute.xlu0 %7294
      %7296 = vrot.lane.b32.xlu0 %v7222, 8
      %v7297 = vpop.permute.xlu0 %7296
      %7298 = vrot.lane.b32.xlu0 %v7223, 8
      %v7299 = vpop.permute.xlu0 %7298
      %7300 = vrot.lane.b32.xlu0 %v7224, 8
      %v7301 = vpop.permute.xlu0 %7300
      %7302 = vrot.lane.b32.xlu0 %v7225, 8
      %v7303 = vpop.permute.xlu0 %7302
      %7304 = vrot.lane.b32.xlu0 %v7226, 8
      %v7305 = vpop.permute.xlu0 %7304
      %7306 = vrot.lane.b32.xlu0 %v7227, 8
      %v7307 = vpop.permute.xlu0 %7306
      %7308 = vrot.lane.b32.xlu0 %v7228, 8
      %v7309 = vpop.permute.xlu0 %7308
      %7310 = vrot.lane.b32.xlu0 %v7229, 8
      %v7311 = vpop.permute.xlu0 %7310
      %7312 = vrot.lane.b32.xlu0 %v7230, 8
      %v7313 = vpop.permute.xlu0 %7312
      %7314 = vrot.lane.b32.xlu0 %v7231, 8
      %v7315 = vpop.permute.xlu0 %7314
      %7316 = vrot.lane.b32.xlu0 %v7232, 8
      %v7317 = vpop.permute.xlu0 %7316
      %7318 = vrot.lane.b32.xlu0 %v7233, 8
      %v7319 = vpop.permute.xlu0 %7318
      %7320 = vrot.lane.b32.xlu0 %v7234, 8
      %v7321 = vpop.permute.xlu0 %7320
      %7322 = vrot.lane.b32.xlu0 %v7235, 8
      %v7323 = vpop.permute.xlu0 %7322
      %7324 = vrot.lane.b32.xlu0 %v7236, 8
      %v7325 = vpop.permute.xlu0 %7324
      %7326 = vrot.lane.b32.xlu0 %v7237, 8
      %v7327 = vpop.permute.xlu0 %7326
      %7328 = vrot.lane.b32.xlu0 %v7238, 8
      %v7329 = vpop.permute.xlu0 %7328
      %7330 = vrot.lane.b32.xlu0 %v7239, 8
      %v7331 = vpop.permute.xlu0 %7330
      %7332 = vrot.lane.b32.xlu0 %v7240, 8
      %v7333 = vpop.permute.xlu0 %7332
      %7334 = vrot.lane.b32.xlu0 %v7241, 8
      %v7335 = vpop.permute.xlu0 %7334
      %7336 = vrot.lane.b32.xlu0 %v7242, 8
      %v7337 = vpop.permute.xlu0 %7336
      %7338 = vrot.lane.b32.xlu0 %v7243, 8
      %v7339 = vpop.permute.xlu0 %7338
      %v7372 = vsel %vm4931, %v4899, %v7277
      %v7373 = vsel %vm4931, %v4900, %v7279
      %v7374 = vsel %vm4931, %v4901, %v7281
      %v7375 = vsel %vm4931, %v4902, %v7283
      %v7376 = vsel %vm4931, %v4903, %v7285
      %v7377 = vsel %vm4931, %v4904, %v7287
      %v7378 = vsel %vm4931, %v4905, %v7289
      %v7379 = vsel %vm4931, %v4906, %v7291
      %v7380 = vsel %vm4931, %v4907, %v7293
      %v7381 = vsel %vm4931, %v4908, %v7295
      %v7382 = vsel %vm4931, %v4909, %v7297
      %v7383 = vsel %vm4931, %v4910, %v7299
      %v7384 = vsel %vm4931, %v4911, %v7301
      %v7385 = vsel %vm4931, %v4912, %v7303
      %v7386 = vsel %vm4931, %v4913, %v7305
      %v7387 = vsel %vm4931, %v4914, %v7307
      %v7388 = vsel %vm4931, %v4915, %v7309
      %v7389 = vsel %vm4931, %v4916, %v7311
      %v7390 = vsel %vm4931, %v4917, %v7313
      %v7391 = vsel %vm4931, %v4918, %v7315
      %v7392 = vsel %vm4931, %v4919, %v7317
      %v7393 = vsel %vm4931, %v4920, %v7319
      %v7394 = vsel %vm4931, %v4921, %v7321
      %v7395 = vsel %vm4931, %v4922, %v7323
      %v7396 = vsel %vm4931, %v4923, %v7325
      %v7397 = vsel %vm4931, %v4924, %v7327
      %v7398 = vsel %vm4931, %v4925, %v7329
      %v7399 = vsel %vm4931, %v4926, %v7331
      %v7400 = vsel %vm4931, %v4927, %v7333
      %v7401 = vsel %vm4931, %v4928, %v7335
      %v7402 = vsel %vm4931, %v4929, %v7337
      %v7403 = vsel %vm4931, %v4930, %v7339
      %v7404 = vadd.f32 %v7372, %v495
      %v7405 = vadd.f32 %v7373, %v496
      %v7406 = vadd.f32 %v7374, %v497
      %v7407 = vadd.f32 %v7375, %v498
      %v7408 = vadd.f32 %v7376, %v499
      %v7409 = vadd.f32 %v7377, %v500
      %v7410 = vadd.f32 %v7378, %v501
      %v7411 = vadd.f32 %v7379, %v502
      %v7412 = vadd.f32 %v7380, %v503
      %v7413 = vadd.f32 %v7381, %v504
      %v7414 = vadd.f32 %v7382, %v505
      %v7415 = vadd.f32 %v7383, %v506
      %v7416 = vadd.f32 %v7384, %v507
      %v7417 = vadd.f32 %v7385, %v508
      %v7418 = vadd.f32 %v7386, %v509
      %v7419 = vadd.f32 %v7387, %v510
      %v7420 = vadd.f32 %v7388, %v511
      %v7421 = vadd.f32 %v7389, %v512
      %v7422 = vadd.f32 %v7390, %v513
      %v7423 = vadd.f32 %v7391, %v514
      %v7424 = vadd.f32 %v7392, %v515
      %v7425 = vadd.f32 %v7393, %v516
      %v7426 = vadd.f32 %v7394, %v517
      %v7427 = vadd.f32 %v7395, %v518
      %v7428 = vadd.f32 %v7396, %v519
      %v7429 = vadd.f32 %v7397, %v520
      %v7430 = vadd.f32 %v7398, %v521
      %v7431 = vadd.f32 %v7399, %v522
      %v7432 = vadd.f32 %v7400, %v523
      %v7433 = vadd.f32 %v7401, %v524
      %v7434 = vadd.f32 %v7402, %v525
      %v7435 = vadd.f32 %v7403, %v526
      %7436 = vst.msk [vmem:[%s494] sm:$0xff] %vm561, %v7404
      %7437 = vst.msk [vmem:[%s494 + $0x8] sm:$0xff] %vm561, %v7405
      %7438 = vst.msk [vmem:[%s494 + $0x10] sm:$0xff] %vm561, %v7406
      %7439 = vst.msk [vmem:[%s494 + $0x18] sm:$0xff] %vm561, %v7407
      %7440 = vst.msk [vmem:[%s494 + $0x20] sm:$0xff] %vm561, %v7408
      %7441 = vst.msk [vmem:[%s494 + $0x28] sm:$0xff] %vm561, %v7409
      %7442 = vst.msk [vmem:[%s494 + $0x30] sm:$0xff] %vm561, %v7410
      %7443 = vst.msk [vmem:[%s494 + $0x38] sm:$0xff] %vm561, %v7411
      %7444 = vst.msk [vmem:[%s494 + $0x40] sm:$0xff] %vm561, %v7412
      %7445 = vst.msk [vmem:[%s494 + $0x48] sm:$0xff] %vm561, %v7413
      %7446 = vst.msk [vmem:[%s494 + $0x50] sm:$0xff] %vm561, %v7414
      %7447 = vst.msk [vmem:[%s494 + $0x58] sm:$0xff] %vm561, %v7415
      %7448 = vst.msk [vmem:[%s494 + $0x60] sm:$0xff] %vm561, %v7416
      %7449 = vst.msk [vmem:[%s494 + $0x68] sm:$0xff] %vm561, %v7417
      %7450 = vst.msk [vmem:[%s494 + $0x70] sm:$0xff] %vm561, %v7418
      %7451 = vst.msk [vmem:[%s494 + $0x78] sm:$0xff] %vm561, %v7419
      %7452 = vst.msk [vmem:[%s494 + $0x80] sm:$0xff] %vm561, %v7420
      %7453 = vst.msk [vmem:[%s494 + $0x88] sm:$0xff] %vm561, %v7421
      %7454 = vst.msk [vmem:[%s494 + $0x90] sm:$0xff] %vm561, %v7422
      %7455 = vst.msk [vmem:[%s494 + $0x98] sm:$0xff] %vm561, %v7423
      %7456 = vst.msk [vmem:[%s494 + $0xa0] sm:$0xff] %vm561, %v7424
      %7457 = vst.msk [vmem:[%s494 + $0xa8] sm:$0xff] %vm561, %v7425
      %7458 = vst.msk [vmem:[%s494 + $0xb0] sm:$0xff] %vm561, %v7426
      %7459 = vst.msk [vmem:[%s494 + $0xb8] sm:$0xff] %vm561, %v7427
      %7460 = vst.msk [vmem:[%s494 + $0xc0] sm:$0xff] %vm561, %v7428
      %7461 = vst.msk [vmem:[%s494 + $0xc8] sm:$0xff] %vm561, %v7429
      %7462 = vst.msk [vmem:[%s494 + $0xd0] sm:$0xff] %vm561, %v7430
      %7463 = vst.msk [vmem:[%s494 + $0xd8] sm:$0xff] %vm561, %v7431
      %7464 = vst.msk [vmem:[%s494 + $0xe0] sm:$0xff] %vm561, %v7432
      %7465 = vst.msk [vmem:[%s494 + $0xe8] sm:$0xff] %vm561, %v7433
      %7466 = vst.msk [vmem:[%s494 + $0xf0] sm:$0xff] %vm561, %v7434
      %7467 = vst.msk [vmem:[%s494 + $0xf8] sm:$0xff] %vm561, %v7435
      %p7468 = scmp.lt.s32.totalorder %s26, 1
      %s7469 = scalar_select %p7468, %s26, 1
      %s7470 = smul.addr %s7469, 32
      %s7471 = smul.addr %s7470, 8
      %s7472 = scalar_lea.vmem %s15, %s7471
      // Predicated region
      $region81: #{ghost_bottleneck_forward.1} parent=79 // pred_check
        %p7473 = pneg %p364
      $region82: #{ghost_bottleneck_forward.1} parent=79 // pred_check_branch
        %7475 = sbr.rel (%p7473) target = $region84
      $region83: #{ghost_bottleneck_forward.1} parent=79 // pred_region
        _
      $region84: #{ghost_bottleneck_forward.1} parent=79 // pred_fallthru
        _
    $region80: #{ghost_bottleneck_forward.1} parent=5 // pred_fallthru
      _
    %p7476 = scmp.le.s32.totalorder 2, %s21
    // Predicated region
    $region85: #{ghost_bottleneck_forward.1} parent=5 // pred_check
      %p7477 = pneg %p7476
    $region86: #{ghost_bottleneck_forward.1} parent=5 // pred_check_branch
      %7479 = sbr.rel (%p7477) target = $region88
    $region87: #{ghost_bottleneck_forward.1} parent=5 // pred_region
      %s7480 = ssub.s32 %s21, 2
      // Predicated region
      $region89: #{ghost_bottleneck_forward.1} parent=87 // pred_check
        %p7481 = pneg %p370
      $region90: #{ghost_bottleneck_forward.1} parent=87 // pred_check_branch
        %7483 = sbr.rel (%p7481) target = $region92
      $region91: #{ghost_bottleneck_forward.1} parent=87 // pred_region
        %p7484 = scmp.lt.s32.totalorder %s27, 1
        %s7485 = scalar_select %p7484, %s27, 1
        %s7486 = smul.addr %s7485, 32
        %s7487 = smul.addr %s7486, 8
        %s7488 = scalar_lea.vmem %s15, %s7487
      $region92: #{ghost_bottleneck_forward.1} parent=87 // pred_fallthru
        _
    $region88: #{ghost_bottleneck_forward.1} parent=5 // pred_fallthru
      _
  $region6: #{ghost_bottleneck_forward.1} parent=0 // loop_footer
    %s25 = sadd.s32 1, %s21
  $region7: #{ghost_bottleneck_forward.1} parent=0 // loop_footer_branch
    %20 = sbr.rel target = $region3
  $region8: #{ghost_bottleneck_forward.1} parent=0 // loop_exit
    _

</llo_original>
